<compile_context>
chip_gen: v6e
topology: v6e:2x2x1
jax: 0.10.0
libtpu: 0.0.40
codegen_flags: <defaults>
</compile_context>

<pallas_src>
import jax
import jax.numpy as jnp
from jax.experimental import pallas as pl
from jax.experimental.pallas import tpu as pltpu

N_FEATS = 2      # GCNLSTM(2, 10) -> LSTM input size
SEQ_LEN = 10     # seq_len (layer2 expects 100 = seq_len * hidden)
HIDDEN = 10      # LSTM hidden size
N_LAYERS = 3     # LSTM layers
LIN2_OUT = 50
LIN3_OUT = 2


def net_kernel(adj_ref, feat_ref,
               w0bd_ref, b0t_ref, whh0_ref,
               w1bd_ref, b1t_ref, whh1_ref,
               w2bd_ref, b2t_ref, whh2_ref,
               w_lin2_ref, b_lin2_ref,
               w_lin3_ref, b_lin3_ref,
               out_ref, slab_a, slab_b):
    f32 = jnp.float32
    H = HIDDEN
    T = SEQ_LEN
    adj = adj_ref[...]                       # (Nb, Nb), block-diag over chunk graphs
    nb = adj.shape[0]

    def lstm_layer(gates_all, w_hh, out_slab):
        """One LSTM layer, T unrolled steps.
        gates_all: (Nb, T*4H) precomputed x_t @ W_ih + (b_ih + b_hh), gate column
        order (i, f, o, g); only h @ W_hh is on the serial critical path.
        h_t is written into out_slab[:, t*H:(t+1)*H] (lane-dense (Nb, T*H))."""
        h = jnp.zeros((nb, H), f32)
        c = jnp.zeros((nb, H), f32)
        for t in range(T):
            gates = (gates_all[:, t * 4 * H:(t + 1) * 4 * H]
                     + jnp.dot(h, w_hh, preferred_element_type=f32))
            sig = jax.nn.sigmoid(gates[:, :3 * H])       # i | f | o, one EUP pass
            g_g = jnp.tanh(gates[:, 3 * H:])
            c = sig[:, H:2 * H] * c + sig[:, :H] * g_g
            h = sig[:, 2 * H:3 * H] * jnp.tanh(c)
            out_slab[:, t * H:(t + 1) * H] = h

    # ---- layer1 (GCNLSTM): GCN aggregation fused with the whole-sequence
    # layer-0 gate precompute: two lane-dense MXU ops. ----
    agg = jnp.dot(adj, feat_ref[...], preferred_element_type=f32)           # (Nb, T*F)
    g0 = jnp.dot(agg, w0bd_ref[...], preferred_element_type=f32) + b0t_ref[...]
    lstm_layer(g0, whh0_ref[...], slab_a)

    # LSTM layers 1 & 2: lane-dense h-slab @ block_diag_T(W_ih) gives all
    # timesteps' input projections in one MXU op per layer.
    # TODO(synk): training-mode dropout (p=0.3 between LSTM layers) not implemented.
    g1 = jnp.dot(slab_a[...], w1bd_ref[...], preferred_element_type=f32) + b1t_ref[...]
    lstm_layer(g1, whh1_ref[...], slab_b)

    g2 = jnp.dot(slab_b[...], w2bd_ref[...], preferred_element_type=f32) + b2t_ref[...]
    lstm_layer(g2, whh2_ref[...], slab_a)

    # x.contiguous().view(n_nodes, -1): slab_a already IS the (Nb, T*H) flatten.
    x_flat = slab_a[...]

    # ---- layer2 (GCNLinear 100 -> 50) + ReLU ----
    agg2 = jnp.dot(adj, x_flat, preferred_element_type=f32)
    y2 = jnp.dot(agg2, w_lin2_ref[...], preferred_element_type=f32) + b_lin2_ref[...]
    y2 = jnp.maximum(y2, 0.0)

    # ---- layer3 (GCNLinear 50 -> 2) + Sigmoid ----
    agg3 = jnp.dot(adj, y2, preferred_element_type=f32)
    y3 = jnp.dot(agg3, w_lin3_ref[...], preferred_element_type=f32) + b_lin3_ref[...]
    out_ref[...] = jax.nn.sigmoid(y3)


def init_params(key):
    """Deterministic parameter init (PyTorch-style uniform bounds).

    LSTM weights are stored transposed (x @ W_ih, h @ W_hh) with gate columns in
    (i, f, o, g) order; a loader from a PyTorch checkpoint (i, f, g, o) would
    permute columns [0:H, H:2H, 3H:4H, 2H:3H].  b = b_ih + b_hh (they only ever
    appear summed in the forward pass).
    """
    ks = iter(jax.random.split(key, 32))
    p = {}

    def unif(k, shape, bound):
        return jax.random.uniform(k, shape, jnp.float32, -bound, bound)

    bound = 1.0 / jnp.sqrt(HIDDEN)
    in_dims = [N_FEATS, HIDDEN, HIDDEN]
    for l in range(N_LAYERS):
        p[f"w_ih{l}"] = unif(next(ks), (in_dims[l], 4 * HIDDEN), bound)
        p[f"w_hh{l}"] = unif(next(ks), (HIDDEN, 4 * HIDDEN), bound)
        p[f"b{l}"] = (unif(next(ks), (1, 4 * HIDDEN), bound)
                      + unif(next(ks), (1, 4 * HIDDEN), bound))

    lin2_in = SEQ_LEN * HIDDEN
    p["w_lin2"] = unif(next(ks), (lin2_in, LIN2_OUT), 1.0 / jnp.sqrt(lin2_in))
    p["b_lin2"] = unif(next(ks), (1, LIN2_OUT), 1.0 / jnp.sqrt(lin2_in))
    p["w_lin3"] = unif(next(ks), (LIN2_OUT, LIN3_OUT), 1.0 / jnp.sqrt(LIN2_OUT))
    p["b_lin3"] = unif(next(ks), (1, LIN3_OUT), 1.0 / jnp.sqrt(LIN2_OUT))
    return p


def net_forward(adj, features, params, graphs_per_block=2):
    """adj: (B, N, N) dense adjacency per graph (A[dst, src] = 1).
    features: (B, N, SEQ_LEN, N_FEATS).  Returns (B, N, 2)."""
    B, n = adj.shape[0], adj.shape[1]
    T, F, H = SEQ_LEN, N_FEATS, HIDDEN

    gpb = min(graphs_per_block, B)
    assert B % gpb == 0, "batch must be divisible by graphs_per_block"
    C = B // gpb                   # grid extent (chunks of graphs)
    Nb = gpb * n                   # nodes per chunk

    # Host-side glue (1): pack gpb graphs into one block-diagonal adjacency so
    # aggregation + the serial LSTM recurrence are batched across graphs.
    adj_c = adj.reshape(C, gpb, n, n)
    eye_g = jnp.eye(gpb, dtype=adj.dtype)
    adj_bd = adj_c[:, :, None, :, :] * eye_g[None, :, :, None, None]   # (C,g,h,N,N)
    adj_bd = adj_bd.transpose(0, 1, 3, 2, 4).reshape(C, Nb, Nb)

    feat_flat = features.reshape(B, n, T * F).reshape(C, Nb, T * F)

    # Host-side glue (2): block-diag-over-time input weights + time-tiled biases
    # so each layer's whole-sequence gate precompute is one lane-dense matmul.
    eye_t = jnp.eye(T, dtype=jnp.float32)
    w0bd = jnp.kron(eye_t, params["w_ih0"])          # (T*F, T*4H)
    w1bd = jnp.kron(eye_t, params["w_ih1"])          # (T*H, T*4H)
    w2bd = jnp.kron(eye_t, params["w_ih2"])          # (T*H, T*4H)
    b0t = jnp.tile(params["b0"], (1, T))             # (1, T*4H)
    b1t = jnp.tile(params["b1"], (1, T))
    b2t = jnp.tile(params["b2"], (1, T))

    args = (adj_bd, feat_flat,
            w0bd, b0t, params["w_hh0"],
            w1bd, b1t, params["w_hh1"],
            w2bd, b2t, params["w_hh2"],
            params["w_lin2"], params["b_lin2"],
            params["w_lin3"], params["b_lin3"])

    chunk_map = lambda c: (c, 0, 0)

    def shared(shape):
        ndim = len(shape)
        return pl.BlockSpec(shape, lambda c: (0,) * ndim)

    in_specs = [
        pl.BlockSpec((None, Nb, Nb), chunk_map),         # block-diag adj per chunk
        pl.BlockSpec((None, Nb, T * F), chunk_map),      # features per chunk
    ] + [shared(a.shape) for a in args[2:]]              # weights shared across grid

    out = pl.pallas_call(
        net_kernel,
        out_shape=jax.ShapeDtypeStruct((C, Nb, LIN3_OUT), jnp.float32),
        grid=(C,),
        in_specs=in_specs,
        out_specs=pl.BlockSpec((None, Nb, LIN3_OUT), chunk_map),
        scratch_shapes=[pltpu.VMEM((Nb, T * H), jnp.float32),   # slab_a
                        pltpu.VMEM((Nb, T * H), jnp.float32)],  # slab_b
        compiler_params=pltpu.CompilerParams(
            dimension_semantics=("parallel",)),          # chunk axis -> both TCs on v7x
    )(*args)

    return out.reshape(B, n, LIN3_OUT)


def net_reference(adj, features, params):
    """Pure-JAX reference of Net.forward (inference mode), one graph at a time."""
    B, n, T, F = features.shape
    H = HIDDEN
    hp = jax.lax.Precision.HIGHEST
    outs = []
    for b in range(B):
        A = adj[b]
        x = jnp.dot(A, features[b].reshape(n, T * F), precision=hp).reshape(n, T, F)
        for l in range(N_LAYERS):
            w_ih, w_hh = params[f"w_ih{l}"], params[f"w_hh{l}"]
            bias = params[f"b{l}"][0]
            h = jnp.zeros((n, H), jnp.float32)
            c = jnp.zeros((n, H), jnp.float32)
            hs = []
            for t in range(T):
                gates = (jnp.dot(x[:, t, :], w_ih, precision=hp)
                         + jnp.dot(h, w_hh, precision=hp) + bias)
                i_g = jax.nn.sigmoid(gates[:, :H])
                f_g = jax.nn.sigmoid(gates[:, H:2 * H])
                o_g = jax.nn.sigmoid(gates[:, 2 * H:3 * H])
                g_g = jnp.tanh(gates[:, 3 * H:])
                c = f_g * c + i_g * g_g
                h = o_g * jnp.tanh(c)
                hs.append(h)
            x = jnp.stack(hs, axis=1)                    # (n, T, H)
        xf = x.reshape(n, T * H)
        y2 = jax.nn.relu(jnp.dot(jnp.dot(A, xf, precision=hp),
                                 params["w_lin2"], precision=hp)
                         + params["b_lin2"][0])
        y3 = jax.nn.sigmoid(jnp.dot(jnp.dot(A, y2, precision=hp),
                                    params["w_lin3"], precision=hp)
                            + params["b_lin3"][0])
        outs.append(y3)
    return jnp.stack(outs)


if __name__ == "__main__":
    key = jax.random.PRNGKey(0)
    k_adj, k_feat, k_param = jax.random.split(key, 3)

    batch = 4        # graphs; packed 2-per-chunk -> grid of 2 "parallel" steps
    n_nodes = 8      # nodes per graph
    adj = jax.random.bernoulli(
        k_adj, 0.5, (batch, n_nodes, n_nodes)).astype(jnp.float32)
    features = jax.random.normal(
        k_feat, (batch, n_nodes, SEQ_LEN, N_FEATS), jnp.float32)

    params = init_params(k_param)

    out = net_forward(adj, features, params, graphs_per_block=2)
    out = jax.block_until_ready(out)
    assert out.shape == (batch, n_nodes, LIN3_OUT)
    assert bool(jnp.all(jnp.isfinite(out)))

    ref = jax.block_until_ready(jax.jit(net_reference)(adj, features, params))
    max_err = float(jnp.max(jnp.abs(out - ref)))
    assert max_err < 1e-3, f"kernel/reference mismatch: max abs err {max_err}"

    print("KERNEL_OK")
</pallas_src>

<mosaic_0001>
module attributes {stable_mosaic.version = 11 : i64} {
  func.func @net_kernel(%arg0: i32, %arg1: memref<1x16x16xf32, #tpu.memory_space<vmem>>, %arg2: memref<1x16x20xf32, #tpu.memory_space<vmem>>, %arg3: memref<20x400xf32, #tpu.memory_space<vmem>>, %arg4: memref<1x400xf32, #tpu.memory_space<vmem>>, %arg5: memref<10x40xf32, #tpu.memory_space<vmem>>, %arg6: memref<100x400xf32, #tpu.memory_space<vmem>>, %arg7: memref<1x400xf32, #tpu.memory_space<vmem>>, %arg8: memref<10x40xf32, #tpu.memory_space<vmem>>, %arg9: memref<100x400xf32, #tpu.memory_space<vmem>>, %arg10: memref<1x400xf32, #tpu.memory_space<vmem>>, %arg11: memref<10x40xf32, #tpu.memory_space<vmem>>, %arg12: memref<100x50xf32, #tpu.memory_space<vmem>>, %arg13: memref<1x50xf32, #tpu.memory_space<vmem>>, %arg14: memref<50x2xf32, #tpu.memory_space<vmem>>, %arg15: memref<1x2xf32, #tpu.memory_space<vmem>>, %arg16: memref<1x16x2xf32, #tpu.memory_space<vmem>>, %arg17: memref<16x100xf32, #tpu.memory_space<vmem>>, %arg18: memref<16x100xf32, #tpu.memory_space<vmem>>) attributes {dimension_semantics = [#tpu.dimension_semantics<parallel>], iteration_bounds = array<i64: 2>, scalar_prefetch = 0 : i64, scratch_operands = 2 : i64, tpu.core_type = #tpu.core_type<tc>, window_params = [{transform_indices = @transform_0, window_bounds = array<i64: 1, 16, 16>}, {transform_indices = @transform_1, window_bounds = array<i64: 1, 16, 20>}, {pipeline_mode = #tpu.pipeline_mode<synchronous>, transform_indices = @transform_2, window_bounds = array<i64: 20, 400>}, {pipeline_mode = #tpu.pipeline_mode<synchronous>, transform_indices = @transform_3, window_bounds = array<i64: 1, 400>}, {pipeline_mode = #tpu.pipeline_mode<synchronous>, transform_indices = @transform_4, window_bounds = array<i64: 10, 40>}, {pipeline_mode = #tpu.pipeline_mode<synchronous>, transform_indices = @transform_5, window_bounds = array<i64: 100, 400>}, {pipeline_mode = #tpu.pipeline_mode<synchronous>, transform_indices = @transform_6, window_bounds = array<i64: 1, 400>}, {pipeline_mode = #tpu.pipeline_mode<synchronous>, transform_indices = @transform_7, window_bounds = array<i64: 10, 40>}, {pipeline_mode = #tpu.pipeline_mode<synchronous>, transform_indices = @transform_8, window_bounds = array<i64: 100, 400>}, {pipeline_mode = #tpu.pipeline_mode<synchronous>, transform_indices = @transform_9, window_bounds = array<i64: 1, 400>}, {pipeline_mode = #tpu.pipeline_mode<synchronous>, transform_indices = @transform_10, window_bounds = array<i64: 10, 40>}, {pipeline_mode = #tpu.pipeline_mode<synchronous>, transform_indices = @transform_11, window_bounds = array<i64: 100, 50>}, {pipeline_mode = #tpu.pipeline_mode<synchronous>, transform_indices = @transform_12, window_bounds = array<i64: 1, 50>}, {pipeline_mode = #tpu.pipeline_mode<synchronous>, transform_indices = @transform_13, window_bounds = array<i64: 50, 2>}, {pipeline_mode = #tpu.pipeline_mode<synchronous>, transform_indices = @transform_14, window_bounds = array<i64: 1, 2>}, {transform_indices = @transform_15, window_bounds = array<i64: 1, 16, 2>}]} {
    %c0 = arith.constant 0 : index
    %c0_0 = arith.constant 0 : index
    %c0_1 = arith.constant 0 : index
    %0 = vector.load %arg1[%c0, %c0_0, %c0_1] : memref<1x16x16xf32, #tpu.memory_space<vmem>>, vector<1x16x16xf32>
    %1 = vector.shape_cast %0 : vector<1x16x16xf32> to vector<16x16xf32>
    %c0_2 = arith.constant 0 : index
    %c0_3 = arith.constant 0 : index
    %c0_4 = arith.constant 0 : index
    %2 = vector.load %arg2[%c0_2, %c0_3, %c0_4] : memref<1x16x20xf32, #tpu.memory_space<vmem>>, vector<1x16x20xf32>
    %3 = vector.shape_cast %2 : vector<1x16x20xf32> to vector<16x20xf32>
    %cst = arith.constant dense<0.000000e+00> : vector<16x20xf32>
    %4 = tpu.matmul %1, %3, %cst {dimension_numbers = #tpu.dot_dimension_numbers<[1], [0], [0], [1], [0, 0, 1, 1], [], []>} : vector<16x16xf32>, vector<16x20xf32>, vector<16x20xf32> -> vector<16x20xf32>
    %c0_5 = arith.constant 0 : index
    %c0_6 = arith.constant 0 : index
    %5 = vector.load %arg3[%c0_5, %c0_6] : memref<20x400xf32, #tpu.memory_space<vmem>>, vector<20x400xf32>
    %cst_7 = arith.constant dense<0.000000e+00> : vector<16x400xf32>
    %6 = tpu.matmul %4, %5, %cst_7 {dimension_numbers = #tpu.dot_dimension_numbers<[1], [0], [0], [1], [0, 0, 1, 1], [], []>} : vector<16x20xf32>, vector<20x400xf32>, vector<16x400xf32> -> vector<16x400xf32>
    %c0_8 = arith.constant 0 : index
    %c0_9 = arith.constant 0 : index
    %7 = vector.load %arg4[%c0_8, %c0_9] : memref<1x400xf32, #tpu.memory_space<vmem>>, vector<1x400xf32>
    %8 = vector.broadcast %7 : vector<1x400xf32> to vector<16x400xf32>
    %9 = arith.addf %6, %8 : vector<16x400xf32>
    %c0_10 = arith.constant 0 : index
    %c0_11 = arith.constant 0 : index
    %10 = vector.load %arg5[%c0_10, %c0_11] : memref<10x40xf32, #tpu.memory_space<vmem>>, vector<10x40xf32>
    %cst_12 = arith.constant 0.000000e+00 : f32
    %11 = vector.broadcast %cst_12 : f32 to vector<16x10xf32>
    %cst_13 = arith.constant 0.000000e+00 : f32
    %12 = vector.broadcast %cst_13 : f32 to vector<16x10xf32>
    %13 = vector.extract_strided_slice %9 {offsets = [0, 0], sizes = [16, 40], strides = [1, 1]} : vector<16x400xf32> to vector<16x40xf32>
    %cst_14 = arith.constant dense<0.000000e+00> : vector<16x40xf32>
    %14 = tpu.matmul %11, %10, %cst_14 {dimension_numbers = #tpu.dot_dimension_numbers<[1], [0], [0], [1], [0, 0, 1, 1], [], []>} : vector<16x10xf32>, vector<10x40xf32>, vector<16x40xf32> -> vector<16x40xf32>
    %15 = arith.addf %13, %14 : vector<16x40xf32>
    %16 = vector.extract_strided_slice %15 {offsets = [0, 0], sizes = [16, 30], strides = [1, 1]} : vector<16x40xf32> to vector<16x30xf32>
    %17 = arith.negf %16 : vector<16x30xf32>
    %18 = math.exp %17 : vector<16x30xf32>
    %cst_15 = arith.constant 1.000000e+00 : f32
    %19 = vector.broadcast %cst_15 : f32 to vector<16x30xf32>
    %20 = arith.addf %19, %18 : vector<16x30xf32>
    %21 = arith.divf %19, %20 : vector<16x30xf32>
    %22 = vector.extract_strided_slice %15 {offsets = [0, 30], sizes = [16, 10], strides = [1, 1]} : vector<16x40xf32> to vector<16x10xf32>
    %23 = math.tanh %22 : vector<16x10xf32>
    %24 = vector.extract_strided_slice %21 {offsets = [0, 10], sizes = [16, 10], strides = [1, 1]} : vector<16x30xf32> to vector<16x10xf32>
    %25 = arith.mulf %24, %12 : vector<16x10xf32>
    %26 = vector.extract_strided_slice %21 {offsets = [0, 0], sizes = [16, 10], strides = [1, 1]} : vector<16x30xf32> to vector<16x10xf32>
    %27 = arith.mulf %26, %23 : vector<16x10xf32>
    %28 = arith.addf %25, %27 : vector<16x10xf32>
    %29 = vector.extract_strided_slice %21 {offsets = [0, 20], sizes = [16, 10], strides = [1, 1]} : vector<16x30xf32> to vector<16x10xf32>
    %30 = math.tanh %28 : vector<16x10xf32>
    %31 = arith.mulf %29, %30 : vector<16x10xf32>
    %c0_16 = arith.constant 0 : index
    %c0_17 = arith.constant 0 : index
    %32 = vector.load %arg17[%c0_16, %c0_17] : memref<16x100xf32, #tpu.memory_space<vmem>>, vector<16x10xf32>
    tpu.vector_store %arg17[%c0_16, %c0_17], %31 {strides = array<i32>} : memref<16x100xf32, #tpu.memory_space<vmem>>, vector<16x10xf32>,
    %33 = vector.extract_strided_slice %9 {offsets = [0, 40], sizes = [16, 40], strides = [1, 1]} : vector<16x400xf32> to vector<16x40xf32>
    %cst_18 = arith.constant dense<0.000000e+00> : vector<16x40xf32>
    %34 = tpu.matmul %31, %10, %cst_18 {dimension_numbers = #tpu.dot_dimension_numbers<[1], [0], [0], [1], [0, 0, 1, 1], [], []>} : vector<16x10xf32>, vector<10x40xf32>, vector<16x40xf32> -> vector<16x40xf32>
    %35 = arith.addf %33, %34 : vector<16x40xf32>
    %36 = vector.extract_strided_slice %35 {offsets = [0, 0], sizes = [16, 30], strides = [1, 1]} : vector<16x40xf32> to vector<16x30xf32>
    %37 = arith.negf %36 : vector<16x30xf32>
    %38 = math.exp %37 : vector<16x30xf32>
    %cst_19 = arith.constant 1.000000e+00 : f32
    %39 = vector.broadcast %cst_19 : f32 to vector<16x30xf32>
    %40 = arith.addf %39, %38 : vector<16x30xf32>
    %41 = arith.divf %39, %40 : vector<16x30xf32>
    %42 = vector.extract_strided_slice %35 {offsets = [0, 30], sizes = [16, 10], strides = [1, 1]} : vector<16x40xf32> to vector<16x10xf32>
    %43 = math.tanh %42 : vector<16x10xf32>
    %44 = vector.extract_strided_slice %41 {offsets = [0, 10], sizes = [16, 10], strides = [1, 1]} : vector<16x30xf32> to vector<16x10xf32>
    %45 = arith.mulf %44, %28 : vector<16x10xf32>
    %46 = vector.extract_strided_slice %41 {offsets = [0, 0], sizes = [16, 10], strides = [1, 1]} : vector<16x30xf32> to vector<16x10xf32>
    %47 = arith.mulf %46, %43 : vector<16x10xf32>
    %48 = arith.addf %45, %47 : vector<16x10xf32>
    %49 = vector.extract_strided_slice %41 {offsets = [0, 20], sizes = [16, 10], strides = [1, 1]} : vector<16x30xf32> to vector<16x10xf32>
    %50 = math.tanh %48 : vector<16x10xf32>
    %51 = arith.mulf %49, %50 : vector<16x10xf32>
    %c0_20 = arith.constant 0 : index
    %c10 = arith.constant 10 : index
    %52 = vector.load %arg17[%c0_20, %c10] : memref<16x100xf32, #tpu.memory_space<vmem>>, vector<16x10xf32>
    tpu.vector_store %arg17[%c0_20, %c10], %51 {strides = array<i32>} : memref<16x100xf32, #tpu.memory_space<vmem>>, vector<16x10xf32>,
    %53 = vector.extract_strided_slice %9 {offsets = [0, 80], sizes = [16, 40], strides = [1, 1]} : vector<16x400xf32> to vector<16x40xf32>
    %cst_21 = arith.constant dense<0.000000e+00> : vector<16x40xf32>
    %54 = tpu.matmul %51, %10, %cst_21 {dimension_numbers = #tpu.dot_dimension_numbers<[1], [0], [0], [1], [0, 0, 1, 1], [], []>} : vector<16x10xf32>, vector<10x40xf32>, vector<16x40xf32> -> vector<16x40xf32>
    %55 = arith.addf %53, %54 : vector<16x40xf32>
    %56 = vector.extract_strided_slice %55 {offsets = [0, 0], sizes = [16, 30], strides = [1, 1]} : vector<16x40xf32> to vector<16x30xf32>
    %57 = arith.negf %56 : vector<16x30xf32>
    %58 = math.exp %57 : vector<16x30xf32>
    %cst_22 = arith.constant 1.000000e+00 : f32
    %59 = vector.broadcast %cst_22 : f32 to vector<16x30xf32>
    %60 = arith.addf %59, %58 : vector<16x30xf32>
    %61 = arith.divf %59, %60 : vector<16x30xf32>
    %62 = vector.extract_strided_slice %55 {offsets = [0, 30], sizes = [16, 10], strides = [1, 1]} : vector<16x40xf32> to vector<16x10xf32>
    %63 = math.tanh %62 : vector<16x10xf32>
    %64 = vector.extract_strided_slice %61 {offsets = [0, 10], sizes = [16, 10], strides = [1, 1]} : vector<16x30xf32> to vector<16x10xf32>
    %65 = arith.mulf %64, %48 : vector<16x10xf32>
    %66 = vector.extract_strided_slice %61 {offsets = [0, 0], sizes = [16, 10], strides = [1, 1]} : vector<16x30xf32> to vector<16x10xf32>
    %67 = arith.mulf %66, %63 : vector<16x10xf32>
    %68 = arith.addf %65, %67 : vector<16x10xf32>
    %69 = vector.extract_strided_slice %61 {offsets = [0, 20], sizes = [16, 10], strides = [1, 1]} : vector<16x30xf32> to vector<16x10xf32>
    %70 = math.tanh %68 : vector<16x10xf32>
    %71 = arith.mulf %69, %70 : vector<16x10xf32>
    %c0_23 = arith.constant 0 : index
    %c20 = arith.constant 20 : index
    %72 = vector.load %arg17[%c0_23, %c20] : memref<16x100xf32, #tpu.memory_space<vmem>>, vector<16x10xf32>
    tpu.vector_store %arg17[%c0_23, %c20], %71 {strides = array<i32>} : memref<16x100xf32, #tpu.memory_space<vmem>>, vector<16x10xf32>,
    %73 = vector.extract_strided_slice %9 {offsets = [0, 120], sizes = [16, 40], strides = [1, 1]} : vector<16x400xf32> to vector<16x40xf32>
    %cst_24 = arith.constant dense<0.000000e+00> : vector<16x40xf32>
    %74 = tpu.matmul %71, %10, %cst_24 {dimension_numbers = #tpu.dot_dimension_numbers<[1], [0], [0], [1], [0, 0, 1, 1], [], []>} : vector<16x10xf32>, vector<10x40xf32>, vector<16x40xf32> -> vector<16x40xf32>
    %75 = arith.addf %73, %74 : vector<16x40xf32>
    %76 = vector.extract_strided_slice %75 {offsets = [0, 0], sizes = [16, 30], strides = [1, 1]} : vector<16x40xf32> to vector<16x30xf32>
    %77 = arith.negf %76 : vector<16x30xf32>
    %78 = math.exp %77 : vector<16x30xf32>
    %cst_25 = arith.constant 1.000000e+00 : f32
    %79 = vector.broadcast %cst_25 : f32 to vector<16x30xf32>
    %80 = arith.addf %79, %78 : vector<16x30xf32>
    %81 = arith.divf %79, %80 : vector<16x30xf32>
    %82 = vector.extract_strided_slice %75 {offsets = [0, 30], sizes = [16, 10], strides = [1, 1]} : vector<16x40xf32> to vector<16x10xf32>
    %83 = math.tanh %82 : vector<16x10xf32>
    %84 = vector.extract_strided_slice %81 {offsets = [0, 10], sizes = [16, 10], strides = [1, 1]} : vector<16x30xf32> to vector<16x10xf32>
    %85 = arith.mulf %84, %68 : vector<16x10xf32>
    %86 = vector.extract_strided_slice %81 {offsets = [0, 0], sizes = [16, 10], strides = [1, 1]} : vector<16x30xf32> to vector<16x10xf32>
    %87 = arith.mulf %86, %83 : vector<16x10xf32>
    %88 = arith.addf %85, %87 : vector<16x10xf32>
    %89 = vector.extract_strided_slice %81 {offsets = [0, 20], sizes = [16, 10], strides = [1, 1]} : vector<16x30xf32> to vector<16x10xf32>
    %90 = math.tanh %88 : vector<16x10xf32>
    %91 = arith.mulf %89, %90 : vector<16x10xf32>
    %c0_26 = arith.constant 0 : index
    %c30 = arith.constant 30 : index
    %92 = vector.load %arg17[%c0_26, %c30] : memref<16x100xf32, #tpu.memory_space<vmem>>, vector<16x10xf32>
    tpu.vector_store %arg17[%c0_26, %c30], %91 {strides = array<i32>} : memref<16x100xf32, #tpu.memory_space<vmem>>, vector<16x10xf32>,
    %93 = vector.extract_strided_slice %9 {offsets = [0, 160], sizes = [16, 40], strides = [1, 1]} : vector<16x400xf32> to vector<16x40xf32>
    %cst_27 = arith.constant dense<0.000000e+00> : vector<16x40xf32>
    %94 = tpu.matmul %91, %10, %cst_27 {dimension_numbers = #tpu.dot_dimension_numbers<[1], [0], [0], [1], [0, 0, 1, 1], [], []>} : vector<16x10xf32>, vector<10x40xf32>, vector<16x40xf32> -> vector<16x40xf32>
    %95 = arith.addf %93, %94 : vector<16x40xf32>
    %96 = vector.extract_strided_slice %95 {offsets = [0, 0], sizes = [16, 30], strides = [1, 1]} : vector<16x40xf32> to vector<16x30xf32>
    %97 = arith.negf %96 : vector<16x30xf32>
    %98 = math.exp %97 : vector<16x30xf32>
    %cst_28 = arith.constant 1.000000e+00 : f32
    %99 = vector.broadcast %cst_28 : f32 to vector<16x30xf32>
    %100 = arith.addf %99, %98 : vector<16x30xf32>
    %101 = arith.divf %99, %100 : vector<16x30xf32>
    %102 = vector.extract_strided_slice %95 {offsets = [0, 30], sizes = [16, 10], strides = [1, 1]} : vector<16x40xf32> to vector<16x10xf32>
    %103 = math.tanh %102 : vector<16x10xf32>
    %104 = vector.extract_strided_slice %101 {offsets = [0, 10], sizes = [16, 10], strides = [1, 1]} : vector<16x30xf32> to vector<16x10xf32>
    %105 = arith.mulf %104, %88 : vector<16x10xf32>
    %106 = vector.extract_strided_slice %101 {offsets = [0, 0], sizes = [16, 10], strides = [1, 1]} : vector<16x30xf32> to vector<16x10xf32>
    %107 = arith.mulf %106, %103 : vector<16x10xf32>
    %108 = arith.addf %105, %107 : vector<16x10xf32>
    %109 = vector.extract_strided_slice %101 {offsets = [0, 20], sizes = [16, 10], strides = [1, 1]} : vector<16x30xf32> to vector<16x10xf32>
    %110 = math.tanh %108 : vector<16x10xf32>
    %111 = arith.mulf %109, %110 : vector<16x10xf32>
    %c0_29 = arith.constant 0 : index
    %c40 = arith.constant 40 : index
    %112 = vector.load %arg17[%c0_29, %c40] : memref<16x100xf32, #tpu.memory_space<vmem>>, vector<16x10xf32>
    tpu.vector_store %arg17[%c0_29, %c40], %111 {strides = array<i32>} : memref<16x100xf32, #tpu.memory_space<vmem>>, vector<16x10xf32>,
    %113 = vector.extract_strided_slice %9 {offsets = [0, 200], sizes = [16, 40], strides = [1, 1]} : vector<16x400xf32> to vector<16x40xf32>
    %cst_30 = arith.constant dense<0.000000e+00> : vector<16x40xf32>
    %114 = tpu.matmul %111, %10, %cst_30 {dimension_numbers = #tpu.dot_dimension_numbers<[1], [0], [0], [1], [0, 0, 1, 1], [], []>} : vector<16x10xf32>, vector<10x40xf32>, vector<16x40xf32> -> vector<16x40xf32>
    %115 = arith.addf %113, %114 : vector<16x40xf32>
    %116 = vector.extract_strided_slice %115 {offsets = [0, 0], sizes = [16, 30], strides = [1, 1]} : vector<16x40xf32> to vector<16x30xf32>
    %117 = arith.negf %116 : vector<16x30xf32>
    %118 = math.exp %117 : vector<16x30xf32>
    %cst_31 = arith.constant 1.000000e+00 : f32
    %119 = vector.broadcast %cst_31 : f32 to vector<16x30xf32>
    %120 = arith.addf %119, %118 : vector<16x30xf32>
    %121 = arith.divf %119, %120 : vector<16x30xf32>
    %122 = vector.extract_strided_slice %115 {offsets = [0, 30], sizes = [16, 10], strides = [1, 1]} : vector<16x40xf32> to vector<16x10xf32>
    %123 = math.tanh %122 : vector<16x10xf32>
    %124 = vector.extract_strided_slice %121 {offsets = [0, 10], sizes = [16, 10], strides = [1, 1]} : vector<16x30xf32> to vector<16x10xf32>
    %125 = arith.mulf %124, %108 : vector<16x10xf32>
    %126 = vector.extract_strided_slice %121 {offsets = [0, 0], sizes = [16, 10], strides = [1, 1]} : vector<16x30xf32> to vector<16x10xf32>
    %127 = arith.mulf %126, %123 : vector<16x10xf32>
    %128 = arith.addf %125, %127 : vector<16x10xf32>
    %129 = vector.extract_strided_slice %121 {offsets = [0, 20], sizes = [16, 10], strides = [1, 1]} : vector<16x30xf32> to vector<16x10xf32>
    %130 = math.tanh %128 : vector<16x10xf32>
    %131 = arith.mulf %129, %130 : vector<16x10xf32>
    %c0_32 = arith.constant 0 : index
    %c50 = arith.constant 50 : index
    %132 = vector.load %arg17[%c0_32, %c50] : memref<16x100xf32, #tpu.memory_space<vmem>>, vector<16x10xf32>
    tpu.vector_store %arg17[%c0_32, %c50], %131 {strides = array<i32>} : memref<16x100xf32, #tpu.memory_space<vmem>>, vector<16x10xf32>,
    %133 = vector.extract_strided_slice %9 {offsets = [0, 240], sizes = [16, 40], strides = [1, 1]} : vector<16x400xf32> to vector<16x40xf32>
    %cst_33 = arith.constant dense<0.000000e+00> : vector<16x40xf32>
    %134 = tpu.matmul %131, %10, %cst_33 {dimension_numbers = #tpu.dot_dimension_numbers<[1], [0], [0], [1], [0, 0, 1, 1], [], []>} : vector<16x10xf32>, vector<10x40xf32>, vector<16x40xf32> -> vector<16x40xf32>
    %135 = arith.addf %133, %134 : vector<16x40xf32>
    %136 = vector.extract_strided_slice %135 {offsets = [0, 0], sizes = [16, 30], strides = [1, 1]} : vector<16x40xf32> to vector<16x30xf32>
    %137 = arith.negf %136 : vector<16x30xf32>
    %138 = math.exp %137 : vector<16x30xf32>
    %cst_34 = arith.constant 1.000000e+00 : f32
    %139 = vector.broadcast %cst_34 : f32 to vector<16x30xf32>
    %140 = arith.addf %139, %138 : vector<16x30xf32>
    %141 = arith.divf %139, %140 : vector<16x30xf32>
    %142 = vector.extract_strided_slice %135 {offsets = [0, 30], sizes = [16, 10], strides = [1, 1]} : vector<16x40xf32> to vector<16x10xf32>
    %143 = math.tanh %142 : vector<16x10xf32>
    %144 = vector.extract_strided_slice %141 {offsets = [0, 10], sizes = [16, 10], strides = [1, 1]} : vector<16x30xf32> to vector<16x10xf32>
    %145 = arith.mulf %144, %128 : vector<16x10xf32>
    %146 = vector.extract_strided_slice %141 {offsets = [0, 0], sizes = [16, 10], strides = [1, 1]} : vector<16x30xf32> to vector<16x10xf32>
    %147 = arith.mulf %146, %143 : vector<16x10xf32>
    %148 = arith.addf %145, %147 : vector<16x10xf32>
    %149 = vector.extract_strided_slice %141 {offsets = [0, 20], sizes = [16, 10], strides = [1, 1]} : vector<16x30xf32> to vector<16x10xf32>
    %150 = math.tanh %148 : vector<16x10xf32>
    %151 = arith.mulf %149, %150 : vector<16x10xf32>
    %c0_35 = arith.constant 0 : index
    %c60 = arith.constant 60 : index
    %152 = vector.load %arg17[%c0_35, %c60] : memref<16x100xf32, #tpu.memory_space<vmem>>, vector<16x10xf32>
    tpu.vector_store %arg17[%c0_35, %c60], %151 {strides = array<i32>} : memref<16x100xf32, #tpu.memory_space<vmem>>, vector<16x10xf32>,
    %153 = vector.extract_strided_slice %9 {offsets = [0, 280], sizes = [16, 40], strides = [1, 1]} : vector<16x400xf32> to vector<16x40xf32>
    %cst_36 = arith.constant dense<0.000000e+00> : vector<16x40xf32>
    %154 = tpu.matmul %151, %10, %cst_36 {dimension_numbers = #tpu.dot_dimension_numbers<[1], [0], [0], [1], [0, 0, 1, 1], [], []>} : vector<16x10xf32>, vector<10x40xf32>, vector<16x40xf32> -> vector<16x40xf32>
    %155 = arith.addf %153, %154 : vector<16x40xf32>
    %156 = vector.extract_strided_slice %155 {offsets = [0, 0], sizes = [16, 30], strides = [1, 1]} : vector<16x40xf32> to vector<16x30xf32>
    %157 = arith.negf %156 : vector<16x30xf32>
    %158 = math.exp %157 : vector<16x30xf32>
    %cst_37 = arith.constant 1.000000e+00 : f32
    %159 = vector.broadcast %cst_37 : f32 to vector<16x30xf32>
    %160 = arith.addf %159, %158 : vector<16x30xf32>
    %161 = arith.divf %159, %160 : vector<16x30xf32>
    %162 = vector.extract_strided_slice %155 {offsets = [0, 30], sizes = [16, 10], strides = [1, 1]} : vector<16x40xf32> to vector<16x10xf32>
    %163 = math.tanh %162 : vector<16x10xf32>
    %164 = vector.extract_strided_slice %161 {offsets = [0, 10], sizes = [16, 10], strides = [1, 1]} : vector<16x30xf32> to vector<16x10xf32>
    %165 = arith.mulf %164, %148 : vector<16x10xf32>
    %166 = vector.extract_strided_slice %161 {offsets = [0, 0], sizes = [16, 10], strides = [1, 1]} : vector<16x30xf32> to vector<16x10xf32>
    %167 = arith.mulf %166, %163 : vector<16x10xf32>
    %168 = arith.addf %165, %167 : vector<16x10xf32>
    %169 = vector.extract_strided_slice %161 {offsets = [0, 20], sizes = [16, 10], strides = [1, 1]} : vector<16x30xf32> to vector<16x10xf32>
    %170 = math.tanh %168 : vector<16x10xf32>
    %171 = arith.mulf %169, %170 : vector<16x10xf32>
    %c0_38 = arith.constant 0 : index
    %c70 = arith.constant 70 : index
    %172 = vector.load %arg17[%c0_38, %c70] : memref<16x100xf32, #tpu.memory_space<vmem>>, vector<16x10xf32>
    tpu.vector_store %arg17[%c0_38, %c70], %171 {strides = array<i32>} : memref<16x100xf32, #tpu.memory_space<vmem>>, vector<16x10xf32>,
    %173 = vector.extract_strided_slice %9 {offsets = [0, 320], sizes = [16, 40], strides = [1, 1]} : vector<16x400xf32> to vector<16x40xf32>
    %cst_39 = arith.constant dense<0.000000e+00> : vector<16x40xf32>
    %174 = tpu.matmul %171, %10, %cst_39 {dimension_numbers = #tpu.dot_dimension_numbers<[1], [0], [0], [1], [0, 0, 1, 1], [], []>} : vector<16x10xf32>, vector<10x40xf32>, vector<16x40xf32> -> vector<16x40xf32>
    %175 = arith.addf %173, %174 : vector<16x40xf32>
    %176 = vector.extract_strided_slice %175 {offsets = [0, 0], sizes = [16, 30], strides = [1, 1]} : vector<16x40xf32> to vector<16x30xf32>
    %177 = arith.negf %176 : vector<16x30xf32>
    %178 = math.exp %177 : vector<16x30xf32>
    %cst_40 = arith.constant 1.000000e+00 : f32
    %179 = vector.broadcast %cst_40 : f32 to vector<16x30xf32>
    %180 = arith.addf %179, %178 : vector<16x30xf32>
    %181 = arith.divf %179, %180 : vector<16x30xf32>
    %182 = vector.extract_strided_slice %175 {offsets = [0, 30], sizes = [16, 10], strides = [1, 1]} : vector<16x40xf32> to vector<16x10xf32>
    %183 = math.tanh %182 : vector<16x10xf32>
    %184 = vector.extract_strided_slice %181 {offsets = [0, 10], sizes = [16, 10], strides = [1, 1]} : vector<16x30xf32> to vector<16x10xf32>
    %185 = arith.mulf %184, %168 : vector<16x10xf32>
    %186 = vector.extract_strided_slice %181 {offsets = [0, 0], sizes = [16, 10], strides = [1, 1]} : vector<16x30xf32> to vector<16x10xf32>
    %187 = arith.mulf %186, %183 : vector<16x10xf32>
    %188 = arith.addf %185, %187 : vector<16x10xf32>
    %189 = vector.extract_strided_slice %181 {offsets = [0, 20], sizes = [16, 10], strides = [1, 1]} : vector<16x30xf32> to vector<16x10xf32>
    %190 = math.tanh %188 : vector<16x10xf32>
    %191 = arith.mulf %189, %190 : vector<16x10xf32>
    %c0_41 = arith.constant 0 : index
    %c80 = arith.constant 80 : index
    %192 = vector.load %arg17[%c0_41, %c80] : memref<16x100xf32, #tpu.memory_space<vmem>>, vector<16x10xf32>
    tpu.vector_store %arg17[%c0_41, %c80], %191 {strides = array<i32>} : memref<16x100xf32, #tpu.memory_space<vmem>>, vector<16x10xf32>,
    %193 = vector.extract_strided_slice %9 {offsets = [0, 360], sizes = [16, 40], strides = [1, 1]} : vector<16x400xf32> to vector<16x40xf32>
    %cst_42 = arith.constant dense<0.000000e+00> : vector<16x40xf32>
    %194 = tpu.matmul %191, %10, %cst_42 {dimension_numbers = #tpu.dot_dimension_numbers<[1], [0], [0], [1], [0, 0, 1, 1], [], []>} : vector<16x10xf32>, vector<10x40xf32>, vector<16x40xf32> -> vector<16x40xf32>
    %195 = arith.addf %193, %194 : vector<16x40xf32>
    %196 = vector.extract_strided_slice %195 {offsets = [0, 0], sizes = [16, 30], strides = [1, 1]} : vector<16x40xf32> to vector<16x30xf32>
    %197 = arith.negf %196 : vector<16x30xf32>
    %198 = math.exp %197 : vector<16x30xf32>
    %cst_43 = arith.constant 1.000000e+00 : f32
    %199 = vector.broadcast %cst_43 : f32 to vector<16x30xf32>
    %200 = arith.addf %199, %198 : vector<16x30xf32>
    %201 = arith.divf %199, %200 : vector<16x30xf32>
    %202 = vector.extract_strided_slice %195 {offsets = [0, 30], sizes = [16, 10], strides = [1, 1]} : vector<16x40xf32> to vector<16x10xf32>
    %203 = math.tanh %202 : vector<16x10xf32>
    %204 = vector.extract_strided_slice %201 {offsets = [0, 10], sizes = [16, 10], strides = [1, 1]} : vector<16x30xf32> to vector<16x10xf32>
    %205 = arith.mulf %204, %188 : vector<16x10xf32>
    %206 = vector.extract_strided_slice %201 {offsets = [0, 0], sizes = [16, 10], strides = [1, 1]} : vector<16x30xf32> to vector<16x10xf32>
    %207 = arith.mulf %206, %203 : vector<16x10xf32>
    %208 = arith.addf %205, %207 : vector<16x10xf32>
    %209 = vector.extract_strided_slice %201 {offsets = [0, 20], sizes = [16, 10], strides = [1, 1]} : vector<16x30xf32> to vector<16x10xf32>
    %210 = math.tanh %208 : vector<16x10xf32>
    %211 = arith.mulf %209, %210 : vector<16x10xf32>
    %c0_44 = arith.constant 0 : index
    %c90 = arith.constant 90 : index
    %212 = vector.load %arg17[%c0_44, %c90] : memref<16x100xf32, #tpu.memory_space<vmem>>, vector<16x10xf32>
    tpu.vector_store %arg17[%c0_44, %c90], %211 {strides = array<i32>} : memref<16x100xf32, #tpu.memory_space<vmem>>, vector<16x10xf32>,
    %c0_45 = arith.constant 0 : index
    %c0_46 = arith.constant 0 : index
    %213 = vector.load %arg17[%c0_45, %c0_46] : memref<16x100xf32, #tpu.memory_space<vmem>>, vector<16x100xf32>
    %c0_47 = arith.constant 0 : index
    %c0_48 = arith.constant 0 : index
    %214 = vector.load %arg6[%c0_47, %c0_48] : memref<100x400xf32, #tpu.memory_space<vmem>>, vector<100x400xf32>
    %cst_49 = arith.constant dense<0.000000e+00> : vector<16x400xf32>
    %215 = tpu.matmul %213, %214, %cst_49 {dimension_numbers = #tpu.dot_dimension_numbers<[1], [0], [0], [1], [0, 0, 1, 1], [], []>} : vector<16x100xf32>, vector<100x400xf32>, vector<16x400xf32> -> vector<16x400xf32>
    %c0_50 = arith.constant 0 : index
    %c0_51 = arith.constant 0 : index
    %216 = vector.load %arg7[%c0_50, %c0_51] : memref<1x400xf32, #tpu.memory_space<vmem>>, vector<1x400xf32>
    %217 = vector.broadcast %216 : vector<1x400xf32> to vector<16x400xf32>
    %218 = arith.addf %215, %217 : vector<16x400xf32>
    %c0_52 = arith.constant 0 : index
    %c0_53 = arith.constant 0 : index
    %219 = vector.load %arg8[%c0_52, %c0_53] : memref<10x40xf32, #tpu.memory_space<vmem>>, vector<10x40xf32>
    %cst_54 = arith.constant 0.000000e+00 : f32
    %220 = vector.broadcast %cst_54 : f32 to vector<16x10xf32>
    %cst_55 = arith.constant 0.000000e+00 : f32
    %221 = vector.broadcast %cst_55 : f32 to vector<16x10xf32>
    %222 = vector.extract_strided_slice %218 {offsets = [0, 0], sizes = [16, 40], strides = [1, 1]} : vector<16x400xf32> to vector<16x40xf32>
    %cst_56 = arith.constant dense<0.000000e+00> : vector<16x40xf32>
    %223 = tpu.matmul %220, %219, %cst_56 {dimension_numbers = #tpu.dot_dimension_numbers<[1], [0], [0], [1], [0, 0, 1, 1], [], []>} : vector<16x10xf32>, vector<10x40xf32>, vector<16x40xf32> -> vector<16x40xf32>
    %224 = arith.addf %222, %223 : vector<16x40xf32>
    %225 = vector.extract_strided_slice %224 {offsets = [0, 0], sizes = [16, 30], strides = [1, 1]} : vector<16x40xf32> to vector<16x30xf32>
    %226 = arith.negf %225 : vector<16x30xf32>
    %227 = math.exp %226 : vector<16x30xf32>
    %cst_57 = arith.constant 1.000000e+00 : f32
    %228 = vector.broadcast %cst_57 : f32 to vector<16x30xf32>
    %229 = arith.addf %228, %227 : vector<16x30xf32>
    %230 = arith.divf %228, %229 : vector<16x30xf32>
    %231 = vector.extract_strided_slice %224 {offsets = [0, 30], sizes = [16, 10], strides = [1, 1]} : vector<16x40xf32> to vector<16x10xf32>
    %232 = math.tanh %231 : vector<16x10xf32>
    %233 = vector.extract_strided_slice %230 {offsets = [0, 10], sizes = [16, 10], strides = [1, 1]} : vector<16x30xf32> to vector<16x10xf32>
    %234 = arith.mulf %233, %221 : vector<16x10xf32>
    %235 = vector.extract_strided_slice %230 {offsets = [0, 0], sizes = [16, 10], strides = [1, 1]} : vector<16x30xf32> to vector<16x10xf32>
    %236 = arith.mulf %235, %232 : vector<16x10xf32>
    %237 = arith.addf %234, %236 : vector<16x10xf32>
    %238 = vector.extract_strided_slice %230 {offsets = [0, 20], sizes = [16, 10], strides = [1, 1]} : vector<16x30xf32> to vector<16x10xf32>
    %239 = math.tanh %237 : vector<16x10xf32>
    %240 = arith.mulf %238, %239 : vector<16x10xf32>
    %c0_58 = arith.constant 0 : index
    %c0_59 = arith.constant 0 : index
    %241 = vector.load %arg18[%c0_58, %c0_59] : memref<16x100xf32, #tpu.memory_space<vmem>>, vector<16x10xf32>
    tpu.vector_store %arg18[%c0_58, %c0_59], %240 {strides = array<i32>} : memref<16x100xf32, #tpu.memory_space<vmem>>, vector<16x10xf32>,
    %242 = vector.extract_strided_slice %218 {offsets = [0, 40], sizes = [16, 40], strides = [1, 1]} : vector<16x400xf32> to vector<16x40xf32>
    %cst_60 = arith.constant dense<0.000000e+00> : vector<16x40xf32>
    %243 = tpu.matmul %240, %219, %cst_60 {dimension_numbers = #tpu.dot_dimension_numbers<[1], [0], [0], [1], [0, 0, 1, 1], [], []>} : vector<16x10xf32>, vector<10x40xf32>, vector<16x40xf32> -> vector<16x40xf32>
    %244 = arith.addf %242, %243 : vector<16x40xf32>
    %245 = vector.extract_strided_slice %244 {offsets = [0, 0], sizes = [16, 30], strides = [1, 1]} : vector<16x40xf32> to vector<16x30xf32>
    %246 = arith.negf %245 : vector<16x30xf32>
    %247 = math.exp %246 : vector<16x30xf32>
    %cst_61 = arith.constant 1.000000e+00 : f32
    %248 = vector.broadcast %cst_61 : f32 to vector<16x30xf32>
    %249 = arith.addf %248, %247 : vector<16x30xf32>
    %250 = arith.divf %248, %249 : vector<16x30xf32>
    %251 = vector.extract_strided_slice %244 {offsets = [0, 30], sizes = [16, 10], strides = [1, 1]} : vector<16x40xf32> to vector<16x10xf32>
    %252 = math.tanh %251 : vector<16x10xf32>
    %253 = vector.extract_strided_slice %250 {offsets = [0, 10], sizes = [16, 10], strides = [1, 1]} : vector<16x30xf32> to vector<16x10xf32>
    %254 = arith.mulf %253, %237 : vector<16x10xf32>
    %255 = vector.extract_strided_slice %250 {offsets = [0, 0], sizes = [16, 10], strides = [1, 1]} : vector<16x30xf32> to vector<16x10xf32>
    %256 = arith.mulf %255, %252 : vector<16x10xf32>
    %257 = arith.addf %254, %256 : vector<16x10xf32>
    %258 = vector.extract_strided_slice %250 {offsets = [0, 20], sizes = [16, 10], strides = [1, 1]} : vector<16x30xf32> to vector<16x10xf32>
    %259 = math.tanh %257 : vector<16x10xf32>
    %260 = arith.mulf %258, %259 : vector<16x10xf32>
    %c0_62 = arith.constant 0 : index
    %c10_63 = arith.constant 10 : index
    %261 = vector.load %arg18[%c0_62, %c10_63] : memref<16x100xf32, #tpu.memory_space<vmem>>, vector<16x10xf32>
    tpu.vector_store %arg18[%c0_62, %c10_63], %260 {strides = array<i32>} : memref<16x100xf32, #tpu.memory_space<vmem>>, vector<16x10xf32>,
    %262 = vector.extract_strided_slice %218 {offsets = [0, 80], sizes = [16, 40], strides = [1, 1]} : vector<16x400xf32> to vector<16x40xf32>
    %cst_64 = arith.constant dense<0.000000e+00> : vector<16x40xf32>
    %263 = tpu.matmul %260, %219, %cst_64 {dimension_numbers = #tpu.dot_dimension_numbers<[1], [0], [0], [1], [0, 0, 1, 1], [], []>} : vector<16x10xf32>, vector<10x40xf32>, vector<16x40xf32> -> vector<16x40xf32>
    %264 = arith.addf %262, %263 : vector<16x40xf32>
    %265 = vector.extract_strided_slice %264 {offsets = [0, 0], sizes = [16, 30], strides = [1, 1]} : vector<16x40xf32> to vector<16x30xf32>
    %266 = arith.negf %265 : vector<16x30xf32>
    %267 = math.exp %266 : vector<16x30xf32>
    %cst_65 = arith.constant 1.000000e+00 : f32
    %268 = vector.broadcast %cst_65 : f32 to vector<16x30xf32>
    %269 = arith.addf %268, %267 : vector<16x30xf32>
    %270 = arith.divf %268, %269 : vector<16x30xf32>
    %271 = vector.extract_strided_slice %264 {offsets = [0, 30], sizes = [16, 10], strides = [1, 1]} : vector<16x40xf32> to vector<16x10xf32>
    %272 = math.tanh %271 : vector<16x10xf32>
    %273 = vector.extract_strided_slice %270 {offsets = [0, 10], sizes = [16, 10], strides = [1, 1]} : vector<16x30xf32> to vector<16x10xf32>
    %274 = arith.mulf %273, %257 : vector<16x10xf32>
    %275 = vector.extract_strided_slice %270 {offsets = [0, 0], sizes = [16, 10], strides = [1, 1]} : vector<16x30xf32> to vector<16x10xf32>
    %276 = arith.mulf %275, %272 : vector<16x10xf32>
    %277 = arith.addf %274, %276 : vector<16x10xf32>
    %278 = vector.extract_strided_slice %270 {offsets = [0, 20], sizes = [16, 10], strides = [1, 1]} : vector<16x30xf32> to vector<16x10xf32>
    %279 = math.tanh %277 : vector<16x10xf32>
    %280 = arith.mulf %278, %279 : vector<16x10xf32>
    %c0_66 = arith.constant 0 : index
    %c20_67 = arith.constant 20 : index
    %281 = vector.load %arg18[%c0_66, %c20_67] : memref<16x100xf32, #tpu.memory_space<vmem>>, vector<16x10xf32>
    tpu.vector_store %arg18[%c0_66, %c20_67], %280 {strides = array<i32>} : memref<16x100xf32, #tpu.memory_space<vmem>>, vector<16x10xf32>,
    %282 = vector.extract_strided_slice %218 {offsets = [0, 120], sizes = [16, 40], strides = [1, 1]} : vector<16x400xf32> to vector<16x40xf32>
    %cst_68 = arith.constant dense<0.000000e+00> : vector<16x40xf32>
    %283 = tpu.matmul %280, %219, %cst_68 {dimension_numbers = #tpu.dot_dimension_numbers<[1], [0], [0], [1], [0, 0, 1, 1], [], []>} : vector<16x10xf32>, vector<10x40xf32>, vector<16x40xf32> -> vector<16x40xf32>
    %284 = arith.addf %282, %283 : vector<16x40xf32>
    %285 = vector.extract_strided_slice %284 {offsets = [0, 0], sizes = [16, 30], strides = [1, 1]} : vector<16x40xf32> to vector<16x30xf32>
    %286 = arith.negf %285 : vector<16x30xf32>
    %287 = math.exp %286 : vector<16x30xf32>
    %cst_69 = arith.constant 1.000000e+00 : f32
    %288 = vector.broadcast %cst_69 : f32 to vector<16x30xf32>
    %289 = arith.addf %288, %287 : vector<16x30xf32>
    %290 = arith.divf %288, %289 : vector<16x30xf32>
    %291 = vector.extract_strided_slice %284 {offsets = [0, 30], sizes = [16, 10], strides = [1, 1]} : vector<16x40xf32> to vector<16x10xf32>
    %292 = math.tanh %291 : vector<16x10xf32>
    %293 = vector.extract_strided_slice %290 {offsets = [0, 10], sizes = [16, 10], strides = [1, 1]} : vector<16x30xf32> to vector<16x10xf32>
    %294 = arith.mulf %293, %277 : vector<16x10xf32>
    %295 = vector.extract_strided_slice %290 {offsets = [0, 0], sizes = [16, 10], strides = [1, 1]} : vector<16x30xf32> to vector<16x10xf32>
    %296 = arith.mulf %295, %292 : vector<16x10xf32>
    %297 = arith.addf %294, %296 : vector<16x10xf32>
    %298 = vector.extract_strided_slice %290 {offsets = [0, 20], sizes = [16, 10], strides = [1, 1]} : vector<16x30xf32> to vector<16x10xf32>
    %299 = math.tanh %297 : vector<16x10xf32>
    %300 = arith.mulf %298, %299 : vector<16x10xf32>
    %c0_70 = arith.constant 0 : index
    %c30_71 = arith.constant 30 : index
    %301 = vector.load %arg18[%c0_70, %c30_71] : memref<16x100xf32, #tpu.memory_space<vmem>>, vector<16x10xf32>
    tpu.vector_store %arg18[%c0_70, %c30_71], %300 {strides = array<i32>} : memref<16x100xf32, #tpu.memory_space<vmem>>, vector<16x10xf32>,
    %302 = vector.extract_strided_slice %218 {offsets = [0, 160], sizes = [16, 40], strides = [1, 1]} : vector<16x400xf32> to vector<16x40xf32>
    %cst_72 = arith.constant dense<0.000000e+00> : vector<16x40xf32>
    %303 = tpu.matmul %300, %219, %cst_72 {dimension_numbers = #tpu.dot_dimension_numbers<[1], [0], [0], [1], [0, 0, 1, 1], [], []>} : vector<16x10xf32>, vector<10x40xf32>, vector<16x40xf32> -> vector<16x40xf32>
    %304 = arith.addf %302, %303 : vector<16x40xf32>
    %305 = vector.extract_strided_slice %304 {offsets = [0, 0], sizes = [16, 30], strides = [1, 1]} : vector<16x40xf32> to vector<16x30xf32>
    %306 = arith.negf %305 : vector<16x30xf32>
    %307 = math.exp %306 : vector<16x30xf32>
    %cst_73 = arith.constant 1.000000e+00 : f32
    %308 = vector.broadcast %cst_73 : f32 to vector<16x30xf32>
    %309 = arith.addf %308, %307 : vector<16x30xf32>
    %310 = arith.divf %308, %309 : vector<16x30xf32>
    %311 = vector.extract_strided_slice %304 {offsets = [0, 30], sizes = [16, 10], strides = [1, 1]} : vector<16x40xf32> to vector<16x10xf32>
    %312 = math.tanh %311 : vector<16x10xf32>
    %313 = vector.extract_strided_slice %310 {offsets = [0, 10], sizes = [16, 10], strides = [1, 1]} : vector<16x30xf32> to vector<16x10xf32>
    %314 = arith.mulf %313, %297 : vector<16x10xf32>
    %315 = vector.extract_strided_slice %310 {offsets = [0, 0], sizes = [16, 10], strides = [1, 1]} : vector<16x30xf32> to vector<16x10xf32>
    %316 = arith.mulf %315, %312 : vector<16x10xf32>
    %317 = arith.addf %314, %316 : vector<16x10xf32>
    %318 = vector.extract_strided_slice %310 {offsets = [0, 20], sizes = [16, 10], strides = [1, 1]} : vector<16x30xf32> to vector<16x10xf32>
    %319 = math.tanh %317 : vector<16x10xf32>
    %320 = arith.mulf %318, %319 : vector<16x10xf32>
    %c0_74 = arith.constant 0 : index
    %c40_75 = arith.constant 40 : index
    %321 = vector.load %arg18[%c0_74, %c40_75] : memref<16x100xf32, #tpu.memory_space<vmem>>, vector<16x10xf32>
    tpu.vector_store %arg18[%c0_74, %c40_75], %320 {strides = array<i32>} : memref<16x100xf32, #tpu.memory_space<vmem>>, vector<16x10xf32>,
    %322 = vector.extract_strided_slice %218 {offsets = [0, 200], sizes = [16, 40], strides = [1, 1]} : vector<16x400xf32> to vector<16x40xf32>
    %cst_76 = arith.constant dense<0.000000e+00> : vector<16x40xf32>
    %323 = tpu.matmul %320, %219, %cst_76 {dimension_numbers = #tpu.dot_dimension_numbers<[1], [0], [0], [1], [0, 0, 1, 1], [], []>} : vector<16x10xf32>, vector<10x40xf32>, vector<16x40xf32> -> vector<16x40xf32>
    %324 = arith.addf %322, %323 : vector<16x40xf32>
    %325 = vector.extract_strided_slice %324 {offsets = [0, 0], sizes = [16, 30], strides = [1, 1]} : vector<16x40xf32> to vector<16x30xf32>
    %326 = arith.negf %325 : vector<16x30xf32>
    %327 = math.exp %326 : vector<16x30xf32>
    %cst_77 = arith.constant 1.000000e+00 : f32
    %328 = vector.broadcast %cst_77 : f32 to vector<16x30xf32>
    %329 = arith.addf %328, %327 : vector<16x30xf32>
    %330 = arith.divf %328, %329 : vector<16x30xf32>
    %331 = vector.extract_strided_slice %324 {offsets = [0, 30], sizes = [16, 10], strides = [1, 1]} : vector<16x40xf32> to vector<16x10xf32>
    %332 = math.tanh %331 : vector<16x10xf32>
    %333 = vector.extract_strided_slice %330 {offsets = [0, 10], sizes = [16, 10], strides = [1, 1]} : vector<16x30xf32> to vector<16x10xf32>
    %334 = arith.mulf %333, %317 : vector<16x10xf32>
    %335 = vector.extract_strided_slice %330 {offsets = [0, 0], sizes = [16, 10], strides = [1, 1]} : vector<16x30xf32> to vector<16x10xf32>
    %336 = arith.mulf %335, %332 : vector<16x10xf32>
    %337 = arith.addf %334, %336 : vector<16x10xf32>
    %338 = vector.extract_strided_slice %330 {offsets = [0, 20], sizes = [16, 10], strides = [1, 1]} : vector<16x30xf32> to vector<16x10xf32>
    %339 = math.tanh %337 : vector<16x10xf32>
    %340 = arith.mulf %338, %339 : vector<16x10xf32>
    %c0_78 = arith.constant 0 : index
    %c50_79 = arith.constant 50 : index
    %341 = vector.load %arg18[%c0_78, %c50_79] : memref<16x100xf32, #tpu.memory_space<vmem>>, vector<16x10xf32>
    tpu.vector_store %arg18[%c0_78, %c50_79], %340 {strides = array<i32>} : memref<16x100xf32, #tpu.memory_space<vmem>>, vector<16x10xf32>,
    %342 = vector.extract_strided_slice %218 {offsets = [0, 240], sizes = [16, 40], strides = [1, 1]} : vector<16x400xf32> to vector<16x40xf32>
    %cst_80 = arith.constant dense<0.000000e+00> : vector<16x40xf32>
    %343 = tpu.matmul %340, %219, %cst_80 {dimension_numbers = #tpu.dot_dimension_numbers<[1], [0], [0], [1], [0, 0, 1, 1], [], []>} : vector<16x10xf32>, vector<10x40xf32>, vector<16x40xf32> -> vector<16x40xf32>
    %344 = arith.addf %342, %343 : vector<16x40xf32>
    %345 = vector.extract_strided_slice %344 {offsets = [0, 0], sizes = [16, 30], strides = [1, 1]} : vector<16x40xf32> to vector<16x30xf32>
    %346 = arith.negf %345 : vector<16x30xf32>
    %347 = math.exp %346 : vector<16x30xf32>
    %cst_81 = arith.constant 1.000000e+00 : f32
    %348 = vector.broadcast %cst_81 : f32 to vector<16x30xf32>
    %349 = arith.addf %348, %347 : vector<16x30xf32>
    %350 = arith.divf %348, %349 : vector<16x30xf32>
    %351 = vector.extract_strided_slice %344 {offsets = [0, 30], sizes = [16, 10], strides = [1, 1]} : vector<16x40xf32> to vector<16x10xf32>
    %352 = math.tanh %351 : vector<16x10xf32>
    %353 = vector.extract_strided_slice %350 {offsets = [0, 10], sizes = [16, 10], strides = [1, 1]} : vector<16x30xf32> to vector<16x10xf32>
    %354 = arith.mulf %353, %337 : vector<16x10xf32>
    %355 = vector.extract_strided_slice %350 {offsets = [0, 0], sizes = [16, 10], strides = [1, 1]} : vector<16x30xf32> to vector<16x10xf32>
    %356 = arith.mulf %355, %352 : vector<16x10xf32>
    %357 = arith.addf %354, %356 : vector<16x10xf32>
    %358 = vector.extract_strided_slice %350 {offsets = [0, 20], sizes = [16, 10], strides = [1, 1]} : vector<16x30xf32> to vector<16x10xf32>
    %359 = math.tanh %357 : vector<16x10xf32>
    %360 = arith.mulf %358, %359 : vector<16x10xf32>
    %c0_82 = arith.constant 0 : index
    %c60_83 = arith.constant 60 : index
    %361 = vector.load %arg18[%c0_82, %c60_83] : memref<16x100xf32, #tpu.memory_space<vmem>>, vector<16x10xf32>
    tpu.vector_store %arg18[%c0_82, %c60_83], %360 {strides = array<i32>} : memref<16x100xf32, #tpu.memory_space<vmem>>, vector<16x10xf32>,
    %362 = vector.extract_strided_slice %218 {offsets = [0, 280], sizes = [16, 40], strides = [1, 1]} : vector<16x400xf32> to vector<16x40xf32>
    %cst_84 = arith.constant dense<0.000000e+00> : vector<16x40xf32>
    %363 = tpu.matmul %360, %219, %cst_84 {dimension_numbers = #tpu.dot_dimension_numbers<[1], [0], [0], [1], [0, 0, 1, 1], [], []>} : vector<16x10xf32>, vector<10x40xf32>, vector<16x40xf32> -> vector<16x40xf32>
    %364 = arith.addf %362, %363 : vector<16x40xf32>
    %365 = vector.extract_strided_slice %364 {offsets = [0, 0], sizes = [16, 30], strides = [1, 1]} : vector<16x40xf32> to vector<16x30xf32>
    %366 = arith.negf %365 : vector<16x30xf32>
    %367 = math.exp %366 : vector<16x30xf32>
    %cst_85 = arith.constant 1.000000e+00 : f32
    %368 = vector.broadcast %cst_85 : f32 to vector<16x30xf32>
    %369 = arith.addf %368, %367 : vector<16x30xf32>
    %370 = arith.divf %368, %369 : vector<16x30xf32>
    %371 = vector.extract_strided_slice %364 {offsets = [0, 30], sizes = [16, 10], strides = [1, 1]} : vector<16x40xf32> to vector<16x10xf32>
    %372 = math.tanh %371 : vector<16x10xf32>
    %373 = vector.extract_strided_slice %370 {offsets = [0, 10], sizes = [16, 10], strides = [1, 1]} : vector<16x30xf32> to vector<16x10xf32>
    %374 = arith.mulf %373, %357 : vector<16x10xf32>
    %375 = vector.extract_strided_slice %370 {offsets = [0, 0], sizes = [16, 10], strides = [1, 1]} : vector<16x30xf32> to vector<16x10xf32>
    %376 = arith.mulf %375, %372 : vector<16x10xf32>
    %377 = arith.addf %374, %376 : vector<16x10xf32>
    %378 = vector.extract_strided_slice %370 {offsets = [0, 20], sizes = [16, 10], strides = [1, 1]} : vector<16x30xf32> to vector<16x10xf32>
    %379 = math.tanh %377 : vector<16x10xf32>
    %380 = arith.mulf %378, %379 : vector<16x10xf32>
    %c0_86 = arith.constant 0 : index
    %c70_87 = arith.constant 70 : index
    %381 = vector.load %arg18[%c0_86, %c70_87] : memref<16x100xf32, #tpu.memory_space<vmem>>, vector<16x10xf32>
    tpu.vector_store %arg18[%c0_86, %c70_87], %380 {strides = array<i32>} : memref<16x100xf32, #tpu.memory_space<vmem>>, vector<16x10xf32>,
    %382 = vector.extract_strided_slice %218 {offsets = [0, 320], sizes = [16, 40], strides = [1, 1]} : vector<16x400xf32> to vector<16x40xf32>
    %cst_88 = arith.constant dense<0.000000e+00> : vector<16x40xf32>
    %383 = tpu.matmul %380, %219, %cst_88 {dimension_numbers = #tpu.dot_dimension_numbers<[1], [0], [0], [1], [0, 0, 1, 1], [], []>} : vector<16x10xf32>, vector<10x40xf32>, vector<16x40xf32> -> vector<16x40xf32>
    %384 = arith.addf %382, %383 : vector<16x40xf32>
    %385 = vector.extract_strided_slice %384 {offsets = [0, 0], sizes = [16, 30], strides = [1, 1]} : vector<16x40xf32> to vector<16x30xf32>
    %386 = arith.negf %385 : vector<16x30xf32>
    %387 = math.exp %386 : vector<16x30xf32>
    %cst_89 = arith.constant 1.000000e+00 : f32
    %388 = vector.broadcast %cst_89 : f32 to vector<16x30xf32>
    %389 = arith.addf %388, %387 : vector<16x30xf32>
    %390 = arith.divf %388, %389 : vector<16x30xf32>
    %391 = vector.extract_strided_slice %384 {offsets = [0, 30], sizes = [16, 10], strides = [1, 1]} : vector<16x40xf32> to vector<16x10xf32>
    %392 = math.tanh %391 : vector<16x10xf32>
    %393 = vector.extract_strided_slice %390 {offsets = [0, 10], sizes = [16, 10], strides = [1, 1]} : vector<16x30xf32> to vector<16x10xf32>
    %394 = arith.mulf %393, %377 : vector<16x10xf32>
    %395 = vector.extract_strided_slice %390 {offsets = [0, 0], sizes = [16, 10], strides = [1, 1]} : vector<16x30xf32> to vector<16x10xf32>
    %396 = arith.mulf %395, %392 : vector<16x10xf32>
    %397 = arith.addf %394, %396 : vector<16x10xf32>
    %398 = vector.extract_strided_slice %390 {offsets = [0, 20], sizes = [16, 10], strides = [1, 1]} : vector<16x30xf32> to vector<16x10xf32>
    %399 = math.tanh %397 : vector<16x10xf32>
    %400 = arith.mulf %398, %399 : vector<16x10xf32>
    %c0_90 = arith.constant 0 : index
    %c80_91 = arith.constant 80 : index
    %401 = vector.load %arg18[%c0_90, %c80_91] : memref<16x100xf32, #tpu.memory_space<vmem>>, vector<16x10xf32>
    tpu.vector_store %arg18[%c0_90, %c80_91], %400 {strides = array<i32>} : memref<16x100xf32, #tpu.memory_space<vmem>>, vector<16x10xf32>,
    %402 = vector.extract_strided_slice %218 {offsets = [0, 360], sizes = [16, 40], strides = [1, 1]} : vector<16x400xf32> to vector<16x40xf32>
    %cst_92 = arith.constant dense<0.000000e+00> : vector<16x40xf32>
    %403 = tpu.matmul %400, %219, %cst_92 {dimension_numbers = #tpu.dot_dimension_numbers<[1], [0], [0], [1], [0, 0, 1, 1], [], []>} : vector<16x10xf32>, vector<10x40xf32>, vector<16x40xf32> -> vector<16x40xf32>
    %404 = arith.addf %402, %403 : vector<16x40xf32>
    %405 = vector.extract_strided_slice %404 {offsets = [0, 0], sizes = [16, 30], strides = [1, 1]} : vector<16x40xf32> to vector<16x30xf32>
    %406 = arith.negf %405 : vector<16x30xf32>
    %407 = math.exp %406 : vector<16x30xf32>
    %cst_93 = arith.constant 1.000000e+00 : f32
    %408 = vector.broadcast %cst_93 : f32 to vector<16x30xf32>
    %409 = arith.addf %408, %407 : vector<16x30xf32>
    %410 = arith.divf %408, %409 : vector<16x30xf32>
    %411 = vector.extract_strided_slice %404 {offsets = [0, 30], sizes = [16, 10], strides = [1, 1]} : vector<16x40xf32> to vector<16x10xf32>
    %412 = math.tanh %411 : vector<16x10xf32>
    %413 = vector.extract_strided_slice %410 {offsets = [0, 10], sizes = [16, 10], strides = [1, 1]} : vector<16x30xf32> to vector<16x10xf32>
    %414 = arith.mulf %413, %397 : vector<16x10xf32>
    %415 = vector.extract_strided_slice %410 {offsets = [0, 0], sizes = [16, 10], strides = [1, 1]} : vector<16x30xf32> to vector<16x10xf32>
    %416 = arith.mulf %415, %412 : vector<16x10xf32>
    %417 = arith.addf %414, %416 : vector<16x10xf32>
    %418 = vector.extract_strided_slice %410 {offsets = [0, 20], sizes = [16, 10], strides = [1, 1]} : vector<16x30xf32> to vector<16x10xf32>
    %419 = math.tanh %417 : vector<16x10xf32>
    %420 = arith.mulf %418, %419 : vector<16x10xf32>
    %c0_94 = arith.constant 0 : index
    %c90_95 = arith.constant 90 : index
    %421 = vector.load %arg18[%c0_94, %c90_95] : memref<16x100xf32, #tpu.memory_space<vmem>>, vector<16x10xf32>
    tpu.vector_store %arg18[%c0_94, %c90_95], %420 {strides = array<i32>} : memref<16x100xf32, #tpu.memory_space<vmem>>, vector<16x10xf32>,
    %c0_96 = arith.constant 0 : index
    %c0_97 = arith.constant 0 : index
    %422 = vector.load %arg18[%c0_96, %c0_97] : memref<16x100xf32, #tpu.memory_space<vmem>>, vector<16x100xf32>
    %c0_98 = arith.constant 0 : index
    %c0_99 = arith.constant 0 : index
    %423 = vector.load %arg9[%c0_98, %c0_99] : memref<100x400xf32, #tpu.memory_space<vmem>>, vector<100x400xf32>
    %cst_100 = arith.constant dense<0.000000e+00> : vector<16x400xf32>
    %424 = tpu.matmul %422, %423, %cst_100 {dimension_numbers = #tpu.dot_dimension_numbers<[1], [0], [0], [1], [0, 0, 1, 1], [], []>} : vector<16x100xf32>, vector<100x400xf32>, vector<16x400xf32> -> vector<16x400xf32>
    %c0_101 = arith.constant 0 : index
    %c0_102 = arith.constant 0 : index
    %425 = vector.load %arg10[%c0_101, %c0_102] : memref<1x400xf32, #tpu.memory_space<vmem>>, vector<1x400xf32>
    %426 = vector.broadcast %425 : vector<1x400xf32> to vector<16x400xf32>
    %427 = arith.addf %424, %426 : vector<16x400xf32>
    %c0_103 = arith.constant 0 : index
    %c0_104 = arith.constant 0 : index
    %428 = vector.load %arg11[%c0_103, %c0_104] : memref<10x40xf32, #tpu.memory_space<vmem>>, vector<10x40xf32>
    %cst_105 = arith.constant 0.000000e+00 : f32
    %429 = vector.broadcast %cst_105 : f32 to vector<16x10xf32>
    %cst_106 = arith.constant 0.000000e+00 : f32
    %430 = vector.broadcast %cst_106 : f32 to vector<16x10xf32>
    %431 = vector.extract_strided_slice %427 {offsets = [0, 0], sizes = [16, 40], strides = [1, 1]} : vector<16x400xf32> to vector<16x40xf32>
    %cst_107 = arith.constant dense<0.000000e+00> : vector<16x40xf32>
    %432 = tpu.matmul %429, %428, %cst_107 {dimension_numbers = #tpu.dot_dimension_numbers<[1], [0], [0], [1], [0, 0, 1, 1], [], []>} : vector<16x10xf32>, vector<10x40xf32>, vector<16x40xf32> -> vector<16x40xf32>
    %433 = arith.addf %431, %432 : vector<16x40xf32>
    %434 = vector.extract_strided_slice %433 {offsets = [0, 0], sizes = [16, 30], strides = [1, 1]} : vector<16x40xf32> to vector<16x30xf32>
    %435 = arith.negf %434 : vector<16x30xf32>
    %436 = math.exp %435 : vector<16x30xf32>
    %cst_108 = arith.constant 1.000000e+00 : f32
    %437 = vector.broadcast %cst_108 : f32 to vector<16x30xf32>
    %438 = arith.addf %437, %436 : vector<16x30xf32>
    %439 = arith.divf %437, %438 : vector<16x30xf32>
    %440 = vector.extract_strided_slice %433 {offsets = [0, 30], sizes = [16, 10], strides = [1, 1]} : vector<16x40xf32> to vector<16x10xf32>
    %441 = math.tanh %440 : vector<16x10xf32>
    %442 = vector.extract_strided_slice %439 {offsets = [0, 10], sizes = [16, 10], strides = [1, 1]} : vector<16x30xf32> to vector<16x10xf32>
    %443 = arith.mulf %442, %430 : vector<16x10xf32>
    %444 = vector.extract_strided_slice %439 {offsets = [0, 0], sizes = [16, 10], strides = [1, 1]} : vector<16x30xf32> to vector<16x10xf32>
    %445 = arith.mulf %444, %441 : vector<16x10xf32>
    %446 = arith.addf %443, %445 : vector<16x10xf32>
    %447 = vector.extract_strided_slice %439 {offsets = [0, 20], sizes = [16, 10], strides = [1, 1]} : vector<16x30xf32> to vector<16x10xf32>
    %448 = math.tanh %446 : vector<16x10xf32>
    %449 = arith.mulf %447, %448 : vector<16x10xf32>
    %c0_109 = arith.constant 0 : index
    %c0_110 = arith.constant 0 : index
    %450 = vector.load %arg17[%c0_109, %c0_110] : memref<16x100xf32, #tpu.memory_space<vmem>>, vector<16x10xf32>
    tpu.vector_store %arg17[%c0_109, %c0_110], %449 {strides = array<i32>} : memref<16x100xf32, #tpu.memory_space<vmem>>, vector<16x10xf32>,
    %451 = vector.extract_strided_slice %427 {offsets = [0, 40], sizes = [16, 40], strides = [1, 1]} : vector<16x400xf32> to vector<16x40xf32>
    %cst_111 = arith.constant dense<0.000000e+00> : vector<16x40xf32>
    %452 = tpu.matmul %449, %428, %cst_111 {dimension_numbers = #tpu.dot_dimension_numbers<[1], [0], [0], [1], [0, 0, 1, 1], [], []>} : vector<16x10xf32>, vector<10x40xf32>, vector<16x40xf32> -> vector<16x40xf32>
    %453 = arith.addf %451, %452 : vector<16x40xf32>
    %454 = vector.extract_strided_slice %453 {offsets = [0, 0], sizes = [16, 30], strides = [1, 1]} : vector<16x40xf32> to vector<16x30xf32>
    %455 = arith.negf %454 : vector<16x30xf32>
    %456 = math.exp %455 : vector<16x30xf32>
    %cst_112 = arith.constant 1.000000e+00 : f32
    %457 = vector.broadcast %cst_112 : f32 to vector<16x30xf32>
    %458 = arith.addf %457, %456 : vector<16x30xf32>
    %459 = arith.divf %457, %458 : vector<16x30xf32>
    %460 = vector.extract_strided_slice %453 {offsets = [0, 30], sizes = [16, 10], strides = [1, 1]} : vector<16x40xf32> to vector<16x10xf32>
    %461 = math.tanh %460 : vector<16x10xf32>
    %462 = vector.extract_strided_slice %459 {offsets = [0, 10], sizes = [16, 10], strides = [1, 1]} : vector<16x30xf32> to vector<16x10xf32>
    %463 = arith.mulf %462, %446 : vector<16x10xf32>
    %464 = vector.extract_strided_slice %459 {offsets = [0, 0], sizes = [16, 10], strides = [1, 1]} : vector<16x30xf32> to vector<16x10xf32>
    %465 = arith.mulf %464, %461 : vector<16x10xf32>
    %466 = arith.addf %463, %465 : vector<16x10xf32>
    %467 = vector.extract_strided_slice %459 {offsets = [0, 20], sizes = [16, 10], strides = [1, 1]} : vector<16x30xf32> to vector<16x10xf32>
    %468 = math.tanh %466 : vector<16x10xf32>
    %469 = arith.mulf %467, %468 : vector<16x10xf32>
    %c0_113 = arith.constant 0 : index
    %c10_114 = arith.constant 10 : index
    %470 = vector.load %arg17[%c0_113, %c10_114] : memref<16x100xf32, #tpu.memory_space<vmem>>, vector<16x10xf32>
    tpu.vector_store %arg17[%c0_113, %c10_114], %469 {strides = array<i32>} : memref<16x100xf32, #tpu.memory_space<vmem>>, vector<16x10xf32>,
    %471 = vector.extract_strided_slice %427 {offsets = [0, 80], sizes = [16, 40], strides = [1, 1]} : vector<16x400xf32> to vector<16x40xf32>
    %cst_115 = arith.constant dense<0.000000e+00> : vector<16x40xf32>
    %472 = tpu.matmul %469, %428, %cst_115 {dimension_numbers = #tpu.dot_dimension_numbers<[1], [0], [0], [1], [0, 0, 1, 1], [], []>} : vector<16x10xf32>, vector<10x40xf32>, vector<16x40xf32> -> vector<16x40xf32>
    %473 = arith.addf %471, %472 : vector<16x40xf32>
    %474 = vector.extract_strided_slice %473 {offsets = [0, 0], sizes = [16, 30], strides = [1, 1]} : vector<16x40xf32> to vector<16x30xf32>
    %475 = arith.negf %474 : vector<16x30xf32>
    %476 = math.exp %475 : vector<16x30xf32>
    %cst_116 = arith.constant 1.000000e+00 : f32
    %477 = vector.broadcast %cst_116 : f32 to vector<16x30xf32>
    %478 = arith.addf %477, %476 : vector<16x30xf32>
    %479 = arith.divf %477, %478 : vector<16x30xf32>
    %480 = vector.extract_strided_slice %473 {offsets = [0, 30], sizes = [16, 10], strides = [1, 1]} : vector<16x40xf32> to vector<16x10xf32>
    %481 = math.tanh %480 : vector<16x10xf32>
    %482 = vector.extract_strided_slice %479 {offsets = [0, 10], sizes = [16, 10], strides = [1, 1]} : vector<16x30xf32> to vector<16x10xf32>
    %483 = arith.mulf %482, %466 : vector<16x10xf32>
    %484 = vector.extract_strided_slice %479 {offsets = [0, 0], sizes = [16, 10], strides = [1, 1]} : vector<16x30xf32> to vector<16x10xf32>
    %485 = arith.mulf %484, %481 : vector<16x10xf32>
    %486 = arith.addf %483, %485 : vector<16x10xf32>
    %487 = vector.extract_strided_slice %479 {offsets = [0, 20], sizes = [16, 10], strides = [1, 1]} : vector<16x30xf32> to vector<16x10xf32>
    %488 = math.tanh %486 : vector<16x10xf32>
    %489 = arith.mulf %487, %488 : vector<16x10xf32>
    %c0_117 = arith.constant 0 : index
    %c20_118 = arith.constant 20 : index
    %490 = vector.load %arg17[%c0_117, %c20_118] : memref<16x100xf32, #tpu.memory_space<vmem>>, vector<16x10xf32>
    tpu.vector_store %arg17[%c0_117, %c20_118], %489 {strides = array<i32>} : memref<16x100xf32, #tpu.memory_space<vmem>>, vector<16x10xf32>,
    %491 = vector.extract_strided_slice %427 {offsets = [0, 120], sizes = [16, 40], strides = [1, 1]} : vector<16x400xf32> to vector<16x40xf32>
    %cst_119 = arith.constant dense<0.000000e+00> : vector<16x40xf32>
    %492 = tpu.matmul %489, %428, %cst_119 {dimension_numbers = #tpu.dot_dimension_numbers<[1], [0], [0], [1], [0, 0, 1, 1], [], []>} : vector<16x10xf32>, vector<10x40xf32>, vector<16x40xf32> -> vector<16x40xf32>
    %493 = arith.addf %491, %492 : vector<16x40xf32>
    %494 = vector.extract_strided_slice %493 {offsets = [0, 0], sizes = [16, 30], strides = [1, 1]} : vector<16x40xf32> to vector<16x30xf32>
    %495 = arith.negf %494 : vector<16x30xf32>
    %496 = math.exp %495 : vector<16x30xf32>
    %cst_120 = arith.constant 1.000000e+00 : f32
    %497 = vector.broadcast %cst_120 : f32 to vector<16x30xf32>
    %498 = arith.addf %497, %496 : vector<16x30xf32>
    %499 = arith.divf %497, %498 : vector<16x30xf32>
    %500 = vector.extract_strided_slice %493 {offsets = [0, 30], sizes = [16, 10], strides = [1, 1]} : vector<16x40xf32> to vector<16x10xf32>
    %501 = math.tanh %500 : vector<16x10xf32>
    %502 = vector.extract_strided_slice %499 {offsets = [0, 10], sizes = [16, 10], strides = [1, 1]} : vector<16x30xf32> to vector<16x10xf32>
    %503 = arith.mulf %502, %486 : vector<16x10xf32>
    %504 = vector.extract_strided_slice %499 {offsets = [0, 0], sizes = [16, 10], strides = [1, 1]} : vector<16x30xf32> to vector<16x10xf32>
    %505 = arith.mulf %504, %501 : vector<16x10xf32>
    %506 = arith.addf %503, %505 : vector<16x10xf32>
    %507 = vector.extract_strided_slice %499 {offsets = [0, 20], sizes = [16, 10], strides = [1, 1]} : vector<16x30xf32> to vector<16x10xf32>
    %508 = math.tanh %506 : vector<16x10xf32>
    %509 = arith.mulf %507, %508 : vector<16x10xf32>
    %c0_121 = arith.constant 0 : index
    %c30_122 = arith.constant 30 : index
    %510 = vector.load %arg17[%c0_121, %c30_122] : memref<16x100xf32, #tpu.memory_space<vmem>>, vector<16x10xf32>
    tpu.vector_store %arg17[%c0_121, %c30_122], %509 {strides = array<i32>} : memref<16x100xf32, #tpu.memory_space<vmem>>, vector<16x10xf32>,
    %511 = vector.extract_strided_slice %427 {offsets = [0, 160], sizes = [16, 40], strides = [1, 1]} : vector<16x400xf32> to vector<16x40xf32>
    %cst_123 = arith.constant dense<0.000000e+00> : vector<16x40xf32>
    %512 = tpu.matmul %509, %428, %cst_123 {dimension_numbers = #tpu.dot_dimension_numbers<[1], [0], [0], [1], [0, 0, 1, 1], [], []>} : vector<16x10xf32>, vector<10x40xf32>, vector<16x40xf32> -> vector<16x40xf32>
    %513 = arith.addf %511, %512 : vector<16x40xf32>
    %514 = vector.extract_strided_slice %513 {offsets = [0, 0], sizes = [16, 30], strides = [1, 1]} : vector<16x40xf32> to vector<16x30xf32>
    %515 = arith.negf %514 : vector<16x30xf32>
    %516 = math.exp %515 : vector<16x30xf32>
    %cst_124 = arith.constant 1.000000e+00 : f32
    %517 = vector.broadcast %cst_124 : f32 to vector<16x30xf32>
    %518 = arith.addf %517, %516 : vector<16x30xf32>
    %519 = arith.divf %517, %518 : vector<16x30xf32>
    %520 = vector.extract_strided_slice %513 {offsets = [0, 30], sizes = [16, 10], strides = [1, 1]} : vector<16x40xf32> to vector<16x10xf32>
    %521 = math.tanh %520 : vector<16x10xf32>
    %522 = vector.extract_strided_slice %519 {offsets = [0, 10], sizes = [16, 10], strides = [1, 1]} : vector<16x30xf32> to vector<16x10xf32>
    %523 = arith.mulf %522, %506 : vector<16x10xf32>
    %524 = vector.extract_strided_slice %519 {offsets = [0, 0], sizes = [16, 10], strides = [1, 1]} : vector<16x30xf32> to vector<16x10xf32>
    %525 = arith.mulf %524, %521 : vector<16x10xf32>
    %526 = arith.addf %523, %525 : vector<16x10xf32>
    %527 = vector.extract_strided_slice %519 {offsets = [0, 20], sizes = [16, 10], strides = [1, 1]} : vector<16x30xf32> to vector<16x10xf32>
    %528 = math.tanh %526 : vector<16x10xf32>
    %529 = arith.mulf %527, %528 : vector<16x10xf32>
    %c0_125 = arith.constant 0 : index
    %c40_126 = arith.constant 40 : index
    %530 = vector.load %arg17[%c0_125, %c40_126] : memref<16x100xf32, #tpu.memory_space<vmem>>, vector<16x10xf32>
    tpu.vector_store %arg17[%c0_125, %c40_126], %529 {strides = array<i32>} : memref<16x100xf32, #tpu.memory_space<vmem>>, vector<16x10xf32>,
    %531 = vector.extract_strided_slice %427 {offsets = [0, 200], sizes = [16, 40], strides = [1, 1]} : vector<16x400xf32> to vector<16x40xf32>
    %cst_127 = arith.constant dense<0.000000e+00> : vector<16x40xf32>
    %532 = tpu.matmul %529, %428, %cst_127 {dimension_numbers = #tpu.dot_dimension_numbers<[1], [0], [0], [1], [0, 0, 1, 1], [], []>} : vector<16x10xf32>, vector<10x40xf32>, vector<16x40xf32> -> vector<16x40xf32>
    %533 = arith.addf %531, %532 : vector<16x40xf32>
    %534 = vector.extract_strided_slice %533 {offsets = [0, 0], sizes = [16, 30], strides = [1, 1]} : vector<16x40xf32> to vector<16x30xf32>
    %535 = arith.negf %534 : vector<16x30xf32>
    %536 = math.exp %535 : vector<16x30xf32>
    %cst_128 = arith.constant 1.000000e+00 : f32
    %537 = vector.broadcast %cst_128 : f32 to vector<16x30xf32>
    %538 = arith.addf %537, %536 : vector<16x30xf32>
    %539 = arith.divf %537, %538 : vector<16x30xf32>
    %540 = vector.extract_strided_slice %533 {offsets = [0, 30], sizes = [16, 10], strides = [1, 1]} : vector<16x40xf32> to vector<16x10xf32>
    %541 = math.tanh %540 : vector<16x10xf32>
    %542 = vector.extract_strided_slice %539 {offsets = [0, 10], sizes = [16, 10], strides = [1, 1]} : vector<16x30xf32> to vector<16x10xf32>
    %543 = arith.mulf %542, %526 : vector<16x10xf32>
    %544 = vector.extract_strided_slice %539 {offsets = [0, 0], sizes = [16, 10], strides = [1, 1]} : vector<16x30xf32> to vector<16x10xf32>
    %545 = arith.mulf %544, %541 : vector<16x10xf32>
    %546 = arith.addf %543, %545 : vector<16x10xf32>
    %547 = vector.extract_strided_slice %539 {offsets = [0, 20], sizes = [16, 10], strides = [1, 1]} : vector<16x30xf32> to vector<16x10xf32>
    %548 = math.tanh %546 : vector<16x10xf32>
    %549 = arith.mulf %547, %548 : vector<16x10xf32>
    %c0_129 = arith.constant 0 : index
    %c50_130 = arith.constant 50 : index
    %550 = vector.load %arg17[%c0_129, %c50_130] : memref<16x100xf32, #tpu.memory_space<vmem>>, vector<16x10xf32>
    tpu.vector_store %arg17[%c0_129, %c50_130], %549 {strides = array<i32>} : memref<16x100xf32, #tpu.memory_space<vmem>>, vector<16x10xf32>,
    %551 = vector.extract_strided_slice %427 {offsets = [0, 240], sizes = [16, 40], strides = [1, 1]} : vector<16x400xf32> to vector<16x40xf32>
    %cst_131 = arith.constant dense<0.000000e+00> : vector<16x40xf32>
    %552 = tpu.matmul %549, %428, %cst_131 {dimension_numbers = #tpu.dot_dimension_numbers<[1], [0], [0], [1], [0, 0, 1, 1], [], []>} : vector<16x10xf32>, vector<10x40xf32>, vector<16x40xf32> -> vector<16x40xf32>
    %553 = arith.addf %551, %552 : vector<16x40xf32>
    %554 = vector.extract_strided_slice %553 {offsets = [0, 0], sizes = [16, 30], strides = [1, 1]} : vector<16x40xf32> to vector<16x30xf32>
    %555 = arith.negf %554 : vector<16x30xf32>
    %556 = math.exp %555 : vector<16x30xf32>
    %cst_132 = arith.constant 1.000000e+00 : f32
    %557 = vector.broadcast %cst_132 : f32 to vector<16x30xf32>
    %558 = arith.addf %557, %556 : vector<16x30xf32>
    %559 = arith.divf %557, %558 : vector<16x30xf32>
    %560 = vector.extract_strided_slice %553 {offsets = [0, 30], sizes = [16, 10], strides = [1, 1]} : vector<16x40xf32> to vector<16x10xf32>
    %561 = math.tanh %560 : vector<16x10xf32>
    %562 = vector.extract_strided_slice %559 {offsets = [0, 10], sizes = [16, 10], strides = [1, 1]} : vector<16x30xf32> to vector<16x10xf32>
    %563 = arith.mulf %562, %546 : vector<16x10xf32>
    %564 = vector.extract_strided_slice %559 {offsets = [0, 0], sizes = [16, 10], strides = [1, 1]} : vector<16x30xf32> to vector<16x10xf32>
    %565 = arith.mulf %564, %561 : vector<16x10xf32>
    %566 = arith.addf %563, %565 : vector<16x10xf32>
    %567 = vector.extract_strided_slice %559 {offsets = [0, 20], sizes = [16, 10], strides = [1, 1]} : vector<16x30xf32> to vector<16x10xf32>
    %568 = math.tanh %566 : vector<16x10xf32>
    %569 = arith.mulf %567, %568 : vector<16x10xf32>
    %c0_133 = arith.constant 0 : index
    %c60_134 = arith.constant 60 : index
    %570 = vector.load %arg17[%c0_133, %c60_134] : memref<16x100xf32, #tpu.memory_space<vmem>>, vector<16x10xf32>
    tpu.vector_store %arg17[%c0_133, %c60_134], %569 {strides = array<i32>} : memref<16x100xf32, #tpu.memory_space<vmem>>, vector<16x10xf32>,
    %571 = vector.extract_strided_slice %427 {offsets = [0, 280], sizes = [16, 40], strides = [1, 1]} : vector<16x400xf32> to vector<16x40xf32>
    %cst_135 = arith.constant dense<0.000000e+00> : vector<16x40xf32>
    %572 = tpu.matmul %569, %428, %cst_135 {dimension_numbers = #tpu.dot_dimension_numbers<[1], [0], [0], [1], [0, 0, 1, 1], [], []>} : vector<16x10xf32>, vector<10x40xf32>, vector<16x40xf32> -> vector<16x40xf32>
    %573 = arith.addf %571, %572 : vector<16x40xf32>
    %574 = vector.extract_strided_slice %573 {offsets = [0, 0], sizes = [16, 30], strides = [1, 1]} : vector<16x40xf32> to vector<16x30xf32>
    %575 = arith.negf %574 : vector<16x30xf32>
    %576 = math.exp %575 : vector<16x30xf32>
    %cst_136 = arith.constant 1.000000e+00 : f32
    %577 = vector.broadcast %cst_136 : f32 to vector<16x30xf32>
    %578 = arith.addf %577, %576 : vector<16x30xf32>
    %579 = arith.divf %577, %578 : vector<16x30xf32>
    %580 = vector.extract_strided_slice %573 {offsets = [0, 30], sizes = [16, 10], strides = [1, 1]} : vector<16x40xf32> to vector<16x10xf32>
    %581 = math.tanh %580 : vector<16x10xf32>
    %582 = vector.extract_strided_slice %579 {offsets = [0, 10], sizes = [16, 10], strides = [1, 1]} : vector<16x30xf32> to vector<16x10xf32>
    %583 = arith.mulf %582, %566 : vector<16x10xf32>
    %584 = vector.extract_strided_slice %579 {offsets = [0, 0], sizes = [16, 10], strides = [1, 1]} : vector<16x30xf32> to vector<16x10xf32>
    %585 = arith.mulf %584, %581 : vector<16x10xf32>
    %586 = arith.addf %583, %585 : vector<16x10xf32>
    %587 = vector.extract_strided_slice %579 {offsets = [0, 20], sizes = [16, 10], strides = [1, 1]} : vector<16x30xf32> to vector<16x10xf32>
    %588 = math.tanh %586 : vector<16x10xf32>
    %589 = arith.mulf %587, %588 : vector<16x10xf32>
    %c0_137 = arith.constant 0 : index
    %c70_138 = arith.constant 70 : index
    %590 = vector.load %arg17[%c0_137, %c70_138] : memref<16x100xf32, #tpu.memory_space<vmem>>, vector<16x10xf32>
    tpu.vector_store %arg17[%c0_137, %c70_138], %589 {strides = array<i32>} : memref<16x100xf32, #tpu.memory_space<vmem>>, vector<16x10xf32>,
    %591 = vector.extract_strided_slice %427 {offsets = [0, 320], sizes = [16, 40], strides = [1, 1]} : vector<16x400xf32> to vector<16x40xf32>
    %cst_139 = arith.constant dense<0.000000e+00> : vector<16x40xf32>
    %592 = tpu.matmul %589, %428, %cst_139 {dimension_numbers = #tpu.dot_dimension_numbers<[1], [0], [0], [1], [0, 0, 1, 1], [], []>} : vector<16x10xf32>, vector<10x40xf32>, vector<16x40xf32> -> vector<16x40xf32>
    %593 = arith.addf %591, %592 : vector<16x40xf32>
    %594 = vector.extract_strided_slice %593 {offsets = [0, 0], sizes = [16, 30], strides = [1, 1]} : vector<16x40xf32> to vector<16x30xf32>
    %595 = arith.negf %594 : vector<16x30xf32>
    %596 = math.exp %595 : vector<16x30xf32>
    %cst_140 = arith.constant 1.000000e+00 : f32
    %597 = vector.broadcast %cst_140 : f32 to vector<16x30xf32>
    %598 = arith.addf %597, %596 : vector<16x30xf32>
    %599 = arith.divf %597, %598 : vector<16x30xf32>
    %600 = vector.extract_strided_slice %593 {offsets = [0, 30], sizes = [16, 10], strides = [1, 1]} : vector<16x40xf32> to vector<16x10xf32>
    %601 = math.tanh %600 : vector<16x10xf32>
    %602 = vector.extract_strided_slice %599 {offsets = [0, 10], sizes = [16, 10], strides = [1, 1]} : vector<16x30xf32> to vector<16x10xf32>
    %603 = arith.mulf %602, %586 : vector<16x10xf32>
    %604 = vector.extract_strided_slice %599 {offsets = [0, 0], sizes = [16, 10], strides = [1, 1]} : vector<16x30xf32> to vector<16x10xf32>
    %605 = arith.mulf %604, %601 : vector<16x10xf32>
    %606 = arith.addf %603, %605 : vector<16x10xf32>
    %607 = vector.extract_strided_slice %599 {offsets = [0, 20], sizes = [16, 10], strides = [1, 1]} : vector<16x30xf32> to vector<16x10xf32>
    %608 = math.tanh %606 : vector<16x10xf32>
    %609 = arith.mulf %607, %608 : vector<16x10xf32>
    %c0_141 = arith.constant 0 : index
    %c80_142 = arith.constant 80 : index
    %610 = vector.load %arg17[%c0_141, %c80_142] : memref<16x100xf32, #tpu.memory_space<vmem>>, vector<16x10xf32>
    tpu.vector_store %arg17[%c0_141, %c80_142], %609 {strides = array<i32>} : memref<16x100xf32, #tpu.memory_space<vmem>>, vector<16x10xf32>,
    %611 = vector.extract_strided_slice %427 {offsets = [0, 360], sizes = [16, 40], strides = [1, 1]} : vector<16x400xf32> to vector<16x40xf32>
    %cst_143 = arith.constant dense<0.000000e+00> : vector<16x40xf32>
    %612 = tpu.matmul %609, %428, %cst_143 {dimension_numbers = #tpu.dot_dimension_numbers<[1], [0], [0], [1], [0, 0, 1, 1], [], []>} : vector<16x10xf32>, vector<10x40xf32>, vector<16x40xf32> -> vector<16x40xf32>
    %613 = arith.addf %611, %612 : vector<16x40xf32>
    %614 = vector.extract_strided_slice %613 {offsets = [0, 0], sizes = [16, 30], strides = [1, 1]} : vector<16x40xf32> to vector<16x30xf32>
    %615 = arith.negf %614 : vector<16x30xf32>
    %616 = math.exp %615 : vector<16x30xf32>
    %cst_144 = arith.constant 1.000000e+00 : f32
    %617 = vector.broadcast %cst_144 : f32 to vector<16x30xf32>
    %618 = arith.addf %617, %616 : vector<16x30xf32>
    %619 = arith.divf %617, %618 : vector<16x30xf32>
    %620 = vector.extract_strided_slice %613 {offsets = [0, 30], sizes = [16, 10], strides = [1, 1]} : vector<16x40xf32> to vector<16x10xf32>
    %621 = math.tanh %620 : vector<16x10xf32>
    %622 = vector.extract_strided_slice %619 {offsets = [0, 10], sizes = [16, 10], strides = [1, 1]} : vector<16x30xf32> to vector<16x10xf32>
    %623 = arith.mulf %622, %606 : vector<16x10xf32>
    %624 = vector.extract_strided_slice %619 {offsets = [0, 0], sizes = [16, 10], strides = [1, 1]} : vector<16x30xf32> to vector<16x10xf32>
    %625 = arith.mulf %624, %621 : vector<16x10xf32>
    %626 = arith.addf %623, %625 : vector<16x10xf32>
    %627 = vector.extract_strided_slice %619 {offsets = [0, 20], sizes = [16, 10], strides = [1, 1]} : vector<16x30xf32> to vector<16x10xf32>
    %628 = math.tanh %626 : vector<16x10xf32>
    %629 = arith.mulf %627, %628 : vector<16x10xf32>
    %c0_145 = arith.constant 0 : index
    %c90_146 = arith.constant 90 : index
    %630 = vector.load %arg17[%c0_145, %c90_146] : memref<16x100xf32, #tpu.memory_space<vmem>>, vector<16x10xf32>
    tpu.vector_store %arg17[%c0_145, %c90_146], %629 {strides = array<i32>} : memref<16x100xf32, #tpu.memory_space<vmem>>, vector<16x10xf32>,
    %c0_147 = arith.constant 0 : index
    %c0_148 = arith.constant 0 : index
    %631 = vector.load %arg17[%c0_147, %c0_148] : memref<16x100xf32, #tpu.memory_space<vmem>>, vector<16x100xf32>
    %cst_149 = arith.constant dense<0.000000e+00> : vector<16x100xf32>
    %632 = tpu.matmul %1, %631, %cst_149 {dimension_numbers = #tpu.dot_dimension_numbers<[1], [0], [0], [1], [0, 0, 1, 1], [], []>} : vector<16x16xf32>, vector<16x100xf32>, vector<16x100xf32> -> vector<16x100xf32>
    %c0_150 = arith.constant 0 : index
    %c0_151 = arith.constant 0 : index
    %633 = vector.load %arg12[%c0_150, %c0_151] : memref<100x50xf32, #tpu.memory_space<vmem>>, vector<100x50xf32>
    %cst_152 = arith.constant dense<0.000000e+00> : vector<16x50xf32>
    %634 = tpu.matmul %632, %633, %cst_152 {dimension_numbers = #tpu.dot_dimension_numbers<[1], [0], [0], [1], [0, 0, 1, 1], [], []>} : vector<16x100xf32>, vector<100x50xf32>, vector<16x50xf32> -> vector<16x50xf32>
    %c0_153 = arith.constant 0 : index
    %c0_154 = arith.constant 0 : index
    %635 = vector.load %arg13[%c0_153, %c0_154] : memref<1x50xf32, #tpu.memory_space<vmem>>, vector<1x50xf32>
    %636 = vector.broadcast %635 : vector<1x50xf32> to vector<16x50xf32>
    %637 = arith.addf %634, %636 : vector<16x50xf32>
    %cst_155 = arith.constant 0.000000e+00 : f32
    %638 = vector.broadcast %cst_155 : f32 to vector<16x50xf32>
    %639 = arith.maximumf %637, %638 : vector<16x50xf32>
    %cst_156 = arith.constant dense<0.000000e+00> : vector<16x50xf32>
    %640 = tpu.matmul %1, %639, %cst_156 {dimension_numbers = #tpu.dot_dimension_numbers<[1], [0], [0], [1], [0, 0, 1, 1], [], []>} : vector<16x16xf32>, vector<16x50xf32>, vector<16x50xf32> -> vector<16x50xf32>
    %c0_157 = arith.constant 0 : index
    %c0_158 = arith.constant 0 : index
    %641 = vector.load %arg14[%c0_157, %c0_158] : memref<50x2xf32, #tpu.memory_space<vmem>>, vector<50x2xf32>
    %cst_159 = arith.constant dense<0.000000e+00> : vector<16x2xf32>
    %642 = tpu.matmul %640, %641, %cst_159 {dimension_numbers = #tpu.dot_dimension_numbers<[1], [0], [0], [1], [0, 0, 1, 1], [], []>} : vector<16x50xf32>, vector<50x2xf32>, vector<16x2xf32> -> vector<16x2xf32>
    %c0_160 = arith.constant 0 : index
    %c0_161 = arith.constant 0 : index
    %643 = vector.load %arg15[%c0_160, %c0_161] : memref<1x2xf32, #tpu.memory_space<vmem>>, vector<1x2xf32>
    %644 = vector.broadcast %643 : vector<1x2xf32> to vector<16x2xf32>
    %645 = arith.addf %642, %644 : vector<16x2xf32>
    %646 = arith.negf %645 : vector<16x2xf32>
    %647 = math.exp %646 : vector<16x2xf32>
    %cst_162 = arith.constant 1.000000e+00 : f32
    %648 = vector.broadcast %cst_162 : f32 to vector<16x2xf32>
    %649 = arith.addf %648, %647 : vector<16x2xf32>
    %650 = arith.divf %648, %649 : vector<16x2xf32>
    %c0_163 = arith.constant 0 : index
    %c0_164 = arith.constant 0 : index
    %c0_165 = arith.constant 0 : index
    %651 = vector.load %arg16[%c0_163, %c0_164, %c0_165] : memref<1x16x2xf32, #tpu.memory_space<vmem>>, vector<1x16x2xf32>
    %652 = vector.shape_cast %651 : vector<1x16x2xf32> to vector<16x2xf32>
    %653 = vector.shape_cast %650 : vector<16x2xf32> to vector<1x16x2xf32>
    tpu.vector_store %arg16[%c0_163, %c0_164, %c0_165], %653 {strides = array<i32>} : memref<1x16x2xf32, #tpu.memory_space<vmem>>, vector<1x16x2xf32>,
    return
  }
  func.func @transform_0(%arg0: i32) -> (i32, i32, i32) {
    %c0_i32 = arith.constant 0 : i32
    %c0_i32_0 = arith.constant 0 : i32
    %c0_i32_1 = arith.constant 0 : i32
    return %arg0, %c0_i32, %c0_i32_0 : i32, i32, i32
  }
  func.func @transform_1(%arg0: i32) -> (i32, i32, i32) {
    %c0_i32 = arith.constant 0 : i32
    %c0_i32_0 = arith.constant 0 : i32
    %c0_i32_1 = arith.constant 0 : i32
    return %arg0, %c0_i32, %c0_i32_0 : i32, i32, i32
  }
  func.func @transform_2(%arg0: i32) -> (i32, i32) {
    %c0_i32 = arith.constant 0 : i32
    %c0_i32_0 = arith.constant 0 : i32
    %c0_i32_1 = arith.constant 0 : i32
    return %c0_i32, %c0_i32_0 : i32, i32
  }
  func.func @transform_3(%arg0: i32) -> (i32, i32) {
    %c0_i32 = arith.constant 0 : i32
    %c0_i32_0 = arith.constant 0 : i32
    %c0_i32_1 = arith.constant 0 : i32
    return %c0_i32, %c0_i32_0 : i32, i32
  }
  func.func @transform_4(%arg0: i32) -> (i32, i32) {
    %c0_i32 = arith.constant 0 : i32
    %c0_i32_0 = arith.constant 0 : i32
    %c0_i32_1 = arith.constant 0 : i32
    return %c0_i32, %c0_i32_0 : i32, i32
  }
  func.func @transform_5(%arg0: i32) -> (i32, i32) {
    %c0_i32 = arith.constant 0 : i32
    %c0_i32_0 = arith.constant 0 : i32
    %c0_i32_1 = arith.constant 0 : i32
    return %c0_i32, %c0_i32_0 : i32, i32
  }
  func.func @transform_6(%arg0: i32) -> (i32, i32) {
    %c0_i32 = arith.constant 0 : i32
    %c0_i32_0 = arith.constant 0 : i32
    %c0_i32_1 = arith.constant 0 : i32
    return %c0_i32, %c0_i32_0 : i32, i32
  }
  func.func @transform_7(%arg0: i32) -> (i32, i32) {
    %c0_i32 = arith.constant 0 : i32
    %c0_i32_0 = arith.constant 0 : i32
    %c0_i32_1 = arith.constant 0 : i32
    return %c0_i32, %c0_i32_0 : i32, i32
  }
  func.func @transform_8(%arg0: i32) -> (i32, i32) {
    %c0_i32 = arith.constant 0 : i32
    %c0_i32_0 = arith.constant 0 : i32
    %c0_i32_1 = arith.constant 0 : i32
    return %c0_i32, %c0_i32_0 : i32, i32
  }
  func.func @transform_9(%arg0: i32) -> (i32, i32) {
    %c0_i32 = arith.constant 0 : i32
    %c0_i32_0 = arith.constant 0 : i32
    %c0_i32_1 = arith.constant 0 : i32
    return %c0_i32, %c0_i32_0 : i32, i32
  }
  func.func @transform_10(%arg0: i32) -> (i32, i32) {
    %c0_i32 = arith.constant 0 : i32
    %c0_i32_0 = arith.constant 0 : i32
    %c0_i32_1 = arith.constant 0 : i32
    return %c0_i32, %c0_i32_0 : i32, i32
  }
  func.func @transform_11(%arg0: i32) -> (i32, i32) {
    %c0_i32 = arith.constant 0 : i32
    %c0_i32_0 = arith.constant 0 : i32
    %c0_i32_1 = arith.constant 0 : i32
    return %c0_i32, %c0_i32_0 : i32, i32
  }
  func.func @transform_12(%arg0: i32) -> (i32, i32) {
    %c0_i32 = arith.constant 0 : i32
    %c0_i32_0 = arith.constant 0 : i32
    %c0_i32_1 = arith.constant 0 : i32
    return %c0_i32, %c0_i32_0 : i32, i32
  }
  func.func @transform_13(%arg0: i32) -> (i32, i32) {
    %c0_i32 = arith.constant 0 : i32
    %c0_i32_0 = arith.constant 0 : i32
    %c0_i32_1 = arith.constant 0 : i32
    return %c0_i32, %c0_i32_0 : i32, i32
  }
  func.func @transform_14(%arg0: i32) -> (i32, i32) {
    %c0_i32 = arith.constant 0 : i32
    %c0_i32_0 = arith.constant 0 : i32
    %c0_i32_1 = arith.constant 0 : i32
    return %c0_i32, %c0_i32_0 : i32, i32
  }
  func.func @transform_15(%arg0: i32) -> (i32, i32, i32) {
    %c0_i32 = arith.constant 0 : i32
    %c0_i32_0 = arith.constant 0 : i32
    %c0_i32_1 = arith.constant 0 : i32
    return %arg0, %c0_i32, %c0_i32_0 : i32, i32, i32
  }
}

</mosaic_0001>

<llo_original>
// kernel: tpu_custom_call.1
$region0: #{tpu_custom_call.1}
  #allocation0 [shape = 'u32[]', space=smem, size = 0x4, offset = 0x4, fixed_abs, tag = 'smem constant byte address 0x4 - core index']
  #allocation1 [shape = 'u32[144,128]{1,0:T(1,128)}', space=vmem, size = 0x12000, scoped, tag = 'internal scratch']
  #allocation2 [shape = 'f32[16,100]{1,0:T(8,128)}', space=vmem, size = 0x2000, scoped, tag = 'scratch operand']
  #allocation3 [shape = 'f32[16,100]{1,0:T(8,128)}', space=vmem, size = 0x2000, scoped, tag = 'scratch operand']
  %s0 = inlined_call_operand.vmem [shape: f32[2,16,16], index: 0, kind: input, shape index: {}]
  %s1 = inlined_call_operand.vmem [shape: f32[2,16,20], index: 1, kind: input, shape index: {}]
  %s2 = inlined_call_operand.vmem [shape: f32[20,400], index: 2, kind: input, shape index: {}]
  %s3 = inlined_call_operand.vmem [shape: f32[1,400], index: 3, kind: input, shape index: {}]
  %s4 = inlined_call_operand.vmem [shape: f32[10,40], index: 4, kind: input, shape index: {}]
  %s5 = inlined_call_operand.vmem [shape: f32[100,400], index: 5, kind: input, shape index: {}]
  %s6 = inlined_call_operand.vmem [shape: f32[1,400], index: 6, kind: input, shape index: {}]
  %s7 = inlined_call_operand.vmem [shape: f32[10,40], index: 7, kind: input, shape index: {}]
  %s8 = inlined_call_operand.vmem [shape: f32[100,400], index: 8, kind: input, shape index: {}]
  %s9 = inlined_call_operand.vmem [shape: f32[1,400], index: 9, kind: input, shape index: {}]
  %s10 = inlined_call_operand.vmem [shape: f32[10,40], index: 10, kind: input, shape index: {}]
  %s11 = inlined_call_operand.vmem [shape: f32[100,50], index: 11, kind: input, shape index: {}]
  %s12 = inlined_call_operand.vmem [shape: f32[1,50], index: 12, kind: input, shape index: {}]
  %s13 = inlined_call_operand.vmem [shape: f32[50,2], index: 13, kind: input, shape index: {}]
  %s14 = inlined_call_operand.vmem [shape: f32[1,2], index: 14, kind: input, shape index: {}]
  %s15 = inlined_call_operand.vmem [shape: f32[2,16,2], index: 15, kind: output, shape index: {}]
  %s16 = sld [smem:[#allocation0]]
  $region93: #{tpu_custom_call.1} parent=0
    _
  %s18 = ssub.s32 1, %s16
  %s19 = scalar_select 0, %s18, %s16
  loop: start=0, step=1, limit=4
  $region2: #{tpu_custom_call.1} parent=0 // loop_pre_header
    _
  $region3: #{tpu_custom_call.1} parent=0 // loop_header
    %s21 = sphi 0, %s25
    %p22 = scmp.ge.s32.totalorder %s21, 4
    %s31 = sphi 0, %s33
    %s34 = sphi 0, %s31
    %s35 = sphi 0, %s34
    %s51 = sphi 0, %s35
    %s57 = sphi 0, %s59
    %s60 = sphi 0, %s57
    %s61 = sphi 0, %s60
    %s77 = sphi 0, %s61
    %s81 = sphi 0, %s81
    %s83 = sphi 0, %s81
    %s84 = sphi 0, %s83
    %s98 = sphi 0, %s84
    %s102 = sphi 0, %s102
    %s104 = sphi 0, %s102
    %s105 = sphi 0, %s104
    %s119 = sphi 0, %s105
    %s123 = sphi 0, %s123
    %s125 = sphi 0, %s123
    %s126 = sphi 0, %s125
    %s140 = sphi 0, %s126
    %s144 = sphi 0, %s144
    %s146 = sphi 0, %s144
    %s147 = sphi 0, %s146
    %s161 = sphi 0, %s147
    %s165 = sphi 0, %s165
    %s167 = sphi 0, %s165
    %s168 = sphi 0, %s167
    %s182 = sphi 0, %s168
    %s186 = sphi 0, %s186
    %s188 = sphi 0, %s186
    %s189 = sphi 0, %s188
    %s203 = sphi 0, %s189
    %s207 = sphi 0, %s207
    %s209 = sphi 0, %s207
    %s210 = sphi 0, %s209
    %s224 = sphi 0, %s210
    %s228 = sphi 0, %s228
    %s230 = sphi 0, %s228
    %s231 = sphi 0, %s230
    %s245 = sphi 0, %s231
    %s249 = sphi 0, %s249
    %s251 = sphi 0, %s249
    %s252 = sphi 0, %s251
    %s266 = sphi 0, %s252
    %s270 = sphi 0, %s270
    %s272 = sphi 0, %s270
    %s273 = sphi 0, %s272
    %s287 = sphi 0, %s273
    %s291 = sphi 0, %s291
    %s293 = sphi 0, %s291
    %s294 = sphi 0, %s293
    %s308 = sphi 0, %s294
    %s312 = sphi 0, %s312
    %s314 = sphi 0, %s312
    %s315 = sphi 0, %s314
    %s329 = sphi 0, %s315
    %s333 = sphi 0, %s333
    %s335 = sphi 0, %s333
    %s336 = sphi 0, %s335
    %s350 = sphi 0, %s336
    %s356 = sphi 0, %s358
    %s359 = sphi 0, %s356
    %s360 = sphi 0, %s359
    %s376 = sphi 0, %s360
  $region4: #{tpu_custom_call.1} parent=0 // loop_header_branch
    %24 = sbr.rel (%p22) target = $region8
  $region5: #{tpu_custom_call.1} parent=0 // loop_body
    %s26 = ssub.s32 %s21, 1
    %s27 = ssub.s32 %s21, 2
    %s28 = sadd.s32 %s21, 1
    %s29 = ssub.s32 %s21, %s28
    %p30 = scmp.eq.s32.totalorder %s29, 0
    %s32 = sadd.s32 %s31, 1
    %s33 = scalar_select %p30, %s31, %s32
    %p36 = pneg %p30
    %p37 = scmp.eq.s32.totalorder %s21, 1
    %p38 = por %p36, %p37
    %p39 = scmp.ne.s32.totalorder %s31, %s34
    %p40 = scmp.eq.s32.totalorder %s21, 0
    %p41 = por %p39, %p40
    %p42 = scmp.ne.s32.totalorder %s31, %s34
    %p43 = scmp.eq.s32.totalorder %s26, 1
    %p44 = por %p42, %p43
    %p45 = scmp.ne.s32.totalorder %s34, %s35
    %p46 = scmp.eq.s32.totalorder %s26, 0
    %p47 = por %p45, %p46
    %p48 = scmp.ne.s32.totalorder %s34, %s35
    %p49 = scmp.eq.s32.totalorder %s27, 1
    %p50 = por %p48, %p49
    %p52 = scmp.ne.s32.totalorder %s35, %s51
    %p53 = scmp.eq.s32.totalorder %s27, 0
    %p54 = por %p52, %p53
    %s55 = ssub.s32 %s21, %s28
    %p56 = scmp.eq.s32.totalorder %s55, 0
    %s58 = sadd.s32 %s57, 1
    %s59 = scalar_select %p56, %s57, %s58
    %p62 = pneg %p56
    %p63 = scmp.eq.s32.totalorder %s21, 1
    %p64 = por %p62, %p63
    %p65 = scmp.ne.s32.totalorder %s57, %s60
    %p66 = scmp.eq.s32.totalorder %s21, 0
    %p67 = por %p65, %p66
    %p68 = scmp.ne.s32.totalorder %s57, %s60
    %p69 = scmp.eq.s32.totalorder %s26, 1
    %p70 = por %p68, %p69
    %p71 = scmp.ne.s32.totalorder %s60, %s61
    %p72 = scmp.eq.s32.totalorder %s26, 0
    %p73 = por %p71, %p72
    %p74 = scmp.ne.s32.totalorder %s60, %s61
    %p75 = scmp.eq.s32.totalorder %s27, 1
    %p76 = por %p74, %p75
    %p78 = scmp.ne.s32.totalorder %s61, %s77
    %p79 = scmp.eq.s32.totalorder %s27, 0
    %p80 = por %p78, %p79
    %s82 = sadd.s32 %s81, 1
    %p85 = scmp.eq.s32.totalorder %s21, 1
    %p86 = scmp.ne.s32.totalorder %s81, %s83
    %p87 = scmp.eq.s32.totalorder %s21, 0
    %p88 = por %p86, %p87
    %p89 = scmp.ne.s32.totalorder %s81, %s83
    %p90 = scmp.eq.s32.totalorder %s26, 1
    %p91 = por %p89, %p90
    %p92 = scmp.ne.s32.totalorder %s83, %s84
    %p93 = scmp.eq.s32.totalorder %s26, 0
    %p94 = por %p92, %p93
    %p95 = scmp.ne.s32.totalorder %s83, %s84
    %p96 = scmp.eq.s32.totalorder %s27, 1
    %p97 = por %p95, %p96
    %p99 = scmp.ne.s32.totalorder %s84, %s98
    %p100 = scmp.eq.s32.totalorder %s27, 0
    %p101 = por %p99, %p100
    %s103 = sadd.s32 %s102, 1
    %p106 = scmp.eq.s32.totalorder %s21, 1
    %p107 = scmp.ne.s32.totalorder %s102, %s104
    %p108 = scmp.eq.s32.totalorder %s21, 0
    %p109 = por %p107, %p108
    %p110 = scmp.ne.s32.totalorder %s102, %s104
    %p111 = scmp.eq.s32.totalorder %s26, 1
    %p112 = por %p110, %p111
    %p113 = scmp.ne.s32.totalorder %s104, %s105
    %p114 = scmp.eq.s32.totalorder %s26, 0
    %p115 = por %p113, %p114
    %p116 = scmp.ne.s32.totalorder %s104, %s105
    %p117 = scmp.eq.s32.totalorder %s27, 1
    %p118 = por %p116, %p117
    %p120 = scmp.ne.s32.totalorder %s105, %s119
    %p121 = scmp.eq.s32.totalorder %s27, 0
    %p122 = por %p120, %p121
    %s124 = sadd.s32 %s123, 1
    %p127 = scmp.eq.s32.totalorder %s21, 1
    %p128 = scmp.ne.s32.totalorder %s123, %s125
    %p129 = scmp.eq.s32.totalorder %s21, 0
    %p130 = por %p128, %p129
    %p131 = scmp.ne.s32.totalorder %s123, %s125
    %p132 = scmp.eq.s32.totalorder %s26, 1
    %p133 = por %p131, %p132
    %p134 = scmp.ne.s32.totalorder %s125, %s126
    %p135 = scmp.eq.s32.totalorder %s26, 0
    %p136 = por %p134, %p135
    %p137 = scmp.ne.s32.totalorder %s125, %s126
    %p138 = scmp.eq.s32.totalorder %s27, 1
    %p139 = por %p137, %p138
    %p141 = scmp.ne.s32.totalorder %s126, %s140
    %p142 = scmp.eq.s32.totalorder %s27, 0
    %p143 = por %p141, %p142
    %s145 = sadd.s32 %s144, 1
    %p148 = scmp.eq.s32.totalorder %s21, 1
    %p149 = scmp.ne.s32.totalorder %s144, %s146
    %p150 = scmp.eq.s32.totalorder %s21, 0
    %p151 = por %p149, %p150
    %p152 = scmp.ne.s32.totalorder %s144, %s146
    %p153 = scmp.eq.s32.totalorder %s26, 1
    %p154 = por %p152, %p153
    %p155 = scmp.ne.s32.totalorder %s146, %s147
    %p156 = scmp.eq.s32.totalorder %s26, 0
    %p157 = por %p155, %p156
    %p158 = scmp.ne.s32.totalorder %s146, %s147
    %p159 = scmp.eq.s32.totalorder %s27, 1
    %p160 = por %p158, %p159
    %p162 = scmp.ne.s32.totalorder %s147, %s161
    %p163 = scmp.eq.s32.totalorder %s27, 0
    %p164 = por %p162, %p163
    %s166 = sadd.s32 %s165, 1
    %p169 = scmp.eq.s32.totalorder %s21, 1
    %p170 = scmp.ne.s32.totalorder %s165, %s167
    %p171 = scmp.eq.s32.totalorder %s21, 0
    %p172 = por %p170, %p171
    %p173 = scmp.ne.s32.totalorder %s165, %s167
    %p174 = scmp.eq.s32.totalorder %s26, 1
    %p175 = por %p173, %p174
    %p176 = scmp.ne.s32.totalorder %s167, %s168
    %p177 = scmp.eq.s32.totalorder %s26, 0
    %p178 = por %p176, %p177
    %p179 = scmp.ne.s32.totalorder %s167, %s168
    %p180 = scmp.eq.s32.totalorder %s27, 1
    %p181 = por %p179, %p180
    %p183 = scmp.ne.s32.totalorder %s168, %s182
    %p184 = scmp.eq.s32.totalorder %s27, 0
    %p185 = por %p183, %p184
    %s187 = sadd.s32 %s186, 1
    %p190 = scmp.eq.s32.totalorder %s21, 1
    %p191 = scmp.ne.s32.totalorder %s186, %s188
    %p192 = scmp.eq.s32.totalorder %s21, 0
    %p193 = por %p191, %p192
    %p194 = scmp.ne.s32.totalorder %s186, %s188
    %p195 = scmp.eq.s32.totalorder %s26, 1
    %p196 = por %p194, %p195
    %p197 = scmp.ne.s32.totalorder %s188, %s189
    %p198 = scmp.eq.s32.totalorder %s26, 0
    %p199 = por %p197, %p198
    %p200 = scmp.ne.s32.totalorder %s188, %s189
    %p201 = scmp.eq.s32.totalorder %s27, 1
    %p202 = por %p200, %p201
    %p204 = scmp.ne.s32.totalorder %s189, %s203
    %p205 = scmp.eq.s32.totalorder %s27, 0
    %p206 = por %p204, %p205
    %s208 = sadd.s32 %s207, 1
    %p211 = scmp.eq.s32.totalorder %s21, 1
    %p212 = scmp.ne.s32.totalorder %s207, %s209
    %p213 = scmp.eq.s32.totalorder %s21, 0
    %p214 = por %p212, %p213
    %p215 = scmp.ne.s32.totalorder %s207, %s209
    %p216 = scmp.eq.s32.totalorder %s26, 1
    %p217 = por %p215, %p216
    %p218 = scmp.ne.s32.totalorder %s209, %s210
    %p219 = scmp.eq.s32.totalorder %s26, 0
    %p220 = por %p218, %p219
    %p221 = scmp.ne.s32.totalorder %s209, %s210
    %p222 = scmp.eq.s32.totalorder %s27, 1
    %p223 = por %p221, %p222
    %p225 = scmp.ne.s32.totalorder %s210, %s224
    %p226 = scmp.eq.s32.totalorder %s27, 0
    %p227 = por %p225, %p226
    %s229 = sadd.s32 %s228, 1
    %p232 = scmp.eq.s32.totalorder %s21, 1
    %p233 = scmp.ne.s32.totalorder %s228, %s230
    %p234 = scmp.eq.s32.totalorder %s21, 0
    %p235 = por %p233, %p234
    %p236 = scmp.ne.s32.totalorder %s228, %s230
    %p237 = scmp.eq.s32.totalorder %s26, 1
    %p238 = por %p236, %p237
    %p239 = scmp.ne.s32.totalorder %s230, %s231
    %p240 = scmp.eq.s32.totalorder %s26, 0
    %p241 = por %p239, %p240
    %p242 = scmp.ne.s32.totalorder %s230, %s231
    %p243 = scmp.eq.s32.totalorder %s27, 1
    %p244 = por %p242, %p243
    %p246 = scmp.ne.s32.totalorder %s231, %s245
    %p247 = scmp.eq.s32.totalorder %s27, 0
    %p248 = por %p246, %p247
    %s250 = sadd.s32 %s249, 1
    %p253 = scmp.eq.s32.totalorder %s21, 1
    %p254 = scmp.ne.s32.totalorder %s249, %s251
    %p255 = scmp.eq.s32.totalorder %s21, 0
    %p256 = por %p254, %p255
    %p257 = scmp.ne.s32.totalorder %s249, %s251
    %p258 = scmp.eq.s32.totalorder %s26, 1
    %p259 = por %p257, %p258
    %p260 = scmp.ne.s32.totalorder %s251, %s252
    %p261 = scmp.eq.s32.totalorder %s26, 0
    %p262 = por %p260, %p261
    %p263 = scmp.ne.s32.totalorder %s251, %s252
    %p264 = scmp.eq.s32.totalorder %s27, 1
    %p265 = por %p263, %p264
    %p267 = scmp.ne.s32.totalorder %s252, %s266
    %p268 = scmp.eq.s32.totalorder %s27, 0
    %p269 = por %p267, %p268
    %s271 = sadd.s32 %s270, 1
    %p274 = scmp.eq.s32.totalorder %s21, 1
    %p275 = scmp.ne.s32.totalorder %s270, %s272
    %p276 = scmp.eq.s32.totalorder %s21, 0
    %p277 = por %p275, %p276
    %p278 = scmp.ne.s32.totalorder %s270, %s272
    %p279 = scmp.eq.s32.totalorder %s26, 1
    %p280 = por %p278, %p279
    %p281 = scmp.ne.s32.totalorder %s272, %s273
    %p282 = scmp.eq.s32.totalorder %s26, 0
    %p283 = por %p281, %p282
    %p284 = scmp.ne.s32.totalorder %s272, %s273
    %p285 = scmp.eq.s32.totalorder %s27, 1
    %p286 = por %p284, %p285
    %p288 = scmp.ne.s32.totalorder %s273, %s287
    %p289 = scmp.eq.s32.totalorder %s27, 0
    %p290 = por %p288, %p289
    %s292 = sadd.s32 %s291, 1
    %p295 = scmp.eq.s32.totalorder %s21, 1
    %p296 = scmp.ne.s32.totalorder %s291, %s293
    %p297 = scmp.eq.s32.totalorder %s21, 0
    %p298 = por %p296, %p297
    %p299 = scmp.ne.s32.totalorder %s291, %s293
    %p300 = scmp.eq.s32.totalorder %s26, 1
    %p301 = por %p299, %p300
    %p302 = scmp.ne.s32.totalorder %s293, %s294
    %p303 = scmp.eq.s32.totalorder %s26, 0
    %p304 = por %p302, %p303
    %p305 = scmp.ne.s32.totalorder %s293, %s294
    %p306 = scmp.eq.s32.totalorder %s27, 1
    %p307 = por %p305, %p306
    %p309 = scmp.ne.s32.totalorder %s294, %s308
    %p310 = scmp.eq.s32.totalorder %s27, 0
    %p311 = por %p309, %p310
    %s313 = sadd.s32 %s312, 1
    %p316 = scmp.eq.s32.totalorder %s21, 1
    %p317 = scmp.ne.s32.totalorder %s312, %s314
    %p318 = scmp.eq.s32.totalorder %s21, 0
    %p319 = por %p317, %p318
    %p320 = scmp.ne.s32.totalorder %s312, %s314
    %p321 = scmp.eq.s32.totalorder %s26, 1
    %p322 = por %p320, %p321
    %p323 = scmp.ne.s32.totalorder %s314, %s315
    %p324 = scmp.eq.s32.totalorder %s26, 0
    %p325 = por %p323, %p324
    %p326 = scmp.ne.s32.totalorder %s314, %s315
    %p327 = scmp.eq.s32.totalorder %s27, 1
    %p328 = por %p326, %p327
    %p330 = scmp.ne.s32.totalorder %s315, %s329
    %p331 = scmp.eq.s32.totalorder %s27, 0
    %p332 = por %p330, %p331
    %s334 = sadd.s32 %s333, 1
    %p337 = scmp.eq.s32.totalorder %s21, 1
    %p338 = scmp.ne.s32.totalorder %s333, %s335
    %p339 = scmp.eq.s32.totalorder %s21, 0
    %p340 = por %p338, %p339
    %p341 = scmp.ne.s32.totalorder %s333, %s335
    %p342 = scmp.eq.s32.totalorder %s26, 1
    %p343 = por %p341, %p342
    %p344 = scmp.ne.s32.totalorder %s335, %s336
    %p345 = scmp.eq.s32.totalorder %s26, 0
    %p346 = por %p344, %p345
    %p347 = scmp.ne.s32.totalorder %s335, %s336
    %p348 = scmp.eq.s32.totalorder %s27, 1
    %p349 = por %p347, %p348
    %p351 = scmp.ne.s32.totalorder %s336, %s350
    %p352 = scmp.eq.s32.totalorder %s27, 0
    %p353 = por %p351, %p352
    %s354 = ssub.s32 %s21, %s28
    %p355 = scmp.eq.s32.totalorder %s354, 0
    %s357 = sadd.s32 %s356, 1
    %s358 = scalar_select %p355, %s356, %s357
    %p361 = pneg %p355
    %p362 = scmp.eq.s32.totalorder %s21, 1
    %p363 = por %p361, %p362
    %p364 = scmp.ne.s32.totalorder %s356, %s359
    %p365 = scmp.eq.s32.totalorder %s21, 0
    %p366 = por %p364, %p365
    %p367 = scmp.ne.s32.totalorder %s356, %s359
    %p368 = scmp.eq.s32.totalorder %s26, 1
    %p369 = por %p367, %p368
    %p370 = scmp.ne.s32.totalorder %s359, %s360
    %p371 = scmp.eq.s32.totalorder %s26, 0
    %p372 = por %p370, %p371
    %p373 = scmp.ne.s32.totalorder %s359, %s360
    %p374 = scmp.eq.s32.totalorder %s27, 1
    %p375 = por %p373, %p374
    %p377 = scmp.ne.s32.totalorder %s360, %s376
    %p378 = scmp.eq.s32.totalorder %s27, 0
    %p379 = por %p377, %p378
    %p380 = scmp.le.s32.totalorder 1, %s21
    %p381 = scmp.lt.s32.totalorder %s21, 3
    %p382 = pnand %p380, %p381
    %p383 = pneg %p382
    // Predicated region
    $region9: #{tpu_custom_call.1} parent=5 // pred_check
      _
    $region10: #{tpu_custom_call.1} parent=5 // pred_check_branch
      %385 = sbr.rel (%p382) target = $region12
    $region11: #{tpu_custom_call.1} parent=5 // pred_region
      %s386 = ssub.s32 %s21, 1
      // Predicated region
      $region13: #{tpu_custom_call.1} parent=11 // pred_check
        %p387 = pneg %p94
      $region14: #{tpu_custom_call.1} parent=11 // pred_check_branch
        %389 = sbr.rel (%p387) target = $region16
      $region15: #{tpu_custom_call.1} parent=11 // pred_region
        _
      $region16: #{tpu_custom_call.1} parent=11 // pred_fallthru
        _
      // Predicated region
      $region17: #{tpu_custom_call.1} parent=11 // pred_check
        %p390 = pneg %p115
      $region18: #{tpu_custom_call.1} parent=11 // pred_check_branch
        %392 = sbr.rel (%p390) target = $region20
      $region19: #{tpu_custom_call.1} parent=11 // pred_region
        _
      $region20: #{tpu_custom_call.1} parent=11 // pred_fallthru
        _
      // Predicated region
      $region21: #{tpu_custom_call.1} parent=11 // pred_check
        %p393 = pneg %p136
      $region22: #{tpu_custom_call.1} parent=11 // pred_check_branch
        %395 = sbr.rel (%p393) target = $region24
      $region23: #{tpu_custom_call.1} parent=11 // pred_region
        _
      $region24: #{tpu_custom_call.1} parent=11 // pred_fallthru
        _
      // Predicated region
      $region25: #{tpu_custom_call.1} parent=11 // pred_check
        %p396 = pneg %p157
      $region26: #{tpu_custom_call.1} parent=11 // pred_check_branch
        %398 = sbr.rel (%p396) target = $region28
      $region27: #{tpu_custom_call.1} parent=11 // pred_region
        _
      $region28: #{tpu_custom_call.1} parent=11 // pred_fallthru
        _
      // Predicated region
      $region29: #{tpu_custom_call.1} parent=11 // pred_check
        %p399 = pneg %p178
      $region30: #{tpu_custom_call.1} parent=11 // pred_check_branch
        %401 = sbr.rel (%p399) target = $region32
      $region31: #{tpu_custom_call.1} parent=11 // pred_region
        _
      $region32: #{tpu_custom_call.1} parent=11 // pred_fallthru
        _
      // Predicated region
      $region33: #{tpu_custom_call.1} parent=11 // pred_check
        %p402 = pneg %p199
      $region34: #{tpu_custom_call.1} parent=11 // pred_check_branch
        %404 = sbr.rel (%p402) target = $region36
      $region35: #{tpu_custom_call.1} parent=11 // pred_region
        _
      $region36: #{tpu_custom_call.1} parent=11 // pred_fallthru
        _
      // Predicated region
      $region37: #{tpu_custom_call.1} parent=11 // pred_check
        %p405 = pneg %p220
      $region38: #{tpu_custom_call.1} parent=11 // pred_check_branch
        %407 = sbr.rel (%p405) target = $region40
      $region39: #{tpu_custom_call.1} parent=11 // pred_region
        _
      $region40: #{tpu_custom_call.1} parent=11 // pred_fallthru
        _
      // Predicated region
      $region41: #{tpu_custom_call.1} parent=11 // pred_check
        %p408 = pneg %p241
      $region42: #{tpu_custom_call.1} parent=11 // pred_check_branch
        %410 = sbr.rel (%p408) target = $region44
      $region43: #{tpu_custom_call.1} parent=11 // pred_region
        _
      $region44: #{tpu_custom_call.1} parent=11 // pred_fallthru
        _
      // Predicated region
      $region45: #{tpu_custom_call.1} parent=11 // pred_check
        %p411 = pneg %p262
      $region46: #{tpu_custom_call.1} parent=11 // pred_check_branch
        %413 = sbr.rel (%p411) target = $region48
      $region47: #{tpu_custom_call.1} parent=11 // pred_region
        _
      $region48: #{tpu_custom_call.1} parent=11 // pred_fallthru
        _
      // Predicated region
      $region49: #{tpu_custom_call.1} parent=11 // pred_check
        %p414 = pneg %p283
      $region50: #{tpu_custom_call.1} parent=11 // pred_check_branch
        %416 = sbr.rel (%p414) target = $region52
      $region51: #{tpu_custom_call.1} parent=11 // pred_region
        _
      $region52: #{tpu_custom_call.1} parent=11 // pred_fallthru
        _
      // Predicated region
      $region53: #{tpu_custom_call.1} parent=11 // pred_check
        %p417 = pneg %p304
      $region54: #{tpu_custom_call.1} parent=11 // pred_check_branch
        %419 = sbr.rel (%p417) target = $region56
      $region55: #{tpu_custom_call.1} parent=11 // pred_region
        _
      $region56: #{tpu_custom_call.1} parent=11 // pred_fallthru
        _
      // Predicated region
      $region57: #{tpu_custom_call.1} parent=11 // pred_check
        %p420 = pneg %p325
      $region58: #{tpu_custom_call.1} parent=11 // pred_check_branch
        %422 = sbr.rel (%p420) target = $region60
      $region59: #{tpu_custom_call.1} parent=11 // pred_region
        _
      $region60: #{tpu_custom_call.1} parent=11 // pred_fallthru
        _
      // Predicated region
      $region61: #{tpu_custom_call.1} parent=11 // pred_check
        %p423 = pneg %p346
      $region62: #{tpu_custom_call.1} parent=11 // pred_check_branch
        %425 = sbr.rel (%p423) target = $region64
      $region63: #{tpu_custom_call.1} parent=11 // pred_region
        _
      $region64: #{tpu_custom_call.1} parent=11 // pred_fallthru
        _
    $region12: #{tpu_custom_call.1} parent=5 // pred_fallthru
      _
    %p426 = scmp.lt.s32.totalorder %s21, 2
    // Predicated region
    $region65: #{tpu_custom_call.1} parent=5 // pred_check
      %p427 = pneg %p426
    $region66: #{tpu_custom_call.1} parent=5 // pred_check_branch
      %429 = sbr.rel (%p427) target = $region68
    $region67: #{tpu_custom_call.1} parent=5 // pred_region
      // Predicated region
      $region69: #{tpu_custom_call.1} parent=67 // pred_check
        %p430 = pneg %p41
      $region70: #{tpu_custom_call.1} parent=67 // pred_check_branch
        %432 = sbr.rel (%p430) target = $region72
      $region71: #{tpu_custom_call.1} parent=67 // pred_region
        %p433 = scmp.lt.s32.totalorder %s21, 1
        %s434 = scalar_select %p433, %s21, 1
        %s435 = smul.addr %s434, 2
        %s436 = smul.addr %s435, 8
        %s437 = scalar_lea.vmem %s0, %s436
      $region72: #{tpu_custom_call.1} parent=67 // pred_fallthru
        _
      // Predicated region
      $region73: #{tpu_custom_call.1} parent=67 // pred_check
        %p438 = pneg %p67
      $region74: #{tpu_custom_call.1} parent=67 // pred_check_branch
        %440 = sbr.rel (%p438) target = $region76
      $region75: #{tpu_custom_call.1} parent=67 // pred_region
        %p441 = scmp.lt.s32.totalorder %s21, 1
        %s442 = scalar_select %p441, %s21, 1
        %s443 = smul.addr %s442, 2
        %s444 = smul.addr %s443, 8
        %s445 = scalar_lea.vmem %s1, %s444
      $region76: #{tpu_custom_call.1} parent=67 // pred_fallthru
        _
    $region68: #{tpu_custom_call.1} parent=5 // pred_fallthru
      _
    %p446 = scmp.le.s32.totalorder 1, %s21
    %p447 = scmp.lt.s32.totalorder %s21, 3
    %p448 = pnand %p446, %p447
    %p449 = pneg %p448
    // Predicated region
    $region77: #{tpu_custom_call.1} parent=5 // pred_check
      _
    $region78: #{tpu_custom_call.1} parent=5 // pred_check_branch
      %451 = sbr.rel (%p448) target = $region80
    $region79: #{tpu_custom_call.1} parent=5 // pred_region
      %s452 = ssub.s32 %s21, 1
      %p453 = scmp.lt.s32.totalorder %s26, 1
      %s454 = scalar_select %p453, %s26, 1
      %s455 = smul.addr %s454, 2
      %s456 = smul.addr %s455, 8
      %s457 = scalar_lea.vmem %s0, %s456
      %p458 = pneg %p47
      %p459 = pneg %p44
      %p460 = scmp.lt.s32.totalorder %s26, 1
      %s461 = scalar_select %p460, %s26, 1
      %s462 = smul.addr %s461, 2
      %s463 = smul.addr %s462, 8
      %s464 = scalar_lea.vmem %s1, %s463
      %p465 = pneg %p73
      %p466 = pneg %p70
      %p467 = pneg %p94
      %p468 = pneg %p91
      %p469 = pneg %p115
      %p470 = pneg %p112
      %p471 = pneg %p136
      %p472 = pneg %p133
      %p473 = pneg %p157
      %p474 = pneg %p154
      %p475 = pneg %p178
      %p476 = pneg %p175
      %p477 = pneg %p199
      %p478 = pneg %p196
      %p479 = pneg %p220
      %p480 = pneg %p217
      %p481 = pneg %p241
      %p482 = pneg %p238
      %p483 = pneg %p262
      %p484 = pneg %p259
      %p485 = pneg %p283
      %p486 = pneg %p280
      %p487 = pneg %p304
      %p488 = pneg %p301
      %p489 = pneg %p325
      %p490 = pneg %p322
      %p491 = pneg %p346
      %p492 = pneg %p343
      %p493 = pneg %p372
      %p494 = pneg %p369
      %p495 = scmp.lt.s32.totalorder %s26, 1
      %s496 = scalar_select %p495, %s26, 1
      %s497 = smul.addr %s496, 2
      %s498 = smul.addr %s497, 8
      %s499 = scalar_lea.vmem %s15, %s498
      %p500 = scmp.lt.s32.totalorder %s26, 1
      %s501 = scalar_select %p500, %s26, 1
      %s502 = smul.addr %s501, 2
      %s503 = smul.addr %s502, 8
      %s504 = scalar_lea.vmem %s0, %s503
      %p505 = scmp.lt.s32.totalorder %s26, 1
      %s506 = scalar_select %p505, %s26, 1
      %s507 = smul.addr %s506, 2
      %s508 = smul.addr %s507, 8
      %s509 = scalar_lea.vmem %s1, %s508
      %p510 = scmp.lt.s32.totalorder %s26, 1
      %s511 = scalar_select %p510, %s26, 1
      %s512 = smul.addr %s511, 2
      %s513 = smul.addr %s512, 8
      %s514 = scalar_lea.vmem %s15, %s513
      %v515 = vld [vmem:[%s504] sm:$0xff]
      %v516 = vld [vmem:[%s504 + $0x8] sm:$0xff]
      %v517 = vld [vmem:[%s509] sm:$0xff]
      %v518 = vld [vmem:[%s509 + $0x8] sm:$0xff]
      %vm519 = vcmask 130048
      %v521 = vsel %vm519, %v515, 0
      %v524 = vsel %vm519, %v516, 0
      %526 = vmatprep.subr.mxu0 0.0
      %527 = vmatpush1.msra.mxu0 0.0
      %528 = vmatprep.subr.mxu0 0.0
      %529 = vmatpush1.msra.mxu0 0.0
      %530 = vmatprep.subr.mxu0 0.0
      %531 = vmatpush1.msra.mxu0 0.0
      %532 = vmatprep.subr.mxu0 0.0
      %533 = vmatpush1.msra.mxu0 0.0
      %534 = vmatprep.subr.mxu0 0.0
      %535 = vmatpush1.msra.mxu0 0.0
      %536 = vmatprep.subr.mxu0 0.0
      %537 = vmatpush1.msra.mxu0 0.0
      %538 = vmatprep.subr.mxu0 0.0
      %539 = vmatpush1.msra.mxu0 0.0
      %540 = vmatprep.subr.mxu0 0.0
      %541 = vmatpush1.msra.mxu0 0.0
      %542 = vmatprep.subr.mxu0 0.0
      %543 = vmatpush1.msra.mxu0 0.0
      %544 = vmatprep.subr.mxu0 0.0
      %545 = vmatpush1.msra.mxu0 0.0
      %546 = vmatprep.subr.mxu0 0.0
      %547 = vmatpush1.msra.mxu0 0.0
      %548 = vmatprep.subr.mxu0 0.0
      %549 = vmatpush1.msra.mxu0 0.0
      %550 = vmatprep.subr.mxu0 0.0
      %551 = vmatpush1.msra.mxu0 0.0
      %552 = vmatprep.subr.mxu0 0.0
      %553 = vmatpush1.msra.mxu0 0.0
      %554 = vmatprep.subr.mxu0 0.0
      %555 = vmatpush1.msra.mxu0 %v518
      %556 = vmatprep.subr.mxu0 0.0
      %557 = vmatpush1.msra.mxu0 %v517
      %558 = vmatprep.subr.mxu0 0.0
      %559 = vmatpush2.msra.mxu0 0.0
      %560 = vmatprep.subr.mxu0 0.0
      %561 = vmatpush2.msra.mxu0 0.0
      %562 = vmatprep.subr.mxu0 0.0
      %563 = vmatpush2.msra.mxu0 0.0
      %564 = vmatprep.subr.mxu0 0.0
      %565 = vmatpush2.msra.mxu0 0.0
      %566 = vmatprep.subr.mxu0 0.0
      %567 = vmatpush2.msra.mxu0 0.0
      %568 = vmatprep.subr.mxu0 0.0
      %569 = vmatpush2.msra.mxu0 0.0
      %570 = vmatprep.subr.mxu0 0.0
      %571 = vmatpush2.msra.mxu0 0.0
      %572 = vmatprep.subr.mxu0 0.0
      %573 = vmatpush2.msra.mxu0 0.0
      %574 = vmatprep.subr.mxu0 0.0
      %575 = vmatpush2.msra.mxu0 0.0
      %576 = vmatprep.subr.mxu0 0.0
      %577 = vmatpush2.msra.mxu0 0.0
      %578 = vmatprep.subr.mxu0 0.0
      %579 = vmatpush2.msra.mxu0 0.0
      %580 = vmatprep.subr.mxu0 0.0
      %581 = vmatpush2.msra.mxu0 0.0
      %582 = vmatprep.subr.mxu0 0.0
      %583 = vmatpush2.msra.mxu0 0.0
      %584 = vmatprep.subr.mxu0 0.0
      %585 = vmatpush2.msra.mxu0 0.0
      %586 = vmatprep.subr.mxu0 0.0
      %587 = vmatpush2.msra.mxu0 0.0
      %588 = vmatprep.subr.mxu0 0.0
      %589 = vmatpush2.msra.mxu0 0.0
      %590 = vmatprep.mubr.f32.mxu0 0.0
      %591 = vmatmul.mubr.f32.gmra.mxu0 %v521
      %v592 = vpop.f32.mrf.mxu0
      %v593 = vadd.f32 0.0, %v592
      %v594 = vpop.f32.mrf.mxu0
      %595 = vmatprep.mubr.f32.mxu0 0.0
      %596 = vmatmul.mubr.f32.gmra.mxu0 %v524
      %v597 = vpop.f32.mrf.mxu0
      %v598 = vadd.f32 0.0, %v597
      %v599 = vpop.f32.mrf.mxu0
      %600 = vdwg.mxu0
      %v601 = vld [vmem:[%s2] sm:$0xff]
      %v602 = vld [vmem:[%s2 + $0x8] sm:$0xff]
      %v603 = vld [vmem:[%s2 + $0x10] sm:$0xff]
      %v604 = vld [vmem:[%s2 + $0x18] sm:$0xff]
      %v605 = vld [vmem:[%s2 + $0x20] sm:$0xff]
      %v606 = vld [vmem:[%s2 + $0x28] sm:$0xff]
      %v607 = vld [vmem:[%s2 + $0x30] sm:$0xff]
      %v608 = vld [vmem:[%s2 + $0x38] sm:$0xff]
      %v609 = vld [vmem:[%s2 + $0x40] sm:$0xf]
      %v610 = vld [vmem:[%s2 + $0x48] sm:$0xf]
      %v611 = vld [vmem:[%s2 + $0x50] sm:$0xf]
      %v612 = vld [vmem:[%s2 + $0x58] sm:$0xf]
      %v613 = vld [vmem:[%s3] sm:$0xf]
      %v615 = vlaneseq
      %v616 = vshrl.u32 %v615, 7
      %v617 = vsub.s32 0, %v616
      %v618 = vrot.slane %v613, %v617
      %v619 = vlaneseq
      %v620 = vshrl.u32 %v619, 7
      %v621 = vsub.s32 1, %v620
      %v622 = vrot.slane %v613, %v621
      %v623 = vlaneseq
      %v624 = vshrl.u32 %v623, 7
      %v625 = vsub.s32 2, %v624
      %v626 = vrot.slane %v613, %v625
      %v627 = vlaneseq
      %v628 = vshrl.u32 %v627, 7
      %v629 = vsub.s32 3, %v628
      %v630 = vrot.slane %v613, %v629
      %vm635 = vcmask 162816
      %v637 = vsel %vm635, %v593, 0
      %v640 = vsel %vm635, %v598, 0
      %vm642 = vcmask 1043456
      %v644 = vsel %vm642, %v609, 0
      %v647 = vsel %vm642, %v610, 0
      %v650 = vsel %vm642, %v611, 0
      %v653 = vsel %vm642, %v612, 0
      %655 = vmatprep.subr.mxu0 0.0
      %656 = vmatpush1.msra.mxu0 0.0
      %657 = vmatprep.subr.mxu0 0.0
      %658 = vmatpush1.msra.mxu0 0.0
      %659 = vmatprep.subr.mxu0 0.0
      %660 = vmatpush1.msra.mxu0 0.0
      %661 = vmatprep.subr.mxu0 0.0
      %662 = vmatpush1.msra.mxu0 0.0
      %663 = vmatprep.subr.mxu0 0.0
      %664 = vmatpush1.msra.mxu0 0.0
      %665 = vmatprep.subr.mxu0 0.0
      %666 = vmatpush1.msra.mxu0 0.0
      %667 = vmatprep.subr.mxu0 0.0
      %668 = vmatpush1.msra.mxu0 0.0
      %669 = vmatprep.subr.mxu0 0.0
      %670 = vmatpush1.msra.mxu0 0.0
      %671 = vmatprep.subr.mxu0 0.0
      %672 = vmatpush1.msra.mxu0 0.0
      %673 = vmatprep.subr.mxu0 0.0
      %674 = vmatpush1.msra.mxu0 0.0
      %675 = vmatprep.subr.mxu0 0.0
      %676 = vmatpush1.msra.mxu0 0.0
      %677 = vmatprep.subr.mxu0 0.0
      %678 = vmatpush1.msra.mxu0 0.0
      %679 = vmatprep.subr.mxu0 0.0
      %680 = vmatpush1.msra.mxu0 0.0
      %681 = vmatprep.subr.mxu0 %v647
      %682 = vmatpush1.msra.mxu0 %v644
      %683 = vmatprep.subr.mxu0 %v606
      %684 = vmatpush1.msra.mxu0 %v605
      %685 = vmatprep.subr.mxu0 %v602
      %686 = vmatpush1.msra.mxu0 %v601
      %687 = vmatprep.subr.mxu0 0.0
      %688 = vmatpush2.msra.mxu0 0.0
      %689 = vmatprep.subr.mxu0 0.0
      %690 = vmatpush2.msra.mxu0 0.0
      %691 = vmatprep.subr.mxu0 0.0
      %692 = vmatpush2.msra.mxu0 0.0
      %693 = vmatprep.subr.mxu0 0.0
      %694 = vmatpush2.msra.mxu0 0.0
      %695 = vmatprep.subr.mxu0 0.0
      %696 = vmatpush2.msra.mxu0 0.0
      %697 = vmatprep.subr.mxu0 0.0
      %698 = vmatpush2.msra.mxu0 0.0
      %699 = vmatprep.subr.mxu0 0.0
      %700 = vmatpush2.msra.mxu0 0.0
      %701 = vmatprep.subr.mxu0 0.0
      %702 = vmatpush2.msra.mxu0 0.0
      %703 = vmatprep.subr.mxu0 0.0
      %704 = vmatpush2.msra.mxu0 0.0
      %705 = vmatprep.subr.mxu0 0.0
      %706 = vmatpush2.msra.mxu0 0.0
      %707 = vmatprep.subr.mxu0 0.0
      %708 = vmatpush2.msra.mxu0 0.0
      %709 = vmatprep.subr.mxu0 0.0
      %710 = vmatpush2.msra.mxu0 0.0
      %711 = vmatprep.subr.mxu0 0.0
      %712 = vmatpush2.msra.mxu0 0.0
      %713 = vmatprep.subr.mxu0 0.0
      %714 = vmatpush2.msra.mxu0 0.0
      %715 = vmatprep.subr.mxu0 0.0
      %716 = vmatpush2.msra.mxu0 0.0
      %717 = vmatprep.subr.mxu0 0.0
      %718 = vmatpush2.msra.mxu0 0.0
      %719 = vmatprep.mubr.f32.mxu0 0.0
      %720 = vmatmul.mubr.f32.gmra.mxu0 %v637
      %v721 = vpop.f32.mrf.mxu0
      %v722 = vadd.f32 %v618, %v721
      %v723 = vpop.f32.mrf.mxu0
      %v724 = vadd.f32 %v622, %v723
      %725 = vmatprep.mubr.f32.mxu0 0.0
      %726 = vmatmul.mubr.f32.gmra.mxu0 %v640
      %v727 = vpop.f32.mrf.mxu0
      %v728 = vadd.f32 %v618, %v727
      %v729 = vpop.f32.mrf.mxu0
      %v730 = vadd.f32 %v622, %v729
      %731 = vdwg.mxu0
      %732 = vmatprep.subr.mxu0 0.0
      %733 = vmatpush1.msra.mxu0 0.0
      %734 = vmatprep.subr.mxu0 0.0
      %735 = vmatpush1.msra.mxu0 0.0
      %736 = vmatprep.subr.mxu0 0.0
      %737 = vmatpush1.msra.mxu0 0.0
      %738 = vmatprep.subr.mxu0 0.0
      %739 = vmatpush1.msra.mxu0 0.0
      %740 = vmatprep.subr.mxu0 0.0
      %741 = vmatpush1.msra.mxu0 0.0
      %742 = vmatprep.subr.mxu0 0.0
      %743 = vmatpush1.msra.mxu0 0.0
      %744 = vmatprep.subr.mxu0 0.0
      %745 = vmatpush1.msra.mxu0 0.0
      %746 = vmatprep.subr.mxu0 0.0
      %747 = vmatpush1.msra.mxu0 0.0
      %748 = vmatprep.subr.mxu0 0.0
      %749 = vmatpush1.msra.mxu0 0.0
      %750 = vmatprep.subr.mxu0 0.0
      %751 = vmatpush1.msra.mxu0 0.0
      %752 = vmatprep.subr.mxu0 0.0
      %753 = vmatpush1.msra.mxu0 0.0
      %754 = vmatprep.subr.mxu0 0.0
      %755 = vmatpush1.msra.mxu0 0.0
      %756 = vmatprep.subr.mxu0 0.0
      %757 = vmatpush1.msra.mxu0 0.0
      %758 = vmatprep.subr.mxu0 %v653
      %759 = vmatpush1.msra.mxu0 %v650
      %760 = vmatprep.subr.mxu0 %v608
      %761 = vmatpush1.msra.mxu0 %v607
      %762 = vmatprep.subr.mxu0 %v604
      %763 = vmatpush1.msra.mxu0 %v603
      %764 = vmatprep.subr.mxu0 0.0
      %765 = vmatpush2.msra.mxu0 0.0
      %766 = vmatprep.subr.mxu0 0.0
      %767 = vmatpush2.msra.mxu0 0.0
      %768 = vmatprep.subr.mxu0 0.0
      %769 = vmatpush2.msra.mxu0 0.0
      %770 = vmatprep.subr.mxu0 0.0
      %771 = vmatpush2.msra.mxu0 0.0
      %772 = vmatprep.subr.mxu0 0.0
      %773 = vmatpush2.msra.mxu0 0.0
      %774 = vmatprep.subr.mxu0 0.0
      %775 = vmatpush2.msra.mxu0 0.0
      %776 = vmatprep.subr.mxu0 0.0
      %777 = vmatpush2.msra.mxu0 0.0
      %778 = vmatprep.subr.mxu0 0.0
      %779 = vmatpush2.msra.mxu0 0.0
      %780 = vmatprep.subr.mxu0 0.0
      %781 = vmatpush2.msra.mxu0 0.0
      %782 = vmatprep.subr.mxu0 0.0
      %783 = vmatpush2.msra.mxu0 0.0
      %784 = vmatprep.subr.mxu0 0.0
      %785 = vmatpush2.msra.mxu0 0.0
      %786 = vmatprep.subr.mxu0 0.0
      %787 = vmatpush2.msra.mxu0 0.0
      %788 = vmatprep.subr.mxu0 0.0
      %789 = vmatpush2.msra.mxu0 0.0
      %790 = vmatprep.subr.mxu0 0.0
      %791 = vmatpush2.msra.mxu0 0.0
      %792 = vmatprep.subr.mxu0 0.0
      %793 = vmatpush2.msra.mxu0 0.0
      %794 = vmatprep.subr.mxu0 0.0
      %795 = vmatpush2.msra.mxu0 0.0
      %796 = vmatprep.mubr.f32.mxu0 0.0
      %797 = vmatmul.mubr.f32.gmra.mxu0 %v637
      %v798 = vpop.f32.mrf.mxu0
      %v799 = vadd.f32 %v626, %v798
      %v800 = vpop.f32.mrf.mxu0
      %v801 = vadd.f32 %v630, %v800
      %802 = vmatprep.mubr.f32.mxu0 0.0
      %803 = vmatmul.mubr.f32.gmra.mxu0 %v640
      %v804 = vpop.f32.mrf.mxu0
      %v805 = vadd.f32 %v626, %v804
      %v806 = vpop.f32.mrf.mxu0
      %v807 = vadd.f32 %v630, %v806
      %808 = vdwg.mxu0
      %v809 = vld [vmem:[%s4] sm:$0xff]
      %v810 = vld [vmem:[%s4 + $0x8] sm:$0x3]
      %vm811 = vcmask 80896
      %v813 = vsel %vm811, 0.0, 0
      %vm815 = vcmask 1041408
      %v817 = vsel %vm815, %v810, 0
      %819 = vmatprep.subr.mxu0 0.0
      %820 = vmatpush1.msra.mxu0 0.0
      %821 = vmatprep.subr.mxu0 0.0
      %822 = vmatpush1.msra.mxu0 0.0
      %823 = vmatprep.subr.mxu0 0.0
      %824 = vmatpush1.msra.mxu0 0.0
      %825 = vmatprep.subr.mxu0 0.0
      %826 = vmatpush1.msra.mxu0 0.0
      %827 = vmatprep.subr.mxu0 0.0
      %828 = vmatpush1.msra.mxu0 0.0
      %829 = vmatprep.subr.mxu0 0.0
      %830 = vmatpush1.msra.mxu0 0.0
      %831 = vmatprep.subr.mxu0 0.0
      %832 = vmatpush1.msra.mxu0 0.0
      %833 = vmatprep.subr.mxu0 0.0
      %834 = vmatpush1.msra.mxu0 0.0
      %835 = vmatprep.subr.mxu0 0.0
      %836 = vmatpush1.msra.mxu0 0.0
      %837 = vmatprep.subr.mxu0 0.0
      %838 = vmatpush1.msra.mxu0 0.0
      %839 = vmatprep.subr.mxu0 0.0
      %840 = vmatpush1.msra.mxu0 0.0
      %841 = vmatprep.subr.mxu0 0.0
      %842 = vmatpush1.msra.mxu0 0.0
      %843 = vmatprep.subr.mxu0 0.0
      %844 = vmatpush1.msra.mxu0 0.0
      %845 = vmatprep.subr.mxu0 0.0
      %846 = vmatpush1.msra.mxu0 0.0
      %847 = vmatprep.subr.mxu0 0.0
      %848 = vmatpush1.msra.mxu0 %v817
      %849 = vmatprep.subr.mxu0 0.0
      %850 = vmatpush1.msra.mxu0 %v809
      %851 = vmatprep.subr.mxu0 0.0
      %852 = vmatpush2.msra.mxu0 0.0
      %853 = vmatprep.subr.mxu0 0.0
      %854 = vmatpush2.msra.mxu0 0.0
      %855 = vmatprep.subr.mxu0 0.0
      %856 = vmatpush2.msra.mxu0 0.0
      %857 = vmatprep.subr.mxu0 0.0
      %858 = vmatpush2.msra.mxu0 0.0
      %859 = vmatprep.subr.mxu0 0.0
      %860 = vmatpush2.msra.mxu0 0.0
      %861 = vmatprep.subr.mxu0 0.0
      %862 = vmatpush2.msra.mxu0 0.0
      %863 = vmatprep.subr.mxu0 0.0
      %864 = vmatpush2.msra.mxu0 0.0
      %865 = vmatprep.subr.mxu0 0.0
      %866 = vmatpush2.msra.mxu0 0.0
      %867 = vmatprep.subr.mxu0 0.0
      %868 = vmatpush2.msra.mxu0 0.0
      %869 = vmatprep.subr.mxu0 0.0
      %870 = vmatpush2.msra.mxu0 0.0
      %871 = vmatprep.subr.mxu0 0.0
      %872 = vmatpush2.msra.mxu0 0.0
      %873 = vmatprep.subr.mxu0 0.0
      %874 = vmatpush2.msra.mxu0 0.0
      %875 = vmatprep.subr.mxu0 0.0
      %876 = vmatpush2.msra.mxu0 0.0
      %877 = vmatprep.subr.mxu0 0.0
      %878 = vmatpush2.msra.mxu0 0.0
      %879 = vmatprep.subr.mxu0 0.0
      %880 = vmatpush2.msra.mxu0 0.0
      %881 = vmatprep.subr.mxu0 0.0
      %882 = vmatpush2.msra.mxu0 0.0
      %883 = vmatprep.mubr.f32.mxu0 0.0
      %884 = vmatmul.mubr.f32.gmra.mxu0 %v813
      %v885 = vpop.f32.mrf.mxu0
      %v886 = vadd.f32 0.0, %v885
      %v887 = vpop.f32.mrf.mxu0
      %888 = vmatprep.mubr.f32.mxu0 0.0
      %889 = vmatmul.mubr.f32.gmra.mxu0 %v813
      %v890 = vpop.f32.mrf.mxu0
      %v891 = vadd.f32 0.0, %v890
      %v892 = vpop.f32.mrf.mxu0
      %893 = vdwg.mxu0
      %v894 = vadd.f32 %v722, %v886
      %v895 = vadd.f32 %v728, %v891
      %v896 = vxor.u32 %v894, 2147483648
      %v897 = vxor.u32 %v895, 2147483648
      %v898 = vmul.f32 %v896, 1.442695
      %v899 = vpow.pop %v898
      %v900 = vmul.f32 %v897, 1.442695
      %v901 = vpow.pop %v900
      %v902 = vadd.f32 %v899, 1.0
      %v903 = vadd.f32 %v901, 1.0
      %v904 = vrcp.pop %v902
      %v905 = vmul.f32 1.0, %v904
      %v906 = vrcp.pop %v903
      %v907 = vmul.f32 1.0, %v906
      %v908 = vtanh.pop %v894
      %v909 = vtanh.pop %v895
      %v910 = vmul.f32 %v905, 0.0
      %v911 = vmul.f32 %v907, 0.0
      %914 = vrot.lane.b32.xlu0 %v908, 98
      %v915 = vpop.permute.xlu0 %914
      %916 = vrot.lane.b32.xlu0 %v909, 98
      %v917 = vpop.permute.xlu0 %916
      %v920 = vmul.f32 %v905, %v915
      %v921 = vmul.f32 %v907, %v917
      %924 = vrot.lane.b32.xlu0 %v920, 10
      %v925 = vpop.permute.xlu0 %924
      %926 = vrot.lane.b32.xlu0 %v921, 10
      %v927 = vpop.permute.xlu0 %926
      %v930 = vadd.f32 %v910, %v925
      %v931 = vadd.f32 %v911, %v927
      %v932 = vtanh.pop %v930
      %v933 = vtanh.pop %v931
      %936 = vrot.lane.b32.xlu0 %v932, 10
      %v937 = vpop.permute.xlu0 %936
      %938 = vrot.lane.b32.xlu0 %v933, 10
      %v939 = vpop.permute.xlu0 %938
      %v942 = vmul.f32 %v905, %v937
      %v943 = vmul.f32 %v907, %v939
      %946 = vrot.lane.b32.xlu0 %v942, 108
      %v947 = vpop.permute.xlu0 %946
      %948 = vrot.lane.b32.xlu0 %v943, 108
      %v949 = vpop.permute.xlu0 %948
      %952 = vst.msk [vmem:[#allocation2] sm:$0xff] %vm811, %v947
      %953 = vst.msk [vmem:[#allocation2 + $0x8] sm:$0xff] %vm811, %v949
      %v954 = vsel %vm811, %v947, 0
      %v956 = vsel %vm811, %v949, 0
      %958 = vmatprep.subr.mxu0 0.0
      %959 = vmatpush1.msra.mxu0 0.0
      %960 = vmatprep.subr.mxu0 0.0
      %961 = vmatpush1.msra.mxu0 0.0
      %962 = vmatprep.subr.mxu0 0.0
      %963 = vmatpush1.msra.mxu0 0.0
      %964 = vmatprep.subr.mxu0 0.0
      %965 = vmatpush1.msra.mxu0 0.0
      %966 = vmatprep.subr.mxu0 0.0
      %967 = vmatpush1.msra.mxu0 0.0
      %968 = vmatprep.subr.mxu0 0.0
      %969 = vmatpush1.msra.mxu0 0.0
      %970 = vmatprep.subr.mxu0 0.0
      %971 = vmatpush1.msra.mxu0 0.0
      %972 = vmatprep.subr.mxu0 0.0
      %973 = vmatpush1.msra.mxu0 0.0
      %974 = vmatprep.subr.mxu0 0.0
      %975 = vmatpush1.msra.mxu0 0.0
      %976 = vmatprep.subr.mxu0 0.0
      %977 = vmatpush1.msra.mxu0 0.0
      %978 = vmatprep.subr.mxu0 0.0
      %979 = vmatpush1.msra.mxu0 0.0
      %980 = vmatprep.subr.mxu0 0.0
      %981 = vmatpush1.msra.mxu0 0.0
      %982 = vmatprep.subr.mxu0 0.0
      %983 = vmatpush1.msra.mxu0 0.0
      %984 = vmatprep.subr.mxu0 0.0
      %985 = vmatpush1.msra.mxu0 0.0
      %986 = vmatprep.subr.mxu0 0.0
      %987 = vmatpush1.msra.mxu0 %v817
      %988 = vmatprep.subr.mxu0 0.0
      %989 = vmatpush1.msra.mxu0 %v809
      %990 = vmatprep.subr.mxu0 0.0
      %991 = vmatpush2.msra.mxu0 0.0
      %992 = vmatprep.subr.mxu0 0.0
      %993 = vmatpush2.msra.mxu0 0.0
      %994 = vmatprep.subr.mxu0 0.0
      %995 = vmatpush2.msra.mxu0 0.0
      %996 = vmatprep.subr.mxu0 0.0
      %997 = vmatpush2.msra.mxu0 0.0
      %998 = vmatprep.subr.mxu0 0.0
      %999 = vmatpush2.msra.mxu0 0.0
      %1000 = vmatprep.subr.mxu0 0.0
      %1001 = vmatpush2.msra.mxu0 0.0
      %1002 = vmatprep.subr.mxu0 0.0
      %1003 = vmatpush2.msra.mxu0 0.0
      %1004 = vmatprep.subr.mxu0 0.0
      %1005 = vmatpush2.msra.mxu0 0.0
      %1006 = vmatprep.subr.mxu0 0.0
      %1007 = vmatpush2.msra.mxu0 0.0
      %1008 = vmatprep.subr.mxu0 0.0
      %1009 = vmatpush2.msra.mxu0 0.0
      %1010 = vmatprep.subr.mxu0 0.0
      %1011 = vmatpush2.msra.mxu0 0.0
      %1012 = vmatprep.subr.mxu0 0.0
      %1013 = vmatpush2.msra.mxu0 0.0
      %1014 = vmatprep.subr.mxu0 0.0
      %1015 = vmatpush2.msra.mxu0 0.0
      %1016 = vmatprep.subr.mxu0 0.0
      %1017 = vmatpush2.msra.mxu0 0.0
      %1018 = vmatprep.subr.mxu0 0.0
      %1019 = vmatpush2.msra.mxu0 0.0
      %1020 = vmatprep.subr.mxu0 0.0
      %1021 = vmatpush2.msra.mxu0 0.0
      %1022 = vmatprep.mubr.f32.mxu0 0.0
      %1023 = vmatmul.mubr.f32.gmra.mxu0 %v954
      %v1024 = vpop.f32.mrf.mxu0
      %v1025 = vadd.f32 0.0, %v1024
      %v1026 = vpop.f32.mrf.mxu0
      %1027 = vmatprep.mubr.f32.mxu0 0.0
      %1028 = vmatmul.mubr.f32.gmra.mxu0 %v956
      %v1029 = vpop.f32.mrf.mxu0
      %v1030 = vadd.f32 0.0, %v1029
      %v1031 = vpop.f32.mrf.mxu0
      %1032 = vdwg.mxu0
      %1035 = vrot.lane.b32.xlu0 %v1025, 40
      %v1036 = vpop.permute.xlu0 %1035
      %1037 = vrot.lane.b32.xlu0 %v1030, 40
      %v1038 = vpop.permute.xlu0 %1037
      %v1041 = vadd.f32 %v722, %v1036
      %v1042 = vadd.f32 %v728, %v1038
      %v1043 = vxor.u32 %v1041, 2147483648
      %v1044 = vxor.u32 %v1042, 2147483648
      %v1045 = vmul.f32 %v1043, 1.442695
      %v1046 = vpow.pop %v1045
      %v1047 = vmul.f32 %v1044, 1.442695
      %v1048 = vpow.pop %v1047
      %v1049 = vadd.f32 %v1046, 1.0
      %v1050 = vadd.f32 %v1048, 1.0
      %v1051 = vrcp.pop %v1049
      %v1052 = vmul.f32 1.0, %v1051
      %v1053 = vrcp.pop %v1050
      %v1054 = vmul.f32 1.0, %v1053
      %v1055 = vtanh.pop %v1041
      %v1056 = vtanh.pop %v1042
      %1059 = vrot.lane.b32.xlu0 %v930, 40
      %v1060 = vpop.permute.xlu0 %1059
      %1061 = vrot.lane.b32.xlu0 %v931, 40
      %v1062 = vpop.permute.xlu0 %1061
      %v1065 = vmul.f32 %v1052, %v1060
      %v1066 = vmul.f32 %v1054, %v1062
      %1069 = vrot.lane.b32.xlu0 %v1055, 98
      %v1070 = vpop.permute.xlu0 %1069
      %1071 = vrot.lane.b32.xlu0 %v1056, 98
      %v1072 = vpop.permute.xlu0 %1071
      %v1075 = vmul.f32 %v1052, %v1070
      %v1076 = vmul.f32 %v1054, %v1072
      %1079 = vrot.lane.b32.xlu0 %v1075, 10
      %v1080 = vpop.permute.xlu0 %1079
      %1081 = vrot.lane.b32.xlu0 %v1076, 10
      %v1082 = vpop.permute.xlu0 %1081
      %v1085 = vadd.f32 %v1065, %v1080
      %v1086 = vadd.f32 %v1066, %v1082
      %v1087 = vtanh.pop %v1085
      %v1088 = vtanh.pop %v1086
      %1091 = vrot.lane.b32.xlu0 %v1087, 10
      %v1092 = vpop.permute.xlu0 %1091
      %1093 = vrot.lane.b32.xlu0 %v1088, 10
      %v1094 = vpop.permute.xlu0 %1093
      %v1097 = vmul.f32 %v1052, %v1092
      %v1098 = vmul.f32 %v1054, %v1094
      %1101 = vrot.lane.b32.xlu0 %v1097, 78
      %v1102 = vpop.permute.xlu0 %1101
      %1103 = vrot.lane.b32.xlu0 %v1098, 78
      %v1104 = vpop.permute.xlu0 %1103
      %vm1107 = vcmask 162896
      %1108 = vst.msk [vmem:[#allocation2] sm:$0xff] %vm1107, %v1102
      %1109 = vst.msk [vmem:[#allocation2 + $0x8] sm:$0xff] %vm1107, %v1104
      %1110 = vrot.lane.b32.xlu0 %v1097, 68
      %v1111 = vpop.permute.xlu0 %1110
      %1112 = vrot.lane.b32.xlu0 %v1098, 68
      %v1113 = vpop.permute.xlu0 %1112
      %v1114 = vsel %vm811, %v1111, 0
      %v1116 = vsel %vm811, %v1113, 0
      %1118 = vmatprep.subr.mxu0 0.0
      %1119 = vmatpush1.msra.mxu0 0.0
      %1120 = vmatprep.subr.mxu0 0.0
      %1121 = vmatpush1.msra.mxu0 0.0
      %1122 = vmatprep.subr.mxu0 0.0
      %1123 = vmatpush1.msra.mxu0 0.0
      %1124 = vmatprep.subr.mxu0 0.0
      %1125 = vmatpush1.msra.mxu0 0.0
      %1126 = vmatprep.subr.mxu0 0.0
      %1127 = vmatpush1.msra.mxu0 0.0
      %1128 = vmatprep.subr.mxu0 0.0
      %1129 = vmatpush1.msra.mxu0 0.0
      %1130 = vmatprep.subr.mxu0 0.0
      %1131 = vmatpush1.msra.mxu0 0.0
      %1132 = vmatprep.subr.mxu0 0.0
      %1133 = vmatpush1.msra.mxu0 0.0
      %1134 = vmatprep.subr.mxu0 0.0
      %1135 = vmatpush1.msra.mxu0 0.0
      %1136 = vmatprep.subr.mxu0 0.0
      %1137 = vmatpush1.msra.mxu0 0.0
      %1138 = vmatprep.subr.mxu0 0.0
      %1139 = vmatpush1.msra.mxu0 0.0
      %1140 = vmatprep.subr.mxu0 0.0
      %1141 = vmatpush1.msra.mxu0 0.0
      %1142 = vmatprep.subr.mxu0 0.0
      %1143 = vmatpush1.msra.mxu0 0.0
      %1144 = vmatprep.subr.mxu0 0.0
      %1145 = vmatpush1.msra.mxu0 0.0
      %1146 = vmatprep.subr.mxu0 0.0
      %1147 = vmatpush1.msra.mxu0 %v817
      %1148 = vmatprep.subr.mxu0 0.0
      %1149 = vmatpush1.msra.mxu0 %v809
      %1150 = vmatprep.subr.mxu0 0.0
      %1151 = vmatpush2.msra.mxu0 0.0
      %1152 = vmatprep.subr.mxu0 0.0
      %1153 = vmatpush2.msra.mxu0 0.0
      %1154 = vmatprep.subr.mxu0 0.0
      %1155 = vmatpush2.msra.mxu0 0.0
      %1156 = vmatprep.subr.mxu0 0.0
      %1157 = vmatpush2.msra.mxu0 0.0
      %1158 = vmatprep.subr.mxu0 0.0
      %1159 = vmatpush2.msra.mxu0 0.0
      %1160 = vmatprep.subr.mxu0 0.0
      %1161 = vmatpush2.msra.mxu0 0.0
      %1162 = vmatprep.subr.mxu0 0.0
      %1163 = vmatpush2.msra.mxu0 0.0
      %1164 = vmatprep.subr.mxu0 0.0
      %1165 = vmatpush2.msra.mxu0 0.0
      %1166 = vmatprep.subr.mxu0 0.0
      %1167 = vmatpush2.msra.mxu0 0.0
      %1168 = vmatprep.subr.mxu0 0.0
      %1169 = vmatpush2.msra.mxu0 0.0
      %1170 = vmatprep.subr.mxu0 0.0
      %1171 = vmatpush2.msra.mxu0 0.0
      %1172 = vmatprep.subr.mxu0 0.0
      %1173 = vmatpush2.msra.mxu0 0.0
      %1174 = vmatprep.subr.mxu0 0.0
      %1175 = vmatpush2.msra.mxu0 0.0
      %1176 = vmatprep.subr.mxu0 0.0
      %1177 = vmatpush2.msra.mxu0 0.0
      %1178 = vmatprep.subr.mxu0 0.0
      %1179 = vmatpush2.msra.mxu0 0.0
      %1180 = vmatprep.subr.mxu0 0.0
      %1181 = vmatpush2.msra.mxu0 0.0
      %1182 = vmatprep.mubr.f32.mxu0 0.0
      %1183 = vmatmul.mubr.f32.gmra.mxu0 %v1114
      %v1184 = vpop.f32.mrf.mxu0
      %v1185 = vadd.f32 0.0, %v1184
      %v1186 = vpop.f32.mrf.mxu0
      %1187 = vmatprep.mubr.f32.mxu0 0.0
      %1188 = vmatmul.mubr.f32.gmra.mxu0 %v1116
      %v1189 = vpop.f32.mrf.mxu0
      %v1190 = vadd.f32 0.0, %v1189
      %v1191 = vpop.f32.mrf.mxu0
      %1192 = vdwg.mxu0
      %1195 = vrot.lane.b32.xlu0 %v1185, 80
      %v1196 = vpop.permute.xlu0 %1195
      %1197 = vrot.lane.b32.xlu0 %v1190, 80
      %v1198 = vpop.permute.xlu0 %1197
      %v1201 = vadd.f32 %v722, %v1196
      %v1202 = vadd.f32 %v728, %v1198
      %v1203 = vxor.u32 %v1201, 2147483648
      %v1204 = vxor.u32 %v1202, 2147483648
      %v1205 = vmul.f32 %v1203, 1.442695
      %v1206 = vpow.pop %v1205
      %v1207 = vmul.f32 %v1204, 1.442695
      %v1208 = vpow.pop %v1207
      %v1209 = vadd.f32 %v1206, 1.0
      %v1210 = vadd.f32 %v1208, 1.0
      %v1211 = vrcp.pop %v1209
      %v1212 = vmul.f32 1.0, %v1211
      %v1213 = vrcp.pop %v1210
      %v1214 = vmul.f32 1.0, %v1213
      %v1215 = vtanh.pop %v1201
      %v1216 = vtanh.pop %v1202
      %1219 = vrot.lane.b32.xlu0 %v1085, 40
      %v1220 = vpop.permute.xlu0 %1219
      %1221 = vrot.lane.b32.xlu0 %v1086, 40
      %v1222 = vpop.permute.xlu0 %1221
      %v1225 = vmul.f32 %v1212, %v1220
      %v1226 = vmul.f32 %v1214, %v1222
      %1229 = vrot.lane.b32.xlu0 %v1215, 98
      %v1230 = vpop.permute.xlu0 %1229
      %1231 = vrot.lane.b32.xlu0 %v1216, 98
      %v1232 = vpop.permute.xlu0 %1231
      %v1235 = vmul.f32 %v1212, %v1230
      %v1236 = vmul.f32 %v1214, %v1232
      %1239 = vrot.lane.b32.xlu0 %v1235, 10
      %v1240 = vpop.permute.xlu0 %1239
      %1241 = vrot.lane.b32.xlu0 %v1236, 10
      %v1242 = vpop.permute.xlu0 %1241
      %v1245 = vadd.f32 %v1225, %v1240
      %v1246 = vadd.f32 %v1226, %v1242
      %v1247 = vtanh.pop %v1245
      %v1248 = vtanh.pop %v1246
      %1251 = vrot.lane.b32.xlu0 %v1247, 10
      %v1252 = vpop.permute.xlu0 %1251
      %1253 = vrot.lane.b32.xlu0 %v1248, 10
      %v1254 = vpop.permute.xlu0 %1253
      %v1257 = vmul.f32 %v1212, %v1252
      %v1258 = vmul.f32 %v1214, %v1254
      %1261 = vrot.lane.b32.xlu0 %v1257, 48
      %v1262 = vpop.permute.xlu0 %1261
      %1263 = vrot.lane.b32.xlu0 %v1258, 48
      %v1264 = vpop.permute.xlu0 %1263
      %vm1267 = vcmask 244896
      %1268 = vst.msk [vmem:[#allocation2] sm:$0xff] %vm1267, %v1262
      %1269 = vst.msk [vmem:[#allocation2 + $0x8] sm:$0xff] %vm1267, %v1264
      %1270 = vrot.lane.b32.xlu0 %v1257, 28
      %v1271 = vpop.permute.xlu0 %1270
      %1272 = vrot.lane.b32.xlu0 %v1258, 28
      %v1273 = vpop.permute.xlu0 %1272
      %v1274 = vsel %vm811, %v1271, 0
      %v1276 = vsel %vm811, %v1273, 0
      %1278 = vmatprep.subr.mxu0 0.0
      %1279 = vmatpush1.msra.mxu0 0.0
      %1280 = vmatprep.subr.mxu0 0.0
      %1281 = vmatpush1.msra.mxu0 0.0
      %1282 = vmatprep.subr.mxu0 0.0
      %1283 = vmatpush1.msra.mxu0 0.0
      %1284 = vmatprep.subr.mxu0 0.0
      %1285 = vmatpush1.msra.mxu0 0.0
      %1286 = vmatprep.subr.mxu0 0.0
      %1287 = vmatpush1.msra.mxu0 0.0
      %1288 = vmatprep.subr.mxu0 0.0
      %1289 = vmatpush1.msra.mxu0 0.0
      %1290 = vmatprep.subr.mxu0 0.0
      %1291 = vmatpush1.msra.mxu0 0.0
      %1292 = vmatprep.subr.mxu0 0.0
      %1293 = vmatpush1.msra.mxu0 0.0
      %1294 = vmatprep.subr.mxu0 0.0
      %1295 = vmatpush1.msra.mxu0 0.0
      %1296 = vmatprep.subr.mxu0 0.0
      %1297 = vmatpush1.msra.mxu0 0.0
      %1298 = vmatprep.subr.mxu0 0.0
      %1299 = vmatpush1.msra.mxu0 0.0
      %1300 = vmatprep.subr.mxu0 0.0
      %1301 = vmatpush1.msra.mxu0 0.0
      %1302 = vmatprep.subr.mxu0 0.0
      %1303 = vmatpush1.msra.mxu0 0.0
      %1304 = vmatprep.subr.mxu0 0.0
      %1305 = vmatpush1.msra.mxu0 0.0
      %1306 = vmatprep.subr.mxu0 0.0
      %1307 = vmatpush1.msra.mxu0 %v817
      %1308 = vmatprep.subr.mxu0 0.0
      %1309 = vmatpush1.msra.mxu0 %v809
      %1310 = vmatprep.subr.mxu0 0.0
      %1311 = vmatpush2.msra.mxu0 0.0
      %1312 = vmatprep.subr.mxu0 0.0
      %1313 = vmatpush2.msra.mxu0 0.0
      %1314 = vmatprep.subr.mxu0 0.0
      %1315 = vmatpush2.msra.mxu0 0.0
      %1316 = vmatprep.subr.mxu0 0.0
      %1317 = vmatpush2.msra.mxu0 0.0
      %1318 = vmatprep.subr.mxu0 0.0
      %1319 = vmatpush2.msra.mxu0 0.0
      %1320 = vmatprep.subr.mxu0 0.0
      %1321 = vmatpush2.msra.mxu0 0.0
      %1322 = vmatprep.subr.mxu0 0.0
      %1323 = vmatpush2.msra.mxu0 0.0
      %1324 = vmatprep.subr.mxu0 0.0
      %1325 = vmatpush2.msra.mxu0 0.0
      %1326 = vmatprep.subr.mxu0 0.0
      %1327 = vmatpush2.msra.mxu0 0.0
      %1328 = vmatprep.subr.mxu0 0.0
      %1329 = vmatpush2.msra.mxu0 0.0
      %1330 = vmatprep.subr.mxu0 0.0
      %1331 = vmatpush2.msra.mxu0 0.0
      %1332 = vmatprep.subr.mxu0 0.0
      %1333 = vmatpush2.msra.mxu0 0.0
      %1334 = vmatprep.subr.mxu0 0.0
      %1335 = vmatpush2.msra.mxu0 0.0
      %1336 = vmatprep.subr.mxu0 0.0
      %1337 = vmatpush2.msra.mxu0 0.0
      %1338 = vmatprep.subr.mxu0 0.0
      %1339 = vmatpush2.msra.mxu0 0.0
      %1340 = vmatprep.subr.mxu0 0.0
      %1341 = vmatpush2.msra.mxu0 0.0
      %1342 = vmatprep.mubr.f32.mxu0 0.0
      %1343 = vmatmul.mubr.f32.gmra.mxu0 %v1274
      %v1344 = vpop.f32.mrf.mxu0
      %v1345 = vadd.f32 0.0, %v1344
      %v1346 = vpop.f32.mrf.mxu0
      %1347 = vmatprep.mubr.f32.mxu0 0.0
      %1348 = vmatmul.mubr.f32.gmra.mxu0 %v1276
      %v1349 = vpop.f32.mrf.mxu0
      %v1350 = vadd.f32 0.0, %v1349
      %v1351 = vpop.f32.mrf.mxu0
      %1352 = vdwg.mxu0
      %1355 = vrot.lane.b32.xlu0 %v1345, 120
      %v1356 = vpop.permute.xlu0 %1355
      %1357 = vrot.lane.b32.xlu0 %v1350, 120
      %v1358 = vpop.permute.xlu0 %1357
      %v1361 = vadd.f32 %v722, %v1356
      %v1362 = vadd.f32 %v724, %v1356
      %v1363 = vadd.f32 %v728, %v1358
      %v1364 = vadd.f32 %v730, %v1358
      %v1365 = vxor.u32 %v1361, 2147483648
      %v1366 = vxor.u32 %v1362, 2147483648
      %v1367 = vxor.u32 %v1363, 2147483648
      %v1368 = vxor.u32 %v1364, 2147483648
      %v1369 = vmul.f32 %v1365, 1.442695
      %v1370 = vpow.pop %v1369
      %v1371 = vmul.f32 %v1366, 1.442695
      %v1372 = vpow.pop %v1371
      %v1373 = vmul.f32 %v1367, 1.442695
      %v1374 = vpow.pop %v1373
      %v1375 = vmul.f32 %v1368, 1.442695
      %v1376 = vpow.pop %v1375
      %v1377 = vadd.f32 %v1370, 1.0
      %v1378 = vadd.f32 %v1372, 1.0
      %v1379 = vadd.f32 %v1374, 1.0
      %v1380 = vadd.f32 %v1376, 1.0
      %v1381 = vrcp.pop %v1377
      %v1382 = vmul.f32 1.0, %v1381
      %v1383 = vrcp.pop %v1378
      %v1384 = vmul.f32 1.0, %v1383
      %v1385 = vrcp.pop %v1379
      %v1386 = vmul.f32 1.0, %v1385
      %v1387 = vrcp.pop %v1380
      %v1388 = vmul.f32 1.0, %v1387
      %v1389 = vtanh.pop %v1362
      %v1390 = vtanh.pop %v1364
      %1393 = vrot.lane.b32.xlu0 %v1245, 40
      %v1394 = vpop.permute.xlu0 %1393
      %1395 = vrot.lane.b32.xlu0 %v1246, 40
      %v1396 = vpop.permute.xlu0 %1395
      %v1399 = vmul.f32 %v1384, %v1394
      %v1400 = vmul.f32 %v1388, %v1396
      %1403 = vrot.lane.b32.xlu0 %v1389, 98
      %v1404 = vpop.permute.xlu0 %1403
      %1405 = vrot.lane.b32.xlu0 %v1390, 98
      %v1406 = vpop.permute.xlu0 %1405
      %v1409 = vmul.f32 %v1382, %v1404
      %v1410 = vmul.f32 %v1384, %v1404
      %v1411 = vmul.f32 %v1386, %v1406
      %v1412 = vmul.f32 %v1388, %v1406
      %1417 = vrot.lane.b32.xlu0 %v1409, 10
      %v1418 = vpop.permute.xlu0 %1417
      %1419 = vrot.lane.b32.xlu0 %v1410, 10
      %v1420 = vpop.permute.xlu0 %1419
      %1421 = vrot.lane.b32.xlu0 %v1411, 10
      %v1422 = vpop.permute.xlu0 %1421
      %1423 = vrot.lane.b32.xlu0 %v1412, 10
      %v1424 = vpop.permute.xlu0 %1423
      %v1425 = vsel %vm811, %v1418, %v1420
      %v1426 = vsel %vm811, %v1422, %v1424
      %v1429 = vadd.f32 %v1399, %v1425
      %v1430 = vadd.f32 %v1400, %v1426
      %v1431 = vtanh.pop %v1429
      %v1432 = vtanh.pop %v1430
      %1435 = vrot.lane.b32.xlu0 %v1431, 10
      %v1436 = vpop.permute.xlu0 %1435
      %1437 = vrot.lane.b32.xlu0 %v1432, 10
      %v1438 = vpop.permute.xlu0 %1437
      %v1441 = vmul.f32 %v1384, %v1436
      %v1442 = vmul.f32 %v1388, %v1438
      %1445 = vrot.lane.b32.xlu0 %v1441, 18
      %v1446 = vpop.permute.xlu0 %1445
      %1447 = vrot.lane.b32.xlu0 %v1442, 18
      %v1448 = vpop.permute.xlu0 %1447
      %vm1451 = vcmask 326896
      %1452 = vst.msk [vmem:[#allocation2] sm:$0xff] %vm1451, %v1446
      %1453 = vst.msk [vmem:[#allocation2 + $0x8] sm:$0xff] %vm1451, %v1448
      %1454 = vrot.lane.b32.xlu0 %v1441, 116
      %v1455 = vpop.permute.xlu0 %1454
      %1456 = vrot.lane.b32.xlu0 %v1442, 116
      %v1457 = vpop.permute.xlu0 %1456
      %v1458 = vsel %vm811, %v1455, 0
      %v1460 = vsel %vm811, %v1457, 0
      %1462 = vmatprep.subr.mxu0 0.0
      %1463 = vmatpush1.msra.mxu0 0.0
      %1464 = vmatprep.subr.mxu0 0.0
      %1465 = vmatpush1.msra.mxu0 0.0
      %1466 = vmatprep.subr.mxu0 0.0
      %1467 = vmatpush1.msra.mxu0 0.0
      %1468 = vmatprep.subr.mxu0 0.0
      %1469 = vmatpush1.msra.mxu0 0.0
      %1470 = vmatprep.subr.mxu0 0.0
      %1471 = vmatpush1.msra.mxu0 0.0
      %1472 = vmatprep.subr.mxu0 0.0
      %1473 = vmatpush1.msra.mxu0 0.0
      %1474 = vmatprep.subr.mxu0 0.0
      %1475 = vmatpush1.msra.mxu0 0.0
      %1476 = vmatprep.subr.mxu0 0.0
      %1477 = vmatpush1.msra.mxu0 0.0
      %1478 = vmatprep.subr.mxu0 0.0
      %1479 = vmatpush1.msra.mxu0 0.0
      %1480 = vmatprep.subr.mxu0 0.0
      %1481 = vmatpush1.msra.mxu0 0.0
      %1482 = vmatprep.subr.mxu0 0.0
      %1483 = vmatpush1.msra.mxu0 0.0
      %1484 = vmatprep.subr.mxu0 0.0
      %1485 = vmatpush1.msra.mxu0 0.0
      %1486 = vmatprep.subr.mxu0 0.0
      %1487 = vmatpush1.msra.mxu0 0.0
      %1488 = vmatprep.subr.mxu0 0.0
      %1489 = vmatpush1.msra.mxu0 0.0
      %1490 = vmatprep.subr.mxu0 0.0
      %1491 = vmatpush1.msra.mxu0 %v817
      %1492 = vmatprep.subr.mxu0 0.0
      %1493 = vmatpush1.msra.mxu0 %v809
      %1494 = vmatprep.subr.mxu0 0.0
      %1495 = vmatpush2.msra.mxu0 0.0
      %1496 = vmatprep.subr.mxu0 0.0
      %1497 = vmatpush2.msra.mxu0 0.0
      %1498 = vmatprep.subr.mxu0 0.0
      %1499 = vmatpush2.msra.mxu0 0.0
      %1500 = vmatprep.subr.mxu0 0.0
      %1501 = vmatpush2.msra.mxu0 0.0
      %1502 = vmatprep.subr.mxu0 0.0
      %1503 = vmatpush2.msra.mxu0 0.0
      %1504 = vmatprep.subr.mxu0 0.0
      %1505 = vmatpush2.msra.mxu0 0.0
      %1506 = vmatprep.subr.mxu0 0.0
      %1507 = vmatpush2.msra.mxu0 0.0
      %1508 = vmatprep.subr.mxu0 0.0
      %1509 = vmatpush2.msra.mxu0 0.0
      %1510 = vmatprep.subr.mxu0 0.0
      %1511 = vmatpush2.msra.mxu0 0.0
      %1512 = vmatprep.subr.mxu0 0.0
      %1513 = vmatpush2.msra.mxu0 0.0
      %1514 = vmatprep.subr.mxu0 0.0
      %1515 = vmatpush2.msra.mxu0 0.0
      %1516 = vmatprep.subr.mxu0 0.0
      %1517 = vmatpush2.msra.mxu0 0.0
      %1518 = vmatprep.subr.mxu0 0.0
      %1519 = vmatpush2.msra.mxu0 0.0
      %1520 = vmatprep.subr.mxu0 0.0
      %1521 = vmatpush2.msra.mxu0 0.0
      %1522 = vmatprep.subr.mxu0 0.0
      %1523 = vmatpush2.msra.mxu0 0.0
      %1524 = vmatprep.subr.mxu0 0.0
      %1525 = vmatpush2.msra.mxu0 0.0
      %1526 = vmatprep.mubr.f32.mxu0 0.0
      %1527 = vmatmul.mubr.f32.gmra.mxu0 %v1458
      %v1528 = vpop.f32.mrf.mxu0
      %v1529 = vadd.f32 0.0, %v1528
      %v1530 = vpop.f32.mrf.mxu0
      %1531 = vmatprep.mubr.f32.mxu0 0.0
      %1532 = vmatmul.mubr.f32.gmra.mxu0 %v1460
      %v1533 = vpop.f32.mrf.mxu0
      %v1534 = vadd.f32 0.0, %v1533
      %v1535 = vpop.f32.mrf.mxu0
      %1536 = vdwg.mxu0
      %1539 = vrot.lane.b32.xlu0 %v1529, 32
      %v1540 = vpop.permute.xlu0 %1539
      %1541 = vrot.lane.b32.xlu0 %v1534, 32
      %v1542 = vpop.permute.xlu0 %1541
      %v1545 = vadd.f32 %v724, %v1540
      %v1546 = vadd.f32 %v730, %v1542
      %v1547 = vxor.u32 %v1545, 2147483648
      %v1548 = vxor.u32 %v1546, 2147483648
      %v1549 = vmul.f32 %v1547, 1.442695
      %v1550 = vpow.pop %v1549
      %v1551 = vmul.f32 %v1548, 1.442695
      %v1552 = vpow.pop %v1551
      %v1553 = vadd.f32 %v1550, 1.0
      %v1554 = vadd.f32 %v1552, 1.0
      %v1555 = vrcp.pop %v1553
      %v1556 = vmul.f32 1.0, %v1555
      %v1557 = vrcp.pop %v1554
      %v1558 = vmul.f32 1.0, %v1557
      %v1559 = vtanh.pop %v1545
      %v1560 = vtanh.pop %v1546
      %1563 = vrot.lane.b32.xlu0 %v1429, 40
      %v1564 = vpop.permute.xlu0 %1563
      %1565 = vrot.lane.b32.xlu0 %v1430, 40
      %v1566 = vpop.permute.xlu0 %1565
      %v1569 = vmul.f32 %v1556, %v1564
      %v1570 = vmul.f32 %v1558, %v1566
      %1573 = vrot.lane.b32.xlu0 %v1559, 98
      %v1574 = vpop.permute.xlu0 %1573
      %1575 = vrot.lane.b32.xlu0 %v1560, 98
      %v1576 = vpop.permute.xlu0 %1575
      %v1579 = vmul.f32 %v1556, %v1574
      %v1580 = vmul.f32 %v1558, %v1576
      %1583 = vrot.lane.b32.xlu0 %v1579, 10
      %v1584 = vpop.permute.xlu0 %1583
      %1585 = vrot.lane.b32.xlu0 %v1580, 10
      %v1586 = vpop.permute.xlu0 %1585
      %v1589 = vadd.f32 %v1569, %v1584
      %v1590 = vadd.f32 %v1570, %v1586
      %v1591 = vtanh.pop %v1589
      %v1592 = vtanh.pop %v1590
      %1595 = vrot.lane.b32.xlu0 %v1591, 10
      %v1596 = vpop.permute.xlu0 %1595
      %1597 = vrot.lane.b32.xlu0 %v1592, 10
      %v1598 = vpop.permute.xlu0 %1597
      %v1601 = vmul.f32 %v1556, %v1596
      %v1602 = vmul.f32 %v1558, %v1598
      %1605 = vrot.lane.b32.xlu0 %v1601, 116
      %v1606 = vpop.permute.xlu0 %1605
      %1607 = vrot.lane.b32.xlu0 %v1602, 116
      %v1608 = vpop.permute.xlu0 %1607
      %vm1611 = vcmask 408896
      %1612 = vst.msk [vmem:[#allocation2] sm:$0xff] %vm1611, %v1606
      %1613 = vst.msk [vmem:[#allocation2 + $0x8] sm:$0xff] %vm1611, %v1608
      %1614 = vrot.lane.b32.xlu0 %v1601, 76
      %v1615 = vpop.permute.xlu0 %1614
      %1616 = vrot.lane.b32.xlu0 %v1602, 76
      %v1617 = vpop.permute.xlu0 %1616
      %v1618 = vsel %vm811, %v1615, 0
      %v1620 = vsel %vm811, %v1617, 0
      %1622 = vmatprep.subr.mxu0 0.0
      %1623 = vmatpush1.msra.mxu0 0.0
      %1624 = vmatprep.subr.mxu0 0.0
      %1625 = vmatpush1.msra.mxu0 0.0
      %1626 = vmatprep.subr.mxu0 0.0
      %1627 = vmatpush1.msra.mxu0 0.0
      %1628 = vmatprep.subr.mxu0 0.0
      %1629 = vmatpush1.msra.mxu0 0.0
      %1630 = vmatprep.subr.mxu0 0.0
      %1631 = vmatpush1.msra.mxu0 0.0
      %1632 = vmatprep.subr.mxu0 0.0
      %1633 = vmatpush1.msra.mxu0 0.0
      %1634 = vmatprep.subr.mxu0 0.0
      %1635 = vmatpush1.msra.mxu0 0.0
      %1636 = vmatprep.subr.mxu0 0.0
      %1637 = vmatpush1.msra.mxu0 0.0
      %1638 = vmatprep.subr.mxu0 0.0
      %1639 = vmatpush1.msra.mxu0 0.0
      %1640 = vmatprep.subr.mxu0 0.0
      %1641 = vmatpush1.msra.mxu0 0.0
      %1642 = vmatprep.subr.mxu0 0.0
      %1643 = vmatpush1.msra.mxu0 0.0
      %1644 = vmatprep.subr.mxu0 0.0
      %1645 = vmatpush1.msra.mxu0 0.0
      %1646 = vmatprep.subr.mxu0 0.0
      %1647 = vmatpush1.msra.mxu0 0.0
      %1648 = vmatprep.subr.mxu0 0.0
      %1649 = vmatpush1.msra.mxu0 0.0
      %1650 = vmatprep.subr.mxu0 0.0
      %1651 = vmatpush1.msra.mxu0 %v817
      %1652 = vmatprep.subr.mxu0 0.0
      %1653 = vmatpush1.msra.mxu0 %v809
      %1654 = vmatprep.subr.mxu0 0.0
      %1655 = vmatpush2.msra.mxu0 0.0
      %1656 = vmatprep.subr.mxu0 0.0
      %1657 = vmatpush2.msra.mxu0 0.0
      %1658 = vmatprep.subr.mxu0 0.0
      %1659 = vmatpush2.msra.mxu0 0.0
      %1660 = vmatprep.subr.mxu0 0.0
      %1661 = vmatpush2.msra.mxu0 0.0
      %1662 = vmatprep.subr.mxu0 0.0
      %1663 = vmatpush2.msra.mxu0 0.0
      %1664 = vmatprep.subr.mxu0 0.0
      %1665 = vmatpush2.msra.mxu0 0.0
      %1666 = vmatprep.subr.mxu0 0.0
      %1667 = vmatpush2.msra.mxu0 0.0
      %1668 = vmatprep.subr.mxu0 0.0
      %1669 = vmatpush2.msra.mxu0 0.0
      %1670 = vmatprep.subr.mxu0 0.0
      %1671 = vmatpush2.msra.mxu0 0.0
      %1672 = vmatprep.subr.mxu0 0.0
      %1673 = vmatpush2.msra.mxu0 0.0
      %1674 = vmatprep.subr.mxu0 0.0
      %1675 = vmatpush2.msra.mxu0 0.0
      %1676 = vmatprep.subr.mxu0 0.0
      %1677 = vmatpush2.msra.mxu0 0.0
      %1678 = vmatprep.subr.mxu0 0.0
      %1679 = vmatpush2.msra.mxu0 0.0
      %1680 = vmatprep.subr.mxu0 0.0
      %1681 = vmatpush2.msra.mxu0 0.0
      %1682 = vmatprep.subr.mxu0 0.0
      %1683 = vmatpush2.msra.mxu0 0.0
      %1684 = vmatprep.subr.mxu0 0.0
      %1685 = vmatpush2.msra.mxu0 0.0
      %1686 = vmatprep.mubr.f32.mxu0 0.0
      %1687 = vmatmul.mubr.f32.gmra.mxu0 %v1618
      %v1688 = vpop.f32.mrf.mxu0
      %v1689 = vadd.f32 0.0, %v1688
      %v1690 = vpop.f32.mrf.mxu0
      %1691 = vmatprep.mubr.f32.mxu0 0.0
      %1692 = vmatmul.mubr.f32.gmra.mxu0 %v1620
      %v1693 = vpop.f32.mrf.mxu0
      %v1694 = vadd.f32 0.0, %v1693
      %v1695 = vpop.f32.mrf.mxu0
      %1696 = vdwg.mxu0
      %1699 = vrot.lane.b32.xlu0 %v1689, 72
      %v1700 = vpop.permute.xlu0 %1699
      %1701 = vrot.lane.b32.xlu0 %v1694, 72
      %v1702 = vpop.permute.xlu0 %1701
      %v1705 = vadd.f32 %v724, %v1700
      %v1706 = vadd.f32 %v730, %v1702
      %v1707 = vxor.u32 %v1705, 2147483648
      %v1708 = vxor.u32 %v1706, 2147483648
      %v1709 = vmul.f32 %v1707, 1.442695
      %v1710 = vpow.pop %v1709
      %v1711 = vmul.f32 %v1708, 1.442695
      %v1712 = vpow.pop %v1711
      %v1713 = vadd.f32 %v1710, 1.0
      %v1714 = vadd.f32 %v1712, 1.0
      %v1715 = vrcp.pop %v1713
      %v1716 = vmul.f32 1.0, %v1715
      %v1717 = vrcp.pop %v1714
      %v1718 = vmul.f32 1.0, %v1717
      %v1719 = vtanh.pop %v1705
      %v1720 = vtanh.pop %v1706
      %1723 = vrot.lane.b32.xlu0 %v1589, 40
      %v1724 = vpop.permute.xlu0 %1723
      %1725 = vrot.lane.b32.xlu0 %v1590, 40
      %v1726 = vpop.permute.xlu0 %1725
      %v1729 = vmul.f32 %v1716, %v1724
      %v1730 = vmul.f32 %v1718, %v1726
      %1733 = vrot.lane.b32.xlu0 %v1719, 98
      %v1734 = vpop.permute.xlu0 %1733
      %1735 = vrot.lane.b32.xlu0 %v1720, 98
      %v1736 = vpop.permute.xlu0 %1735
      %v1739 = vmul.f32 %v1716, %v1734
      %v1740 = vmul.f32 %v1718, %v1736
      %1743 = vrot.lane.b32.xlu0 %v1739, 10
      %v1744 = vpop.permute.xlu0 %1743
      %1745 = vrot.lane.b32.xlu0 %v1740, 10
      %v1746 = vpop.permute.xlu0 %1745
      %v1749 = vadd.f32 %v1729, %v1744
      %v1750 = vadd.f32 %v1730, %v1746
      %v1751 = vtanh.pop %v1749
      %v1752 = vtanh.pop %v1750
      %1755 = vrot.lane.b32.xlu0 %v1751, 10
      %v1756 = vpop.permute.xlu0 %1755
      %1757 = vrot.lane.b32.xlu0 %v1752, 10
      %v1758 = vpop.permute.xlu0 %1757
      %v1761 = vmul.f32 %v1716, %v1756
      %v1762 = vmul.f32 %v1718, %v1758
      %1765 = vrot.lane.b32.xlu0 %v1761, 86
      %v1766 = vpop.permute.xlu0 %1765
      %1767 = vrot.lane.b32.xlu0 %v1762, 86
      %v1768 = vpop.permute.xlu0 %1767
      %vm1771 = vcmask 490896
      %1772 = vst.msk [vmem:[#allocation2] sm:$0xff] %vm1771, %v1766
      %1773 = vst.msk [vmem:[#allocation2 + $0x8] sm:$0xff] %vm1771, %v1768
      %1774 = vrot.lane.b32.xlu0 %v1761, 36
      %v1775 = vpop.permute.xlu0 %1774
      %1776 = vrot.lane.b32.xlu0 %v1762, 36
      %v1777 = vpop.permute.xlu0 %1776
      %v1778 = vsel %vm811, %v1775, 0
      %v1780 = vsel %vm811, %v1777, 0
      %1782 = vmatprep.subr.mxu0 0.0
      %1783 = vmatpush1.msra.mxu0 0.0
      %1784 = vmatprep.subr.mxu0 0.0
      %1785 = vmatpush1.msra.mxu0 0.0
      %1786 = vmatprep.subr.mxu0 0.0
      %1787 = vmatpush1.msra.mxu0 0.0
      %1788 = vmatprep.subr.mxu0 0.0
      %1789 = vmatpush1.msra.mxu0 0.0
      %1790 = vmatprep.subr.mxu0 0.0
      %1791 = vmatpush1.msra.mxu0 0.0
      %1792 = vmatprep.subr.mxu0 0.0
      %1793 = vmatpush1.msra.mxu0 0.0
      %1794 = vmatprep.subr.mxu0 0.0
      %1795 = vmatpush1.msra.mxu0 0.0
      %1796 = vmatprep.subr.mxu0 0.0
      %1797 = vmatpush1.msra.mxu0 0.0
      %1798 = vmatprep.subr.mxu0 0.0
      %1799 = vmatpush1.msra.mxu0 0.0
      %1800 = vmatprep.subr.mxu0 0.0
      %1801 = vmatpush1.msra.mxu0 0.0
      %1802 = vmatprep.subr.mxu0 0.0
      %1803 = vmatpush1.msra.mxu0 0.0
      %1804 = vmatprep.subr.mxu0 0.0
      %1805 = vmatpush1.msra.mxu0 0.0
      %1806 = vmatprep.subr.mxu0 0.0
      %1807 = vmatpush1.msra.mxu0 0.0
      %1808 = vmatprep.subr.mxu0 0.0
      %1809 = vmatpush1.msra.mxu0 0.0
      %1810 = vmatprep.subr.mxu0 0.0
      %1811 = vmatpush1.msra.mxu0 %v817
      %1812 = vmatprep.subr.mxu0 0.0
      %1813 = vmatpush1.msra.mxu0 %v809
      %1814 = vmatprep.subr.mxu0 0.0
      %1815 = vmatpush2.msra.mxu0 0.0
      %1816 = vmatprep.subr.mxu0 0.0
      %1817 = vmatpush2.msra.mxu0 0.0
      %1818 = vmatprep.subr.mxu0 0.0
      %1819 = vmatpush2.msra.mxu0 0.0
      %1820 = vmatprep.subr.mxu0 0.0
      %1821 = vmatpush2.msra.mxu0 0.0
      %1822 = vmatprep.subr.mxu0 0.0
      %1823 = vmatpush2.msra.mxu0 0.0
      %1824 = vmatprep.subr.mxu0 0.0
      %1825 = vmatpush2.msra.mxu0 0.0
      %1826 = vmatprep.subr.mxu0 0.0
      %1827 = vmatpush2.msra.mxu0 0.0
      %1828 = vmatprep.subr.mxu0 0.0
      %1829 = vmatpush2.msra.mxu0 0.0
      %1830 = vmatprep.subr.mxu0 0.0
      %1831 = vmatpush2.msra.mxu0 0.0
      %1832 = vmatprep.subr.mxu0 0.0
      %1833 = vmatpush2.msra.mxu0 0.0
      %1834 = vmatprep.subr.mxu0 0.0
      %1835 = vmatpush2.msra.mxu0 0.0
      %1836 = vmatprep.subr.mxu0 0.0
      %1837 = vmatpush2.msra.mxu0 0.0
      %1838 = vmatprep.subr.mxu0 0.0
      %1839 = vmatpush2.msra.mxu0 0.0
      %1840 = vmatprep.subr.mxu0 0.0
      %1841 = vmatpush2.msra.mxu0 0.0
      %1842 = vmatprep.subr.mxu0 0.0
      %1843 = vmatpush2.msra.mxu0 0.0
      %1844 = vmatprep.subr.mxu0 0.0
      %1845 = vmatpush2.msra.mxu0 0.0
      %1846 = vmatprep.mubr.f32.mxu0 0.0
      %1847 = vmatmul.mubr.f32.gmra.mxu0 %v1778
      %v1848 = vpop.f32.mrf.mxu0
      %v1849 = vadd.f32 0.0, %v1848
      %v1850 = vpop.f32.mrf.mxu0
      %1851 = vmatprep.mubr.f32.mxu0 0.0
      %1852 = vmatmul.mubr.f32.gmra.mxu0 %v1780
      %v1853 = vpop.f32.mrf.mxu0
      %v1854 = vadd.f32 0.0, %v1853
      %v1855 = vpop.f32.mrf.mxu0
      %1856 = vdwg.mxu0
      %1859 = vrot.lane.b32.xlu0 %v1849, 112
      %v1860 = vpop.permute.xlu0 %1859
      %1861 = vrot.lane.b32.xlu0 %v1854, 112
      %v1862 = vpop.permute.xlu0 %1861
      %v1865 = vadd.f32 %v724, %v1860
      %v1866 = vadd.f32 %v799, %v1860
      %v1867 = vadd.f32 %v730, %v1862
      %v1868 = vadd.f32 %v805, %v1862
      %v1869 = vxor.u32 %v1865, 2147483648
      %v1870 = vxor.u32 %v1866, 2147483648
      %v1871 = vxor.u32 %v1867, 2147483648
      %v1872 = vxor.u32 %v1868, 2147483648
      %v1873 = vmul.f32 %v1869, 1.442695
      %v1874 = vpow.pop %v1873
      %v1875 = vmul.f32 %v1870, 1.442695
      %v1876 = vpow.pop %v1875
      %v1877 = vmul.f32 %v1871, 1.442695
      %v1878 = vpow.pop %v1877
      %v1879 = vmul.f32 %v1872, 1.442695
      %v1880 = vpow.pop %v1879
      %v1881 = vadd.f32 %v1874, 1.0
      %v1882 = vadd.f32 %v1876, 1.0
      %v1883 = vadd.f32 %v1878, 1.0
      %v1884 = vadd.f32 %v1880, 1.0
      %v1885 = vrcp.pop %v1881
      %v1886 = vmul.f32 1.0, %v1885
      %v1887 = vrcp.pop %v1882
      %v1888 = vmul.f32 1.0, %v1887
      %v1889 = vrcp.pop %v1883
      %v1890 = vmul.f32 1.0, %v1889
      %v1891 = vrcp.pop %v1884
      %v1892 = vmul.f32 1.0, %v1891
      %v1893 = vtanh.pop %v1866
      %v1894 = vtanh.pop %v1868
      %1897 = vrot.lane.b32.xlu0 %v1749, 40
      %v1898 = vpop.permute.xlu0 %1897
      %1899 = vrot.lane.b32.xlu0 %v1750, 40
      %v1900 = vpop.permute.xlu0 %1899
      %v1903 = vmul.f32 %v1886, %v1898
      %v1904 = vmul.f32 %v1888, %v1898
      %v1905 = vmul.f32 %v1890, %v1900
      %v1906 = vmul.f32 %v1892, %v1900
      %1909 = vrot.lane.b32.xlu0 %v1893, 98
      %v1910 = vpop.permute.xlu0 %1909
      %1911 = vrot.lane.b32.xlu0 %v1894, 98
      %v1912 = vpop.permute.xlu0 %1911
      %v1915 = vmul.f32 %v1886, %v1910
      %v1916 = vmul.f32 %v1890, %v1912
      %1919 = vrot.lane.b32.xlu0 %v1915, 10
      %v1920 = vpop.permute.xlu0 %1919
      %1921 = vrot.lane.b32.xlu0 %v1916, 10
      %v1922 = vpop.permute.xlu0 %1921
      %v1925 = vadd.f32 %v1903, %v1920
      %v1926 = vadd.f32 %v1904, %v1920
      %v1927 = vadd.f32 %v1905, %v1922
      %v1928 = vadd.f32 %v1906, %v1922
      %v1929 = vtanh.pop %v1925
      %v1930 = vtanh.pop %v1926
      %v1931 = vtanh.pop %v1927
      %v1932 = vtanh.pop %v1928
      %1937 = vrot.lane.b32.xlu0 %v1929, 10
      %v1938 = vpop.permute.xlu0 %1937
      %1939 = vrot.lane.b32.xlu0 %v1930, 10
      %v1940 = vpop.permute.xlu0 %1939
      %1941 = vrot.lane.b32.xlu0 %v1931, 10
      %v1942 = vpop.permute.xlu0 %1941
      %1943 = vrot.lane.b32.xlu0 %v1932, 10
      %v1944 = vpop.permute.xlu0 %1943
      %v1945 = vsel %vm811, %v1938, %v1940
      %v1946 = vsel %vm811, %v1942, %v1944
      %v1949 = vmul.f32 %v1888, %v1945
      %v1950 = vmul.f32 %v1892, %v1946
      %1953 = vrot.lane.b32.xlu0 %v1949, 56
      %v1954 = vpop.permute.xlu0 %1953
      %1955 = vrot.lane.b32.xlu0 %v1950, 56
      %v1956 = vpop.permute.xlu0 %1955
      %vm1959 = vcmask 572896
      %1960 = vst.msk [vmem:[#allocation2] sm:$0xff] %vm1959, %v1954
      %1961 = vst.msk [vmem:[#allocation2 + $0x8] sm:$0xff] %vm1959, %v1956
      %1962 = vrot.lane.b32.xlu0 %v1949, 124
      %v1963 = vpop.permute.xlu0 %1962
      %1964 = vrot.lane.b32.xlu0 %v1950, 124
      %v1965 = vpop.permute.xlu0 %1964
      %v1966 = vsel %vm811, %v1963, 0
      %v1968 = vsel %vm811, %v1965, 0
      %1970 = vmatprep.subr.mxu0 0.0
      %1971 = vmatpush1.msra.mxu0 0.0
      %1972 = vmatprep.subr.mxu0 0.0
      %1973 = vmatpush1.msra.mxu0 0.0
      %1974 = vmatprep.subr.mxu0 0.0
      %1975 = vmatpush1.msra.mxu0 0.0
      %1976 = vmatprep.subr.mxu0 0.0
      %1977 = vmatpush1.msra.mxu0 0.0
      %1978 = vmatprep.subr.mxu0 0.0
      %1979 = vmatpush1.msra.mxu0 0.0
      %1980 = vmatprep.subr.mxu0 0.0
      %1981 = vmatpush1.msra.mxu0 0.0
      %1982 = vmatprep.subr.mxu0 0.0
      %1983 = vmatpush1.msra.mxu0 0.0
      %1984 = vmatprep.subr.mxu0 0.0
      %1985 = vmatpush1.msra.mxu0 0.0
      %1986 = vmatprep.subr.mxu0 0.0
      %1987 = vmatpush1.msra.mxu0 0.0
      %1988 = vmatprep.subr.mxu0 0.0
      %1989 = vmatpush1.msra.mxu0 0.0
      %1990 = vmatprep.subr.mxu0 0.0
      %1991 = vmatpush1.msra.mxu0 0.0
      %1992 = vmatprep.subr.mxu0 0.0
      %1993 = vmatpush1.msra.mxu0 0.0
      %1994 = vmatprep.subr.mxu0 0.0
      %1995 = vmatpush1.msra.mxu0 0.0
      %1996 = vmatprep.subr.mxu0 0.0
      %1997 = vmatpush1.msra.mxu0 0.0
      %1998 = vmatprep.subr.mxu0 0.0
      %1999 = vmatpush1.msra.mxu0 %v817
      %2000 = vmatprep.subr.mxu0 0.0
      %2001 = vmatpush1.msra.mxu0 %v809
      %2002 = vmatprep.subr.mxu0 0.0
      %2003 = vmatpush2.msra.mxu0 0.0
      %2004 = vmatprep.subr.mxu0 0.0
      %2005 = vmatpush2.msra.mxu0 0.0
      %2006 = vmatprep.subr.mxu0 0.0
      %2007 = vmatpush2.msra.mxu0 0.0
      %2008 = vmatprep.subr.mxu0 0.0
      %2009 = vmatpush2.msra.mxu0 0.0
      %2010 = vmatprep.subr.mxu0 0.0
      %2011 = vmatpush2.msra.mxu0 0.0
      %2012 = vmatprep.subr.mxu0 0.0
      %2013 = vmatpush2.msra.mxu0 0.0
      %2014 = vmatprep.subr.mxu0 0.0
      %2015 = vmatpush2.msra.mxu0 0.0
      %2016 = vmatprep.subr.mxu0 0.0
      %2017 = vmatpush2.msra.mxu0 0.0
      %2018 = vmatprep.subr.mxu0 0.0
      %2019 = vmatpush2.msra.mxu0 0.0
      %2020 = vmatprep.subr.mxu0 0.0
      %2021 = vmatpush2.msra.mxu0 0.0
      %2022 = vmatprep.subr.mxu0 0.0
      %2023 = vmatpush2.msra.mxu0 0.0
      %2024 = vmatprep.subr.mxu0 0.0
      %2025 = vmatpush2.msra.mxu0 0.0
      %2026 = vmatprep.subr.mxu0 0.0
      %2027 = vmatpush2.msra.mxu0 0.0
      %2028 = vmatprep.subr.mxu0 0.0
      %2029 = vmatpush2.msra.mxu0 0.0
      %2030 = vmatprep.subr.mxu0 0.0
      %2031 = vmatpush2.msra.mxu0 0.0
      %2032 = vmatprep.subr.mxu0 0.0
      %2033 = vmatpush2.msra.mxu0 0.0
      %2034 = vmatprep.mubr.f32.mxu0 0.0
      %2035 = vmatmul.mubr.f32.gmra.mxu0 %v1966
      %v2036 = vpop.f32.mrf.mxu0
      %v2037 = vadd.f32 0.0, %v2036
      %v2038 = vpop.f32.mrf.mxu0
      %2039 = vmatprep.mubr.f32.mxu0 0.0
      %2040 = vmatmul.mubr.f32.gmra.mxu0 %v1968
      %v2041 = vpop.f32.mrf.mxu0
      %v2042 = vadd.f32 0.0, %v2041
      %v2043 = vpop.f32.mrf.mxu0
      %2044 = vdwg.mxu0
      %2047 = vrot.lane.b32.xlu0 %v2037, 24
      %v2048 = vpop.permute.xlu0 %2047
      %2049 = vrot.lane.b32.xlu0 %v2042, 24
      %v2050 = vpop.permute.xlu0 %2049
      %v2053 = vadd.f32 %v799, %v2048
      %v2054 = vadd.f32 %v805, %v2050
      %v2055 = vxor.u32 %v2053, 2147483648
      %v2056 = vxor.u32 %v2054, 2147483648
      %v2057 = vmul.f32 %v2055, 1.442695
      %v2058 = vpow.pop %v2057
      %v2059 = vmul.f32 %v2056, 1.442695
      %v2060 = vpow.pop %v2059
      %v2061 = vadd.f32 %v2058, 1.0
      %v2062 = vadd.f32 %v2060, 1.0
      %v2063 = vrcp.pop %v2061
      %v2064 = vmul.f32 1.0, %v2063
      %v2065 = vrcp.pop %v2062
      %v2066 = vmul.f32 1.0, %v2065
      %v2067 = vtanh.pop %v2053
      %v2068 = vtanh.pop %v2054
      %2073 = vrot.lane.b32.xlu0 %v1925, 40
      %v2074 = vpop.permute.xlu0 %2073
      %2075 = vrot.lane.b32.xlu0 %v1926, 40
      %v2076 = vpop.permute.xlu0 %2075
      %2077 = vrot.lane.b32.xlu0 %v1927, 40
      %v2078 = vpop.permute.xlu0 %2077
      %2079 = vrot.lane.b32.xlu0 %v1928, 40
      %v2080 = vpop.permute.xlu0 %2079
      %vm2081 = vcmask 326656
      %v2082 = vsel %vm2081, %v2074, %v2076
      %v2083 = vsel %vm2081, %v2078, %v2080
      %v2086 = vmul.f32 %v2064, %v2082
      %v2087 = vmul.f32 %v2066, %v2083
      %2090 = vrot.lane.b32.xlu0 %v2067, 98
      %v2091 = vpop.permute.xlu0 %2090
      %2092 = vrot.lane.b32.xlu0 %v2068, 98
      %v2093 = vpop.permute.xlu0 %2092
      %v2096 = vmul.f32 %v2064, %v2091
      %v2097 = vmul.f32 %v2066, %v2093
      %2100 = vrot.lane.b32.xlu0 %v2096, 10
      %v2101 = vpop.permute.xlu0 %2100
      %2102 = vrot.lane.b32.xlu0 %v2097, 10
      %v2103 = vpop.permute.xlu0 %2102
      %v2106 = vadd.f32 %v2086, %v2101
      %v2107 = vadd.f32 %v2087, %v2103
      %v2108 = vtanh.pop %v2106
      %v2109 = vtanh.pop %v2107
      %2112 = vrot.lane.b32.xlu0 %v2108, 10
      %v2113 = vpop.permute.xlu0 %2112
      %2114 = vrot.lane.b32.xlu0 %v2109, 10
      %v2115 = vpop.permute.xlu0 %2114
      %v2118 = vmul.f32 %v2064, %v2113
      %v2119 = vmul.f32 %v2066, %v2115
      %2122 = vrot.lane.b32.xlu0 %v2118, 26
      %v2123 = vpop.permute.xlu0 %2122
      %2124 = vrot.lane.b32.xlu0 %v2119, 26
      %v2125 = vpop.permute.xlu0 %2124
      %vm2128 = vcmask 654896
      %2129 = vst.msk [vmem:[#allocation2] sm:$0xff] %vm2128, %v2123
      %2130 = vst.msk [vmem:[#allocation2 + $0x8] sm:$0xff] %vm2128, %v2125
      %2131 = vrot.lane.b32.xlu0 %v2118, 84
      %v2132 = vpop.permute.xlu0 %2131
      %2133 = vrot.lane.b32.xlu0 %v2119, 84
      %v2134 = vpop.permute.xlu0 %2133
      %v2135 = vsel %vm811, %v2132, 0
      %v2137 = vsel %vm811, %v2134, 0
      %2139 = vmatprep.subr.mxu0 0.0
      %2140 = vmatpush1.msra.mxu0 0.0
      %2141 = vmatprep.subr.mxu0 0.0
      %2142 = vmatpush1.msra.mxu0 0.0
      %2143 = vmatprep.subr.mxu0 0.0
      %2144 = vmatpush1.msra.mxu0 0.0
      %2145 = vmatprep.subr.mxu0 0.0
      %2146 = vmatpush1.msra.mxu0 0.0
      %2147 = vmatprep.subr.mxu0 0.0
      %2148 = vmatpush1.msra.mxu0 0.0
      %2149 = vmatprep.subr.mxu0 0.0
      %2150 = vmatpush1.msra.mxu0 0.0
      %2151 = vmatprep.subr.mxu0 0.0
      %2152 = vmatpush1.msra.mxu0 0.0
      %2153 = vmatprep.subr.mxu0 0.0
      %2154 = vmatpush1.msra.mxu0 0.0
      %2155 = vmatprep.subr.mxu0 0.0
      %2156 = vmatpush1.msra.mxu0 0.0
      %2157 = vmatprep.subr.mxu0 0.0
      %2158 = vmatpush1.msra.mxu0 0.0
      %2159 = vmatprep.subr.mxu0 0.0
      %2160 = vmatpush1.msra.mxu0 0.0
      %2161 = vmatprep.subr.mxu0 0.0
      %2162 = vmatpush1.msra.mxu0 0.0
      %2163 = vmatprep.subr.mxu0 0.0
      %2164 = vmatpush1.msra.mxu0 0.0
      %2165 = vmatprep.subr.mxu0 0.0
      %2166 = vmatpush1.msra.mxu0 0.0
      %2167 = vmatprep.subr.mxu0 0.0
      %2168 = vmatpush1.msra.mxu0 %v817
      %2169 = vmatprep.subr.mxu0 0.0
      %2170 = vmatpush1.msra.mxu0 %v809
      %2171 = vmatprep.subr.mxu0 0.0
      %2172 = vmatpush2.msra.mxu0 0.0
      %2173 = vmatprep.subr.mxu0 0.0
      %2174 = vmatpush2.msra.mxu0 0.0
      %2175 = vmatprep.subr.mxu0 0.0
      %2176 = vmatpush2.msra.mxu0 0.0
      %2177 = vmatprep.subr.mxu0 0.0
      %2178 = vmatpush2.msra.mxu0 0.0
      %2179 = vmatprep.subr.mxu0 0.0
      %2180 = vmatpush2.msra.mxu0 0.0
      %2181 = vmatprep.subr.mxu0 0.0
      %2182 = vmatpush2.msra.mxu0 0.0
      %2183 = vmatprep.subr.mxu0 0.0
      %2184 = vmatpush2.msra.mxu0 0.0
      %2185 = vmatprep.subr.mxu0 0.0
      %2186 = vmatpush2.msra.mxu0 0.0
      %2187 = vmatprep.subr.mxu0 0.0
      %2188 = vmatpush2.msra.mxu0 0.0
      %2189 = vmatprep.subr.mxu0 0.0
      %2190 = vmatpush2.msra.mxu0 0.0
      %2191 = vmatprep.subr.mxu0 0.0
      %2192 = vmatpush2.msra.mxu0 0.0
      %2193 = vmatprep.subr.mxu0 0.0
      %2194 = vmatpush2.msra.mxu0 0.0
      %2195 = vmatprep.subr.mxu0 0.0
      %2196 = vmatpush2.msra.mxu0 0.0
      %2197 = vmatprep.subr.mxu0 0.0
      %2198 = vmatpush2.msra.mxu0 0.0
      %2199 = vmatprep.subr.mxu0 0.0
      %2200 = vmatpush2.msra.mxu0 0.0
      %2201 = vmatprep.subr.mxu0 0.0
      %2202 = vmatpush2.msra.mxu0 0.0
      %2203 = vmatprep.mubr.f32.mxu0 0.0
      %2204 = vmatmul.mubr.f32.gmra.mxu0 %v2135
      %v2205 = vpop.f32.mrf.mxu0
      %v2206 = vadd.f32 0.0, %v2205
      %v2207 = vpop.f32.mrf.mxu0
      %2208 = vmatprep.mubr.f32.mxu0 0.0
      %2209 = vmatmul.mubr.f32.gmra.mxu0 %v2137
      %v2210 = vpop.f32.mrf.mxu0
      %v2211 = vadd.f32 0.0, %v2210
      %v2212 = vpop.f32.mrf.mxu0
      %2213 = vdwg.mxu0
      %2216 = vrot.lane.b32.xlu0 %v2206, 64
      %v2217 = vpop.permute.xlu0 %2216
      %2218 = vrot.lane.b32.xlu0 %v2211, 64
      %v2219 = vpop.permute.xlu0 %2218
      %v2222 = vadd.f32 %v799, %v2217
      %v2223 = vadd.f32 %v805, %v2219
      %v2224 = vxor.u32 %v2222, 2147483648
      %v2225 = vxor.u32 %v2223, 2147483648
      %v2226 = vmul.f32 %v2224, 1.442695
      %v2227 = vpow.pop %v2226
      %v2228 = vmul.f32 %v2225, 1.442695
      %v2229 = vpow.pop %v2228
      %v2230 = vadd.f32 %v2227, 1.0
      %v2231 = vadd.f32 %v2229, 1.0
      %v2232 = vrcp.pop %v2230
      %v2233 = vmul.f32 1.0, %v2232
      %v2234 = vrcp.pop %v2231
      %v2235 = vmul.f32 1.0, %v2234
      %v2236 = vtanh.pop %v2222
      %v2237 = vtanh.pop %v2223
      %2240 = vrot.lane.b32.xlu0 %v2106, 40
      %v2241 = vpop.permute.xlu0 %2240
      %2242 = vrot.lane.b32.xlu0 %v2107, 40
      %v2243 = vpop.permute.xlu0 %2242
      %v2246 = vmul.f32 %v2233, %v2241
      %v2247 = vmul.f32 %v2235, %v2243
      %2250 = vrot.lane.b32.xlu0 %v2236, 98
      %v2251 = vpop.permute.xlu0 %2250
      %2252 = vrot.lane.b32.xlu0 %v2237, 98
      %v2253 = vpop.permute.xlu0 %2252
      %v2256 = vmul.f32 %v2233, %v2251
      %v2257 = vmul.f32 %v2235, %v2253
      %2260 = vrot.lane.b32.xlu0 %v2256, 10
      %v2261 = vpop.permute.xlu0 %2260
      %2262 = vrot.lane.b32.xlu0 %v2257, 10
      %v2263 = vpop.permute.xlu0 %2262
      %v2266 = vadd.f32 %v2246, %v2261
      %v2267 = vadd.f32 %v2247, %v2263
      %v2268 = vtanh.pop %v2266
      %v2269 = vtanh.pop %v2267
      %2272 = vrot.lane.b32.xlu0 %v2268, 10
      %v2273 = vpop.permute.xlu0 %2272
      %2274 = vrot.lane.b32.xlu0 %v2269, 10
      %v2275 = vpop.permute.xlu0 %2274
      %v2278 = vmul.f32 %v2233, %v2273
      %v2279 = vmul.f32 %v2235, %v2275
      %2282 = vrot.lane.b32.xlu0 %v2278, 124
      %v2283 = vpop.permute.xlu0 %2282
      %2284 = vrot.lane.b32.xlu0 %v2279, 124
      %v2285 = vpop.permute.xlu0 %2284
      %vm2288 = vcmask 736896
      %2289 = vst.msk [vmem:[#allocation2] sm:$0xff] %vm2288, %v2283
      %2290 = vst.msk [vmem:[#allocation2 + $0x8] sm:$0xff] %vm2288, %v2285
      %2291 = vrot.lane.b32.xlu0 %v2278, 44
      %v2292 = vpop.permute.xlu0 %2291
      %2293 = vrot.lane.b32.xlu0 %v2279, 44
      %v2294 = vpop.permute.xlu0 %2293
      %v2295 = vsel %vm811, %v2292, 0
      %v2297 = vsel %vm811, %v2294, 0
      %2299 = vmatprep.subr.mxu0 0.0
      %2300 = vmatpush1.msra.mxu0 0.0
      %2301 = vmatprep.subr.mxu0 0.0
      %2302 = vmatpush1.msra.mxu0 0.0
      %2303 = vmatprep.subr.mxu0 0.0
      %2304 = vmatpush1.msra.mxu0 0.0
      %2305 = vmatprep.subr.mxu0 0.0
      %2306 = vmatpush1.msra.mxu0 0.0
      %2307 = vmatprep.subr.mxu0 0.0
      %2308 = vmatpush1.msra.mxu0 0.0
      %2309 = vmatprep.subr.mxu0 0.0
      %2310 = vmatpush1.msra.mxu0 0.0
      %2311 = vmatprep.subr.mxu0 0.0
      %2312 = vmatpush1.msra.mxu0 0.0
      %2313 = vmatprep.subr.mxu0 0.0
      %2314 = vmatpush1.msra.mxu0 0.0
      %2315 = vmatprep.subr.mxu0 0.0
      %2316 = vmatpush1.msra.mxu0 0.0
      %2317 = vmatprep.subr.mxu0 0.0
      %2318 = vmatpush1.msra.mxu0 0.0
      %2319 = vmatprep.subr.mxu0 0.0
      %2320 = vmatpush1.msra.mxu0 0.0
      %2321 = vmatprep.subr.mxu0 0.0
      %2322 = vmatpush1.msra.mxu0 0.0
      %2323 = vmatprep.subr.mxu0 0.0
      %2324 = vmatpush1.msra.mxu0 0.0
      %2325 = vmatprep.subr.mxu0 0.0
      %2326 = vmatpush1.msra.mxu0 0.0
      %2327 = vmatprep.subr.mxu0 0.0
      %2328 = vmatpush1.msra.mxu0 %v817
      %2329 = vmatprep.subr.mxu0 0.0
      %2330 = vmatpush1.msra.mxu0 %v809
      %2331 = vmatprep.subr.mxu0 0.0
      %2332 = vmatpush2.msra.mxu0 0.0
      %2333 = vmatprep.subr.mxu0 0.0
      %2334 = vmatpush2.msra.mxu0 0.0
      %2335 = vmatprep.subr.mxu0 0.0
      %2336 = vmatpush2.msra.mxu0 0.0
      %2337 = vmatprep.subr.mxu0 0.0
      %2338 = vmatpush2.msra.mxu0 0.0
      %2339 = vmatprep.subr.mxu0 0.0
      %2340 = vmatpush2.msra.mxu0 0.0
      %2341 = vmatprep.subr.mxu0 0.0
      %2342 = vmatpush2.msra.mxu0 0.0
      %2343 = vmatprep.subr.mxu0 0.0
      %2344 = vmatpush2.msra.mxu0 0.0
      %2345 = vmatprep.subr.mxu0 0.0
      %2346 = vmatpush2.msra.mxu0 0.0
      %2347 = vmatprep.subr.mxu0 0.0
      %2348 = vmatpush2.msra.mxu0 0.0
      %2349 = vmatprep.subr.mxu0 0.0
      %2350 = vmatpush2.msra.mxu0 0.0
      %2351 = vmatprep.subr.mxu0 0.0
      %2352 = vmatpush2.msra.mxu0 0.0
      %2353 = vmatprep.subr.mxu0 0.0
      %2354 = vmatpush2.msra.mxu0 0.0
      %2355 = vmatprep.subr.mxu0 0.0
      %2356 = vmatpush2.msra.mxu0 0.0
      %2357 = vmatprep.subr.mxu0 0.0
      %2358 = vmatpush2.msra.mxu0 0.0
      %2359 = vmatprep.subr.mxu0 0.0
      %2360 = vmatpush2.msra.mxu0 0.0
      %2361 = vmatprep.subr.mxu0 0.0
      %2362 = vmatpush2.msra.mxu0 0.0
      %2363 = vmatprep.mubr.f32.mxu0 0.0
      %2364 = vmatmul.mubr.f32.gmra.mxu0 %v2295
      %v2365 = vpop.f32.mrf.mxu0
      %v2366 = vadd.f32 0.0, %v2365
      %v2367 = vpop.f32.mrf.mxu0
      %2368 = vmatprep.mubr.f32.mxu0 0.0
      %2369 = vmatmul.mubr.f32.gmra.mxu0 %v2297
      %v2370 = vpop.f32.mrf.mxu0
      %v2371 = vadd.f32 0.0, %v2370
      %v2372 = vpop.f32.mrf.mxu0
      %2373 = vdwg.mxu0
      %2376 = vrot.lane.b32.xlu0 %v2366, 104
      %v2377 = vpop.permute.xlu0 %2376
      %2378 = vrot.lane.b32.xlu0 %v2371, 104
      %v2379 = vpop.permute.xlu0 %2378
      %v2382 = vadd.f32 %v799, %v2377
      %v2383 = vadd.f32 %v801, %v2377
      %v2384 = vadd.f32 %v805, %v2379
      %v2385 = vadd.f32 %v807, %v2379
      %v2386 = vxor.u32 %v2382, 2147483648
      %v2387 = vxor.u32 %v2383, 2147483648
      %v2388 = vxor.u32 %v2384, 2147483648
      %v2389 = vxor.u32 %v2385, 2147483648
      %v2390 = vmul.f32 %v2386, 1.442695
      %v2391 = vpow.pop %v2390
      %v2392 = vmul.f32 %v2387, 1.442695
      %v2393 = vpow.pop %v2392
      %v2394 = vmul.f32 %v2388, 1.442695
      %v2395 = vpow.pop %v2394
      %v2396 = vmul.f32 %v2389, 1.442695
      %v2397 = vpow.pop %v2396
      %v2398 = vadd.f32 %v2391, 1.0
      %v2399 = vadd.f32 %v2393, 1.0
      %v2400 = vadd.f32 %v2395, 1.0
      %v2401 = vadd.f32 %v2397, 1.0
      %v2402 = vrcp.pop %v2398
      %v2403 = vmul.f32 1.0, %v2402
      %v2404 = vrcp.pop %v2399
      %v2405 = vmul.f32 1.0, %v2404
      %v2406 = vrcp.pop %v2400
      %v2407 = vmul.f32 1.0, %v2406
      %v2408 = vrcp.pop %v2401
      %v2409 = vmul.f32 1.0, %v2408
      %v2410 = vtanh.pop %v2383
      %v2411 = vtanh.pop %v2385
      %2414 = vrot.lane.b32.xlu0 %v2266, 40
      %v2415 = vpop.permute.xlu0 %2414
      %2416 = vrot.lane.b32.xlu0 %v2267, 40
      %v2417 = vpop.permute.xlu0 %2416
      %v2420 = vmul.f32 %v2403, %v2415
      %v2421 = vmul.f32 %v2407, %v2417
      %2424 = vrot.lane.b32.xlu0 %v2410, 98
      %v2425 = vpop.permute.xlu0 %2424
      %2426 = vrot.lane.b32.xlu0 %v2411, 98
      %v2427 = vpop.permute.xlu0 %2426
      %v2430 = vmul.f32 %v2403, %v2425
      %v2431 = vmul.f32 %v2407, %v2427
      %2434 = vrot.lane.b32.xlu0 %v2430, 10
      %v2435 = vpop.permute.xlu0 %2434
      %2436 = vrot.lane.b32.xlu0 %v2431, 10
      %v2437 = vpop.permute.xlu0 %2436
      %v2440 = vadd.f32 %v2420, %v2435
      %v2441 = vadd.f32 %v2421, %v2437
      %v2442 = vtanh.pop %v2440
      %v2443 = vtanh.pop %v2441
      %2446 = vrot.lane.b32.xlu0 %v2442, 10
      %v2447 = vpop.permute.xlu0 %2446
      %2448 = vrot.lane.b32.xlu0 %v2443, 10
      %v2449 = vpop.permute.xlu0 %2448
      %v2452 = vmul.f32 %v2403, %v2447
      %v2453 = vmul.f32 %v2405, %v2447
      %v2454 = vmul.f32 %v2407, %v2449
      %v2455 = vmul.f32 %v2409, %v2449
      %2460 = vrot.lane.b32.xlu0 %v2452, 94
      %v2461 = vpop.permute.xlu0 %2460
      %2462 = vrot.lane.b32.xlu0 %v2453, 94
      %v2463 = vpop.permute.xlu0 %2462
      %2464 = vrot.lane.b32.xlu0 %v2454, 94
      %v2465 = vpop.permute.xlu0 %2464
      %2466 = vrot.lane.b32.xlu0 %v2455, 94
      %v2467 = vpop.permute.xlu0 %2466
      %vm2468 = vcmask 769024
      %v2469 = vsel %vm2468, %v2461, %v2463
      %v2470 = vsel %vm2468, %v2465, %v2467
      %vm2473 = vcmask 818896
      %2474 = vst.msk [vmem:[#allocation2] sm:$0xff] %vm2473, %v2469
      %2475 = vst.msk [vmem:[#allocation2 + $0x8] sm:$0xff] %vm2473, %v2470
      %v2476 = vld [vmem:[#allocation2] sm:$0xff]
      %v2477 = vld [vmem:[#allocation2 + $0x8] sm:$0xff]
      %v2478 = vld [vmem:[%s5] sm:$0xff]
      %v2479 = vld [vmem:[%s5 + $0x8] sm:$0xff]
      %v2480 = vld [vmem:[%s5 + $0x10] sm:$0xff]
      %v2481 = vld [vmem:[%s5 + $0x18] sm:$0xff]
      %v2482 = vld [vmem:[%s5 + $0x20] sm:$0xff]
      %v2483 = vld [vmem:[%s5 + $0x28] sm:$0xff]
      %v2484 = vld [vmem:[%s5 + $0x30] sm:$0xff]
      %v2485 = vld [vmem:[%s5 + $0x38] sm:$0xff]
      %v2486 = vld [vmem:[%s5 + $0x40] sm:$0xff]
      %v2487 = vld [vmem:[%s5 + $0x48] sm:$0xff]
      %v2488 = vld [vmem:[%s5 + $0x50] sm:$0xff]
      %v2489 = vld [vmem:[%s5 + $0x58] sm:$0xff]
      %v2490 = vld [vmem:[%s5 + $0x60] sm:$0xff]
      %v2491 = vld [vmem:[%s5 + $0x68] sm:$0xff]
      %v2492 = vld [vmem:[%s5 + $0x70] sm:$0xff]
      %v2493 = vld [vmem:[%s5 + $0x78] sm:$0xff]
      %v2494 = vld [vmem:[%s5 + $0x80] sm:$0xff]
      %v2495 = vld [vmem:[%s5 + $0x88] sm:$0xff]
      %v2496 = vld [vmem:[%s5 + $0x90] sm:$0xff]
      %v2497 = vld [vmem:[%s5 + $0x98] sm:$0xff]
      %v2498 = vld [vmem:[%s5 + $0xa0] sm:$0xff]
      %v2499 = vld [vmem:[%s5 + $0xa8] sm:$0xff]
      %v2500 = vld [vmem:[%s5 + $0xb0] sm:$0xff]
      %v2501 = vld [vmem:[%s5 + $0xb8] sm:$0xff]
      %v2502 = vld [vmem:[%s5 + $0xc0] sm:$0xff]
      %v2503 = vld [vmem:[%s5 + $0xc8] sm:$0xff]
      %v2504 = vld [vmem:[%s5 + $0xd0] sm:$0xff]
      %v2505 = vld [vmem:[%s5 + $0xd8] sm:$0xff]
      %v2506 = vld [vmem:[%s5 + $0xe0] sm:$0xff]
      %v2507 = vld [vmem:[%s5 + $0xe8] sm:$0xff]
      %v2508 = vld [vmem:[%s5 + $0xf0] sm:$0xff]
      %v2509 = vld [vmem:[%s5 + $0xf8] sm:$0xff]
      %v2510 = vld [vmem:[%s5 + $0x100] sm:$0xff]
      %v2511 = vld [vmem:[%s5 + $0x108] sm:$0xff]
      %v2512 = vld [vmem:[%s5 + $0x110] sm:$0xff]
      %v2513 = vld [vmem:[%s5 + $0x118] sm:$0xff]
      %v2514 = vld [vmem:[%s5 + $0x120] sm:$0xff]
      %v2515 = vld [vmem:[%s5 + $0x128] sm:$0xff]
      %v2516 = vld [vmem:[%s5 + $0x130] sm:$0xff]
      %v2517 = vld [vmem:[%s5 + $0x138] sm:$0xff]
      %v2518 = vld [vmem:[%s5 + $0x140] sm:$0xff]
      %v2519 = vld [vmem:[%s5 + $0x148] sm:$0xff]
      %v2520 = vld [vmem:[%s5 + $0x150] sm:$0xff]
      %v2521 = vld [vmem:[%s5 + $0x158] sm:$0xff]
      %v2522 = vld [vmem:[%s5 + $0x160] sm:$0xff]
      %v2523 = vld [vmem:[%s5 + $0x168] sm:$0xff]
      %v2524 = vld [vmem:[%s5 + $0x170] sm:$0xff]
      %v2525 = vld [vmem:[%s5 + $0x178] sm:$0xff]
      %v2526 = vld [vmem:[%s5 + $0x180] sm:$0xf]
      %v2527 = vld [vmem:[%s5 + $0x188] sm:$0xf]
      %v2528 = vld [vmem:[%s5 + $0x190] sm:$0xf]
      %v2529 = vld [vmem:[%s5 + $0x198] sm:$0xf]
      %v2530 = vld [vmem:[%s6] sm:$0xf]
      %v2532 = vlaneseq
      %v2533 = vshrl.u32 %v2532, 7
      %v2534 = vsub.s32 0, %v2533
      %v2535 = vrot.slane %v2530, %v2534
      %v2536 = vlaneseq
      %v2537 = vshrl.u32 %v2536, 7
      %v2538 = vsub.s32 1, %v2537
      %v2539 = vrot.slane %v2530, %v2538
      %v2540 = vlaneseq
      %v2541 = vshrl.u32 %v2540, 7
      %v2542 = vsub.s32 2, %v2541
      %v2543 = vrot.slane %v2530, %v2542
      %v2544 = vlaneseq
      %v2545 = vshrl.u32 %v2544, 7
      %v2546 = vsub.s32 3, %v2545
      %v2547 = vrot.slane %v2530, %v2546
      %vm2552 = vcmask 818176
      %v2554 = vsel %vm2552, %v2476, 0
      %v2557 = vsel %vm2552, %v2477, 0
      %v2560 = vsel %vm642, %v2526, 0
      %v2563 = vsel %vm642, %v2527, 0
      %v2566 = vsel %vm642, %v2528, 0
      %v2569 = vsel %vm642, %v2529, 0
      %2571 = vmatprep.subr.mxu0 0.0
      %2572 = vmatpush1.msra.mxu0 0.0
      %2573 = vmatprep.subr.mxu0 0.0
      %2574 = vmatpush1.msra.mxu0 0.0
      %2575 = vmatprep.subr.mxu0 0.0
      %2576 = vmatpush1.msra.mxu0 0.0
      %2577 = vmatprep.subr.mxu0 %v2563
      %2578 = vmatpush1.msra.mxu0 %v2560
      %2579 = vmatprep.subr.mxu0 %v2523
      %2580 = vmatpush1.msra.mxu0 %v2522
      %2581 = vmatprep.subr.mxu0 %v2519
      %2582 = vmatpush1.msra.mxu0 %v2518
      %2583 = vmatprep.subr.mxu0 %v2515
      %2584 = vmatpush1.msra.mxu0 %v2514
      %2585 = vmatprep.subr.mxu0 %v2511
      %2586 = vmatpush1.msra.mxu0 %v2510
      %2587 = vmatprep.subr.mxu0 %v2507
      %2588 = vmatpush1.msra.mxu0 %v2506
      %2589 = vmatprep.subr.mxu0 %v2503
      %2590 = vmatpush1.msra.mxu0 %v2502
      %2591 = vmatprep.subr.mxu0 %v2499
      %2592 = vmatpush1.msra.mxu0 %v2498
      %2593 = vmatprep.subr.mxu0 %v2495
      %2594 = vmatpush1.msra.mxu0 %v2494
      %2595 = vmatprep.subr.mxu0 %v2491
      %2596 = vmatpush1.msra.mxu0 %v2490
      %2597 = vmatprep.subr.mxu0 %v2487
      %2598 = vmatpush1.msra.mxu0 %v2486
      %2599 = vmatprep.subr.mxu0 %v2483
      %2600 = vmatpush1.msra.mxu0 %v2482
      %2601 = vmatprep.subr.mxu0 %v2479
      %2602 = vmatpush1.msra.mxu0 %v2478
      %2603 = vmatprep.subr.mxu0 0.0
      %2604 = vmatpush2.msra.mxu0 0.0
      %2605 = vmatprep.subr.mxu0 0.0
      %2606 = vmatpush2.msra.mxu0 0.0
      %2607 = vmatprep.subr.mxu0 0.0
      %2608 = vmatpush2.msra.mxu0 0.0
      %2609 = vmatprep.subr.mxu0 0.0
      %2610 = vmatpush2.msra.mxu0 0.0
      %2611 = vmatprep.subr.mxu0 0.0
      %2612 = vmatpush2.msra.mxu0 0.0
      %2613 = vmatprep.subr.mxu0 0.0
      %2614 = vmatpush2.msra.mxu0 0.0
      %2615 = vmatprep.subr.mxu0 0.0
      %2616 = vmatpush2.msra.mxu0 0.0
      %2617 = vmatprep.subr.mxu0 0.0
      %2618 = vmatpush2.msra.mxu0 0.0
      %2619 = vmatprep.subr.mxu0 0.0
      %2620 = vmatpush2.msra.mxu0 0.0
      %2621 = vmatprep.subr.mxu0 0.0
      %2622 = vmatpush2.msra.mxu0 0.0
      %2623 = vmatprep.subr.mxu0 0.0
      %2624 = vmatpush2.msra.mxu0 0.0
      %2625 = vmatprep.subr.mxu0 0.0
      %2626 = vmatpush2.msra.mxu0 0.0
      %2627 = vmatprep.subr.mxu0 0.0
      %2628 = vmatpush2.msra.mxu0 0.0
      %2629 = vmatprep.subr.mxu0 0.0
      %2630 = vmatpush2.msra.mxu0 0.0
      %2631 = vmatprep.subr.mxu0 0.0
      %2632 = vmatpush2.msra.mxu0 0.0
      %2633 = vmatprep.subr.mxu0 0.0
      %2634 = vmatpush2.msra.mxu0 0.0
      %2635 = vmatprep.mubr.f32.mxu0 0.0
      %2636 = vmatmul.mubr.f32.gmra.mxu0 %v2554
      %v2637 = vpop.f32.mrf.mxu0
      %v2638 = vadd.f32 %v2535, %v2637
      %v2639 = vpop.f32.mrf.mxu0
      %v2640 = vadd.f32 %v2539, %v2639
      %2641 = vmatprep.mubr.f32.mxu0 0.0
      %2642 = vmatmul.mubr.f32.gmra.mxu0 %v2557
      %v2643 = vpop.f32.mrf.mxu0
      %v2644 = vadd.f32 %v2535, %v2643
      %v2645 = vpop.f32.mrf.mxu0
      %v2646 = vadd.f32 %v2539, %v2645
      %2647 = vdwg.mxu0
      %2648 = vmatprep.subr.mxu0 0.0
      %2649 = vmatpush1.msra.mxu0 0.0
      %2650 = vmatprep.subr.mxu0 0.0
      %2651 = vmatpush1.msra.mxu0 0.0
      %2652 = vmatprep.subr.mxu0 0.0
      %2653 = vmatpush1.msra.mxu0 0.0
      %2654 = vmatprep.subr.mxu0 %v2569
      %2655 = vmatpush1.msra.mxu0 %v2566
      %2656 = vmatprep.subr.mxu0 %v2525
      %2657 = vmatpush1.msra.mxu0 %v2524
      %2658 = vmatprep.subr.mxu0 %v2521
      %2659 = vmatpush1.msra.mxu0 %v2520
      %2660 = vmatprep.subr.mxu0 %v2517
      %2661 = vmatpush1.msra.mxu0 %v2516
      %2662 = vmatprep.subr.mxu0 %v2513
      %2663 = vmatpush1.msra.mxu0 %v2512
      %2664 = vmatprep.subr.mxu0 %v2509
      %2665 = vmatpush1.msra.mxu0 %v2508
      %2666 = vmatprep.subr.mxu0 %v2505
      %2667 = vmatpush1.msra.mxu0 %v2504
      %2668 = vmatprep.subr.mxu0 %v2501
      %2669 = vmatpush1.msra.mxu0 %v2500
      %2670 = vmatprep.subr.mxu0 %v2497
      %2671 = vmatpush1.msra.mxu0 %v2496
      %2672 = vmatprep.subr.mxu0 %v2493
      %2673 = vmatpush1.msra.mxu0 %v2492
      %2674 = vmatprep.subr.mxu0 %v2489
      %2675 = vmatpush1.msra.mxu0 %v2488
      %2676 = vmatprep.subr.mxu0 %v2485
      %2677 = vmatpush1.msra.mxu0 %v2484
      %2678 = vmatprep.subr.mxu0 %v2481
      %2679 = vmatpush1.msra.mxu0 %v2480
      %2680 = vmatprep.subr.mxu0 0.0
      %2681 = vmatpush2.msra.mxu0 0.0
      %2682 = vmatprep.subr.mxu0 0.0
      %2683 = vmatpush2.msra.mxu0 0.0
      %2684 = vmatprep.subr.mxu0 0.0
      %2685 = vmatpush2.msra.mxu0 0.0
      %2686 = vmatprep.subr.mxu0 0.0
      %2687 = vmatpush2.msra.mxu0 0.0
      %2688 = vmatprep.subr.mxu0 0.0
      %2689 = vmatpush2.msra.mxu0 0.0
      %2690 = vmatprep.subr.mxu0 0.0
      %2691 = vmatpush2.msra.mxu0 0.0
      %2692 = vmatprep.subr.mxu0 0.0
      %2693 = vmatpush2.msra.mxu0 0.0
      %2694 = vmatprep.subr.mxu0 0.0
      %2695 = vmatpush2.msra.mxu0 0.0
      %2696 = vmatprep.subr.mxu0 0.0
      %2697 = vmatpush2.msra.mxu0 0.0
      %2698 = vmatprep.subr.mxu0 0.0
      %2699 = vmatpush2.msra.mxu0 0.0
      %2700 = vmatprep.subr.mxu0 0.0
      %2701 = vmatpush2.msra.mxu0 0.0
      %2702 = vmatprep.subr.mxu0 0.0
      %2703 = vmatpush2.msra.mxu0 0.0
      %2704 = vmatprep.subr.mxu0 0.0
      %2705 = vmatpush2.msra.mxu0 0.0
      %2706 = vmatprep.subr.mxu0 0.0
      %2707 = vmatpush2.msra.mxu0 0.0
      %2708 = vmatprep.subr.mxu0 0.0
      %2709 = vmatpush2.msra.mxu0 0.0
      %2710 = vmatprep.subr.mxu0 0.0
      %2711 = vmatpush2.msra.mxu0 0.0
      %2712 = vmatprep.mubr.f32.mxu0 0.0
      %2713 = vmatmul.mubr.f32.gmra.mxu0 %v2554
      %v2714 = vpop.f32.mrf.mxu0
      %v2715 = vadd.f32 %v2543, %v2714
      %v2716 = vpop.f32.mrf.mxu0
      %v2717 = vadd.f32 %v2547, %v2716
      %2718 = vmatprep.mubr.f32.mxu0 0.0
      %2719 = vmatmul.mubr.f32.gmra.mxu0 %v2557
      %v2720 = vpop.f32.mrf.mxu0
      %v2721 = vadd.f32 %v2543, %v2720
      %v2722 = vpop.f32.mrf.mxu0
      %v2723 = vadd.f32 %v2547, %v2722
      %2724 = vdwg.mxu0
      %v2725 = vld [vmem:[%s7] sm:$0xff]
      %v2726 = vld [vmem:[%s7 + $0x8] sm:$0x3]
      %v2728 = vsel %vm815, %v2726, 0
      %2730 = vmatprep.subr.mxu0 0.0
      %2731 = vmatpush1.msra.mxu0 0.0
      %2732 = vmatprep.subr.mxu0 0.0
      %2733 = vmatpush1.msra.mxu0 0.0
      %2734 = vmatprep.subr.mxu0 0.0
      %2735 = vmatpush1.msra.mxu0 0.0
      %2736 = vmatprep.subr.mxu0 0.0
      %2737 = vmatpush1.msra.mxu0 0.0
      %2738 = vmatprep.subr.mxu0 0.0
      %2739 = vmatpush1.msra.mxu0 0.0
      %2740 = vmatprep.subr.mxu0 0.0
      %2741 = vmatpush1.msra.mxu0 0.0
      %2742 = vmatprep.subr.mxu0 0.0
      %2743 = vmatpush1.msra.mxu0 0.0
      %2744 = vmatprep.subr.mxu0 0.0
      %2745 = vmatpush1.msra.mxu0 0.0
      %2746 = vmatprep.subr.mxu0 0.0
      %2747 = vmatpush1.msra.mxu0 0.0
      %2748 = vmatprep.subr.mxu0 0.0
      %2749 = vmatpush1.msra.mxu0 0.0
      %2750 = vmatprep.subr.mxu0 0.0
      %2751 = vmatpush1.msra.mxu0 0.0
      %2752 = vmatprep.subr.mxu0 0.0
      %2753 = vmatpush1.msra.mxu0 0.0
      %2754 = vmatprep.subr.mxu0 0.0
      %2755 = vmatpush1.msra.mxu0 0.0
      %2756 = vmatprep.subr.mxu0 0.0
      %2757 = vmatpush1.msra.mxu0 0.0
      %2758 = vmatprep.subr.mxu0 0.0
      %2759 = vmatpush1.msra.mxu0 %v2728
      %2760 = vmatprep.subr.mxu0 0.0
      %2761 = vmatpush1.msra.mxu0 %v2725
      %2762 = vmatprep.subr.mxu0 0.0
      %2763 = vmatpush2.msra.mxu0 0.0
      %2764 = vmatprep.subr.mxu0 0.0
      %2765 = vmatpush2.msra.mxu0 0.0
      %2766 = vmatprep.subr.mxu0 0.0
      %2767 = vmatpush2.msra.mxu0 0.0
      %2768 = vmatprep.subr.mxu0 0.0
      %2769 = vmatpush2.msra.mxu0 0.0
      %2770 = vmatprep.subr.mxu0 0.0
      %2771 = vmatpush2.msra.mxu0 0.0
      %2772 = vmatprep.subr.mxu0 0.0
      %2773 = vmatpush2.msra.mxu0 0.0
      %2774 = vmatprep.subr.mxu0 0.0
      %2775 = vmatpush2.msra.mxu0 0.0
      %2776 = vmatprep.subr.mxu0 0.0
      %2777 = vmatpush2.msra.mxu0 0.0
      %2778 = vmatprep.subr.mxu0 0.0
      %2779 = vmatpush2.msra.mxu0 0.0
      %2780 = vmatprep.subr.mxu0 0.0
      %2781 = vmatpush2.msra.mxu0 0.0
      %2782 = vmatprep.subr.mxu0 0.0
      %2783 = vmatpush2.msra.mxu0 0.0
      %2784 = vmatprep.subr.mxu0 0.0
      %2785 = vmatpush2.msra.mxu0 0.0
      %2786 = vmatprep.subr.mxu0 0.0
      %2787 = vmatpush2.msra.mxu0 0.0
      %2788 = vmatprep.subr.mxu0 0.0
      %2789 = vmatpush2.msra.mxu0 0.0
      %2790 = vmatprep.subr.mxu0 0.0
      %2791 = vmatpush2.msra.mxu0 0.0
      %2792 = vmatprep.subr.mxu0 0.0
      %2793 = vmatpush2.msra.mxu0 0.0
      %2794 = vmatprep.mubr.f32.mxu0 0.0
      %2795 = vmatmul.mubr.f32.gmra.mxu0 %v813
      %v2796 = vpop.f32.mrf.mxu0
      %v2797 = vadd.f32 0.0, %v2796
      %v2798 = vpop.f32.mrf.mxu0
      %2799 = vmatprep.mubr.f32.mxu0 0.0
      %2800 = vmatmul.mubr.f32.gmra.mxu0 %v813
      %v2801 = vpop.f32.mrf.mxu0
      %v2802 = vadd.f32 0.0, %v2801
      %v2803 = vpop.f32.mrf.mxu0
      %2804 = vdwg.mxu0
      %v2805 = vadd.f32 %v2638, %v2797
      %v2806 = vadd.f32 %v2644, %v2802
      %v2807 = vxor.u32 %v2805, 2147483648
      %v2808 = vxor.u32 %v2806, 2147483648
      %v2809 = vmul.f32 %v2807, 1.442695
      %v2810 = vpow.pop %v2809
      %v2811 = vmul.f32 %v2808, 1.442695
      %v2812 = vpow.pop %v2811
      %v2813 = vadd.f32 %v2810, 1.0
      %v2814 = vadd.f32 %v2812, 1.0
      %v2815 = vrcp.pop %v2813
      %v2816 = vmul.f32 1.0, %v2815
      %v2817 = vrcp.pop %v2814
      %v2818 = vmul.f32 1.0, %v2817
      %v2819 = vtanh.pop %v2805
      %v2820 = vtanh.pop %v2806
      %v2821 = vmul.f32 %v2816, 0.0
      %v2822 = vmul.f32 %v2818, 0.0
      %2825 = vrot.lane.b32.xlu0 %v2819, 98
      %v2826 = vpop.permute.xlu0 %2825
      %2827 = vrot.lane.b32.xlu0 %v2820, 98
      %v2828 = vpop.permute.xlu0 %2827
      %v2831 = vmul.f32 %v2816, %v2826
      %v2832 = vmul.f32 %v2818, %v2828
      %2835 = vrot.lane.b32.xlu0 %v2831, 10
      %v2836 = vpop.permute.xlu0 %2835
      %2837 = vrot.lane.b32.xlu0 %v2832, 10
      %v2838 = vpop.permute.xlu0 %2837
      %v2841 = vadd.f32 %v2821, %v2836
      %v2842 = vadd.f32 %v2822, %v2838
      %v2843 = vtanh.pop %v2841
      %v2844 = vtanh.pop %v2842
      %2847 = vrot.lane.b32.xlu0 %v2843, 10
      %v2848 = vpop.permute.xlu0 %2847
      %2849 = vrot.lane.b32.xlu0 %v2844, 10
      %v2850 = vpop.permute.xlu0 %2849
      %v2853 = vmul.f32 %v2816, %v2848
      %v2854 = vmul.f32 %v2818, %v2850
      %2857 = vrot.lane.b32.xlu0 %v2853, 108
      %v2858 = vpop.permute.xlu0 %2857
      %2859 = vrot.lane.b32.xlu0 %v2854, 108
      %v2860 = vpop.permute.xlu0 %2859
      %2863 = vst.msk [vmem:[#allocation3] sm:$0xff] %vm811, %v2858
      %2864 = vst.msk [vmem:[#allocation3 + $0x8] sm:$0xff] %vm811, %v2860
      %v2865 = vsel %vm811, %v2858, 0
      %v2867 = vsel %vm811, %v2860, 0
      %2869 = vmatprep.subr.mxu0 0.0
      %2870 = vmatpush1.msra.mxu0 0.0
      %2871 = vmatprep.subr.mxu0 0.0
      %2872 = vmatpush1.msra.mxu0 0.0
      %2873 = vmatprep.subr.mxu0 0.0
      %2874 = vmatpush1.msra.mxu0 0.0
      %2875 = vmatprep.subr.mxu0 0.0
      %2876 = vmatpush1.msra.mxu0 0.0
      %2877 = vmatprep.subr.mxu0 0.0
      %2878 = vmatpush1.msra.mxu0 0.0
      %2879 = vmatprep.subr.mxu0 0.0
      %2880 = vmatpush1.msra.mxu0 0.0
      %2881 = vmatprep.subr.mxu0 0.0
      %2882 = vmatpush1.msra.mxu0 0.0
      %2883 = vmatprep.subr.mxu0 0.0
      %2884 = vmatpush1.msra.mxu0 0.0
      %2885 = vmatprep.subr.mxu0 0.0
      %2886 = vmatpush1.msra.mxu0 0.0
      %2887 = vmatprep.subr.mxu0 0.0
      %2888 = vmatpush1.msra.mxu0 0.0
      %2889 = vmatprep.subr.mxu0 0.0
      %2890 = vmatpush1.msra.mxu0 0.0
      %2891 = vmatprep.subr.mxu0 0.0
      %2892 = vmatpush1.msra.mxu0 0.0
      %2893 = vmatprep.subr.mxu0 0.0
      %2894 = vmatpush1.msra.mxu0 0.0
      %2895 = vmatprep.subr.mxu0 0.0
      %2896 = vmatpush1.msra.mxu0 0.0
      %2897 = vmatprep.subr.mxu0 0.0
      %2898 = vmatpush1.msra.mxu0 %v2728
      %2899 = vmatprep.subr.mxu0 0.0
      %2900 = vmatpush1.msra.mxu0 %v2725
      %2901 = vmatprep.subr.mxu0 0.0
      %2902 = vmatpush2.msra.mxu0 0.0
      %2903 = vmatprep.subr.mxu0 0.0
      %2904 = vmatpush2.msra.mxu0 0.0
      %2905 = vmatprep.subr.mxu0 0.0
      %2906 = vmatpush2.msra.mxu0 0.0
      %2907 = vmatprep.subr.mxu0 0.0
      %2908 = vmatpush2.msra.mxu0 0.0
      %2909 = vmatprep.subr.mxu0 0.0
      %2910 = vmatpush2.msra.mxu0 0.0
      %2911 = vmatprep.subr.mxu0 0.0
      %2912 = vmatpush2.msra.mxu0 0.0
      %2913 = vmatprep.subr.mxu0 0.0
      %2914 = vmatpush2.msra.mxu0 0.0
      %2915 = vmatprep.subr.mxu0 0.0
      %2916 = vmatpush2.msra.mxu0 0.0
      %2917 = vmatprep.subr.mxu0 0.0
      %2918 = vmatpush2.msra.mxu0 0.0
      %2919 = vmatprep.subr.mxu0 0.0
      %2920 = vmatpush2.msra.mxu0 0.0
      %2921 = vmatprep.subr.mxu0 0.0
      %2922 = vmatpush2.msra.mxu0 0.0
      %2923 = vmatprep.subr.mxu0 0.0
      %2924 = vmatpush2.msra.mxu0 0.0
      %2925 = vmatprep.subr.mxu0 0.0
      %2926 = vmatpush2.msra.mxu0 0.0
      %2927 = vmatprep.subr.mxu0 0.0
      %2928 = vmatpush2.msra.mxu0 0.0
      %2929 = vmatprep.subr.mxu0 0.0
      %2930 = vmatpush2.msra.mxu0 0.0
      %2931 = vmatprep.subr.mxu0 0.0
      %2932 = vmatpush2.msra.mxu0 0.0
      %2933 = vmatprep.mubr.f32.mxu0 0.0
      %2934 = vmatmul.mubr.f32.gmra.mxu0 %v2865
      %v2935 = vpop.f32.mrf.mxu0
      %v2936 = vadd.f32 0.0, %v2935
      %v2937 = vpop.f32.mrf.mxu0
      %2938 = vmatprep.mubr.f32.mxu0 0.0
      %2939 = vmatmul.mubr.f32.gmra.mxu0 %v2867
      %v2940 = vpop.f32.mrf.mxu0
      %v2941 = vadd.f32 0.0, %v2940
      %v2942 = vpop.f32.mrf.mxu0
      %2943 = vdwg.mxu0
      %2946 = vrot.lane.b32.xlu0 %v2936, 40
      %v2947 = vpop.permute.xlu0 %2946
      %2948 = vrot.lane.b32.xlu0 %v2941, 40
      %v2949 = vpop.permute.xlu0 %2948
      %v2952 = vadd.f32 %v2638, %v2947
      %v2953 = vadd.f32 %v2644, %v2949
      %v2954 = vxor.u32 %v2952, 2147483648
      %v2955 = vxor.u32 %v2953, 2147483648
      %v2956 = vmul.f32 %v2954, 1.442695
      %v2957 = vpow.pop %v2956
      %v2958 = vmul.f32 %v2955, 1.442695
      %v2959 = vpow.pop %v2958
      %v2960 = vadd.f32 %v2957, 1.0
      %v2961 = vadd.f32 %v2959, 1.0
      %v2962 = vrcp.pop %v2960
      %v2963 = vmul.f32 1.0, %v2962
      %v2964 = vrcp.pop %v2961
      %v2965 = vmul.f32 1.0, %v2964
      %v2966 = vtanh.pop %v2952
      %v2967 = vtanh.pop %v2953
      %2970 = vrot.lane.b32.xlu0 %v2841, 40
      %v2971 = vpop.permute.xlu0 %2970
      %2972 = vrot.lane.b32.xlu0 %v2842, 40
      %v2973 = vpop.permute.xlu0 %2972
      %v2976 = vmul.f32 %v2963, %v2971
      %v2977 = vmul.f32 %v2965, %v2973
      %2980 = vrot.lane.b32.xlu0 %v2966, 98
      %v2981 = vpop.permute.xlu0 %2980
      %2982 = vrot.lane.b32.xlu0 %v2967, 98
      %v2983 = vpop.permute.xlu0 %2982
      %v2986 = vmul.f32 %v2963, %v2981
      %v2987 = vmul.f32 %v2965, %v2983
      %2990 = vrot.lane.b32.xlu0 %v2986, 10
      %v2991 = vpop.permute.xlu0 %2990
      %2992 = vrot.lane.b32.xlu0 %v2987, 10
      %v2993 = vpop.permute.xlu0 %2992
      %v2996 = vadd.f32 %v2976, %v2991
      %v2997 = vadd.f32 %v2977, %v2993
      %v2998 = vtanh.pop %v2996
      %v2999 = vtanh.pop %v2997
      %3002 = vrot.lane.b32.xlu0 %v2998, 10
      %v3003 = vpop.permute.xlu0 %3002
      %3004 = vrot.lane.b32.xlu0 %v2999, 10
      %v3005 = vpop.permute.xlu0 %3004
      %v3008 = vmul.f32 %v2963, %v3003
      %v3009 = vmul.f32 %v2965, %v3005
      %3012 = vrot.lane.b32.xlu0 %v3008, 78
      %v3013 = vpop.permute.xlu0 %3012
      %3014 = vrot.lane.b32.xlu0 %v3009, 78
      %v3015 = vpop.permute.xlu0 %3014
      %3018 = vst.msk [vmem:[#allocation3] sm:$0xff] %vm1107, %v3013
      %3019 = vst.msk [vmem:[#allocation3 + $0x8] sm:$0xff] %vm1107, %v3015
      %3020 = vrot.lane.b32.xlu0 %v3008, 68
      %v3021 = vpop.permute.xlu0 %3020
      %3022 = vrot.lane.b32.xlu0 %v3009, 68
      %v3023 = vpop.permute.xlu0 %3022
      %v3024 = vsel %vm811, %v3021, 0
      %v3026 = vsel %vm811, %v3023, 0
      %3028 = vmatprep.subr.mxu0 0.0
      %3029 = vmatpush1.msra.mxu0 0.0
      %3030 = vmatprep.subr.mxu0 0.0
      %3031 = vmatpush1.msra.mxu0 0.0
      %3032 = vmatprep.subr.mxu0 0.0
      %3033 = vmatpush1.msra.mxu0 0.0
      %3034 = vmatprep.subr.mxu0 0.0
      %3035 = vmatpush1.msra.mxu0 0.0
      %3036 = vmatprep.subr.mxu0 0.0
      %3037 = vmatpush1.msra.mxu0 0.0
      %3038 = vmatprep.subr.mxu0 0.0
      %3039 = vmatpush1.msra.mxu0 0.0
      %3040 = vmatprep.subr.mxu0 0.0
      %3041 = vmatpush1.msra.mxu0 0.0
      %3042 = vmatprep.subr.mxu0 0.0
      %3043 = vmatpush1.msra.mxu0 0.0
      %3044 = vmatprep.subr.mxu0 0.0
      %3045 = vmatpush1.msra.mxu0 0.0
      %3046 = vmatprep.subr.mxu0 0.0
      %3047 = vmatpush1.msra.mxu0 0.0
      %3048 = vmatprep.subr.mxu0 0.0
      %3049 = vmatpush1.msra.mxu0 0.0
      %3050 = vmatprep.subr.mxu0 0.0
      %3051 = vmatpush1.msra.mxu0 0.0
      %3052 = vmatprep.subr.mxu0 0.0
      %3053 = vmatpush1.msra.mxu0 0.0
      %3054 = vmatprep.subr.mxu0 0.0
      %3055 = vmatpush1.msra.mxu0 0.0
      %3056 = vmatprep.subr.mxu0 0.0
      %3057 = vmatpush1.msra.mxu0 %v2728
      %3058 = vmatprep.subr.mxu0 0.0
      %3059 = vmatpush1.msra.mxu0 %v2725
      %3060 = vmatprep.subr.mxu0 0.0
      %3061 = vmatpush2.msra.mxu0 0.0
      %3062 = vmatprep.subr.mxu0 0.0
      %3063 = vmatpush2.msra.mxu0 0.0
      %3064 = vmatprep.subr.mxu0 0.0
      %3065 = vmatpush2.msra.mxu0 0.0
      %3066 = vmatprep.subr.mxu0 0.0
      %3067 = vmatpush2.msra.mxu0 0.0
      %3068 = vmatprep.subr.mxu0 0.0
      %3069 = vmatpush2.msra.mxu0 0.0
      %3070 = vmatprep.subr.mxu0 0.0
      %3071 = vmatpush2.msra.mxu0 0.0
      %3072 = vmatprep.subr.mxu0 0.0
      %3073 = vmatpush2.msra.mxu0 0.0
      %3074 = vmatprep.subr.mxu0 0.0
      %3075 = vmatpush2.msra.mxu0 0.0
      %3076 = vmatprep.subr.mxu0 0.0
      %3077 = vmatpush2.msra.mxu0 0.0
      %3078 = vmatprep.subr.mxu0 0.0
      %3079 = vmatpush2.msra.mxu0 0.0
      %3080 = vmatprep.subr.mxu0 0.0
      %3081 = vmatpush2.msra.mxu0 0.0
      %3082 = vmatprep.subr.mxu0 0.0
      %3083 = vmatpush2.msra.mxu0 0.0
      %3084 = vmatprep.subr.mxu0 0.0
      %3085 = vmatpush2.msra.mxu0 0.0
      %3086 = vmatprep.subr.mxu0 0.0
      %3087 = vmatpush2.msra.mxu0 0.0
      %3088 = vmatprep.subr.mxu0 0.0
      %3089 = vmatpush2.msra.mxu0 0.0
      %3090 = vmatprep.subr.mxu0 0.0
      %3091 = vmatpush2.msra.mxu0 0.0
      %3092 = vmatprep.mubr.f32.mxu0 0.0
      %3093 = vmatmul.mubr.f32.gmra.mxu0 %v3024
      %v3094 = vpop.f32.mrf.mxu0
      %v3095 = vadd.f32 0.0, %v3094
      %v3096 = vpop.f32.mrf.mxu0
      %3097 = vmatprep.mubr.f32.mxu0 0.0
      %3098 = vmatmul.mubr.f32.gmra.mxu0 %v3026
      %v3099 = vpop.f32.mrf.mxu0
      %v3100 = vadd.f32 0.0, %v3099
      %v3101 = vpop.f32.mrf.mxu0
      %3102 = vdwg.mxu0
      %3105 = vrot.lane.b32.xlu0 %v3095, 80
      %v3106 = vpop.permute.xlu0 %3105
      %3107 = vrot.lane.b32.xlu0 %v3100, 80
      %v3108 = vpop.permute.xlu0 %3107
      %v3111 = vadd.f32 %v2638, %v3106
      %v3112 = vadd.f32 %v2644, %v3108
      %v3113 = vxor.u32 %v3111, 2147483648
      %v3114 = vxor.u32 %v3112, 2147483648
      %v3115 = vmul.f32 %v3113, 1.442695
      %v3116 = vpow.pop %v3115
      %v3117 = vmul.f32 %v3114, 1.442695
      %v3118 = vpow.pop %v3117
      %v3119 = vadd.f32 %v3116, 1.0
      %v3120 = vadd.f32 %v3118, 1.0
      %v3121 = vrcp.pop %v3119
      %v3122 = vmul.f32 1.0, %v3121
      %v3123 = vrcp.pop %v3120
      %v3124 = vmul.f32 1.0, %v3123
      %v3125 = vtanh.pop %v3111
      %v3126 = vtanh.pop %v3112
      %3129 = vrot.lane.b32.xlu0 %v2996, 40
      %v3130 = vpop.permute.xlu0 %3129
      %3131 = vrot.lane.b32.xlu0 %v2997, 40
      %v3132 = vpop.permute.xlu0 %3131
      %v3135 = vmul.f32 %v3122, %v3130
      %v3136 = vmul.f32 %v3124, %v3132
      %3139 = vrot.lane.b32.xlu0 %v3125, 98
      %v3140 = vpop.permute.xlu0 %3139
      %3141 = vrot.lane.b32.xlu0 %v3126, 98
      %v3142 = vpop.permute.xlu0 %3141
      %v3145 = vmul.f32 %v3122, %v3140
      %v3146 = vmul.f32 %v3124, %v3142
      %3149 = vrot.lane.b32.xlu0 %v3145, 10
      %v3150 = vpop.permute.xlu0 %3149
      %3151 = vrot.lane.b32.xlu0 %v3146, 10
      %v3152 = vpop.permute.xlu0 %3151
      %v3155 = vadd.f32 %v3135, %v3150
      %v3156 = vadd.f32 %v3136, %v3152
      %v3157 = vtanh.pop %v3155
      %v3158 = vtanh.pop %v3156
      %3161 = vrot.lane.b32.xlu0 %v3157, 10
      %v3162 = vpop.permute.xlu0 %3161
      %3163 = vrot.lane.b32.xlu0 %v3158, 10
      %v3164 = vpop.permute.xlu0 %3163
      %v3167 = vmul.f32 %v3122, %v3162
      %v3168 = vmul.f32 %v3124, %v3164
      %3171 = vrot.lane.b32.xlu0 %v3167, 48
      %v3172 = vpop.permute.xlu0 %3171
      %3173 = vrot.lane.b32.xlu0 %v3168, 48
      %v3174 = vpop.permute.xlu0 %3173
      %3177 = vst.msk [vmem:[#allocation3] sm:$0xff] %vm1267, %v3172
      %3178 = vst.msk [vmem:[#allocation3 + $0x8] sm:$0xff] %vm1267, %v3174
      %3179 = vrot.lane.b32.xlu0 %v3167, 28
      %v3180 = vpop.permute.xlu0 %3179
      %3181 = vrot.lane.b32.xlu0 %v3168, 28
      %v3182 = vpop.permute.xlu0 %3181
      %v3183 = vsel %vm811, %v3180, 0
      %v3185 = vsel %vm811, %v3182, 0
      %3187 = vmatprep.subr.mxu0 0.0
      %3188 = vmatpush1.msra.mxu0 0.0
      %3189 = vmatprep.subr.mxu0 0.0
      %3190 = vmatpush1.msra.mxu0 0.0
      %3191 = vmatprep.subr.mxu0 0.0
      %3192 = vmatpush1.msra.mxu0 0.0
      %3193 = vmatprep.subr.mxu0 0.0
      %3194 = vmatpush1.msra.mxu0 0.0
      %3195 = vmatprep.subr.mxu0 0.0
      %3196 = vmatpush1.msra.mxu0 0.0
      %3197 = vmatprep.subr.mxu0 0.0
      %3198 = vmatpush1.msra.mxu0 0.0
      %3199 = vmatprep.subr.mxu0 0.0
      %3200 = vmatpush1.msra.mxu0 0.0
      %3201 = vmatprep.subr.mxu0 0.0
      %3202 = vmatpush1.msra.mxu0 0.0
      %3203 = vmatprep.subr.mxu0 0.0
      %3204 = vmatpush1.msra.mxu0 0.0
      %3205 = vmatprep.subr.mxu0 0.0
      %3206 = vmatpush1.msra.mxu0 0.0
      %3207 = vmatprep.subr.mxu0 0.0
      %3208 = vmatpush1.msra.mxu0 0.0
      %3209 = vmatprep.subr.mxu0 0.0
      %3210 = vmatpush1.msra.mxu0 0.0
      %3211 = vmatprep.subr.mxu0 0.0
      %3212 = vmatpush1.msra.mxu0 0.0
      %3213 = vmatprep.subr.mxu0 0.0
      %3214 = vmatpush1.msra.mxu0 0.0
      %3215 = vmatprep.subr.mxu0 0.0
      %3216 = vmatpush1.msra.mxu0 %v2728
      %3217 = vmatprep.subr.mxu0 0.0
      %3218 = vmatpush1.msra.mxu0 %v2725
      %3219 = vmatprep.subr.mxu0 0.0
      %3220 = vmatpush2.msra.mxu0 0.0
      %3221 = vmatprep.subr.mxu0 0.0
      %3222 = vmatpush2.msra.mxu0 0.0
      %3223 = vmatprep.subr.mxu0 0.0
      %3224 = vmatpush2.msra.mxu0 0.0
      %3225 = vmatprep.subr.mxu0 0.0
      %3226 = vmatpush2.msra.mxu0 0.0
      %3227 = vmatprep.subr.mxu0 0.0
      %3228 = vmatpush2.msra.mxu0 0.0
      %3229 = vmatprep.subr.mxu0 0.0
      %3230 = vmatpush2.msra.mxu0 0.0
      %3231 = vmatprep.subr.mxu0 0.0
      %3232 = vmatpush2.msra.mxu0 0.0
      %3233 = vmatprep.subr.mxu0 0.0
      %3234 = vmatpush2.msra.mxu0 0.0
      %3235 = vmatprep.subr.mxu0 0.0
      %3236 = vmatpush2.msra.mxu0 0.0
      %3237 = vmatprep.subr.mxu0 0.0
      %3238 = vmatpush2.msra.mxu0 0.0
      %3239 = vmatprep.subr.mxu0 0.0
      %3240 = vmatpush2.msra.mxu0 0.0
      %3241 = vmatprep.subr.mxu0 0.0
      %3242 = vmatpush2.msra.mxu0 0.0
      %3243 = vmatprep.subr.mxu0 0.0
      %3244 = vmatpush2.msra.mxu0 0.0
      %3245 = vmatprep.subr.mxu0 0.0
      %3246 = vmatpush2.msra.mxu0 0.0
      %3247 = vmatprep.subr.mxu0 0.0
      %3248 = vmatpush2.msra.mxu0 0.0
      %3249 = vmatprep.subr.mxu0 0.0
      %3250 = vmatpush2.msra.mxu0 0.0
      %3251 = vmatprep.mubr.f32.mxu0 0.0
      %3252 = vmatmul.mubr.f32.gmra.mxu0 %v3183
      %v3253 = vpop.f32.mrf.mxu0
      %v3254 = vadd.f32 0.0, %v3253
      %v3255 = vpop.f32.mrf.mxu0
      %3256 = vmatprep.mubr.f32.mxu0 0.0
      %3257 = vmatmul.mubr.f32.gmra.mxu0 %v3185
      %v3258 = vpop.f32.mrf.mxu0
      %v3259 = vadd.f32 0.0, %v3258
      %v3260 = vpop.f32.mrf.mxu0
      %3261 = vdwg.mxu0
      %3264 = vrot.lane.b32.xlu0 %v3254, 120
      %v3265 = vpop.permute.xlu0 %3264
      %3266 = vrot.lane.b32.xlu0 %v3259, 120
      %v3267 = vpop.permute.xlu0 %3266
      %v3270 = vadd.f32 %v2638, %v3265
      %v3271 = vadd.f32 %v2640, %v3265
      %v3272 = vadd.f32 %v2644, %v3267
      %v3273 = vadd.f32 %v2646, %v3267
      %v3274 = vxor.u32 %v3270, 2147483648
      %v3275 = vxor.u32 %v3271, 2147483648
      %v3276 = vxor.u32 %v3272, 2147483648
      %v3277 = vxor.u32 %v3273, 2147483648
      %v3278 = vmul.f32 %v3274, 1.442695
      %v3279 = vpow.pop %v3278
      %v3280 = vmul.f32 %v3275, 1.442695
      %v3281 = vpow.pop %v3280
      %v3282 = vmul.f32 %v3276, 1.442695
      %v3283 = vpow.pop %v3282
      %v3284 = vmul.f32 %v3277, 1.442695
      %v3285 = vpow.pop %v3284
      %v3286 = vadd.f32 %v3279, 1.0
      %v3287 = vadd.f32 %v3281, 1.0
      %v3288 = vadd.f32 %v3283, 1.0
      %v3289 = vadd.f32 %v3285, 1.0
      %v3290 = vrcp.pop %v3286
      %v3291 = vmul.f32 1.0, %v3290
      %v3292 = vrcp.pop %v3287
      %v3293 = vmul.f32 1.0, %v3292
      %v3294 = vrcp.pop %v3288
      %v3295 = vmul.f32 1.0, %v3294
      %v3296 = vrcp.pop %v3289
      %v3297 = vmul.f32 1.0, %v3296
      %v3298 = vtanh.pop %v3271
      %v3299 = vtanh.pop %v3273
      %3302 = vrot.lane.b32.xlu0 %v3155, 40
      %v3303 = vpop.permute.xlu0 %3302
      %3304 = vrot.lane.b32.xlu0 %v3156, 40
      %v3305 = vpop.permute.xlu0 %3304
      %v3308 = vmul.f32 %v3293, %v3303
      %v3309 = vmul.f32 %v3297, %v3305
      %3312 = vrot.lane.b32.xlu0 %v3298, 98
      %v3313 = vpop.permute.xlu0 %3312
      %3314 = vrot.lane.b32.xlu0 %v3299, 98
      %v3315 = vpop.permute.xlu0 %3314
      %v3318 = vmul.f32 %v3291, %v3313
      %v3319 = vmul.f32 %v3293, %v3313
      %v3320 = vmul.f32 %v3295, %v3315
      %v3321 = vmul.f32 %v3297, %v3315
      %3326 = vrot.lane.b32.xlu0 %v3318, 10
      %v3327 = vpop.permute.xlu0 %3326
      %3328 = vrot.lane.b32.xlu0 %v3319, 10
      %v3329 = vpop.permute.xlu0 %3328
      %3330 = vrot.lane.b32.xlu0 %v3320, 10
      %v3331 = vpop.permute.xlu0 %3330
      %3332 = vrot.lane.b32.xlu0 %v3321, 10
      %v3333 = vpop.permute.xlu0 %3332
      %v3334 = vsel %vm811, %v3327, %v3329
      %v3335 = vsel %vm811, %v3331, %v3333
      %v3338 = vadd.f32 %v3308, %v3334
      %v3339 = vadd.f32 %v3309, %v3335
      %v3340 = vtanh.pop %v3338
      %v3341 = vtanh.pop %v3339
      %3344 = vrot.lane.b32.xlu0 %v3340, 10
      %v3345 = vpop.permute.xlu0 %3344
      %3346 = vrot.lane.b32.xlu0 %v3341, 10
      %v3347 = vpop.permute.xlu0 %3346
      %v3350 = vmul.f32 %v3293, %v3345
      %v3351 = vmul.f32 %v3297, %v3347
      %3354 = vrot.lane.b32.xlu0 %v3350, 18
      %v3355 = vpop.permute.xlu0 %3354
      %3356 = vrot.lane.b32.xlu0 %v3351, 18
      %v3357 = vpop.permute.xlu0 %3356
      %3360 = vst.msk [vmem:[#allocation3] sm:$0xff] %vm1451, %v3355
      %3361 = vst.msk [vmem:[#allocation3 + $0x8] sm:$0xff] %vm1451, %v3357
      %3362 = vrot.lane.b32.xlu0 %v3350, 116
      %v3363 = vpop.permute.xlu0 %3362
      %3364 = vrot.lane.b32.xlu0 %v3351, 116
      %v3365 = vpop.permute.xlu0 %3364
      %v3366 = vsel %vm811, %v3363, 0
      %v3368 = vsel %vm811, %v3365, 0
      %3370 = vmatprep.subr.mxu0 0.0
      %3371 = vmatpush1.msra.mxu0 0.0
      %3372 = vmatprep.subr.mxu0 0.0
      %3373 = vmatpush1.msra.mxu0 0.0
      %3374 = vmatprep.subr.mxu0 0.0
      %3375 = vmatpush1.msra.mxu0 0.0
      %3376 = vmatprep.subr.mxu0 0.0
      %3377 = vmatpush1.msra.mxu0 0.0
      %3378 = vmatprep.subr.mxu0 0.0
      %3379 = vmatpush1.msra.mxu0 0.0
      %3380 = vmatprep.subr.mxu0 0.0
      %3381 = vmatpush1.msra.mxu0 0.0
      %3382 = vmatprep.subr.mxu0 0.0
      %3383 = vmatpush1.msra.mxu0 0.0
      %3384 = vmatprep.subr.mxu0 0.0
      %3385 = vmatpush1.msra.mxu0 0.0
      %3386 = vmatprep.subr.mxu0 0.0
      %3387 = vmatpush1.msra.mxu0 0.0
      %3388 = vmatprep.subr.mxu0 0.0
      %3389 = vmatpush1.msra.mxu0 0.0
      %3390 = vmatprep.subr.mxu0 0.0
      %3391 = vmatpush1.msra.mxu0 0.0
      %3392 = vmatprep.subr.mxu0 0.0
      %3393 = vmatpush1.msra.mxu0 0.0
      %3394 = vmatprep.subr.mxu0 0.0
      %3395 = vmatpush1.msra.mxu0 0.0
      %3396 = vmatprep.subr.mxu0 0.0
      %3397 = vmatpush1.msra.mxu0 0.0
      %3398 = vmatprep.subr.mxu0 0.0
      %3399 = vmatpush1.msra.mxu0 %v2728
      %3400 = vmatprep.subr.mxu0 0.0
      %3401 = vmatpush1.msra.mxu0 %v2725
      %3402 = vmatprep.subr.mxu0 0.0
      %3403 = vmatpush2.msra.mxu0 0.0
      %3404 = vmatprep.subr.mxu0 0.0
      %3405 = vmatpush2.msra.mxu0 0.0
      %3406 = vmatprep.subr.mxu0 0.0
      %3407 = vmatpush2.msra.mxu0 0.0
      %3408 = vmatprep.subr.mxu0 0.0
      %3409 = vmatpush2.msra.mxu0 0.0
      %3410 = vmatprep.subr.mxu0 0.0
      %3411 = vmatpush2.msra.mxu0 0.0
      %3412 = vmatprep.subr.mxu0 0.0
      %3413 = vmatpush2.msra.mxu0 0.0
      %3414 = vmatprep.subr.mxu0 0.0
      %3415 = vmatpush2.msra.mxu0 0.0
      %3416 = vmatprep.subr.mxu0 0.0
      %3417 = vmatpush2.msra.mxu0 0.0
      %3418 = vmatprep.subr.mxu0 0.0
      %3419 = vmatpush2.msra.mxu0 0.0
      %3420 = vmatprep.subr.mxu0 0.0
      %3421 = vmatpush2.msra.mxu0 0.0
      %3422 = vmatprep.subr.mxu0 0.0
      %3423 = vmatpush2.msra.mxu0 0.0
      %3424 = vmatprep.subr.mxu0 0.0
      %3425 = vmatpush2.msra.mxu0 0.0
      %3426 = vmatprep.subr.mxu0 0.0
      %3427 = vmatpush2.msra.mxu0 0.0
      %3428 = vmatprep.subr.mxu0 0.0
      %3429 = vmatpush2.msra.mxu0 0.0
      %3430 = vmatprep.subr.mxu0 0.0
      %3431 = vmatpush2.msra.mxu0 0.0
      %3432 = vmatprep.subr.mxu0 0.0
      %3433 = vmatpush2.msra.mxu0 0.0
      %3434 = vmatprep.mubr.f32.mxu0 0.0
      %3435 = vmatmul.mubr.f32.gmra.mxu0 %v3366
      %v3436 = vpop.f32.mrf.mxu0
      %v3437 = vadd.f32 0.0, %v3436
      %v3438 = vpop.f32.mrf.mxu0
      %3439 = vmatprep.mubr.f32.mxu0 0.0
      %3440 = vmatmul.mubr.f32.gmra.mxu0 %v3368
      %v3441 = vpop.f32.mrf.mxu0
      %v3442 = vadd.f32 0.0, %v3441
      %v3443 = vpop.f32.mrf.mxu0
      %3444 = vdwg.mxu0
      %3447 = vrot.lane.b32.xlu0 %v3437, 32
      %v3448 = vpop.permute.xlu0 %3447
      %3449 = vrot.lane.b32.xlu0 %v3442, 32
      %v3450 = vpop.permute.xlu0 %3449
      %v3453 = vadd.f32 %v2640, %v3448
      %v3454 = vadd.f32 %v2646, %v3450
      %v3455 = vxor.u32 %v3453, 2147483648
      %v3456 = vxor.u32 %v3454, 2147483648
      %v3457 = vmul.f32 %v3455, 1.442695
      %v3458 = vpow.pop %v3457
      %v3459 = vmul.f32 %v3456, 1.442695
      %v3460 = vpow.pop %v3459
      %v3461 = vadd.f32 %v3458, 1.0
      %v3462 = vadd.f32 %v3460, 1.0
      %v3463 = vrcp.pop %v3461
      %v3464 = vmul.f32 1.0, %v3463
      %v3465 = vrcp.pop %v3462
      %v3466 = vmul.f32 1.0, %v3465
      %v3467 = vtanh.pop %v3453
      %v3468 = vtanh.pop %v3454
      %3471 = vrot.lane.b32.xlu0 %v3338, 40
      %v3472 = vpop.permute.xlu0 %3471
      %3473 = vrot.lane.b32.xlu0 %v3339, 40
      %v3474 = vpop.permute.xlu0 %3473
      %v3477 = vmul.f32 %v3464, %v3472
      %v3478 = vmul.f32 %v3466, %v3474
      %3481 = vrot.lane.b32.xlu0 %v3467, 98
      %v3482 = vpop.permute.xlu0 %3481
      %3483 = vrot.lane.b32.xlu0 %v3468, 98
      %v3484 = vpop.permute.xlu0 %3483
      %v3487 = vmul.f32 %v3464, %v3482
      %v3488 = vmul.f32 %v3466, %v3484
      %3491 = vrot.lane.b32.xlu0 %v3487, 10
      %v3492 = vpop.permute.xlu0 %3491
      %3493 = vrot.lane.b32.xlu0 %v3488, 10
      %v3494 = vpop.permute.xlu0 %3493
      %v3497 = vadd.f32 %v3477, %v3492
      %v3498 = vadd.f32 %v3478, %v3494
      %v3499 = vtanh.pop %v3497
      %v3500 = vtanh.pop %v3498
      %3503 = vrot.lane.b32.xlu0 %v3499, 10
      %v3504 = vpop.permute.xlu0 %3503
      %3505 = vrot.lane.b32.xlu0 %v3500, 10
      %v3506 = vpop.permute.xlu0 %3505
      %v3509 = vmul.f32 %v3464, %v3504
      %v3510 = vmul.f32 %v3466, %v3506
      %3513 = vrot.lane.b32.xlu0 %v3509, 116
      %v3514 = vpop.permute.xlu0 %3513
      %3515 = vrot.lane.b32.xlu0 %v3510, 116
      %v3516 = vpop.permute.xlu0 %3515
      %3519 = vst.msk [vmem:[#allocation3] sm:$0xff] %vm1611, %v3514
      %3520 = vst.msk [vmem:[#allocation3 + $0x8] sm:$0xff] %vm1611, %v3516
      %3521 = vrot.lane.b32.xlu0 %v3509, 76
      %v3522 = vpop.permute.xlu0 %3521
      %3523 = vrot.lane.b32.xlu0 %v3510, 76
      %v3524 = vpop.permute.xlu0 %3523
      %v3525 = vsel %vm811, %v3522, 0
      %v3527 = vsel %vm811, %v3524, 0
      %3529 = vmatprep.subr.mxu0 0.0
      %3530 = vmatpush1.msra.mxu0 0.0
      %3531 = vmatprep.subr.mxu0 0.0
      %3532 = vmatpush1.msra.mxu0 0.0
      %3533 = vmatprep.subr.mxu0 0.0
      %3534 = vmatpush1.msra.mxu0 0.0
      %3535 = vmatprep.subr.mxu0 0.0
      %3536 = vmatpush1.msra.mxu0 0.0
      %3537 = vmatprep.subr.mxu0 0.0
      %3538 = vmatpush1.msra.mxu0 0.0
      %3539 = vmatprep.subr.mxu0 0.0
      %3540 = vmatpush1.msra.mxu0 0.0
      %3541 = vmatprep.subr.mxu0 0.0
      %3542 = vmatpush1.msra.mxu0 0.0
      %3543 = vmatprep.subr.mxu0 0.0
      %3544 = vmatpush1.msra.mxu0 0.0
      %3545 = vmatprep.subr.mxu0 0.0
      %3546 = vmatpush1.msra.mxu0 0.0
      %3547 = vmatprep.subr.mxu0 0.0
      %3548 = vmatpush1.msra.mxu0 0.0
      %3549 = vmatprep.subr.mxu0 0.0
      %3550 = vmatpush1.msra.mxu0 0.0
      %3551 = vmatprep.subr.mxu0 0.0
      %3552 = vmatpush1.msra.mxu0 0.0
      %3553 = vmatprep.subr.mxu0 0.0
      %3554 = vmatpush1.msra.mxu0 0.0
      %3555 = vmatprep.subr.mxu0 0.0
      %3556 = vmatpush1.msra.mxu0 0.0
      %3557 = vmatprep.subr.mxu0 0.0
      %3558 = vmatpush1.msra.mxu0 %v2728
      %3559 = vmatprep.subr.mxu0 0.0
      %3560 = vmatpush1.msra.mxu0 %v2725
      %3561 = vmatprep.subr.mxu0 0.0
      %3562 = vmatpush2.msra.mxu0 0.0
      %3563 = vmatprep.subr.mxu0 0.0
      %3564 = vmatpush2.msra.mxu0 0.0
      %3565 = vmatprep.subr.mxu0 0.0
      %3566 = vmatpush2.msra.mxu0 0.0
      %3567 = vmatprep.subr.mxu0 0.0
      %3568 = vmatpush2.msra.mxu0 0.0
      %3569 = vmatprep.subr.mxu0 0.0
      %3570 = vmatpush2.msra.mxu0 0.0
      %3571 = vmatprep.subr.mxu0 0.0
      %3572 = vmatpush2.msra.mxu0 0.0
      %3573 = vmatprep.subr.mxu0 0.0
      %3574 = vmatpush2.msra.mxu0 0.0
      %3575 = vmatprep.subr.mxu0 0.0
      %3576 = vmatpush2.msra.mxu0 0.0
      %3577 = vmatprep.subr.mxu0 0.0
      %3578 = vmatpush2.msra.mxu0 0.0
      %3579 = vmatprep.subr.mxu0 0.0
      %3580 = vmatpush2.msra.mxu0 0.0
      %3581 = vmatprep.subr.mxu0 0.0
      %3582 = vmatpush2.msra.mxu0 0.0
      %3583 = vmatprep.subr.mxu0 0.0
      %3584 = vmatpush2.msra.mxu0 0.0
      %3585 = vmatprep.subr.mxu0 0.0
      %3586 = vmatpush2.msra.mxu0 0.0
      %3587 = vmatprep.subr.mxu0 0.0
      %3588 = vmatpush2.msra.mxu0 0.0
      %3589 = vmatprep.subr.mxu0 0.0
      %3590 = vmatpush2.msra.mxu0 0.0
      %3591 = vmatprep.subr.mxu0 0.0
      %3592 = vmatpush2.msra.mxu0 0.0
      %3593 = vmatprep.mubr.f32.mxu0 0.0
      %3594 = vmatmul.mubr.f32.gmra.mxu0 %v3525
      %v3595 = vpop.f32.mrf.mxu0
      %v3596 = vadd.f32 0.0, %v3595
      %v3597 = vpop.f32.mrf.mxu0
      %3598 = vmatprep.mubr.f32.mxu0 0.0
      %3599 = vmatmul.mubr.f32.gmra.mxu0 %v3527
      %v3600 = vpop.f32.mrf.mxu0
      %v3601 = vadd.f32 0.0, %v3600
      %v3602 = vpop.f32.mrf.mxu0
      %3603 = vdwg.mxu0
      %3606 = vrot.lane.b32.xlu0 %v3596, 72
      %v3607 = vpop.permute.xlu0 %3606
      %3608 = vrot.lane.b32.xlu0 %v3601, 72
      %v3609 = vpop.permute.xlu0 %3608
      %v3612 = vadd.f32 %v2640, %v3607
      %v3613 = vadd.f32 %v2646, %v3609
      %v3614 = vxor.u32 %v3612, 2147483648
      %v3615 = vxor.u32 %v3613, 2147483648
      %v3616 = vmul.f32 %v3614, 1.442695
      %v3617 = vpow.pop %v3616
      %v3618 = vmul.f32 %v3615, 1.442695
      %v3619 = vpow.pop %v3618
      %v3620 = vadd.f32 %v3617, 1.0
      %v3621 = vadd.f32 %v3619, 1.0
      %v3622 = vrcp.pop %v3620
      %v3623 = vmul.f32 1.0, %v3622
      %v3624 = vrcp.pop %v3621
      %v3625 = vmul.f32 1.0, %v3624
      %v3626 = vtanh.pop %v3612
      %v3627 = vtanh.pop %v3613
      %3630 = vrot.lane.b32.xlu0 %v3497, 40
      %v3631 = vpop.permute.xlu0 %3630
      %3632 = vrot.lane.b32.xlu0 %v3498, 40
      %v3633 = vpop.permute.xlu0 %3632
      %v3636 = vmul.f32 %v3623, %v3631
      %v3637 = vmul.f32 %v3625, %v3633
      %3640 = vrot.lane.b32.xlu0 %v3626, 98
      %v3641 = vpop.permute.xlu0 %3640
      %3642 = vrot.lane.b32.xlu0 %v3627, 98
      %v3643 = vpop.permute.xlu0 %3642
      %v3646 = vmul.f32 %v3623, %v3641
      %v3647 = vmul.f32 %v3625, %v3643
      %3650 = vrot.lane.b32.xlu0 %v3646, 10
      %v3651 = vpop.permute.xlu0 %3650
      %3652 = vrot.lane.b32.xlu0 %v3647, 10
      %v3653 = vpop.permute.xlu0 %3652
      %v3656 = vadd.f32 %v3636, %v3651
      %v3657 = vadd.f32 %v3637, %v3653
      %v3658 = vtanh.pop %v3656
      %v3659 = vtanh.pop %v3657
      %3662 = vrot.lane.b32.xlu0 %v3658, 10
      %v3663 = vpop.permute.xlu0 %3662
      %3664 = vrot.lane.b32.xlu0 %v3659, 10
      %v3665 = vpop.permute.xlu0 %3664
      %v3668 = vmul.f32 %v3623, %v3663
      %v3669 = vmul.f32 %v3625, %v3665
      %3672 = vrot.lane.b32.xlu0 %v3668, 86
      %v3673 = vpop.permute.xlu0 %3672
      %3674 = vrot.lane.b32.xlu0 %v3669, 86
      %v3675 = vpop.permute.xlu0 %3674
      %3678 = vst.msk [vmem:[#allocation3] sm:$0xff] %vm1771, %v3673
      %3679 = vst.msk [vmem:[#allocation3 + $0x8] sm:$0xff] %vm1771, %v3675
      %3680 = vrot.lane.b32.xlu0 %v3668, 36
      %v3681 = vpop.permute.xlu0 %3680
      %3682 = vrot.lane.b32.xlu0 %v3669, 36
      %v3683 = vpop.permute.xlu0 %3682
      %v3684 = vsel %vm811, %v3681, 0
      %v3686 = vsel %vm811, %v3683, 0
      %3688 = vmatprep.subr.mxu0 0.0
      %3689 = vmatpush1.msra.mxu0 0.0
      %3690 = vmatprep.subr.mxu0 0.0
      %3691 = vmatpush1.msra.mxu0 0.0
      %3692 = vmatprep.subr.mxu0 0.0
      %3693 = vmatpush1.msra.mxu0 0.0
      %3694 = vmatprep.subr.mxu0 0.0
      %3695 = vmatpush1.msra.mxu0 0.0
      %3696 = vmatprep.subr.mxu0 0.0
      %3697 = vmatpush1.msra.mxu0 0.0
      %3698 = vmatprep.subr.mxu0 0.0
      %3699 = vmatpush1.msra.mxu0 0.0
      %3700 = vmatprep.subr.mxu0 0.0
      %3701 = vmatpush1.msra.mxu0 0.0
      %3702 = vmatprep.subr.mxu0 0.0
      %3703 = vmatpush1.msra.mxu0 0.0
      %3704 = vmatprep.subr.mxu0 0.0
      %3705 = vmatpush1.msra.mxu0 0.0
      %3706 = vmatprep.subr.mxu0 0.0
      %3707 = vmatpush1.msra.mxu0 0.0
      %3708 = vmatprep.subr.mxu0 0.0
      %3709 = vmatpush1.msra.mxu0 0.0
      %3710 = vmatprep.subr.mxu0 0.0
      %3711 = vmatpush1.msra.mxu0 0.0
      %3712 = vmatprep.subr.mxu0 0.0
      %3713 = vmatpush1.msra.mxu0 0.0
      %3714 = vmatprep.subr.mxu0 0.0
      %3715 = vmatpush1.msra.mxu0 0.0
      %3716 = vmatprep.subr.mxu0 0.0
      %3717 = vmatpush1.msra.mxu0 %v2728
      %3718 = vmatprep.subr.mxu0 0.0
      %3719 = vmatpush1.msra.mxu0 %v2725
      %3720 = vmatprep.subr.mxu0 0.0
      %3721 = vmatpush2.msra.mxu0 0.0
      %3722 = vmatprep.subr.mxu0 0.0
      %3723 = vmatpush2.msra.mxu0 0.0
      %3724 = vmatprep.subr.mxu0 0.0
      %3725 = vmatpush2.msra.mxu0 0.0
      %3726 = vmatprep.subr.mxu0 0.0
      %3727 = vmatpush2.msra.mxu0 0.0
      %3728 = vmatprep.subr.mxu0 0.0
      %3729 = vmatpush2.msra.mxu0 0.0
      %3730 = vmatprep.subr.mxu0 0.0
      %3731 = vmatpush2.msra.mxu0 0.0
      %3732 = vmatprep.subr.mxu0 0.0
      %3733 = vmatpush2.msra.mxu0 0.0
      %3734 = vmatprep.subr.mxu0 0.0
      %3735 = vmatpush2.msra.mxu0 0.0
      %3736 = vmatprep.subr.mxu0 0.0
      %3737 = vmatpush2.msra.mxu0 0.0
      %3738 = vmatprep.subr.mxu0 0.0
      %3739 = vmatpush2.msra.mxu0 0.0
      %3740 = vmatprep.subr.mxu0 0.0
      %3741 = vmatpush2.msra.mxu0 0.0
      %3742 = vmatprep.subr.mxu0 0.0
      %3743 = vmatpush2.msra.mxu0 0.0
      %3744 = vmatprep.subr.mxu0 0.0
      %3745 = vmatpush2.msra.mxu0 0.0
      %3746 = vmatprep.subr.mxu0 0.0
      %3747 = vmatpush2.msra.mxu0 0.0
      %3748 = vmatprep.subr.mxu0 0.0
      %3749 = vmatpush2.msra.mxu0 0.0
      %3750 = vmatprep.subr.mxu0 0.0
      %3751 = vmatpush2.msra.mxu0 0.0
      %3752 = vmatprep.mubr.f32.mxu0 0.0
      %3753 = vmatmul.mubr.f32.gmra.mxu0 %v3684
      %v3754 = vpop.f32.mrf.mxu0
      %v3755 = vadd.f32 0.0, %v3754
      %v3756 = vpop.f32.mrf.mxu0
      %3757 = vmatprep.mubr.f32.mxu0 0.0
      %3758 = vmatmul.mubr.f32.gmra.mxu0 %v3686
      %v3759 = vpop.f32.mrf.mxu0
      %v3760 = vadd.f32 0.0, %v3759
      %v3761 = vpop.f32.mrf.mxu0
      %3762 = vdwg.mxu0
      %3765 = vrot.lane.b32.xlu0 %v3755, 112
      %v3766 = vpop.permute.xlu0 %3765
      %3767 = vrot.lane.b32.xlu0 %v3760, 112
      %v3768 = vpop.permute.xlu0 %3767
      %v3771 = vadd.f32 %v2640, %v3766
      %v3772 = vadd.f32 %v2715, %v3766
      %v3773 = vadd.f32 %v2646, %v3768
      %v3774 = vadd.f32 %v2721, %v3768
      %v3775 = vxor.u32 %v3771, 2147483648
      %v3776 = vxor.u32 %v3772, 2147483648
      %v3777 = vxor.u32 %v3773, 2147483648
      %v3778 = vxor.u32 %v3774, 2147483648
      %v3779 = vmul.f32 %v3775, 1.442695
      %v3780 = vpow.pop %v3779
      %v3781 = vmul.f32 %v3776, 1.442695
      %v3782 = vpow.pop %v3781
      %v3783 = vmul.f32 %v3777, 1.442695
      %v3784 = vpow.pop %v3783
      %v3785 = vmul.f32 %v3778, 1.442695
      %v3786 = vpow.pop %v3785
      %v3787 = vadd.f32 %v3780, 1.0
      %v3788 = vadd.f32 %v3782, 1.0
      %v3789 = vadd.f32 %v3784, 1.0
      %v3790 = vadd.f32 %v3786, 1.0
      %v3791 = vrcp.pop %v3787
      %v3792 = vmul.f32 1.0, %v3791
      %v3793 = vrcp.pop %v3788
      %v3794 = vmul.f32 1.0, %v3793
      %v3795 = vrcp.pop %v3789
      %v3796 = vmul.f32 1.0, %v3795
      %v3797 = vrcp.pop %v3790
      %v3798 = vmul.f32 1.0, %v3797
      %v3799 = vtanh.pop %v3772
      %v3800 = vtanh.pop %v3774
      %3803 = vrot.lane.b32.xlu0 %v3656, 40
      %v3804 = vpop.permute.xlu0 %3803
      %3805 = vrot.lane.b32.xlu0 %v3657, 40
      %v3806 = vpop.permute.xlu0 %3805
      %v3809 = vmul.f32 %v3792, %v3804
      %v3810 = vmul.f32 %v3794, %v3804
      %v3811 = vmul.f32 %v3796, %v3806
      %v3812 = vmul.f32 %v3798, %v3806
      %3815 = vrot.lane.b32.xlu0 %v3799, 98
      %v3816 = vpop.permute.xlu0 %3815
      %3817 = vrot.lane.b32.xlu0 %v3800, 98
      %v3818 = vpop.permute.xlu0 %3817
      %v3821 = vmul.f32 %v3792, %v3816
      %v3822 = vmul.f32 %v3796, %v3818
      %3825 = vrot.lane.b32.xlu0 %v3821, 10
      %v3826 = vpop.permute.xlu0 %3825
      %3827 = vrot.lane.b32.xlu0 %v3822, 10
      %v3828 = vpop.permute.xlu0 %3827
      %v3831 = vadd.f32 %v3809, %v3826
      %v3832 = vadd.f32 %v3810, %v3826
      %v3833 = vadd.f32 %v3811, %v3828
      %v3834 = vadd.f32 %v3812, %v3828
      %v3835 = vtanh.pop %v3831
      %v3836 = vtanh.pop %v3832
      %v3837 = vtanh.pop %v3833
      %v3838 = vtanh.pop %v3834
      %3843 = vrot.lane.b32.xlu0 %v3835, 10
      %v3844 = vpop.permute.xlu0 %3843
      %3845 = vrot.lane.b32.xlu0 %v3836, 10
      %v3846 = vpop.permute.xlu0 %3845
      %3847 = vrot.lane.b32.xlu0 %v3837, 10
      %v3848 = vpop.permute.xlu0 %3847
      %3849 = vrot.lane.b32.xlu0 %v3838, 10
      %v3850 = vpop.permute.xlu0 %3849
      %v3851 = vsel %vm811, %v3844, %v3846
      %v3852 = vsel %vm811, %v3848, %v3850
      %v3855 = vmul.f32 %v3794, %v3851
      %v3856 = vmul.f32 %v3798, %v3852
      %3859 = vrot.lane.b32.xlu0 %v3855, 56
      %v3860 = vpop.permute.xlu0 %3859
      %3861 = vrot.lane.b32.xlu0 %v3856, 56
      %v3862 = vpop.permute.xlu0 %3861
      %3865 = vst.msk [vmem:[#allocation3] sm:$0xff] %vm1959, %v3860
      %3866 = vst.msk [vmem:[#allocation3 + $0x8] sm:$0xff] %vm1959, %v3862
      %3867 = vrot.lane.b32.xlu0 %v3855, 124
      %v3868 = vpop.permute.xlu0 %3867
      %3869 = vrot.lane.b32.xlu0 %v3856, 124
      %v3870 = vpop.permute.xlu0 %3869
      %v3871 = vsel %vm811, %v3868, 0
      %v3873 = vsel %vm811, %v3870, 0
      %3875 = vmatprep.subr.mxu0 0.0
      %3876 = vmatpush1.msra.mxu0 0.0
      %3877 = vmatprep.subr.mxu0 0.0
      %3878 = vmatpush1.msra.mxu0 0.0
      %3879 = vmatprep.subr.mxu0 0.0
      %3880 = vmatpush1.msra.mxu0 0.0
      %3881 = vmatprep.subr.mxu0 0.0
      %3882 = vmatpush1.msra.mxu0 0.0
      %3883 = vmatprep.subr.mxu0 0.0
      %3884 = vmatpush1.msra.mxu0 0.0
      %3885 = vmatprep.subr.mxu0 0.0
      %3886 = vmatpush1.msra.mxu0 0.0
      %3887 = vmatprep.subr.mxu0 0.0
      %3888 = vmatpush1.msra.mxu0 0.0
      %3889 = vmatprep.subr.mxu0 0.0
      %3890 = vmatpush1.msra.mxu0 0.0
      %3891 = vmatprep.subr.mxu0 0.0
      %3892 = vmatpush1.msra.mxu0 0.0
      %3893 = vmatprep.subr.mxu0 0.0
      %3894 = vmatpush1.msra.mxu0 0.0
      %3895 = vmatprep.subr.mxu0 0.0
      %3896 = vmatpush1.msra.mxu0 0.0
      %3897 = vmatprep.subr.mxu0 0.0
      %3898 = vmatpush1.msra.mxu0 0.0
      %3899 = vmatprep.subr.mxu0 0.0
      %3900 = vmatpush1.msra.mxu0 0.0
      %3901 = vmatprep.subr.mxu0 0.0
      %3902 = vmatpush1.msra.mxu0 0.0
      %3903 = vmatprep.subr.mxu0 0.0
      %3904 = vmatpush1.msra.mxu0 %v2728
      %3905 = vmatprep.subr.mxu0 0.0
      %3906 = vmatpush1.msra.mxu0 %v2725
      %3907 = vmatprep.subr.mxu0 0.0
      %3908 = vmatpush2.msra.mxu0 0.0
      %3909 = vmatprep.subr.mxu0 0.0
      %3910 = vmatpush2.msra.mxu0 0.0
      %3911 = vmatprep.subr.mxu0 0.0
      %3912 = vmatpush2.msra.mxu0 0.0
      %3913 = vmatprep.subr.mxu0 0.0
      %3914 = vmatpush2.msra.mxu0 0.0
      %3915 = vmatprep.subr.mxu0 0.0
      %3916 = vmatpush2.msra.mxu0 0.0
      %3917 = vmatprep.subr.mxu0 0.0
      %3918 = vmatpush2.msra.mxu0 0.0
      %3919 = vmatprep.subr.mxu0 0.0
      %3920 = vmatpush2.msra.mxu0 0.0
      %3921 = vmatprep.subr.mxu0 0.0
      %3922 = vmatpush2.msra.mxu0 0.0
      %3923 = vmatprep.subr.mxu0 0.0
      %3924 = vmatpush2.msra.mxu0 0.0
      %3925 = vmatprep.subr.mxu0 0.0
      %3926 = vmatpush2.msra.mxu0 0.0
      %3927 = vmatprep.subr.mxu0 0.0
      %3928 = vmatpush2.msra.mxu0 0.0
      %3929 = vmatprep.subr.mxu0 0.0
      %3930 = vmatpush2.msra.mxu0 0.0
      %3931 = vmatprep.subr.mxu0 0.0
      %3932 = vmatpush2.msra.mxu0 0.0
      %3933 = vmatprep.subr.mxu0 0.0
      %3934 = vmatpush2.msra.mxu0 0.0
      %3935 = vmatprep.subr.mxu0 0.0
      %3936 = vmatpush2.msra.mxu0 0.0
      %3937 = vmatprep.subr.mxu0 0.0
      %3938 = vmatpush2.msra.mxu0 0.0
      %3939 = vmatprep.mubr.f32.mxu0 0.0
      %3940 = vmatmul.mubr.f32.gmra.mxu0 %v3871
      %v3941 = vpop.f32.mrf.mxu0
      %v3942 = vadd.f32 0.0, %v3941
      %v3943 = vpop.f32.mrf.mxu0
      %3944 = vmatprep.mubr.f32.mxu0 0.0
      %3945 = vmatmul.mubr.f32.gmra.mxu0 %v3873
      %v3946 = vpop.f32.mrf.mxu0
      %v3947 = vadd.f32 0.0, %v3946
      %v3948 = vpop.f32.mrf.mxu0
      %3949 = vdwg.mxu0
      %3952 = vrot.lane.b32.xlu0 %v3942, 24
      %v3953 = vpop.permute.xlu0 %3952
      %3954 = vrot.lane.b32.xlu0 %v3947, 24
      %v3955 = vpop.permute.xlu0 %3954
      %v3958 = vadd.f32 %v2715, %v3953
      %v3959 = vadd.f32 %v2721, %v3955
      %v3960 = vxor.u32 %v3958, 2147483648
      %v3961 = vxor.u32 %v3959, 2147483648
      %v3962 = vmul.f32 %v3960, 1.442695
      %v3963 = vpow.pop %v3962
      %v3964 = vmul.f32 %v3961, 1.442695
      %v3965 = vpow.pop %v3964
      %v3966 = vadd.f32 %v3963, 1.0
      %v3967 = vadd.f32 %v3965, 1.0
      %v3968 = vrcp.pop %v3966
      %v3969 = vmul.f32 1.0, %v3968
      %v3970 = vrcp.pop %v3967
      %v3971 = vmul.f32 1.0, %v3970
      %v3972 = vtanh.pop %v3958
      %v3973 = vtanh.pop %v3959
      %3978 = vrot.lane.b32.xlu0 %v3831, 40
      %v3979 = vpop.permute.xlu0 %3978
      %3980 = vrot.lane.b32.xlu0 %v3832, 40
      %v3981 = vpop.permute.xlu0 %3980
      %3982 = vrot.lane.b32.xlu0 %v3833, 40
      %v3983 = vpop.permute.xlu0 %3982
      %3984 = vrot.lane.b32.xlu0 %v3834, 40
      %v3985 = vpop.permute.xlu0 %3984
      %v3986 = vsel %vm2081, %v3979, %v3981
      %v3987 = vsel %vm2081, %v3983, %v3985
      %v3990 = vmul.f32 %v3969, %v3986
      %v3991 = vmul.f32 %v3971, %v3987
      %3994 = vrot.lane.b32.xlu0 %v3972, 98
      %v3995 = vpop.permute.xlu0 %3994
      %3996 = vrot.lane.b32.xlu0 %v3973, 98
      %v3997 = vpop.permute.xlu0 %3996
      %v4000 = vmul.f32 %v3969, %v3995
      %v4001 = vmul.f32 %v3971, %v3997
      %4004 = vrot.lane.b32.xlu0 %v4000, 10
      %v4005 = vpop.permute.xlu0 %4004
      %4006 = vrot.lane.b32.xlu0 %v4001, 10
      %v4007 = vpop.permute.xlu0 %4006
      %v4010 = vadd.f32 %v3990, %v4005
      %v4011 = vadd.f32 %v3991, %v4007
      %v4012 = vtanh.pop %v4010
      %v4013 = vtanh.pop %v4011
      %4016 = vrot.lane.b32.xlu0 %v4012, 10
      %v4017 = vpop.permute.xlu0 %4016
      %4018 = vrot.lane.b32.xlu0 %v4013, 10
      %v4019 = vpop.permute.xlu0 %4018
      %v4022 = vmul.f32 %v3969, %v4017
      %v4023 = vmul.f32 %v3971, %v4019
      %4026 = vrot.lane.b32.xlu0 %v4022, 26
      %v4027 = vpop.permute.xlu0 %4026
      %4028 = vrot.lane.b32.xlu0 %v4023, 26
      %v4029 = vpop.permute.xlu0 %4028
      %4032 = vst.msk [vmem:[#allocation3] sm:$0xff] %vm2128, %v4027
      %4033 = vst.msk [vmem:[#allocation3 + $0x8] sm:$0xff] %vm2128, %v4029
      %4034 = vrot.lane.b32.xlu0 %v4022, 84
      %v4035 = vpop.permute.xlu0 %4034
      %4036 = vrot.lane.b32.xlu0 %v4023, 84
      %v4037 = vpop.permute.xlu0 %4036
      %v4038 = vsel %vm811, %v4035, 0
      %v4040 = vsel %vm811, %v4037, 0
      %4042 = vmatprep.subr.mxu0 0.0
      %4043 = vmatpush1.msra.mxu0 0.0
      %4044 = vmatprep.subr.mxu0 0.0
      %4045 = vmatpush1.msra.mxu0 0.0
      %4046 = vmatprep.subr.mxu0 0.0
      %4047 = vmatpush1.msra.mxu0 0.0
      %4048 = vmatprep.subr.mxu0 0.0
      %4049 = vmatpush1.msra.mxu0 0.0
      %4050 = vmatprep.subr.mxu0 0.0
      %4051 = vmatpush1.msra.mxu0 0.0
      %4052 = vmatprep.subr.mxu0 0.0
      %4053 = vmatpush1.msra.mxu0 0.0
      %4054 = vmatprep.subr.mxu0 0.0
      %4055 = vmatpush1.msra.mxu0 0.0
      %4056 = vmatprep.subr.mxu0 0.0
      %4057 = vmatpush1.msra.mxu0 0.0
      %4058 = vmatprep.subr.mxu0 0.0
      %4059 = vmatpush1.msra.mxu0 0.0
      %4060 = vmatprep.subr.mxu0 0.0
      %4061 = vmatpush1.msra.mxu0 0.0
      %4062 = vmatprep.subr.mxu0 0.0
      %4063 = vmatpush1.msra.mxu0 0.0
      %4064 = vmatprep.subr.mxu0 0.0
      %4065 = vmatpush1.msra.mxu0 0.0
      %4066 = vmatprep.subr.mxu0 0.0
      %4067 = vmatpush1.msra.mxu0 0.0
      %4068 = vmatprep.subr.mxu0 0.0
      %4069 = vmatpush1.msra.mxu0 0.0
      %4070 = vmatprep.subr.mxu0 0.0
      %4071 = vmatpush1.msra.mxu0 %v2728
      %4072 = vmatprep.subr.mxu0 0.0
      %4073 = vmatpush1.msra.mxu0 %v2725
      %4074 = vmatprep.subr.mxu0 0.0
      %4075 = vmatpush2.msra.mxu0 0.0
      %4076 = vmatprep.subr.mxu0 0.0
      %4077 = vmatpush2.msra.mxu0 0.0
      %4078 = vmatprep.subr.mxu0 0.0
      %4079 = vmatpush2.msra.mxu0 0.0
      %4080 = vmatprep.subr.mxu0 0.0
      %4081 = vmatpush2.msra.mxu0 0.0
      %4082 = vmatprep.subr.mxu0 0.0
      %4083 = vmatpush2.msra.mxu0 0.0
      %4084 = vmatprep.subr.mxu0 0.0
      %4085 = vmatpush2.msra.mxu0 0.0
      %4086 = vmatprep.subr.mxu0 0.0
      %4087 = vmatpush2.msra.mxu0 0.0
      %4088 = vmatprep.subr.mxu0 0.0
      %4089 = vmatpush2.msra.mxu0 0.0
      %4090 = vmatprep.subr.mxu0 0.0
      %4091 = vmatpush2.msra.mxu0 0.0
      %4092 = vmatprep.subr.mxu0 0.0
      %4093 = vmatpush2.msra.mxu0 0.0
      %4094 = vmatprep.subr.mxu0 0.0
      %4095 = vmatpush2.msra.mxu0 0.0
      %4096 = vmatprep.subr.mxu0 0.0
      %4097 = vmatpush2.msra.mxu0 0.0
      %4098 = vmatprep.subr.mxu0 0.0
      %4099 = vmatpush2.msra.mxu0 0.0
      %4100 = vmatprep.subr.mxu0 0.0
      %4101 = vmatpush2.msra.mxu0 0.0
      %4102 = vmatprep.subr.mxu0 0.0
      %4103 = vmatpush2.msra.mxu0 0.0
      %4104 = vmatprep.subr.mxu0 0.0
      %4105 = vmatpush2.msra.mxu0 0.0
      %4106 = vmatprep.mubr.f32.mxu0 0.0
      %4107 = vmatmul.mubr.f32.gmra.mxu0 %v4038
      %v4108 = vpop.f32.mrf.mxu0
      %v4109 = vadd.f32 0.0, %v4108
      %v4110 = vpop.f32.mrf.mxu0
      %4111 = vmatprep.mubr.f32.mxu0 0.0
      %4112 = vmatmul.mubr.f32.gmra.mxu0 %v4040
      %v4113 = vpop.f32.mrf.mxu0
      %v4114 = vadd.f32 0.0, %v4113
      %v4115 = vpop.f32.mrf.mxu0
      %4116 = vdwg.mxu0
      %4119 = vrot.lane.b32.xlu0 %v4109, 64
      %v4120 = vpop.permute.xlu0 %4119
      %4121 = vrot.lane.b32.xlu0 %v4114, 64
      %v4122 = vpop.permute.xlu0 %4121
      %v4125 = vadd.f32 %v2715, %v4120
      %v4126 = vadd.f32 %v2721, %v4122
      %v4127 = vxor.u32 %v4125, 2147483648
      %v4128 = vxor.u32 %v4126, 2147483648
      %v4129 = vmul.f32 %v4127, 1.442695
      %v4130 = vpow.pop %v4129
      %v4131 = vmul.f32 %v4128, 1.442695
      %v4132 = vpow.pop %v4131
      %v4133 = vadd.f32 %v4130, 1.0
      %v4134 = vadd.f32 %v4132, 1.0
      %v4135 = vrcp.pop %v4133
      %v4136 = vmul.f32 1.0, %v4135
      %v4137 = vrcp.pop %v4134
      %v4138 = vmul.f32 1.0, %v4137
      %v4139 = vtanh.pop %v4125
      %v4140 = vtanh.pop %v4126
      %4143 = vrot.lane.b32.xlu0 %v4010, 40
      %v4144 = vpop.permute.xlu0 %4143
      %4145 = vrot.lane.b32.xlu0 %v4011, 40
      %v4146 = vpop.permute.xlu0 %4145
      %v4149 = vmul.f32 %v4136, %v4144
      %v4150 = vmul.f32 %v4138, %v4146
      %4153 = vrot.lane.b32.xlu0 %v4139, 98
      %v4154 = vpop.permute.xlu0 %4153
      %4155 = vrot.lane.b32.xlu0 %v4140, 98
      %v4156 = vpop.permute.xlu0 %4155
      %v4159 = vmul.f32 %v4136, %v4154
      %v4160 = vmul.f32 %v4138, %v4156
      %4163 = vrot.lane.b32.xlu0 %v4159, 10
      %v4164 = vpop.permute.xlu0 %4163
      %4165 = vrot.lane.b32.xlu0 %v4160, 10
      %v4166 = vpop.permute.xlu0 %4165
      %v4169 = vadd.f32 %v4149, %v4164
      %v4170 = vadd.f32 %v4150, %v4166
      %v4171 = vtanh.pop %v4169
      %v4172 = vtanh.pop %v4170
      %4175 = vrot.lane.b32.xlu0 %v4171, 10
      %v4176 = vpop.permute.xlu0 %4175
      %4177 = vrot.lane.b32.xlu0 %v4172, 10
      %v4178 = vpop.permute.xlu0 %4177
      %v4181 = vmul.f32 %v4136, %v4176
      %v4182 = vmul.f32 %v4138, %v4178
      %4185 = vrot.lane.b32.xlu0 %v4181, 124
      %v4186 = vpop.permute.xlu0 %4185
      %4187 = vrot.lane.b32.xlu0 %v4182, 124
      %v4188 = vpop.permute.xlu0 %4187
      %4191 = vst.msk [vmem:[#allocation3] sm:$0xff] %vm2288, %v4186
      %4192 = vst.msk [vmem:[#allocation3 + $0x8] sm:$0xff] %vm2288, %v4188
      %4193 = vrot.lane.b32.xlu0 %v4181, 44
      %v4194 = vpop.permute.xlu0 %4193
      %4195 = vrot.lane.b32.xlu0 %v4182, 44
      %v4196 = vpop.permute.xlu0 %4195
      %v4197 = vsel %vm811, %v4194, 0
      %v4199 = vsel %vm811, %v4196, 0
      %4201 = vmatprep.subr.mxu0 0.0
      %4202 = vmatpush1.msra.mxu0 0.0
      %4203 = vmatprep.subr.mxu0 0.0
      %4204 = vmatpush1.msra.mxu0 0.0
      %4205 = vmatprep.subr.mxu0 0.0
      %4206 = vmatpush1.msra.mxu0 0.0
      %4207 = vmatprep.subr.mxu0 0.0
      %4208 = vmatpush1.msra.mxu0 0.0
      %4209 = vmatprep.subr.mxu0 0.0
      %4210 = vmatpush1.msra.mxu0 0.0
      %4211 = vmatprep.subr.mxu0 0.0
      %4212 = vmatpush1.msra.mxu0 0.0
      %4213 = vmatprep.subr.mxu0 0.0
      %4214 = vmatpush1.msra.mxu0 0.0
      %4215 = vmatprep.subr.mxu0 0.0
      %4216 = vmatpush1.msra.mxu0 0.0
      %4217 = vmatprep.subr.mxu0 0.0
      %4218 = vmatpush1.msra.mxu0 0.0
      %4219 = vmatprep.subr.mxu0 0.0
      %4220 = vmatpush1.msra.mxu0 0.0
      %4221 = vmatprep.subr.mxu0 0.0
      %4222 = vmatpush1.msra.mxu0 0.0
      %4223 = vmatprep.subr.mxu0 0.0
      %4224 = vmatpush1.msra.mxu0 0.0
      %4225 = vmatprep.subr.mxu0 0.0
      %4226 = vmatpush1.msra.mxu0 0.0
      %4227 = vmatprep.subr.mxu0 0.0
      %4228 = vmatpush1.msra.mxu0 0.0
      %4229 = vmatprep.subr.mxu0 0.0
      %4230 = vmatpush1.msra.mxu0 %v2728
      %4231 = vmatprep.subr.mxu0 0.0
      %4232 = vmatpush1.msra.mxu0 %v2725
      %4233 = vmatprep.subr.mxu0 0.0
      %4234 = vmatpush2.msra.mxu0 0.0
      %4235 = vmatprep.subr.mxu0 0.0
      %4236 = vmatpush2.msra.mxu0 0.0
      %4237 = vmatprep.subr.mxu0 0.0
      %4238 = vmatpush2.msra.mxu0 0.0
      %4239 = vmatprep.subr.mxu0 0.0
      %4240 = vmatpush2.msra.mxu0 0.0
      %4241 = vmatprep.subr.mxu0 0.0
      %4242 = vmatpush2.msra.mxu0 0.0
      %4243 = vmatprep.subr.mxu0 0.0
      %4244 = vmatpush2.msra.mxu0 0.0
      %4245 = vmatprep.subr.mxu0 0.0
      %4246 = vmatpush2.msra.mxu0 0.0
      %4247 = vmatprep.subr.mxu0 0.0
      %4248 = vmatpush2.msra.mxu0 0.0
      %4249 = vmatprep.subr.mxu0 0.0
      %4250 = vmatpush2.msra.mxu0 0.0
      %4251 = vmatprep.subr.mxu0 0.0
      %4252 = vmatpush2.msra.mxu0 0.0
      %4253 = vmatprep.subr.mxu0 0.0
      %4254 = vmatpush2.msra.mxu0 0.0
      %4255 = vmatprep.subr.mxu0 0.0
      %4256 = vmatpush2.msra.mxu0 0.0
      %4257 = vmatprep.subr.mxu0 0.0
      %4258 = vmatpush2.msra.mxu0 0.0
      %4259 = vmatprep.subr.mxu0 0.0
      %4260 = vmatpush2.msra.mxu0 0.0
      %4261 = vmatprep.subr.mxu0 0.0
      %4262 = vmatpush2.msra.mxu0 0.0
      %4263 = vmatprep.subr.mxu0 0.0
      %4264 = vmatpush2.msra.mxu0 0.0
      %4265 = vmatprep.mubr.f32.mxu0 0.0
      %4266 = vmatmul.mubr.f32.gmra.mxu0 %v4197
      %v4267 = vpop.f32.mrf.mxu0
      %v4268 = vadd.f32 0.0, %v4267
      %v4269 = vpop.f32.mrf.mxu0
      %4270 = vmatprep.mubr.f32.mxu0 0.0
      %4271 = vmatmul.mubr.f32.gmra.mxu0 %v4199
      %v4272 = vpop.f32.mrf.mxu0
      %v4273 = vadd.f32 0.0, %v4272
      %v4274 = vpop.f32.mrf.mxu0
      %4275 = vdwg.mxu0
      %4278 = vrot.lane.b32.xlu0 %v4268, 104
      %v4279 = vpop.permute.xlu0 %4278
      %4280 = vrot.lane.b32.xlu0 %v4273, 104
      %v4281 = vpop.permute.xlu0 %4280
      %v4284 = vadd.f32 %v2715, %v4279
      %v4285 = vadd.f32 %v2717, %v4279
      %v4286 = vadd.f32 %v2721, %v4281
      %v4287 = vadd.f32 %v2723, %v4281
      %v4288 = vxor.u32 %v4284, 2147483648
      %v4289 = vxor.u32 %v4285, 2147483648
      %v4290 = vxor.u32 %v4286, 2147483648
      %v4291 = vxor.u32 %v4287, 2147483648
      %v4292 = vmul.f32 %v4288, 1.442695
      %v4293 = vpow.pop %v4292
      %v4294 = vmul.f32 %v4289, 1.442695
      %v4295 = vpow.pop %v4294
      %v4296 = vmul.f32 %v4290, 1.442695
      %v4297 = vpow.pop %v4296
      %v4298 = vmul.f32 %v4291, 1.442695
      %v4299 = vpow.pop %v4298
      %v4300 = vadd.f32 %v4293, 1.0
      %v4301 = vadd.f32 %v4295, 1.0
      %v4302 = vadd.f32 %v4297, 1.0
      %v4303 = vadd.f32 %v4299, 1.0
      %v4304 = vrcp.pop %v4300
      %v4305 = vmul.f32 1.0, %v4304
      %v4306 = vrcp.pop %v4301
      %v4307 = vmul.f32 1.0, %v4306
      %v4308 = vrcp.pop %v4302
      %v4309 = vmul.f32 1.0, %v4308
      %v4310 = vrcp.pop %v4303
      %v4311 = vmul.f32 1.0, %v4310
      %v4312 = vtanh.pop %v4285
      %v4313 = vtanh.pop %v4287
      %4316 = vrot.lane.b32.xlu0 %v4169, 40
      %v4317 = vpop.permute.xlu0 %4316
      %4318 = vrot.lane.b32.xlu0 %v4170, 40
      %v4319 = vpop.permute.xlu0 %4318
      %v4322 = vmul.f32 %v4305, %v4317
      %v4323 = vmul.f32 %v4309, %v4319
      %4326 = vrot.lane.b32.xlu0 %v4312, 98
      %v4327 = vpop.permute.xlu0 %4326
      %4328 = vrot.lane.b32.xlu0 %v4313, 98
      %v4329 = vpop.permute.xlu0 %4328
      %v4332 = vmul.f32 %v4305, %v4327
      %v4333 = vmul.f32 %v4309, %v4329
      %4336 = vrot.lane.b32.xlu0 %v4332, 10
      %v4337 = vpop.permute.xlu0 %4336
      %4338 = vrot.lane.b32.xlu0 %v4333, 10
      %v4339 = vpop.permute.xlu0 %4338
      %v4342 = vadd.f32 %v4322, %v4337
      %v4343 = vadd.f32 %v4323, %v4339
      %v4344 = vtanh.pop %v4342
      %v4345 = vtanh.pop %v4343
      %4348 = vrot.lane.b32.xlu0 %v4344, 10
      %v4349 = vpop.permute.xlu0 %4348
      %4350 = vrot.lane.b32.xlu0 %v4345, 10
      %v4351 = vpop.permute.xlu0 %4350
      %v4354 = vmul.f32 %v4305, %v4349
      %v4355 = vmul.f32 %v4307, %v4349
      %v4356 = vmul.f32 %v4309, %v4351
      %v4357 = vmul.f32 %v4311, %v4351
      %4362 = vrot.lane.b32.xlu0 %v4354, 94
      %v4363 = vpop.permute.xlu0 %4362
      %4364 = vrot.lane.b32.xlu0 %v4355, 94
      %v4365 = vpop.permute.xlu0 %4364
      %4366 = vrot.lane.b32.xlu0 %v4356, 94
      %v4367 = vpop.permute.xlu0 %4366
      %4368 = vrot.lane.b32.xlu0 %v4357, 94
      %v4369 = vpop.permute.xlu0 %4368
      %v4370 = vsel %vm2468, %v4363, %v4365
      %v4371 = vsel %vm2468, %v4367, %v4369
      %4374 = vst.msk [vmem:[#allocation3] sm:$0xff] %vm2473, %v4370
      %4375 = vst.msk [vmem:[#allocation3 + $0x8] sm:$0xff] %vm2473, %v4371
      %v4376 = vld [vmem:[#allocation3] sm:$0xff]
      %v4377 = vld [vmem:[#allocation3 + $0x8] sm:$0xff]
      %v4378 = vld [vmem:[%s8] sm:$0xff]
      %v4379 = vld [vmem:[%s8 + $0x8] sm:$0xff]
      %v4380 = vld [vmem:[%s8 + $0x10] sm:$0xff]
      %v4381 = vld [vmem:[%s8 + $0x18] sm:$0xff]
      %v4382 = vld [vmem:[%s8 + $0x20] sm:$0xff]
      %v4383 = vld [vmem:[%s8 + $0x28] sm:$0xff]
      %v4384 = vld [vmem:[%s8 + $0x30] sm:$0xff]
      %v4385 = vld [vmem:[%s8 + $0x38] sm:$0xff]
      %v4386 = vld [vmem:[%s8 + $0x40] sm:$0xff]
      %v4387 = vld [vmem:[%s8 + $0x48] sm:$0xff]
      %v4388 = vld [vmem:[%s8 + $0x50] sm:$0xff]
      %v4389 = vld [vmem:[%s8 + $0x58] sm:$0xff]
      %v4390 = vld [vmem:[%s8 + $0x60] sm:$0xff]
      %v4391 = vld [vmem:[%s8 + $0x68] sm:$0xff]
      %v4392 = vld [vmem:[%s8 + $0x70] sm:$0xff]
      %v4393 = vld [vmem:[%s8 + $0x78] sm:$0xff]
      %v4394 = vld [vmem:[%s8 + $0x80] sm:$0xff]
      %v4395 = vld [vmem:[%s8 + $0x88] sm:$0xff]
      %v4396 = vld [vmem:[%s8 + $0x90] sm:$0xff]
      %v4397 = vld [vmem:[%s8 + $0x98] sm:$0xff]
      %v4398 = vld [vmem:[%s8 + $0xa0] sm:$0xff]
      %v4399 = vld [vmem:[%s8 + $0xa8] sm:$0xff]
      %v4400 = vld [vmem:[%s8 + $0xb0] sm:$0xff]
      %v4401 = vld [vmem:[%s8 + $0xb8] sm:$0xff]
      %v4402 = vld [vmem:[%s8 + $0xc0] sm:$0xff]
      %v4403 = vld [vmem:[%s8 + $0xc8] sm:$0xff]
      %v4404 = vld [vmem:[%s8 + $0xd0] sm:$0xff]
      %v4405 = vld [vmem:[%s8 + $0xd8] sm:$0xff]
      %v4406 = vld [vmem:[%s8 + $0xe0] sm:$0xff]
      %v4407 = vld [vmem:[%s8 + $0xe8] sm:$0xff]
      %v4408 = vld [vmem:[%s8 + $0xf0] sm:$0xff]
      %v4409 = vld [vmem:[%s8 + $0xf8] sm:$0xff]
      %v4410 = vld [vmem:[%s8 + $0x100] sm:$0xff]
      %v4411 = vld [vmem:[%s8 + $0x108] sm:$0xff]
      %v4412 = vld [vmem:[%s8 + $0x110] sm:$0xff]
      %v4413 = vld [vmem:[%s8 + $0x118] sm:$0xff]
      %v4414 = vld [vmem:[%s8 + $0x120] sm:$0xff]
      %v4415 = vld [vmem:[%s8 + $0x128] sm:$0xff]
      %v4416 = vld [vmem:[%s8 + $0x130] sm:$0xff]
      %v4417 = vld [vmem:[%s8 + $0x138] sm:$0xff]
      %v4418 = vld [vmem:[%s8 + $0x140] sm:$0xff]
      %v4419 = vld [vmem:[%s8 + $0x148] sm:$0xff]
      %v4420 = vld [vmem:[%s8 + $0x150] sm:$0xff]
      %v4421 = vld [vmem:[%s8 + $0x158] sm:$0xff]
      %v4422 = vld [vmem:[%s8 + $0x160] sm:$0xff]
      %v4423 = vld [vmem:[%s8 + $0x168] sm:$0xff]
      %v4424 = vld [vmem:[%s8 + $0x170] sm:$0xff]
      %v4425 = vld [vmem:[%s8 + $0x178] sm:$0xff]
      %v4426 = vld [vmem:[%s8 + $0x180] sm:$0xf]
      %v4427 = vld [vmem:[%s8 + $0x188] sm:$0xf]
      %v4428 = vld [vmem:[%s8 + $0x190] sm:$0xf]
      %v4429 = vld [vmem:[%s8 + $0x198] sm:$0xf]
      %v4430 = vld [vmem:[%s9] sm:$0xf]
      %v4432 = vlaneseq
      %v4433 = vshrl.u32 %v4432, 7
      %v4434 = vsub.s32 0, %v4433
      %v4435 = vrot.slane %v4430, %v4434
      %v4436 = vlaneseq
      %v4437 = vshrl.u32 %v4436, 7
      %v4438 = vsub.s32 1, %v4437
      %v4439 = vrot.slane %v4430, %v4438
      %v4440 = vlaneseq
      %v4441 = vshrl.u32 %v4440, 7
      %v4442 = vsub.s32 2, %v4441
      %v4443 = vrot.slane %v4430, %v4442
      %v4444 = vlaneseq
      %v4445 = vshrl.u32 %v4444, 7
      %v4446 = vsub.s32 3, %v4445
      %v4447 = vrot.slane %v4430, %v4446
      %v4453 = vsel %vm2552, %v4376, 0
      %v4456 = vsel %vm2552, %v4377, 0
      %v4459 = vsel %vm642, %v4426, 0
      %v4462 = vsel %vm642, %v4427, 0
      %v4465 = vsel %vm642, %v4428, 0
      %v4468 = vsel %vm642, %v4429, 0
      %4470 = vmatprep.subr.mxu0 0.0
      %4471 = vmatpush1.msra.mxu0 0.0
      %4472 = vmatprep.subr.mxu0 0.0
      %4473 = vmatpush1.msra.mxu0 0.0
      %4474 = vmatprep.subr.mxu0 0.0
      %4475 = vmatpush1.msra.mxu0 0.0
      %4476 = vmatprep.subr.mxu0 %v4462
      %4477 = vmatpush1.msra.mxu0 %v4459
      %4478 = vmatprep.subr.mxu0 %v4423
      %4479 = vmatpush1.msra.mxu0 %v4422
      %4480 = vmatprep.subr.mxu0 %v4419
      %4481 = vmatpush1.msra.mxu0 %v4418
      %4482 = vmatprep.subr.mxu0 %v4415
      %4483 = vmatpush1.msra.mxu0 %v4414
      %4484 = vmatprep.subr.mxu0 %v4411
      %4485 = vmatpush1.msra.mxu0 %v4410
      %4486 = vmatprep.subr.mxu0 %v4407
      %4487 = vmatpush1.msra.mxu0 %v4406
      %4488 = vmatprep.subr.mxu0 %v4403
      %4489 = vmatpush1.msra.mxu0 %v4402
      %4490 = vmatprep.subr.mxu0 %v4399
      %4491 = vmatpush1.msra.mxu0 %v4398
      %4492 = vmatprep.subr.mxu0 %v4395
      %4493 = vmatpush1.msra.mxu0 %v4394
      %4494 = vmatprep.subr.mxu0 %v4391
      %4495 = vmatpush1.msra.mxu0 %v4390
      %4496 = vmatprep.subr.mxu0 %v4387
      %4497 = vmatpush1.msra.mxu0 %v4386
      %4498 = vmatprep.subr.mxu0 %v4383
      %4499 = vmatpush1.msra.mxu0 %v4382
      %4500 = vmatprep.subr.mxu0 %v4379
      %4501 = vmatpush1.msra.mxu0 %v4378
      %4502 = vmatprep.subr.mxu0 0.0
      %4503 = vmatpush2.msra.mxu0 0.0
      %4504 = vmatprep.subr.mxu0 0.0
      %4505 = vmatpush2.msra.mxu0 0.0
      %4506 = vmatprep.subr.mxu0 0.0
      %4507 = vmatpush2.msra.mxu0 0.0
      %4508 = vmatprep.subr.mxu0 0.0
      %4509 = vmatpush2.msra.mxu0 0.0
      %4510 = vmatprep.subr.mxu0 0.0
      %4511 = vmatpush2.msra.mxu0 0.0
      %4512 = vmatprep.subr.mxu0 0.0
      %4513 = vmatpush2.msra.mxu0 0.0
      %4514 = vmatprep.subr.mxu0 0.0
      %4515 = vmatpush2.msra.mxu0 0.0
      %4516 = vmatprep.subr.mxu0 0.0
      %4517 = vmatpush2.msra.mxu0 0.0
      %4518 = vmatprep.subr.mxu0 0.0
      %4519 = vmatpush2.msra.mxu0 0.0
      %4520 = vmatprep.subr.mxu0 0.0
      %4521 = vmatpush2.msra.mxu0 0.0
      %4522 = vmatprep.subr.mxu0 0.0
      %4523 = vmatpush2.msra.mxu0 0.0
      %4524 = vmatprep.subr.mxu0 0.0
      %4525 = vmatpush2.msra.mxu0 0.0
      %4526 = vmatprep.subr.mxu0 0.0
      %4527 = vmatpush2.msra.mxu0 0.0
      %4528 = vmatprep.subr.mxu0 0.0
      %4529 = vmatpush2.msra.mxu0 0.0
      %4530 = vmatprep.subr.mxu0 0.0
      %4531 = vmatpush2.msra.mxu0 0.0
      %4532 = vmatprep.subr.mxu0 0.0
      %4533 = vmatpush2.msra.mxu0 0.0
      %4534 = vmatprep.mubr.f32.mxu0 0.0
      %4535 = vmatmul.mubr.f32.gmra.mxu0 %v4453
      %v4536 = vpop.f32.mrf.mxu0
      %v4537 = vadd.f32 %v4435, %v4536
      %v4538 = vpop.f32.mrf.mxu0
      %v4539 = vadd.f32 %v4439, %v4538
      %4540 = vmatprep.mubr.f32.mxu0 0.0
      %4541 = vmatmul.mubr.f32.gmra.mxu0 %v4456
      %v4542 = vpop.f32.mrf.mxu0
      %v4543 = vadd.f32 %v4435, %v4542
      %v4544 = vpop.f32.mrf.mxu0
      %v4545 = vadd.f32 %v4439, %v4544
      %4546 = vdwg.mxu0
      %4547 = vmatprep.subr.mxu0 0.0
      %4548 = vmatpush1.msra.mxu0 0.0
      %4549 = vmatprep.subr.mxu0 0.0
      %4550 = vmatpush1.msra.mxu0 0.0
      %4551 = vmatprep.subr.mxu0 0.0
      %4552 = vmatpush1.msra.mxu0 0.0
      %4553 = vmatprep.subr.mxu0 %v4468
      %4554 = vmatpush1.msra.mxu0 %v4465
      %4555 = vmatprep.subr.mxu0 %v4425
      %4556 = vmatpush1.msra.mxu0 %v4424
      %4557 = vmatprep.subr.mxu0 %v4421
      %4558 = vmatpush1.msra.mxu0 %v4420
      %4559 = vmatprep.subr.mxu0 %v4417
      %4560 = vmatpush1.msra.mxu0 %v4416
      %4561 = vmatprep.subr.mxu0 %v4413
      %4562 = vmatpush1.msra.mxu0 %v4412
      %4563 = vmatprep.subr.mxu0 %v4409
      %4564 = vmatpush1.msra.mxu0 %v4408
      %4565 = vmatprep.subr.mxu0 %v4405
      %4566 = vmatpush1.msra.mxu0 %v4404
      %4567 = vmatprep.subr.mxu0 %v4401
      %4568 = vmatpush1.msra.mxu0 %v4400
      %4569 = vmatprep.subr.mxu0 %v4397
      %4570 = vmatpush1.msra.mxu0 %v4396
      %4571 = vmatprep.subr.mxu0 %v4393
      %4572 = vmatpush1.msra.mxu0 %v4392
      %4573 = vmatprep.subr.mxu0 %v4389
      %4574 = vmatpush1.msra.mxu0 %v4388
      %4575 = vmatprep.subr.mxu0 %v4385
      %4576 = vmatpush1.msra.mxu0 %v4384
      %4577 = vmatprep.subr.mxu0 %v4381
      %4578 = vmatpush1.msra.mxu0 %v4380
      %4579 = vmatprep.subr.mxu0 0.0
      %4580 = vmatpush2.msra.mxu0 0.0
      %4581 = vmatprep.subr.mxu0 0.0
      %4582 = vmatpush2.msra.mxu0 0.0
      %4583 = vmatprep.subr.mxu0 0.0
      %4584 = vmatpush2.msra.mxu0 0.0
      %4585 = vmatprep.subr.mxu0 0.0
      %4586 = vmatpush2.msra.mxu0 0.0
      %4587 = vmatprep.subr.mxu0 0.0
      %4588 = vmatpush2.msra.mxu0 0.0
      %4589 = vmatprep.subr.mxu0 0.0
      %4590 = vmatpush2.msra.mxu0 0.0
      %4591 = vmatprep.subr.mxu0 0.0
      %4592 = vmatpush2.msra.mxu0 0.0
      %4593 = vmatprep.subr.mxu0 0.0
      %4594 = vmatpush2.msra.mxu0 0.0
      %4595 = vmatprep.subr.mxu0 0.0
      %4596 = vmatpush2.msra.mxu0 0.0
      %4597 = vmatprep.subr.mxu0 0.0
      %4598 = vmatpush2.msra.mxu0 0.0
      %4599 = vmatprep.subr.mxu0 0.0
      %4600 = vmatpush2.msra.mxu0 0.0
      %4601 = vmatprep.subr.mxu0 0.0
      %4602 = vmatpush2.msra.mxu0 0.0
      %4603 = vmatprep.subr.mxu0 0.0
      %4604 = vmatpush2.msra.mxu0 0.0
      %4605 = vmatprep.subr.mxu0 0.0
      %4606 = vmatpush2.msra.mxu0 0.0
      %4607 = vmatprep.subr.mxu0 0.0
      %4608 = vmatpush2.msra.mxu0 0.0
      %4609 = vmatprep.subr.mxu0 0.0
      %4610 = vmatpush2.msra.mxu0 0.0
      %4611 = vmatprep.mubr.f32.mxu0 0.0
      %4612 = vmatmul.mubr.f32.gmra.mxu0 %v4453
      %v4613 = vpop.f32.mrf.mxu0
      %v4614 = vadd.f32 %v4443, %v4613
      %v4615 = vpop.f32.mrf.mxu0
      %v4616 = vadd.f32 %v4447, %v4615
      %4617 = vmatprep.mubr.f32.mxu0 0.0
      %4618 = vmatmul.mubr.f32.gmra.mxu0 %v4456
      %v4619 = vpop.f32.mrf.mxu0
      %v4620 = vadd.f32 %v4443, %v4619
      %v4621 = vpop.f32.mrf.mxu0
      %v4622 = vadd.f32 %v4447, %v4621
      %4623 = vdwg.mxu0
      %v4624 = vld [vmem:[%s10] sm:$0xff]
      %v4625 = vld [vmem:[%s10 + $0x8] sm:$0x3]
      %v4627 = vsel %vm815, %v4625, 0
      %4629 = vmatprep.subr.mxu0 0.0
      %4630 = vmatpush1.msra.mxu0 0.0
      %4631 = vmatprep.subr.mxu0 0.0
      %4632 = vmatpush1.msra.mxu0 0.0
      %4633 = vmatprep.subr.mxu0 0.0
      %4634 = vmatpush1.msra.mxu0 0.0
      %4635 = vmatprep.subr.mxu0 0.0
      %4636 = vmatpush1.msra.mxu0 0.0
      %4637 = vmatprep.subr.mxu0 0.0
      %4638 = vmatpush1.msra.mxu0 0.0
      %4639 = vmatprep.subr.mxu0 0.0
      %4640 = vmatpush1.msra.mxu0 0.0
      %4641 = vmatprep.subr.mxu0 0.0
      %4642 = vmatpush1.msra.mxu0 0.0
      %4643 = vmatprep.subr.mxu0 0.0
      %4644 = vmatpush1.msra.mxu0 0.0
      %4645 = vmatprep.subr.mxu0 0.0
      %4646 = vmatpush1.msra.mxu0 0.0
      %4647 = vmatprep.subr.mxu0 0.0
      %4648 = vmatpush1.msra.mxu0 0.0
      %4649 = vmatprep.subr.mxu0 0.0
      %4650 = vmatpush1.msra.mxu0 0.0
      %4651 = vmatprep.subr.mxu0 0.0
      %4652 = vmatpush1.msra.mxu0 0.0
      %4653 = vmatprep.subr.mxu0 0.0
      %4654 = vmatpush1.msra.mxu0 0.0
      %4655 = vmatprep.subr.mxu0 0.0
      %4656 = vmatpush1.msra.mxu0 0.0
      %4657 = vmatprep.subr.mxu0 0.0
      %4658 = vmatpush1.msra.mxu0 %v4627
      %4659 = vmatprep.subr.mxu0 0.0
      %4660 = vmatpush1.msra.mxu0 %v4624
      %4661 = vmatprep.subr.mxu0 0.0
      %4662 = vmatpush2.msra.mxu0 0.0
      %4663 = vmatprep.subr.mxu0 0.0
      %4664 = vmatpush2.msra.mxu0 0.0
      %4665 = vmatprep.subr.mxu0 0.0
      %4666 = vmatpush2.msra.mxu0 0.0
      %4667 = vmatprep.subr.mxu0 0.0
      %4668 = vmatpush2.msra.mxu0 0.0
      %4669 = vmatprep.subr.mxu0 0.0
      %4670 = vmatpush2.msra.mxu0 0.0
      %4671 = vmatprep.subr.mxu0 0.0
      %4672 = vmatpush2.msra.mxu0 0.0
      %4673 = vmatprep.subr.mxu0 0.0
      %4674 = vmatpush2.msra.mxu0 0.0
      %4675 = vmatprep.subr.mxu0 0.0
      %4676 = vmatpush2.msra.mxu0 0.0
      %4677 = vmatprep.subr.mxu0 0.0
      %4678 = vmatpush2.msra.mxu0 0.0
      %4679 = vmatprep.subr.mxu0 0.0
      %4680 = vmatpush2.msra.mxu0 0.0
      %4681 = vmatprep.subr.mxu0 0.0
      %4682 = vmatpush2.msra.mxu0 0.0
      %4683 = vmatprep.subr.mxu0 0.0
      %4684 = vmatpush2.msra.mxu0 0.0
      %4685 = vmatprep.subr.mxu0 0.0
      %4686 = vmatpush2.msra.mxu0 0.0
      %4687 = vmatprep.subr.mxu0 0.0
      %4688 = vmatpush2.msra.mxu0 0.0
      %4689 = vmatprep.subr.mxu0 0.0
      %4690 = vmatpush2.msra.mxu0 0.0
      %4691 = vmatprep.subr.mxu0 0.0
      %4692 = vmatpush2.msra.mxu0 0.0
      %4693 = vmatprep.mubr.f32.mxu0 0.0
      %4694 = vmatmul.mubr.f32.gmra.mxu0 %v813
      %v4695 = vpop.f32.mrf.mxu0
      %v4696 = vadd.f32 0.0, %v4695
      %v4697 = vpop.f32.mrf.mxu0
      %4698 = vmatprep.mubr.f32.mxu0 0.0
      %4699 = vmatmul.mubr.f32.gmra.mxu0 %v813
      %v4700 = vpop.f32.mrf.mxu0
      %v4701 = vadd.f32 0.0, %v4700
      %v4702 = vpop.f32.mrf.mxu0
      %4703 = vdwg.mxu0
      %v4704 = vadd.f32 %v4537, %v4696
      %v4705 = vadd.f32 %v4543, %v4701
      %v4706 = vxor.u32 %v4704, 2147483648
      %v4707 = vxor.u32 %v4705, 2147483648
      %v4708 = vmul.f32 %v4706, 1.442695
      %v4709 = vpow.pop %v4708
      %v4710 = vmul.f32 %v4707, 1.442695
      %v4711 = vpow.pop %v4710
      %v4712 = vadd.f32 %v4709, 1.0
      %v4713 = vadd.f32 %v4711, 1.0
      %v4714 = vrcp.pop %v4712
      %v4715 = vmul.f32 1.0, %v4714
      %v4716 = vrcp.pop %v4713
      %v4717 = vmul.f32 1.0, %v4716
      %v4718 = vtanh.pop %v4704
      %v4719 = vtanh.pop %v4705
      %v4720 = vmul.f32 %v4715, 0.0
      %v4721 = vmul.f32 %v4717, 0.0
      %4724 = vrot.lane.b32.xlu0 %v4718, 98
      %v4725 = vpop.permute.xlu0 %4724
      %4726 = vrot.lane.b32.xlu0 %v4719, 98
      %v4727 = vpop.permute.xlu0 %4726
      %v4730 = vmul.f32 %v4715, %v4725
      %v4731 = vmul.f32 %v4717, %v4727
      %4734 = vrot.lane.b32.xlu0 %v4730, 10
      %v4735 = vpop.permute.xlu0 %4734
      %4736 = vrot.lane.b32.xlu0 %v4731, 10
      %v4737 = vpop.permute.xlu0 %4736
      %v4740 = vadd.f32 %v4720, %v4735
      %v4741 = vadd.f32 %v4721, %v4737
      %v4742 = vtanh.pop %v4740
      %v4743 = vtanh.pop %v4741
      %4746 = vrot.lane.b32.xlu0 %v4742, 10
      %v4747 = vpop.permute.xlu0 %4746
      %4748 = vrot.lane.b32.xlu0 %v4743, 10
      %v4749 = vpop.permute.xlu0 %4748
      %v4752 = vmul.f32 %v4715, %v4747
      %v4753 = vmul.f32 %v4717, %v4749
      %4756 = vrot.lane.b32.xlu0 %v4752, 108
      %v4757 = vpop.permute.xlu0 %4756
      %4758 = vrot.lane.b32.xlu0 %v4753, 108
      %v4759 = vpop.permute.xlu0 %4758
      %4762 = vst.msk [vmem:[#allocation2] sm:$0xff] %vm811, %v4757
      %4763 = vst.msk [vmem:[#allocation2 + $0x8] sm:$0xff] %vm811, %v4759
      %v4764 = vsel %vm811, %v4757, 0
      %v4766 = vsel %vm811, %v4759, 0
      %4768 = vmatprep.subr.mxu0 0.0
      %4769 = vmatpush1.msra.mxu0 0.0
      %4770 = vmatprep.subr.mxu0 0.0
      %4771 = vmatpush1.msra.mxu0 0.0
      %4772 = vmatprep.subr.mxu0 0.0
      %4773 = vmatpush1.msra.mxu0 0.0
      %4774 = vmatprep.subr.mxu0 0.0
      %4775 = vmatpush1.msra.mxu0 0.0
      %4776 = vmatprep.subr.mxu0 0.0
      %4777 = vmatpush1.msra.mxu0 0.0
      %4778 = vmatprep.subr.mxu0 0.0
      %4779 = vmatpush1.msra.mxu0 0.0
      %4780 = vmatprep.subr.mxu0 0.0
      %4781 = vmatpush1.msra.mxu0 0.0
      %4782 = vmatprep.subr.mxu0 0.0
      %4783 = vmatpush1.msra.mxu0 0.0
      %4784 = vmatprep.subr.mxu0 0.0
      %4785 = vmatpush1.msra.mxu0 0.0
      %4786 = vmatprep.subr.mxu0 0.0
      %4787 = vmatpush1.msra.mxu0 0.0
      %4788 = vmatprep.subr.mxu0 0.0
      %4789 = vmatpush1.msra.mxu0 0.0
      %4790 = vmatprep.subr.mxu0 0.0
      %4791 = vmatpush1.msra.mxu0 0.0
      %4792 = vmatprep.subr.mxu0 0.0
      %4793 = vmatpush1.msra.mxu0 0.0
      %4794 = vmatprep.subr.mxu0 0.0
      %4795 = vmatpush1.msra.mxu0 0.0
      %4796 = vmatprep.subr.mxu0 0.0
      %4797 = vmatpush1.msra.mxu0 %v4627
      %4798 = vmatprep.subr.mxu0 0.0
      %4799 = vmatpush1.msra.mxu0 %v4624
      %4800 = vmatprep.subr.mxu0 0.0
      %4801 = vmatpush2.msra.mxu0 0.0
      %4802 = vmatprep.subr.mxu0 0.0
      %4803 = vmatpush2.msra.mxu0 0.0
      %4804 = vmatprep.subr.mxu0 0.0
      %4805 = vmatpush2.msra.mxu0 0.0
      %4806 = vmatprep.subr.mxu0 0.0
      %4807 = vmatpush2.msra.mxu0 0.0
      %4808 = vmatprep.subr.mxu0 0.0
      %4809 = vmatpush2.msra.mxu0 0.0
      %4810 = vmatprep.subr.mxu0 0.0
      %4811 = vmatpush2.msra.mxu0 0.0
      %4812 = vmatprep.subr.mxu0 0.0
      %4813 = vmatpush2.msra.mxu0 0.0
      %4814 = vmatprep.subr.mxu0 0.0
      %4815 = vmatpush2.msra.mxu0 0.0
      %4816 = vmatprep.subr.mxu0 0.0
      %4817 = vmatpush2.msra.mxu0 0.0
      %4818 = vmatprep.subr.mxu0 0.0
      %4819 = vmatpush2.msra.mxu0 0.0
      %4820 = vmatprep.subr.mxu0 0.0
      %4821 = vmatpush2.msra.mxu0 0.0
      %4822 = vmatprep.subr.mxu0 0.0
      %4823 = vmatpush2.msra.mxu0 0.0
      %4824 = vmatprep.subr.mxu0 0.0
      %4825 = vmatpush2.msra.mxu0 0.0
      %4826 = vmatprep.subr.mxu0 0.0
      %4827 = vmatpush2.msra.mxu0 0.0
      %4828 = vmatprep.subr.mxu0 0.0
      %4829 = vmatpush2.msra.mxu0 0.0
      %4830 = vmatprep.subr.mxu0 0.0
      %4831 = vmatpush2.msra.mxu0 0.0
      %4832 = vmatprep.mubr.f32.mxu0 0.0
      %4833 = vmatmul.mubr.f32.gmra.mxu0 %v4764
      %v4834 = vpop.f32.mrf.mxu0
      %v4835 = vadd.f32 0.0, %v4834
      %v4836 = vpop.f32.mrf.mxu0
      %4837 = vmatprep.mubr.f32.mxu0 0.0
      %4838 = vmatmul.mubr.f32.gmra.mxu0 %v4766
      %v4839 = vpop.f32.mrf.mxu0
      %v4840 = vadd.f32 0.0, %v4839
      %v4841 = vpop.f32.mrf.mxu0
      %4842 = vdwg.mxu0
      %4845 = vrot.lane.b32.xlu0 %v4835, 40
      %v4846 = vpop.permute.xlu0 %4845
      %4847 = vrot.lane.b32.xlu0 %v4840, 40
      %v4848 = vpop.permute.xlu0 %4847
      %v4851 = vadd.f32 %v4537, %v4846
      %v4852 = vadd.f32 %v4543, %v4848
      %v4853 = vxor.u32 %v4851, 2147483648
      %v4854 = vxor.u32 %v4852, 2147483648
      %v4855 = vmul.f32 %v4853, 1.442695
      %v4856 = vpow.pop %v4855
      %v4857 = vmul.f32 %v4854, 1.442695
      %v4858 = vpow.pop %v4857
      %v4859 = vadd.f32 %v4856, 1.0
      %v4860 = vadd.f32 %v4858, 1.0
      %v4861 = vrcp.pop %v4859
      %v4862 = vmul.f32 1.0, %v4861
      %v4863 = vrcp.pop %v4860
      %v4864 = vmul.f32 1.0, %v4863
      %v4865 = vtanh.pop %v4851
      %v4866 = vtanh.pop %v4852
      %4869 = vrot.lane.b32.xlu0 %v4740, 40
      %v4870 = vpop.permute.xlu0 %4869
      %4871 = vrot.lane.b32.xlu0 %v4741, 40
      %v4872 = vpop.permute.xlu0 %4871
      %v4875 = vmul.f32 %v4862, %v4870
      %v4876 = vmul.f32 %v4864, %v4872
      %4879 = vrot.lane.b32.xlu0 %v4865, 98
      %v4880 = vpop.permute.xlu0 %4879
      %4881 = vrot.lane.b32.xlu0 %v4866, 98
      %v4882 = vpop.permute.xlu0 %4881
      %v4885 = vmul.f32 %v4862, %v4880
      %v4886 = vmul.f32 %v4864, %v4882
      %4889 = vrot.lane.b32.xlu0 %v4885, 10
      %v4890 = vpop.permute.xlu0 %4889
      %4891 = vrot.lane.b32.xlu0 %v4886, 10
      %v4892 = vpop.permute.xlu0 %4891
      %v4895 = vadd.f32 %v4875, %v4890
      %v4896 = vadd.f32 %v4876, %v4892
      %v4897 = vtanh.pop %v4895
      %v4898 = vtanh.pop %v4896
      %4901 = vrot.lane.b32.xlu0 %v4897, 10
      %v4902 = vpop.permute.xlu0 %4901
      %4903 = vrot.lane.b32.xlu0 %v4898, 10
      %v4904 = vpop.permute.xlu0 %4903
      %v4907 = vmul.f32 %v4862, %v4902
      %v4908 = vmul.f32 %v4864, %v4904
      %4911 = vrot.lane.b32.xlu0 %v4907, 78
      %v4912 = vpop.permute.xlu0 %4911
      %4913 = vrot.lane.b32.xlu0 %v4908, 78
      %v4914 = vpop.permute.xlu0 %4913
      %4917 = vst.msk [vmem:[#allocation2] sm:$0xff] %vm1107, %v4912
      %4918 = vst.msk [vmem:[#allocation2 + $0x8] sm:$0xff] %vm1107, %v4914
      %4919 = vrot.lane.b32.xlu0 %v4907, 68
      %v4920 = vpop.permute.xlu0 %4919
      %4921 = vrot.lane.b32.xlu0 %v4908, 68
      %v4922 = vpop.permute.xlu0 %4921
      %v4923 = vsel %vm811, %v4920, 0
      %v4925 = vsel %vm811, %v4922, 0
      %4927 = vmatprep.subr.mxu0 0.0
      %4928 = vmatpush1.msra.mxu0 0.0
      %4929 = vmatprep.subr.mxu0 0.0
      %4930 = vmatpush1.msra.mxu0 0.0
      %4931 = vmatprep.subr.mxu0 0.0
      %4932 = vmatpush1.msra.mxu0 0.0
      %4933 = vmatprep.subr.mxu0 0.0
      %4934 = vmatpush1.msra.mxu0 0.0
      %4935 = vmatprep.subr.mxu0 0.0
      %4936 = vmatpush1.msra.mxu0 0.0
      %4937 = vmatprep.subr.mxu0 0.0
      %4938 = vmatpush1.msra.mxu0 0.0
      %4939 = vmatprep.subr.mxu0 0.0
      %4940 = vmatpush1.msra.mxu0 0.0
      %4941 = vmatprep.subr.mxu0 0.0
      %4942 = vmatpush1.msra.mxu0 0.0
      %4943 = vmatprep.subr.mxu0 0.0
      %4944 = vmatpush1.msra.mxu0 0.0
      %4945 = vmatprep.subr.mxu0 0.0
      %4946 = vmatpush1.msra.mxu0 0.0
      %4947 = vmatprep.subr.mxu0 0.0
      %4948 = vmatpush1.msra.mxu0 0.0
      %4949 = vmatprep.subr.mxu0 0.0
      %4950 = vmatpush1.msra.mxu0 0.0
      %4951 = vmatprep.subr.mxu0 0.0
      %4952 = vmatpush1.msra.mxu0 0.0
      %4953 = vmatprep.subr.mxu0 0.0
      %4954 = vmatpush1.msra.mxu0 0.0
      %4955 = vmatprep.subr.mxu0 0.0
      %4956 = vmatpush1.msra.mxu0 %v4627
      %4957 = vmatprep.subr.mxu0 0.0
      %4958 = vmatpush1.msra.mxu0 %v4624
      %4959 = vmatprep.subr.mxu0 0.0
      %4960 = vmatpush2.msra.mxu0 0.0
      %4961 = vmatprep.subr.mxu0 0.0
      %4962 = vmatpush2.msra.mxu0 0.0
      %4963 = vmatprep.subr.mxu0 0.0
      %4964 = vmatpush2.msra.mxu0 0.0
      %4965 = vmatprep.subr.mxu0 0.0
      %4966 = vmatpush2.msra.mxu0 0.0
      %4967 = vmatprep.subr.mxu0 0.0
      %4968 = vmatpush2.msra.mxu0 0.0
      %4969 = vmatprep.subr.mxu0 0.0
      %4970 = vmatpush2.msra.mxu0 0.0
      %4971 = vmatprep.subr.mxu0 0.0
      %4972 = vmatpush2.msra.mxu0 0.0
      %4973 = vmatprep.subr.mxu0 0.0
      %4974 = vmatpush2.msra.mxu0 0.0
      %4975 = vmatprep.subr.mxu0 0.0
      %4976 = vmatpush2.msra.mxu0 0.0
      %4977 = vmatprep.subr.mxu0 0.0
      %4978 = vmatpush2.msra.mxu0 0.0
      %4979 = vmatprep.subr.mxu0 0.0
      %4980 = vmatpush2.msra.mxu0 0.0
      %4981 = vmatprep.subr.mxu0 0.0
      %4982 = vmatpush2.msra.mxu0 0.0
      %4983 = vmatprep.subr.mxu0 0.0
      %4984 = vmatpush2.msra.mxu0 0.0
      %4985 = vmatprep.subr.mxu0 0.0
      %4986 = vmatpush2.msra.mxu0 0.0
      %4987 = vmatprep.subr.mxu0 0.0
      %4988 = vmatpush2.msra.mxu0 0.0
      %4989 = vmatprep.subr.mxu0 0.0
      %4990 = vmatpush2.msra.mxu0 0.0
      %4991 = vmatprep.mubr.f32.mxu0 0.0
      %4992 = vmatmul.mubr.f32.gmra.mxu0 %v4923
      %v4993 = vpop.f32.mrf.mxu0
      %v4994 = vadd.f32 0.0, %v4993
      %v4995 = vpop.f32.mrf.mxu0
      %4996 = vmatprep.mubr.f32.mxu0 0.0
      %4997 = vmatmul.mubr.f32.gmra.mxu0 %v4925
      %v4998 = vpop.f32.mrf.mxu0
      %v4999 = vadd.f32 0.0, %v4998
      %v5000 = vpop.f32.mrf.mxu0
      %5001 = vdwg.mxu0
      %5004 = vrot.lane.b32.xlu0 %v4994, 80
      %v5005 = vpop.permute.xlu0 %5004
      %5006 = vrot.lane.b32.xlu0 %v4999, 80
      %v5007 = vpop.permute.xlu0 %5006
      %v5010 = vadd.f32 %v4537, %v5005
      %v5011 = vadd.f32 %v4543, %v5007
      %v5012 = vxor.u32 %v5010, 2147483648
      %v5013 = vxor.u32 %v5011, 2147483648
      %v5014 = vmul.f32 %v5012, 1.442695
      %v5015 = vpow.pop %v5014
      %v5016 = vmul.f32 %v5013, 1.442695
      %v5017 = vpow.pop %v5016
      %v5018 = vadd.f32 %v5015, 1.0
      %v5019 = vadd.f32 %v5017, 1.0
      %v5020 = vrcp.pop %v5018
      %v5021 = vmul.f32 1.0, %v5020
      %v5022 = vrcp.pop %v5019
      %v5023 = vmul.f32 1.0, %v5022
      %v5024 = vtanh.pop %v5010
      %v5025 = vtanh.pop %v5011
      %5028 = vrot.lane.b32.xlu0 %v4895, 40
      %v5029 = vpop.permute.xlu0 %5028
      %5030 = vrot.lane.b32.xlu0 %v4896, 40
      %v5031 = vpop.permute.xlu0 %5030
      %v5034 = vmul.f32 %v5021, %v5029
      %v5035 = vmul.f32 %v5023, %v5031
      %5038 = vrot.lane.b32.xlu0 %v5024, 98
      %v5039 = vpop.permute.xlu0 %5038
      %5040 = vrot.lane.b32.xlu0 %v5025, 98
      %v5041 = vpop.permute.xlu0 %5040
      %v5044 = vmul.f32 %v5021, %v5039
      %v5045 = vmul.f32 %v5023, %v5041
      %5048 = vrot.lane.b32.xlu0 %v5044, 10
      %v5049 = vpop.permute.xlu0 %5048
      %5050 = vrot.lane.b32.xlu0 %v5045, 10
      %v5051 = vpop.permute.xlu0 %5050
      %v5054 = vadd.f32 %v5034, %v5049
      %v5055 = vadd.f32 %v5035, %v5051
      %v5056 = vtanh.pop %v5054
      %v5057 = vtanh.pop %v5055
      %5060 = vrot.lane.b32.xlu0 %v5056, 10
      %v5061 = vpop.permute.xlu0 %5060
      %5062 = vrot.lane.b32.xlu0 %v5057, 10
      %v5063 = vpop.permute.xlu0 %5062
      %v5066 = vmul.f32 %v5021, %v5061
      %v5067 = vmul.f32 %v5023, %v5063
      %5070 = vrot.lane.b32.xlu0 %v5066, 48
      %v5071 = vpop.permute.xlu0 %5070
      %5072 = vrot.lane.b32.xlu0 %v5067, 48
      %v5073 = vpop.permute.xlu0 %5072
      %5076 = vst.msk [vmem:[#allocation2] sm:$0xff] %vm1267, %v5071
      %5077 = vst.msk [vmem:[#allocation2 + $0x8] sm:$0xff] %vm1267, %v5073
      %5078 = vrot.lane.b32.xlu0 %v5066, 28
      %v5079 = vpop.permute.xlu0 %5078
      %5080 = vrot.lane.b32.xlu0 %v5067, 28
      %v5081 = vpop.permute.xlu0 %5080
      %v5082 = vsel %vm811, %v5079, 0
      %v5084 = vsel %vm811, %v5081, 0
      %5086 = vmatprep.subr.mxu0 0.0
      %5087 = vmatpush1.msra.mxu0 0.0
      %5088 = vmatprep.subr.mxu0 0.0
      %5089 = vmatpush1.msra.mxu0 0.0
      %5090 = vmatprep.subr.mxu0 0.0
      %5091 = vmatpush1.msra.mxu0 0.0
      %5092 = vmatprep.subr.mxu0 0.0
      %5093 = vmatpush1.msra.mxu0 0.0
      %5094 = vmatprep.subr.mxu0 0.0
      %5095 = vmatpush1.msra.mxu0 0.0
      %5096 = vmatprep.subr.mxu0 0.0
      %5097 = vmatpush1.msra.mxu0 0.0
      %5098 = vmatprep.subr.mxu0 0.0
      %5099 = vmatpush1.msra.mxu0 0.0
      %5100 = vmatprep.subr.mxu0 0.0
      %5101 = vmatpush1.msra.mxu0 0.0
      %5102 = vmatprep.subr.mxu0 0.0
      %5103 = vmatpush1.msra.mxu0 0.0
      %5104 = vmatprep.subr.mxu0 0.0
      %5105 = vmatpush1.msra.mxu0 0.0
      %5106 = vmatprep.subr.mxu0 0.0
      %5107 = vmatpush1.msra.mxu0 0.0
      %5108 = vmatprep.subr.mxu0 0.0
      %5109 = vmatpush1.msra.mxu0 0.0
      %5110 = vmatprep.subr.mxu0 0.0
      %5111 = vmatpush1.msra.mxu0 0.0
      %5112 = vmatprep.subr.mxu0 0.0
      %5113 = vmatpush1.msra.mxu0 0.0
      %5114 = vmatprep.subr.mxu0 0.0
      %5115 = vmatpush1.msra.mxu0 %v4627
      %5116 = vmatprep.subr.mxu0 0.0
      %5117 = vmatpush1.msra.mxu0 %v4624
      %5118 = vmatprep.subr.mxu0 0.0
      %5119 = vmatpush2.msra.mxu0 0.0
      %5120 = vmatprep.subr.mxu0 0.0
      %5121 = vmatpush2.msra.mxu0 0.0
      %5122 = vmatprep.subr.mxu0 0.0
      %5123 = vmatpush2.msra.mxu0 0.0
      %5124 = vmatprep.subr.mxu0 0.0
      %5125 = vmatpush2.msra.mxu0 0.0
      %5126 = vmatprep.subr.mxu0 0.0
      %5127 = vmatpush2.msra.mxu0 0.0
      %5128 = vmatprep.subr.mxu0 0.0
      %5129 = vmatpush2.msra.mxu0 0.0
      %5130 = vmatprep.subr.mxu0 0.0
      %5131 = vmatpush2.msra.mxu0 0.0
      %5132 = vmatprep.subr.mxu0 0.0
      %5133 = vmatpush2.msra.mxu0 0.0
      %5134 = vmatprep.subr.mxu0 0.0
      %5135 = vmatpush2.msra.mxu0 0.0
      %5136 = vmatprep.subr.mxu0 0.0
      %5137 = vmatpush2.msra.mxu0 0.0
      %5138 = vmatprep.subr.mxu0 0.0
      %5139 = vmatpush2.msra.mxu0 0.0
      %5140 = vmatprep.subr.mxu0 0.0
      %5141 = vmatpush2.msra.mxu0 0.0
      %5142 = vmatprep.subr.mxu0 0.0
      %5143 = vmatpush2.msra.mxu0 0.0
      %5144 = vmatprep.subr.mxu0 0.0
      %5145 = vmatpush2.msra.mxu0 0.0
      %5146 = vmatprep.subr.mxu0 0.0
      %5147 = vmatpush2.msra.mxu0 0.0
      %5148 = vmatprep.subr.mxu0 0.0
      %5149 = vmatpush2.msra.mxu0 0.0
      %5150 = vmatprep.mubr.f32.mxu0 0.0
      %5151 = vmatmul.mubr.f32.gmra.mxu0 %v5082
      %v5152 = vpop.f32.mrf.mxu0
      %v5153 = vadd.f32 0.0, %v5152
      %v5154 = vpop.f32.mrf.mxu0
      %5155 = vmatprep.mubr.f32.mxu0 0.0
      %5156 = vmatmul.mubr.f32.gmra.mxu0 %v5084
      %v5157 = vpop.f32.mrf.mxu0
      %v5158 = vadd.f32 0.0, %v5157
      %v5159 = vpop.f32.mrf.mxu0
      %5160 = vdwg.mxu0
      %5163 = vrot.lane.b32.xlu0 %v5153, 120
      %v5164 = vpop.permute.xlu0 %5163
      %5165 = vrot.lane.b32.xlu0 %v5158, 120
      %v5166 = vpop.permute.xlu0 %5165
      %v5169 = vadd.f32 %v4537, %v5164
      %v5170 = vadd.f32 %v4539, %v5164
      %v5171 = vadd.f32 %v4543, %v5166
      %v5172 = vadd.f32 %v4545, %v5166
      %v5173 = vxor.u32 %v5169, 2147483648
      %v5174 = vxor.u32 %v5170, 2147483648
      %v5175 = vxor.u32 %v5171, 2147483648
      %v5176 = vxor.u32 %v5172, 2147483648
      %v5177 = vmul.f32 %v5173, 1.442695
      %v5178 = vpow.pop %v5177
      %v5179 = vmul.f32 %v5174, 1.442695
      %v5180 = vpow.pop %v5179
      %v5181 = vmul.f32 %v5175, 1.442695
      %v5182 = vpow.pop %v5181
      %v5183 = vmul.f32 %v5176, 1.442695
      %v5184 = vpow.pop %v5183
      %v5185 = vadd.f32 %v5178, 1.0
      %v5186 = vadd.f32 %v5180, 1.0
      %v5187 = vadd.f32 %v5182, 1.0
      %v5188 = vadd.f32 %v5184, 1.0
      %v5189 = vrcp.pop %v5185
      %v5190 = vmul.f32 1.0, %v5189
      %v5191 = vrcp.pop %v5186
      %v5192 = vmul.f32 1.0, %v5191
      %v5193 = vrcp.pop %v5187
      %v5194 = vmul.f32 1.0, %v5193
      %v5195 = vrcp.pop %v5188
      %v5196 = vmul.f32 1.0, %v5195
      %v5197 = vtanh.pop %v5170
      %v5198 = vtanh.pop %v5172
      %5201 = vrot.lane.b32.xlu0 %v5054, 40
      %v5202 = vpop.permute.xlu0 %5201
      %5203 = vrot.lane.b32.xlu0 %v5055, 40
      %v5204 = vpop.permute.xlu0 %5203
      %v5207 = vmul.f32 %v5192, %v5202
      %v5208 = vmul.f32 %v5196, %v5204
      %5211 = vrot.lane.b32.xlu0 %v5197, 98
      %v5212 = vpop.permute.xlu0 %5211
      %5213 = vrot.lane.b32.xlu0 %v5198, 98
      %v5214 = vpop.permute.xlu0 %5213
      %v5217 = vmul.f32 %v5190, %v5212
      %v5218 = vmul.f32 %v5192, %v5212
      %v5219 = vmul.f32 %v5194, %v5214
      %v5220 = vmul.f32 %v5196, %v5214
      %5225 = vrot.lane.b32.xlu0 %v5217, 10
      %v5226 = vpop.permute.xlu0 %5225
      %5227 = vrot.lane.b32.xlu0 %v5218, 10
      %v5228 = vpop.permute.xlu0 %5227
      %5229 = vrot.lane.b32.xlu0 %v5219, 10
      %v5230 = vpop.permute.xlu0 %5229
      %5231 = vrot.lane.b32.xlu0 %v5220, 10
      %v5232 = vpop.permute.xlu0 %5231
      %v5233 = vsel %vm811, %v5226, %v5228
      %v5234 = vsel %vm811, %v5230, %v5232
      %v5237 = vadd.f32 %v5207, %v5233
      %v5238 = vadd.f32 %v5208, %v5234
      %v5239 = vtanh.pop %v5237
      %v5240 = vtanh.pop %v5238
      %5243 = vrot.lane.b32.xlu0 %v5239, 10
      %v5244 = vpop.permute.xlu0 %5243
      %5245 = vrot.lane.b32.xlu0 %v5240, 10
      %v5246 = vpop.permute.xlu0 %5245
      %v5249 = vmul.f32 %v5192, %v5244
      %v5250 = vmul.f32 %v5196, %v5246
      %5253 = vrot.lane.b32.xlu0 %v5249, 18
      %v5254 = vpop.permute.xlu0 %5253
      %5255 = vrot.lane.b32.xlu0 %v5250, 18
      %v5256 = vpop.permute.xlu0 %5255
      %5259 = vst.msk [vmem:[#allocation2] sm:$0xff] %vm1451, %v5254
      %5260 = vst.msk [vmem:[#allocation2 + $0x8] sm:$0xff] %vm1451, %v5256
      %5261 = vrot.lane.b32.xlu0 %v5249, 116
      %v5262 = vpop.permute.xlu0 %5261
      %5263 = vrot.lane.b32.xlu0 %v5250, 116
      %v5264 = vpop.permute.xlu0 %5263
      %v5265 = vsel %vm811, %v5262, 0
      %v5267 = vsel %vm811, %v5264, 0
      %5269 = vmatprep.subr.mxu0 0.0
      %5270 = vmatpush1.msra.mxu0 0.0
      %5271 = vmatprep.subr.mxu0 0.0
      %5272 = vmatpush1.msra.mxu0 0.0
      %5273 = vmatprep.subr.mxu0 0.0
      %5274 = vmatpush1.msra.mxu0 0.0
      %5275 = vmatprep.subr.mxu0 0.0
      %5276 = vmatpush1.msra.mxu0 0.0
      %5277 = vmatprep.subr.mxu0 0.0
      %5278 = vmatpush1.msra.mxu0 0.0
      %5279 = vmatprep.subr.mxu0 0.0
      %5280 = vmatpush1.msra.mxu0 0.0
      %5281 = vmatprep.subr.mxu0 0.0
      %5282 = vmatpush1.msra.mxu0 0.0
      %5283 = vmatprep.subr.mxu0 0.0
      %5284 = vmatpush1.msra.mxu0 0.0
      %5285 = vmatprep.subr.mxu0 0.0
      %5286 = vmatpush1.msra.mxu0 0.0
      %5287 = vmatprep.subr.mxu0 0.0
      %5288 = vmatpush1.msra.mxu0 0.0
      %5289 = vmatprep.subr.mxu0 0.0
      %5290 = vmatpush1.msra.mxu0 0.0
      %5291 = vmatprep.subr.mxu0 0.0
      %5292 = vmatpush1.msra.mxu0 0.0
      %5293 = vmatprep.subr.mxu0 0.0
      %5294 = vmatpush1.msra.mxu0 0.0
      %5295 = vmatprep.subr.mxu0 0.0
      %5296 = vmatpush1.msra.mxu0 0.0
      %5297 = vmatprep.subr.mxu0 0.0
      %5298 = vmatpush1.msra.mxu0 %v4627
      %5299 = vmatprep.subr.mxu0 0.0
      %5300 = vmatpush1.msra.mxu0 %v4624
      %5301 = vmatprep.subr.mxu0 0.0
      %5302 = vmatpush2.msra.mxu0 0.0
      %5303 = vmatprep.subr.mxu0 0.0
      %5304 = vmatpush2.msra.mxu0 0.0
      %5305 = vmatprep.subr.mxu0 0.0
      %5306 = vmatpush2.msra.mxu0 0.0
      %5307 = vmatprep.subr.mxu0 0.0
      %5308 = vmatpush2.msra.mxu0 0.0
      %5309 = vmatprep.subr.mxu0 0.0
      %5310 = vmatpush2.msra.mxu0 0.0
      %5311 = vmatprep.subr.mxu0 0.0
      %5312 = vmatpush2.msra.mxu0 0.0
      %5313 = vmatprep.subr.mxu0 0.0
      %5314 = vmatpush2.msra.mxu0 0.0
      %5315 = vmatprep.subr.mxu0 0.0
      %5316 = vmatpush2.msra.mxu0 0.0
      %5317 = vmatprep.subr.mxu0 0.0
      %5318 = vmatpush2.msra.mxu0 0.0
      %5319 = vmatprep.subr.mxu0 0.0
      %5320 = vmatpush2.msra.mxu0 0.0
      %5321 = vmatprep.subr.mxu0 0.0
      %5322 = vmatpush2.msra.mxu0 0.0
      %5323 = vmatprep.subr.mxu0 0.0
      %5324 = vmatpush2.msra.mxu0 0.0
      %5325 = vmatprep.subr.mxu0 0.0
      %5326 = vmatpush2.msra.mxu0 0.0
      %5327 = vmatprep.subr.mxu0 0.0
      %5328 = vmatpush2.msra.mxu0 0.0
      %5329 = vmatprep.subr.mxu0 0.0
      %5330 = vmatpush2.msra.mxu0 0.0
      %5331 = vmatprep.subr.mxu0 0.0
      %5332 = vmatpush2.msra.mxu0 0.0
      %5333 = vmatprep.mubr.f32.mxu0 0.0
      %5334 = vmatmul.mubr.f32.gmra.mxu0 %v5265
      %v5335 = vpop.f32.mrf.mxu0
      %v5336 = vadd.f32 0.0, %v5335
      %v5337 = vpop.f32.mrf.mxu0
      %5338 = vmatprep.mubr.f32.mxu0 0.0
      %5339 = vmatmul.mubr.f32.gmra.mxu0 %v5267
      %v5340 = vpop.f32.mrf.mxu0
      %v5341 = vadd.f32 0.0, %v5340
      %v5342 = vpop.f32.mrf.mxu0
      %5343 = vdwg.mxu0
      %5346 = vrot.lane.b32.xlu0 %v5336, 32
      %v5347 = vpop.permute.xlu0 %5346
      %5348 = vrot.lane.b32.xlu0 %v5341, 32
      %v5349 = vpop.permute.xlu0 %5348
      %v5352 = vadd.f32 %v4539, %v5347
      %v5353 = vadd.f32 %v4545, %v5349
      %v5354 = vxor.u32 %v5352, 2147483648
      %v5355 = vxor.u32 %v5353, 2147483648
      %v5356 = vmul.f32 %v5354, 1.442695
      %v5357 = vpow.pop %v5356
      %v5358 = vmul.f32 %v5355, 1.442695
      %v5359 = vpow.pop %v5358
      %v5360 = vadd.f32 %v5357, 1.0
      %v5361 = vadd.f32 %v5359, 1.0
      %v5362 = vrcp.pop %v5360
      %v5363 = vmul.f32 1.0, %v5362
      %v5364 = vrcp.pop %v5361
      %v5365 = vmul.f32 1.0, %v5364
      %v5366 = vtanh.pop %v5352
      %v5367 = vtanh.pop %v5353
      %5370 = vrot.lane.b32.xlu0 %v5237, 40
      %v5371 = vpop.permute.xlu0 %5370
      %5372 = vrot.lane.b32.xlu0 %v5238, 40
      %v5373 = vpop.permute.xlu0 %5372
      %v5376 = vmul.f32 %v5363, %v5371
      %v5377 = vmul.f32 %v5365, %v5373
      %5380 = vrot.lane.b32.xlu0 %v5366, 98
      %v5381 = vpop.permute.xlu0 %5380
      %5382 = vrot.lane.b32.xlu0 %v5367, 98
      %v5383 = vpop.permute.xlu0 %5382
      %v5386 = vmul.f32 %v5363, %v5381
      %v5387 = vmul.f32 %v5365, %v5383
      %5390 = vrot.lane.b32.xlu0 %v5386, 10
      %v5391 = vpop.permute.xlu0 %5390
      %5392 = vrot.lane.b32.xlu0 %v5387, 10
      %v5393 = vpop.permute.xlu0 %5392
      %v5396 = vadd.f32 %v5376, %v5391
      %v5397 = vadd.f32 %v5377, %v5393
      %v5398 = vtanh.pop %v5396
      %v5399 = vtanh.pop %v5397
      %5402 = vrot.lane.b32.xlu0 %v5398, 10
      %v5403 = vpop.permute.xlu0 %5402
      %5404 = vrot.lane.b32.xlu0 %v5399, 10
      %v5405 = vpop.permute.xlu0 %5404
      %v5408 = vmul.f32 %v5363, %v5403
      %v5409 = vmul.f32 %v5365, %v5405
      %5412 = vrot.lane.b32.xlu0 %v5408, 116
      %v5413 = vpop.permute.xlu0 %5412
      %5414 = vrot.lane.b32.xlu0 %v5409, 116
      %v5415 = vpop.permute.xlu0 %5414
      %5418 = vst.msk [vmem:[#allocation2] sm:$0xff] %vm1611, %v5413
      %5419 = vst.msk [vmem:[#allocation2 + $0x8] sm:$0xff] %vm1611, %v5415
      %5420 = vrot.lane.b32.xlu0 %v5408, 76
      %v5421 = vpop.permute.xlu0 %5420
      %5422 = vrot.lane.b32.xlu0 %v5409, 76
      %v5423 = vpop.permute.xlu0 %5422
      %v5424 = vsel %vm811, %v5421, 0
      %v5426 = vsel %vm811, %v5423, 0
      %5428 = vmatprep.subr.mxu0 0.0
      %5429 = vmatpush1.msra.mxu0 0.0
      %5430 = vmatprep.subr.mxu0 0.0
      %5431 = vmatpush1.msra.mxu0 0.0
      %5432 = vmatprep.subr.mxu0 0.0
      %5433 = vmatpush1.msra.mxu0 0.0
      %5434 = vmatprep.subr.mxu0 0.0
      %5435 = vmatpush1.msra.mxu0 0.0
      %5436 = vmatprep.subr.mxu0 0.0
      %5437 = vmatpush1.msra.mxu0 0.0
      %5438 = vmatprep.subr.mxu0 0.0
      %5439 = vmatpush1.msra.mxu0 0.0
      %5440 = vmatprep.subr.mxu0 0.0
      %5441 = vmatpush1.msra.mxu0 0.0
      %5442 = vmatprep.subr.mxu0 0.0
      %5443 = vmatpush1.msra.mxu0 0.0
      %5444 = vmatprep.subr.mxu0 0.0
      %5445 = vmatpush1.msra.mxu0 0.0
      %5446 = vmatprep.subr.mxu0 0.0
      %5447 = vmatpush1.msra.mxu0 0.0
      %5448 = vmatprep.subr.mxu0 0.0
      %5449 = vmatpush1.msra.mxu0 0.0
      %5450 = vmatprep.subr.mxu0 0.0
      %5451 = vmatpush1.msra.mxu0 0.0
      %5452 = vmatprep.subr.mxu0 0.0
      %5453 = vmatpush1.msra.mxu0 0.0
      %5454 = vmatprep.subr.mxu0 0.0
      %5455 = vmatpush1.msra.mxu0 0.0
      %5456 = vmatprep.subr.mxu0 0.0
      %5457 = vmatpush1.msra.mxu0 %v4627
      %5458 = vmatprep.subr.mxu0 0.0
      %5459 = vmatpush1.msra.mxu0 %v4624
      %5460 = vmatprep.subr.mxu0 0.0
      %5461 = vmatpush2.msra.mxu0 0.0
      %5462 = vmatprep.subr.mxu0 0.0
      %5463 = vmatpush2.msra.mxu0 0.0
      %5464 = vmatprep.subr.mxu0 0.0
      %5465 = vmatpush2.msra.mxu0 0.0
      %5466 = vmatprep.subr.mxu0 0.0
      %5467 = vmatpush2.msra.mxu0 0.0
      %5468 = vmatprep.subr.mxu0 0.0
      %5469 = vmatpush2.msra.mxu0 0.0
      %5470 = vmatprep.subr.mxu0 0.0
      %5471 = vmatpush2.msra.mxu0 0.0
      %5472 = vmatprep.subr.mxu0 0.0
      %5473 = vmatpush2.msra.mxu0 0.0
      %5474 = vmatprep.subr.mxu0 0.0
      %5475 = vmatpush2.msra.mxu0 0.0
      %5476 = vmatprep.subr.mxu0 0.0
      %5477 = vmatpush2.msra.mxu0 0.0
      %5478 = vmatprep.subr.mxu0 0.0
      %5479 = vmatpush2.msra.mxu0 0.0
      %5480 = vmatprep.subr.mxu0 0.0
      %5481 = vmatpush2.msra.mxu0 0.0
      %5482 = vmatprep.subr.mxu0 0.0
      %5483 = vmatpush2.msra.mxu0 0.0
      %5484 = vmatprep.subr.mxu0 0.0
      %5485 = vmatpush2.msra.mxu0 0.0
      %5486 = vmatprep.subr.mxu0 0.0
      %5487 = vmatpush2.msra.mxu0 0.0
      %5488 = vmatprep.subr.mxu0 0.0
      %5489 = vmatpush2.msra.mxu0 0.0
      %5490 = vmatprep.subr.mxu0 0.0
      %5491 = vmatpush2.msra.mxu0 0.0
      %5492 = vmatprep.mubr.f32.mxu0 0.0
      %5493 = vmatmul.mubr.f32.gmra.mxu0 %v5424
      %v5494 = vpop.f32.mrf.mxu0
      %v5495 = vadd.f32 0.0, %v5494
      %v5496 = vpop.f32.mrf.mxu0
      %5497 = vmatprep.mubr.f32.mxu0 0.0
      %5498 = vmatmul.mubr.f32.gmra.mxu0 %v5426
      %v5499 = vpop.f32.mrf.mxu0
      %v5500 = vadd.f32 0.0, %v5499
      %v5501 = vpop.f32.mrf.mxu0
      %5502 = vdwg.mxu0
      %5505 = vrot.lane.b32.xlu0 %v5495, 72
      %v5506 = vpop.permute.xlu0 %5505
      %5507 = vrot.lane.b32.xlu0 %v5500, 72
      %v5508 = vpop.permute.xlu0 %5507
      %v5511 = vadd.f32 %v4539, %v5506
      %v5512 = vadd.f32 %v4545, %v5508
      %v5513 = vxor.u32 %v5511, 2147483648
      %v5514 = vxor.u32 %v5512, 2147483648
      %v5515 = vmul.f32 %v5513, 1.442695
      %v5516 = vpow.pop %v5515
      %v5517 = vmul.f32 %v5514, 1.442695
      %v5518 = vpow.pop %v5517
      %v5519 = vadd.f32 %v5516, 1.0
      %v5520 = vadd.f32 %v5518, 1.0
      %v5521 = vrcp.pop %v5519
      %v5522 = vmul.f32 1.0, %v5521
      %v5523 = vrcp.pop %v5520
      %v5524 = vmul.f32 1.0, %v5523
      %v5525 = vtanh.pop %v5511
      %v5526 = vtanh.pop %v5512
      %5529 = vrot.lane.b32.xlu0 %v5396, 40
      %v5530 = vpop.permute.xlu0 %5529
      %5531 = vrot.lane.b32.xlu0 %v5397, 40
      %v5532 = vpop.permute.xlu0 %5531
      %v5535 = vmul.f32 %v5522, %v5530
      %v5536 = vmul.f32 %v5524, %v5532
      %5539 = vrot.lane.b32.xlu0 %v5525, 98
      %v5540 = vpop.permute.xlu0 %5539
      %5541 = vrot.lane.b32.xlu0 %v5526, 98
      %v5542 = vpop.permute.xlu0 %5541
      %v5545 = vmul.f32 %v5522, %v5540
      %v5546 = vmul.f32 %v5524, %v5542
      %5549 = vrot.lane.b32.xlu0 %v5545, 10
      %v5550 = vpop.permute.xlu0 %5549
      %5551 = vrot.lane.b32.xlu0 %v5546, 10
      %v5552 = vpop.permute.xlu0 %5551
      %v5555 = vadd.f32 %v5535, %v5550
      %v5556 = vadd.f32 %v5536, %v5552
      %v5557 = vtanh.pop %v5555
      %v5558 = vtanh.pop %v5556
      %5561 = vrot.lane.b32.xlu0 %v5557, 10
      %v5562 = vpop.permute.xlu0 %5561
      %5563 = vrot.lane.b32.xlu0 %v5558, 10
      %v5564 = vpop.permute.xlu0 %5563
      %v5567 = vmul.f32 %v5522, %v5562
      %v5568 = vmul.f32 %v5524, %v5564
      %5571 = vrot.lane.b32.xlu0 %v5567, 86
      %v5572 = vpop.permute.xlu0 %5571
      %5573 = vrot.lane.b32.xlu0 %v5568, 86
      %v5574 = vpop.permute.xlu0 %5573
      %5577 = vst.msk [vmem:[#allocation2] sm:$0xff] %vm1771, %v5572
      %5578 = vst.msk [vmem:[#allocation2 + $0x8] sm:$0xff] %vm1771, %v5574
      %5579 = vrot.lane.b32.xlu0 %v5567, 36
      %v5580 = vpop.permute.xlu0 %5579
      %5581 = vrot.lane.b32.xlu0 %v5568, 36
      %v5582 = vpop.permute.xlu0 %5581
      %v5583 = vsel %vm811, %v5580, 0
      %v5585 = vsel %vm811, %v5582, 0
      %5587 = vmatprep.subr.mxu0 0.0
      %5588 = vmatpush1.msra.mxu0 0.0
      %5589 = vmatprep.subr.mxu0 0.0
      %5590 = vmatpush1.msra.mxu0 0.0
      %5591 = vmatprep.subr.mxu0 0.0
      %5592 = vmatpush1.msra.mxu0 0.0
      %5593 = vmatprep.subr.mxu0 0.0
      %5594 = vmatpush1.msra.mxu0 0.0
      %5595 = vmatprep.subr.mxu0 0.0
      %5596 = vmatpush1.msra.mxu0 0.0
      %5597 = vmatprep.subr.mxu0 0.0
      %5598 = vmatpush1.msra.mxu0 0.0
      %5599 = vmatprep.subr.mxu0 0.0
      %5600 = vmatpush1.msra.mxu0 0.0
      %5601 = vmatprep.subr.mxu0 0.0
      %5602 = vmatpush1.msra.mxu0 0.0
      %5603 = vmatprep.subr.mxu0 0.0
      %5604 = vmatpush1.msra.mxu0 0.0
      %5605 = vmatprep.subr.mxu0 0.0
      %5606 = vmatpush1.msra.mxu0 0.0
      %5607 = vmatprep.subr.mxu0 0.0
      %5608 = vmatpush1.msra.mxu0 0.0
      %5609 = vmatprep.subr.mxu0 0.0
      %5610 = vmatpush1.msra.mxu0 0.0
      %5611 = vmatprep.subr.mxu0 0.0
      %5612 = vmatpush1.msra.mxu0 0.0
      %5613 = vmatprep.subr.mxu0 0.0
      %5614 = vmatpush1.msra.mxu0 0.0
      %5615 = vmatprep.subr.mxu0 0.0
      %5616 = vmatpush1.msra.mxu0 %v4627
      %5617 = vmatprep.subr.mxu0 0.0
      %5618 = vmatpush1.msra.mxu0 %v4624
      %5619 = vmatprep.subr.mxu0 0.0
      %5620 = vmatpush2.msra.mxu0 0.0
      %5621 = vmatprep.subr.mxu0 0.0
      %5622 = vmatpush2.msra.mxu0 0.0
      %5623 = vmatprep.subr.mxu0 0.0
      %5624 = vmatpush2.msra.mxu0 0.0
      %5625 = vmatprep.subr.mxu0 0.0
      %5626 = vmatpush2.msra.mxu0 0.0
      %5627 = vmatprep.subr.mxu0 0.0
      %5628 = vmatpush2.msra.mxu0 0.0
      %5629 = vmatprep.subr.mxu0 0.0
      %5630 = vmatpush2.msra.mxu0 0.0
      %5631 = vmatprep.subr.mxu0 0.0
      %5632 = vmatpush2.msra.mxu0 0.0
      %5633 = vmatprep.subr.mxu0 0.0
      %5634 = vmatpush2.msra.mxu0 0.0
      %5635 = vmatprep.subr.mxu0 0.0
      %5636 = vmatpush2.msra.mxu0 0.0
      %5637 = vmatprep.subr.mxu0 0.0
      %5638 = vmatpush2.msra.mxu0 0.0
      %5639 = vmatprep.subr.mxu0 0.0
      %5640 = vmatpush2.msra.mxu0 0.0
      %5641 = vmatprep.subr.mxu0 0.0
      %5642 = vmatpush2.msra.mxu0 0.0
      %5643 = vmatprep.subr.mxu0 0.0
      %5644 = vmatpush2.msra.mxu0 0.0
      %5645 = vmatprep.subr.mxu0 0.0
      %5646 = vmatpush2.msra.mxu0 0.0
      %5647 = vmatprep.subr.mxu0 0.0
      %5648 = vmatpush2.msra.mxu0 0.0
      %5649 = vmatprep.subr.mxu0 0.0
      %5650 = vmatpush2.msra.mxu0 0.0
      %5651 = vmatprep.mubr.f32.mxu0 0.0
      %5652 = vmatmul.mubr.f32.gmra.mxu0 %v5583
      %v5653 = vpop.f32.mrf.mxu0
      %v5654 = vadd.f32 0.0, %v5653
      %v5655 = vpop.f32.mrf.mxu0
      %5656 = vmatprep.mubr.f32.mxu0 0.0
      %5657 = vmatmul.mubr.f32.gmra.mxu0 %v5585
      %v5658 = vpop.f32.mrf.mxu0
      %v5659 = vadd.f32 0.0, %v5658
      %v5660 = vpop.f32.mrf.mxu0
      %5661 = vdwg.mxu0
      %5664 = vrot.lane.b32.xlu0 %v5654, 112
      %v5665 = vpop.permute.xlu0 %5664
      %5666 = vrot.lane.b32.xlu0 %v5659, 112
      %v5667 = vpop.permute.xlu0 %5666
      %v5670 = vadd.f32 %v4539, %v5665
      %v5671 = vadd.f32 %v4614, %v5665
      %v5672 = vadd.f32 %v4545, %v5667
      %v5673 = vadd.f32 %v4620, %v5667
      %v5674 = vxor.u32 %v5670, 2147483648
      %v5675 = vxor.u32 %v5671, 2147483648
      %v5676 = vxor.u32 %v5672, 2147483648
      %v5677 = vxor.u32 %v5673, 2147483648
      %v5678 = vmul.f32 %v5674, 1.442695
      %v5679 = vpow.pop %v5678
      %v5680 = vmul.f32 %v5675, 1.442695
      %v5681 = vpow.pop %v5680
      %v5682 = vmul.f32 %v5676, 1.442695
      %v5683 = vpow.pop %v5682
      %v5684 = vmul.f32 %v5677, 1.442695
      %v5685 = vpow.pop %v5684
      %v5686 = vadd.f32 %v5679, 1.0
      %v5687 = vadd.f32 %v5681, 1.0
      %v5688 = vadd.f32 %v5683, 1.0
      %v5689 = vadd.f32 %v5685, 1.0
      %v5690 = vrcp.pop %v5686
      %v5691 = vmul.f32 1.0, %v5690
      %v5692 = vrcp.pop %v5687
      %v5693 = vmul.f32 1.0, %v5692
      %v5694 = vrcp.pop %v5688
      %v5695 = vmul.f32 1.0, %v5694
      %v5696 = vrcp.pop %v5689
      %v5697 = vmul.f32 1.0, %v5696
      %v5698 = vtanh.pop %v5671
      %v5699 = vtanh.pop %v5673
      %5702 = vrot.lane.b32.xlu0 %v5555, 40
      %v5703 = vpop.permute.xlu0 %5702
      %5704 = vrot.lane.b32.xlu0 %v5556, 40
      %v5705 = vpop.permute.xlu0 %5704
      %v5708 = vmul.f32 %v5691, %v5703
      %v5709 = vmul.f32 %v5693, %v5703
      %v5710 = vmul.f32 %v5695, %v5705
      %v5711 = vmul.f32 %v5697, %v5705
      %5714 = vrot.lane.b32.xlu0 %v5698, 98
      %v5715 = vpop.permute.xlu0 %5714
      %5716 = vrot.lane.b32.xlu0 %v5699, 98
      %v5717 = vpop.permute.xlu0 %5716
      %v5720 = vmul.f32 %v5691, %v5715
      %v5721 = vmul.f32 %v5695, %v5717
      %5724 = vrot.lane.b32.xlu0 %v5720, 10
      %v5725 = vpop.permute.xlu0 %5724
      %5726 = vrot.lane.b32.xlu0 %v5721, 10
      %v5727 = vpop.permute.xlu0 %5726
      %v5730 = vadd.f32 %v5708, %v5725
      %v5731 = vadd.f32 %v5709, %v5725
      %v5732 = vadd.f32 %v5710, %v5727
      %v5733 = vadd.f32 %v5711, %v5727
      %v5734 = vtanh.pop %v5730
      %v5735 = vtanh.pop %v5731
      %v5736 = vtanh.pop %v5732
      %v5737 = vtanh.pop %v5733
      %5742 = vrot.lane.b32.xlu0 %v5734, 10
      %v5743 = vpop.permute.xlu0 %5742
      %5744 = vrot.lane.b32.xlu0 %v5735, 10
      %v5745 = vpop.permute.xlu0 %5744
      %5746 = vrot.lane.b32.xlu0 %v5736, 10
      %v5747 = vpop.permute.xlu0 %5746
      %5748 = vrot.lane.b32.xlu0 %v5737, 10
      %v5749 = vpop.permute.xlu0 %5748
      %v5750 = vsel %vm811, %v5743, %v5745
      %v5751 = vsel %vm811, %v5747, %v5749
      %v5754 = vmul.f32 %v5693, %v5750
      %v5755 = vmul.f32 %v5697, %v5751
      %5758 = vrot.lane.b32.xlu0 %v5754, 56
      %v5759 = vpop.permute.xlu0 %5758
      %5760 = vrot.lane.b32.xlu0 %v5755, 56
      %v5761 = vpop.permute.xlu0 %5760
      %5764 = vst.msk [vmem:[#allocation2] sm:$0xff] %vm1959, %v5759
      %5765 = vst.msk [vmem:[#allocation2 + $0x8] sm:$0xff] %vm1959, %v5761
      %5766 = vrot.lane.b32.xlu0 %v5754, 124
      %v5767 = vpop.permute.xlu0 %5766
      %5768 = vrot.lane.b32.xlu0 %v5755, 124
      %v5769 = vpop.permute.xlu0 %5768
      %v5770 = vsel %vm811, %v5767, 0
      %v5772 = vsel %vm811, %v5769, 0
      %5774 = vmatprep.subr.mxu0 0.0
      %5775 = vmatpush1.msra.mxu0 0.0
      %5776 = vmatprep.subr.mxu0 0.0
      %5777 = vmatpush1.msra.mxu0 0.0
      %5778 = vmatprep.subr.mxu0 0.0
      %5779 = vmatpush1.msra.mxu0 0.0
      %5780 = vmatprep.subr.mxu0 0.0
      %5781 = vmatpush1.msra.mxu0 0.0
      %5782 = vmatprep.subr.mxu0 0.0
      %5783 = vmatpush1.msra.mxu0 0.0
      %5784 = vmatprep.subr.mxu0 0.0
      %5785 = vmatpush1.msra.mxu0 0.0
      %5786 = vmatprep.subr.mxu0 0.0
      %5787 = vmatpush1.msra.mxu0 0.0
      %5788 = vmatprep.subr.mxu0 0.0
      %5789 = vmatpush1.msra.mxu0 0.0
      %5790 = vmatprep.subr.mxu0 0.0
      %5791 = vmatpush1.msra.mxu0 0.0
      %5792 = vmatprep.subr.mxu0 0.0
      %5793 = vmatpush1.msra.mxu0 0.0
      %5794 = vmatprep.subr.mxu0 0.0
      %5795 = vmatpush1.msra.mxu0 0.0
      %5796 = vmatprep.subr.mxu0 0.0
      %5797 = vmatpush1.msra.mxu0 0.0
      %5798 = vmatprep.subr.mxu0 0.0
      %5799 = vmatpush1.msra.mxu0 0.0
      %5800 = vmatprep.subr.mxu0 0.0
      %5801 = vmatpush1.msra.mxu0 0.0
      %5802 = vmatprep.subr.mxu0 0.0
      %5803 = vmatpush1.msra.mxu0 %v4627
      %5804 = vmatprep.subr.mxu0 0.0
      %5805 = vmatpush1.msra.mxu0 %v4624
      %5806 = vmatprep.subr.mxu0 0.0
      %5807 = vmatpush2.msra.mxu0 0.0
      %5808 = vmatprep.subr.mxu0 0.0
      %5809 = vmatpush2.msra.mxu0 0.0
      %5810 = vmatprep.subr.mxu0 0.0
      %5811 = vmatpush2.msra.mxu0 0.0
      %5812 = vmatprep.subr.mxu0 0.0
      %5813 = vmatpush2.msra.mxu0 0.0
      %5814 = vmatprep.subr.mxu0 0.0
      %5815 = vmatpush2.msra.mxu0 0.0
      %5816 = vmatprep.subr.mxu0 0.0
      %5817 = vmatpush2.msra.mxu0 0.0
      %5818 = vmatprep.subr.mxu0 0.0
      %5819 = vmatpush2.msra.mxu0 0.0
      %5820 = vmatprep.subr.mxu0 0.0
      %5821 = vmatpush2.msra.mxu0 0.0
      %5822 = vmatprep.subr.mxu0 0.0
      %5823 = vmatpush2.msra.mxu0 0.0
      %5824 = vmatprep.subr.mxu0 0.0
      %5825 = vmatpush2.msra.mxu0 0.0
      %5826 = vmatprep.subr.mxu0 0.0
      %5827 = vmatpush2.msra.mxu0 0.0
      %5828 = vmatprep.subr.mxu0 0.0
      %5829 = vmatpush2.msra.mxu0 0.0
      %5830 = vmatprep.subr.mxu0 0.0
      %5831 = vmatpush2.msra.mxu0 0.0
      %5832 = vmatprep.subr.mxu0 0.0
      %5833 = vmatpush2.msra.mxu0 0.0
      %5834 = vmatprep.subr.mxu0 0.0
      %5835 = vmatpush2.msra.mxu0 0.0
      %5836 = vmatprep.subr.mxu0 0.0
      %5837 = vmatpush2.msra.mxu0 0.0
      %5838 = vmatprep.mubr.f32.mxu0 0.0
      %5839 = vmatmul.mubr.f32.gmra.mxu0 %v5770
      %v5840 = vpop.f32.mrf.mxu0
      %v5841 = vadd.f32 0.0, %v5840
      %v5842 = vpop.f32.mrf.mxu0
      %5843 = vmatprep.mubr.f32.mxu0 0.0
      %5844 = vmatmul.mubr.f32.gmra.mxu0 %v5772
      %v5845 = vpop.f32.mrf.mxu0
      %v5846 = vadd.f32 0.0, %v5845
      %v5847 = vpop.f32.mrf.mxu0
      %5848 = vdwg.mxu0
      %5851 = vrot.lane.b32.xlu0 %v5841, 24
      %v5852 = vpop.permute.xlu0 %5851
      %5853 = vrot.lane.b32.xlu0 %v5846, 24
      %v5854 = vpop.permute.xlu0 %5853
      %v5857 = vadd.f32 %v4614, %v5852
      %v5858 = vadd.f32 %v4620, %v5854
      %v5859 = vxor.u32 %v5857, 2147483648
      %v5860 = vxor.u32 %v5858, 2147483648
      %v5861 = vmul.f32 %v5859, 1.442695
      %v5862 = vpow.pop %v5861
      %v5863 = vmul.f32 %v5860, 1.442695
      %v5864 = vpow.pop %v5863
      %v5865 = vadd.f32 %v5862, 1.0
      %v5866 = vadd.f32 %v5864, 1.0
      %v5867 = vrcp.pop %v5865
      %v5868 = vmul.f32 1.0, %v5867
      %v5869 = vrcp.pop %v5866
      %v5870 = vmul.f32 1.0, %v5869
      %v5871 = vtanh.pop %v5857
      %v5872 = vtanh.pop %v5858
      %5877 = vrot.lane.b32.xlu0 %v5730, 40
      %v5878 = vpop.permute.xlu0 %5877
      %5879 = vrot.lane.b32.xlu0 %v5731, 40
      %v5880 = vpop.permute.xlu0 %5879
      %5881 = vrot.lane.b32.xlu0 %v5732, 40
      %v5882 = vpop.permute.xlu0 %5881
      %5883 = vrot.lane.b32.xlu0 %v5733, 40
      %v5884 = vpop.permute.xlu0 %5883
      %v5885 = vsel %vm2081, %v5878, %v5880
      %v5886 = vsel %vm2081, %v5882, %v5884
      %v5889 = vmul.f32 %v5868, %v5885
      %v5890 = vmul.f32 %v5870, %v5886
      %5893 = vrot.lane.b32.xlu0 %v5871, 98
      %v5894 = vpop.permute.xlu0 %5893
      %5895 = vrot.lane.b32.xlu0 %v5872, 98
      %v5896 = vpop.permute.xlu0 %5895
      %v5899 = vmul.f32 %v5868, %v5894
      %v5900 = vmul.f32 %v5870, %v5896
      %5903 = vrot.lane.b32.xlu0 %v5899, 10
      %v5904 = vpop.permute.xlu0 %5903
      %5905 = vrot.lane.b32.xlu0 %v5900, 10
      %v5906 = vpop.permute.xlu0 %5905
      %v5909 = vadd.f32 %v5889, %v5904
      %v5910 = vadd.f32 %v5890, %v5906
      %v5911 = vtanh.pop %v5909
      %v5912 = vtanh.pop %v5910
      %5915 = vrot.lane.b32.xlu0 %v5911, 10
      %v5916 = vpop.permute.xlu0 %5915
      %5917 = vrot.lane.b32.xlu0 %v5912, 10
      %v5918 = vpop.permute.xlu0 %5917
      %v5921 = vmul.f32 %v5868, %v5916
      %v5922 = vmul.f32 %v5870, %v5918
      %5925 = vrot.lane.b32.xlu0 %v5921, 26
      %v5926 = vpop.permute.xlu0 %5925
      %5927 = vrot.lane.b32.xlu0 %v5922, 26
      %v5928 = vpop.permute.xlu0 %5927
      %5931 = vst.msk [vmem:[#allocation2] sm:$0xff] %vm2128, %v5926
      %5932 = vst.msk [vmem:[#allocation2 + $0x8] sm:$0xff] %vm2128, %v5928
      %5933 = vrot.lane.b32.xlu0 %v5921, 84
      %v5934 = vpop.permute.xlu0 %5933
      %5935 = vrot.lane.b32.xlu0 %v5922, 84
      %v5936 = vpop.permute.xlu0 %5935
      %v5937 = vsel %vm811, %v5934, 0
      %v5939 = vsel %vm811, %v5936, 0
      %5941 = vmatprep.subr.mxu0 0.0
      %5942 = vmatpush1.msra.mxu0 0.0
      %5943 = vmatprep.subr.mxu0 0.0
      %5944 = vmatpush1.msra.mxu0 0.0
      %5945 = vmatprep.subr.mxu0 0.0
      %5946 = vmatpush1.msra.mxu0 0.0
      %5947 = vmatprep.subr.mxu0 0.0
      %5948 = vmatpush1.msra.mxu0 0.0
      %5949 = vmatprep.subr.mxu0 0.0
      %5950 = vmatpush1.msra.mxu0 0.0
      %5951 = vmatprep.subr.mxu0 0.0
      %5952 = vmatpush1.msra.mxu0 0.0
      %5953 = vmatprep.subr.mxu0 0.0
      %5954 = vmatpush1.msra.mxu0 0.0
      %5955 = vmatprep.subr.mxu0 0.0
      %5956 = vmatpush1.msra.mxu0 0.0
      %5957 = vmatprep.subr.mxu0 0.0
      %5958 = vmatpush1.msra.mxu0 0.0
      %5959 = vmatprep.subr.mxu0 0.0
      %5960 = vmatpush1.msra.mxu0 0.0
      %5961 = vmatprep.subr.mxu0 0.0
      %5962 = vmatpush1.msra.mxu0 0.0
      %5963 = vmatprep.subr.mxu0 0.0
      %5964 = vmatpush1.msra.mxu0 0.0
      %5965 = vmatprep.subr.mxu0 0.0
      %5966 = vmatpush1.msra.mxu0 0.0
      %5967 = vmatprep.subr.mxu0 0.0
      %5968 = vmatpush1.msra.mxu0 0.0
      %5969 = vmatprep.subr.mxu0 0.0
      %5970 = vmatpush1.msra.mxu0 %v4627
      %5971 = vmatprep.subr.mxu0 0.0
      %5972 = vmatpush1.msra.mxu0 %v4624
      %5973 = vmatprep.subr.mxu0 0.0
      %5974 = vmatpush2.msra.mxu0 0.0
      %5975 = vmatprep.subr.mxu0 0.0
      %5976 = vmatpush2.msra.mxu0 0.0
      %5977 = vmatprep.subr.mxu0 0.0
      %5978 = vmatpush2.msra.mxu0 0.0
      %5979 = vmatprep.subr.mxu0 0.0
      %5980 = vmatpush2.msra.mxu0 0.0
      %5981 = vmatprep.subr.mxu0 0.0
      %5982 = vmatpush2.msra.mxu0 0.0
      %5983 = vmatprep.subr.mxu0 0.0
      %5984 = vmatpush2.msra.mxu0 0.0
      %5985 = vmatprep.subr.mxu0 0.0
      %5986 = vmatpush2.msra.mxu0 0.0
      %5987 = vmatprep.subr.mxu0 0.0
      %5988 = vmatpush2.msra.mxu0 0.0
      %5989 = vmatprep.subr.mxu0 0.0
      %5990 = vmatpush2.msra.mxu0 0.0
      %5991 = vmatprep.subr.mxu0 0.0
      %5992 = vmatpush2.msra.mxu0 0.0
      %5993 = vmatprep.subr.mxu0 0.0
      %5994 = vmatpush2.msra.mxu0 0.0
      %5995 = vmatprep.subr.mxu0 0.0
      %5996 = vmatpush2.msra.mxu0 0.0
      %5997 = vmatprep.subr.mxu0 0.0
      %5998 = vmatpush2.msra.mxu0 0.0
      %5999 = vmatprep.subr.mxu0 0.0
      %6000 = vmatpush2.msra.mxu0 0.0
      %6001 = vmatprep.subr.mxu0 0.0
      %6002 = vmatpush2.msra.mxu0 0.0
      %6003 = vmatprep.subr.mxu0 0.0
      %6004 = vmatpush2.msra.mxu0 0.0
      %6005 = vmatprep.mubr.f32.mxu0 0.0
      %6006 = vmatmul.mubr.f32.gmra.mxu0 %v5937
      %v6007 = vpop.f32.mrf.mxu0
      %v6008 = vadd.f32 0.0, %v6007
      %v6009 = vpop.f32.mrf.mxu0
      %6010 = vmatprep.mubr.f32.mxu0 0.0
      %6011 = vmatmul.mubr.f32.gmra.mxu0 %v5939
      %v6012 = vpop.f32.mrf.mxu0
      %v6013 = vadd.f32 0.0, %v6012
      %v6014 = vpop.f32.mrf.mxu0
      %6015 = vdwg.mxu0
      %6018 = vrot.lane.b32.xlu0 %v6008, 64
      %v6019 = vpop.permute.xlu0 %6018
      %6020 = vrot.lane.b32.xlu0 %v6013, 64
      %v6021 = vpop.permute.xlu0 %6020
      %v6024 = vadd.f32 %v4614, %v6019
      %v6025 = vadd.f32 %v4620, %v6021
      %v6026 = vxor.u32 %v6024, 2147483648
      %v6027 = vxor.u32 %v6025, 2147483648
      %v6028 = vmul.f32 %v6026, 1.442695
      %v6029 = vpow.pop %v6028
      %v6030 = vmul.f32 %v6027, 1.442695
      %v6031 = vpow.pop %v6030
      %v6032 = vadd.f32 %v6029, 1.0
      %v6033 = vadd.f32 %v6031, 1.0
      %v6034 = vrcp.pop %v6032
      %v6035 = vmul.f32 1.0, %v6034
      %v6036 = vrcp.pop %v6033
      %v6037 = vmul.f32 1.0, %v6036
      %v6038 = vtanh.pop %v6024
      %v6039 = vtanh.pop %v6025
      %6042 = vrot.lane.b32.xlu0 %v5909, 40
      %v6043 = vpop.permute.xlu0 %6042
      %6044 = vrot.lane.b32.xlu0 %v5910, 40
      %v6045 = vpop.permute.xlu0 %6044
      %v6048 = vmul.f32 %v6035, %v6043
      %v6049 = vmul.f32 %v6037, %v6045
      %6052 = vrot.lane.b32.xlu0 %v6038, 98
      %v6053 = vpop.permute.xlu0 %6052
      %6054 = vrot.lane.b32.xlu0 %v6039, 98
      %v6055 = vpop.permute.xlu0 %6054
      %v6058 = vmul.f32 %v6035, %v6053
      %v6059 = vmul.f32 %v6037, %v6055
      %6062 = vrot.lane.b32.xlu0 %v6058, 10
      %v6063 = vpop.permute.xlu0 %6062
      %6064 = vrot.lane.b32.xlu0 %v6059, 10
      %v6065 = vpop.permute.xlu0 %6064
      %v6068 = vadd.f32 %v6048, %v6063
      %v6069 = vadd.f32 %v6049, %v6065
      %v6070 = vtanh.pop %v6068
      %v6071 = vtanh.pop %v6069
      %6074 = vrot.lane.b32.xlu0 %v6070, 10
      %v6075 = vpop.permute.xlu0 %6074
      %6076 = vrot.lane.b32.xlu0 %v6071, 10
      %v6077 = vpop.permute.xlu0 %6076
      %v6080 = vmul.f32 %v6035, %v6075
      %v6081 = vmul.f32 %v6037, %v6077
      %6084 = vrot.lane.b32.xlu0 %v6080, 124
      %v6085 = vpop.permute.xlu0 %6084
      %6086 = vrot.lane.b32.xlu0 %v6081, 124
      %v6087 = vpop.permute.xlu0 %6086
      %6090 = vst.msk [vmem:[#allocation2] sm:$0xff] %vm2288, %v6085
      %6091 = vst.msk [vmem:[#allocation2 + $0x8] sm:$0xff] %vm2288, %v6087
      %6092 = vrot.lane.b32.xlu0 %v6080, 44
      %v6093 = vpop.permute.xlu0 %6092
      %6094 = vrot.lane.b32.xlu0 %v6081, 44
      %v6095 = vpop.permute.xlu0 %6094
      %v6096 = vsel %vm811, %v6093, 0
      %v6098 = vsel %vm811, %v6095, 0
      %6100 = vmatprep.subr.mxu0 0.0
      %6101 = vmatpush1.msra.mxu0 0.0
      %6102 = vmatprep.subr.mxu0 0.0
      %6103 = vmatpush1.msra.mxu0 0.0
      %6104 = vmatprep.subr.mxu0 0.0
      %6105 = vmatpush1.msra.mxu0 0.0
      %6106 = vmatprep.subr.mxu0 0.0
      %6107 = vmatpush1.msra.mxu0 0.0
      %6108 = vmatprep.subr.mxu0 0.0
      %6109 = vmatpush1.msra.mxu0 0.0
      %6110 = vmatprep.subr.mxu0 0.0
      %6111 = vmatpush1.msra.mxu0 0.0
      %6112 = vmatprep.subr.mxu0 0.0
      %6113 = vmatpush1.msra.mxu0 0.0
      %6114 = vmatprep.subr.mxu0 0.0
      %6115 = vmatpush1.msra.mxu0 0.0
      %6116 = vmatprep.subr.mxu0 0.0
      %6117 = vmatpush1.msra.mxu0 0.0
      %6118 = vmatprep.subr.mxu0 0.0
      %6119 = vmatpush1.msra.mxu0 0.0
      %6120 = vmatprep.subr.mxu0 0.0
      %6121 = vmatpush1.msra.mxu0 0.0
      %6122 = vmatprep.subr.mxu0 0.0
      %6123 = vmatpush1.msra.mxu0 0.0
      %6124 = vmatprep.subr.mxu0 0.0
      %6125 = vmatpush1.msra.mxu0 0.0
      %6126 = vmatprep.subr.mxu0 0.0
      %6127 = vmatpush1.msra.mxu0 0.0
      %6128 = vmatprep.subr.mxu0 0.0
      %6129 = vmatpush1.msra.mxu0 %v4627
      %6130 = vmatprep.subr.mxu0 0.0
      %6131 = vmatpush1.msra.mxu0 %v4624
      %6132 = vmatprep.subr.mxu0 0.0
      %6133 = vmatpush2.msra.mxu0 0.0
      %6134 = vmatprep.subr.mxu0 0.0
      %6135 = vmatpush2.msra.mxu0 0.0
      %6136 = vmatprep.subr.mxu0 0.0
      %6137 = vmatpush2.msra.mxu0 0.0
      %6138 = vmatprep.subr.mxu0 0.0
      %6139 = vmatpush2.msra.mxu0 0.0
      %6140 = vmatprep.subr.mxu0 0.0
      %6141 = vmatpush2.msra.mxu0 0.0
      %6142 = vmatprep.subr.mxu0 0.0
      %6143 = vmatpush2.msra.mxu0 0.0
      %6144 = vmatprep.subr.mxu0 0.0
      %6145 = vmatpush2.msra.mxu0 0.0
      %6146 = vmatprep.subr.mxu0 0.0
      %6147 = vmatpush2.msra.mxu0 0.0
      %6148 = vmatprep.subr.mxu0 0.0
      %6149 = vmatpush2.msra.mxu0 0.0
      %6150 = vmatprep.subr.mxu0 0.0
      %6151 = vmatpush2.msra.mxu0 0.0
      %6152 = vmatprep.subr.mxu0 0.0
      %6153 = vmatpush2.msra.mxu0 0.0
      %6154 = vmatprep.subr.mxu0 0.0
      %6155 = vmatpush2.msra.mxu0 0.0
      %6156 = vmatprep.subr.mxu0 0.0
      %6157 = vmatpush2.msra.mxu0 0.0
      %6158 = vmatprep.subr.mxu0 0.0
      %6159 = vmatpush2.msra.mxu0 0.0
      %6160 = vmatprep.subr.mxu0 0.0
      %6161 = vmatpush2.msra.mxu0 0.0
      %6162 = vmatprep.subr.mxu0 0.0
      %6163 = vmatpush2.msra.mxu0 0.0
      %6164 = vmatprep.mubr.f32.mxu0 0.0
      %6165 = vmatmul.mubr.f32.gmra.mxu0 %v6096
      %v6166 = vpop.f32.mrf.mxu0
      %v6167 = vadd.f32 0.0, %v6166
      %v6168 = vpop.f32.mrf.mxu0
      %6169 = vmatprep.mubr.f32.mxu0 0.0
      %6170 = vmatmul.mubr.f32.gmra.mxu0 %v6098
      %v6171 = vpop.f32.mrf.mxu0
      %v6172 = vadd.f32 0.0, %v6171
      %v6173 = vpop.f32.mrf.mxu0
      %6174 = vdwg.mxu0
      %6177 = vrot.lane.b32.xlu0 %v6167, 104
      %v6178 = vpop.permute.xlu0 %6177
      %6179 = vrot.lane.b32.xlu0 %v6172, 104
      %v6180 = vpop.permute.xlu0 %6179
      %v6183 = vadd.f32 %v4614, %v6178
      %v6184 = vadd.f32 %v4616, %v6178
      %v6185 = vadd.f32 %v4620, %v6180
      %v6186 = vadd.f32 %v4622, %v6180
      %v6187 = vxor.u32 %v6183, 2147483648
      %v6188 = vxor.u32 %v6184, 2147483648
      %v6189 = vxor.u32 %v6185, 2147483648
      %v6190 = vxor.u32 %v6186, 2147483648
      %v6191 = vmul.f32 %v6187, 1.442695
      %v6192 = vpow.pop %v6191
      %v6193 = vmul.f32 %v6188, 1.442695
      %v6194 = vpow.pop %v6193
      %v6195 = vmul.f32 %v6189, 1.442695
      %v6196 = vpow.pop %v6195
      %v6197 = vmul.f32 %v6190, 1.442695
      %v6198 = vpow.pop %v6197
      %v6199 = vadd.f32 %v6192, 1.0
      %v6200 = vadd.f32 %v6194, 1.0
      %v6201 = vadd.f32 %v6196, 1.0
      %v6202 = vadd.f32 %v6198, 1.0
      %v6203 = vrcp.pop %v6199
      %v6204 = vmul.f32 1.0, %v6203
      %v6205 = vrcp.pop %v6200
      %v6206 = vmul.f32 1.0, %v6205
      %v6207 = vrcp.pop %v6201
      %v6208 = vmul.f32 1.0, %v6207
      %v6209 = vrcp.pop %v6202
      %v6210 = vmul.f32 1.0, %v6209
      %v6211 = vtanh.pop %v6184
      %v6212 = vtanh.pop %v6186
      %6215 = vrot.lane.b32.xlu0 %v6068, 40
      %v6216 = vpop.permute.xlu0 %6215
      %6217 = vrot.lane.b32.xlu0 %v6069, 40
      %v6218 = vpop.permute.xlu0 %6217
      %v6221 = vmul.f32 %v6204, %v6216
      %v6222 = vmul.f32 %v6208, %v6218
      %6225 = vrot.lane.b32.xlu0 %v6211, 98
      %v6226 = vpop.permute.xlu0 %6225
      %6227 = vrot.lane.b32.xlu0 %v6212, 98
      %v6228 = vpop.permute.xlu0 %6227
      %v6231 = vmul.f32 %v6204, %v6226
      %v6232 = vmul.f32 %v6208, %v6228
      %6235 = vrot.lane.b32.xlu0 %v6231, 10
      %v6236 = vpop.permute.xlu0 %6235
      %6237 = vrot.lane.b32.xlu0 %v6232, 10
      %v6238 = vpop.permute.xlu0 %6237
      %v6241 = vadd.f32 %v6221, %v6236
      %v6242 = vadd.f32 %v6222, %v6238
      %v6243 = vtanh.pop %v6241
      %v6244 = vtanh.pop %v6242
      %6247 = vrot.lane.b32.xlu0 %v6243, 10
      %v6248 = vpop.permute.xlu0 %6247
      %6249 = vrot.lane.b32.xlu0 %v6244, 10
      %v6250 = vpop.permute.xlu0 %6249
      %v6253 = vmul.f32 %v6204, %v6248
      %v6254 = vmul.f32 %v6206, %v6248
      %v6255 = vmul.f32 %v6208, %v6250
      %v6256 = vmul.f32 %v6210, %v6250
      %6261 = vrot.lane.b32.xlu0 %v6253, 94
      %v6262 = vpop.permute.xlu0 %6261
      %6263 = vrot.lane.b32.xlu0 %v6254, 94
      %v6264 = vpop.permute.xlu0 %6263
      %6265 = vrot.lane.b32.xlu0 %v6255, 94
      %v6266 = vpop.permute.xlu0 %6265
      %6267 = vrot.lane.b32.xlu0 %v6256, 94
      %v6268 = vpop.permute.xlu0 %6267
      %v6269 = vsel %vm2468, %v6262, %v6264
      %v6270 = vsel %vm2468, %v6266, %v6268
      %6273 = vst.msk [vmem:[#allocation2] sm:$0xff] %vm2473, %v6269
      %6274 = vst.msk [vmem:[#allocation2 + $0x8] sm:$0xff] %vm2473, %v6270
      %v6275 = vld [vmem:[#allocation2] sm:$0xff]
      %v6276 = vld [vmem:[#allocation2 + $0x8] sm:$0xff]
      %6277 = vmatprep.subr.mxu0 0.0
      %6278 = vmatpush1.msra.mxu0 0.0
      %6279 = vmatprep.subr.mxu0 0.0
      %6280 = vmatpush1.msra.mxu0 0.0
      %6281 = vmatprep.subr.mxu0 0.0
      %6282 = vmatpush1.msra.mxu0 0.0
      %6283 = vmatprep.subr.mxu0 0.0
      %6284 = vmatpush1.msra.mxu0 0.0
      %6285 = vmatprep.subr.mxu0 0.0
      %6286 = vmatpush1.msra.mxu0 0.0
      %6287 = vmatprep.subr.mxu0 0.0
      %6288 = vmatpush1.msra.mxu0 0.0
      %6289 = vmatprep.subr.mxu0 0.0
      %6290 = vmatpush1.msra.mxu0 0.0
      %6291 = vmatprep.subr.mxu0 0.0
      %6292 = vmatpush1.msra.mxu0 0.0
      %6293 = vmatprep.subr.mxu0 0.0
      %6294 = vmatpush1.msra.mxu0 0.0
      %6295 = vmatprep.subr.mxu0 0.0
      %6296 = vmatpush1.msra.mxu0 0.0
      %6297 = vmatprep.subr.mxu0 0.0
      %6298 = vmatpush1.msra.mxu0 0.0
      %6299 = vmatprep.subr.mxu0 0.0
      %6300 = vmatpush1.msra.mxu0 0.0
      %6301 = vmatprep.subr.mxu0 0.0
      %6302 = vmatpush1.msra.mxu0 0.0
      %6303 = vmatprep.subr.mxu0 0.0
      %6304 = vmatpush1.msra.mxu0 0.0
      %6305 = vmatprep.subr.mxu0 0.0
      %6306 = vmatpush1.msra.mxu0 %v6276
      %6307 = vmatprep.subr.mxu0 0.0
      %6308 = vmatpush1.msra.mxu0 %v6275
      %6309 = vmatprep.subr.mxu0 0.0
      %6310 = vmatpush2.msra.mxu0 0.0
      %6311 = vmatprep.subr.mxu0 0.0
      %6312 = vmatpush2.msra.mxu0 0.0
      %6313 = vmatprep.subr.mxu0 0.0
      %6314 = vmatpush2.msra.mxu0 0.0
      %6315 = vmatprep.subr.mxu0 0.0
      %6316 = vmatpush2.msra.mxu0 0.0
      %6317 = vmatprep.subr.mxu0 0.0
      %6318 = vmatpush2.msra.mxu0 0.0
      %6319 = vmatprep.subr.mxu0 0.0
      %6320 = vmatpush2.msra.mxu0 0.0
      %6321 = vmatprep.subr.mxu0 0.0
      %6322 = vmatpush2.msra.mxu0 0.0
      %6323 = vmatprep.subr.mxu0 0.0
      %6324 = vmatpush2.msra.mxu0 0.0
      %6325 = vmatprep.subr.mxu0 0.0
      %6326 = vmatpush2.msra.mxu0 0.0
      %6327 = vmatprep.subr.mxu0 0.0
      %6328 = vmatpush2.msra.mxu0 0.0
      %6329 = vmatprep.subr.mxu0 0.0
      %6330 = vmatpush2.msra.mxu0 0.0
      %6331 = vmatprep.subr.mxu0 0.0
      %6332 = vmatpush2.msra.mxu0 0.0
      %6333 = vmatprep.subr.mxu0 0.0
      %6334 = vmatpush2.msra.mxu0 0.0
      %6335 = vmatprep.subr.mxu0 0.0
      %6336 = vmatpush2.msra.mxu0 0.0
      %6337 = vmatprep.subr.mxu0 0.0
      %6338 = vmatpush2.msra.mxu0 0.0
      %6339 = vmatprep.subr.mxu0 0.0
      %6340 = vmatpush2.msra.mxu0 0.0
      %6341 = vmatprep.mubr.f32.mxu0 0.0
      %6342 = vmatmul.mubr.f32.gmra.mxu0 %v521
      %v6343 = vpop.f32.mrf.mxu0
      %v6344 = vadd.f32 0.0, %v6343
      %v6345 = vpop.f32.mrf.mxu0
      %6346 = vmatprep.mubr.f32.mxu0 0.0
      %6347 = vmatmul.mubr.f32.gmra.mxu0 %v524
      %v6348 = vpop.f32.mrf.mxu0
      %v6349 = vadd.f32 0.0, %v6348
      %v6350 = vpop.f32.mrf.mxu0
      %6351 = vdwg.mxu0
      %v6352 = vld [vmem:[%s11] sm:$0xff]
      %v6353 = vld [vmem:[%s11 + $0x8] sm:$0xff]
      %v6354 = vld [vmem:[%s11 + $0x10] sm:$0xff]
      %v6355 = vld [vmem:[%s11 + $0x18] sm:$0xff]
      %v6356 = vld [vmem:[%s11 + $0x20] sm:$0xff]
      %v6357 = vld [vmem:[%s11 + $0x28] sm:$0xff]
      %v6358 = vld [vmem:[%s11 + $0x30] sm:$0xff]
      %v6359 = vld [vmem:[%s11 + $0x38] sm:$0xff]
      %v6360 = vld [vmem:[%s11 + $0x40] sm:$0xff]
      %v6361 = vld [vmem:[%s11 + $0x48] sm:$0xff]
      %v6362 = vld [vmem:[%s11 + $0x50] sm:$0xff]
      %v6363 = vld [vmem:[%s11 + $0x58] sm:$0xff]
      %v6364 = vld [vmem:[%s11 + $0x60] sm:$0xf]
      %v6365 = vld [vmem:[%s12] sm:$0x1]
      %v6367 = vlaneseq
      %v6368 = vshrl.u32 %v6367, 7
      %v6369 = vsub.s32 0, %v6368
      %v6370 = vrot.slane %v6365, %v6369
      %v6373 = vsel %vm2552, %v6344, 0
      %v6376 = vsel %vm2552, %v6349, 0
      %v6379 = vsel %vm642, %v6364, 0
      %6381 = vmatprep.subr.mxu0 0.0
      %6382 = vmatpush1.msra.mxu0 0.0
      %6383 = vmatprep.subr.mxu0 0.0
      %6384 = vmatpush1.msra.mxu0 0.0
      %6385 = vmatprep.subr.mxu0 0.0
      %6386 = vmatpush1.msra.mxu0 0.0
      %6387 = vmatprep.subr.mxu0 0.0
      %6388 = vmatpush1.msra.mxu0 %v6379
      %6389 = vmatprep.subr.mxu0 0.0
      %6390 = vmatpush1.msra.mxu0 %v6363
      %6391 = vmatprep.subr.mxu0 0.0
      %6392 = vmatpush1.msra.mxu0 %v6362
      %6393 = vmatprep.subr.mxu0 0.0
      %6394 = vmatpush1.msra.mxu0 %v6361
      %6395 = vmatprep.subr.mxu0 0.0
      %6396 = vmatpush1.msra.mxu0 %v6360
      %6397 = vmatprep.subr.mxu0 0.0
      %6398 = vmatpush1.msra.mxu0 %v6359
      %6399 = vmatprep.subr.mxu0 0.0
      %6400 = vmatpush1.msra.mxu0 %v6358
      %6401 = vmatprep.subr.mxu0 0.0
      %6402 = vmatpush1.msra.mxu0 %v6357
      %6403 = vmatprep.subr.mxu0 0.0
      %6404 = vmatpush1.msra.mxu0 %v6356
      %6405 = vmatprep.subr.mxu0 0.0
      %6406 = vmatpush1.msra.mxu0 %v6355
      %6407 = vmatprep.subr.mxu0 0.0
      %6408 = vmatpush1.msra.mxu0 %v6354
      %6409 = vmatprep.subr.mxu0 0.0
      %6410 = vmatpush1.msra.mxu0 %v6353
      %6411 = vmatprep.subr.mxu0 0.0
      %6412 = vmatpush1.msra.mxu0 %v6352
      %6413 = vmatprep.subr.mxu0 0.0
      %6414 = vmatpush2.msra.mxu0 0.0
      %6415 = vmatprep.subr.mxu0 0.0
      %6416 = vmatpush2.msra.mxu0 0.0
      %6417 = vmatprep.subr.mxu0 0.0
      %6418 = vmatpush2.msra.mxu0 0.0
      %6419 = vmatprep.subr.mxu0 0.0
      %6420 = vmatpush2.msra.mxu0 0.0
      %6421 = vmatprep.subr.mxu0 0.0
      %6422 = vmatpush2.msra.mxu0 0.0
      %6423 = vmatprep.subr.mxu0 0.0
      %6424 = vmatpush2.msra.mxu0 0.0
      %6425 = vmatprep.subr.mxu0 0.0
      %6426 = vmatpush2.msra.mxu0 0.0
      %6427 = vmatprep.subr.mxu0 0.0
      %6428 = vmatpush2.msra.mxu0 0.0
      %6429 = vmatprep.subr.mxu0 0.0
      %6430 = vmatpush2.msra.mxu0 0.0
      %6431 = vmatprep.subr.mxu0 0.0
      %6432 = vmatpush2.msra.mxu0 0.0
      %6433 = vmatprep.subr.mxu0 0.0
      %6434 = vmatpush2.msra.mxu0 0.0
      %6435 = vmatprep.subr.mxu0 0.0
      %6436 = vmatpush2.msra.mxu0 0.0
      %6437 = vmatprep.subr.mxu0 0.0
      %6438 = vmatpush2.msra.mxu0 0.0
      %6439 = vmatprep.subr.mxu0 0.0
      %6440 = vmatpush2.msra.mxu0 0.0
      %6441 = vmatprep.subr.mxu0 0.0
      %6442 = vmatpush2.msra.mxu0 0.0
      %6443 = vmatprep.subr.mxu0 0.0
      %6444 = vmatpush2.msra.mxu0 0.0
      %6445 = vmatprep.mubr.f32.mxu0 0.0
      %6446 = vmatmul.mubr.f32.gmra.mxu0 %v6373
      %v6447 = vpop.f32.mrf.mxu0
      %v6448 = vadd.f32 %v6370, %v6447
      %v6449 = vpop.f32.mrf.mxu0
      %6450 = vmatprep.mubr.f32.mxu0 0.0
      %6451 = vmatmul.mubr.f32.gmra.mxu0 %v6376
      %v6452 = vpop.f32.mrf.mxu0
      %v6453 = vadd.f32 %v6370, %v6452
      %v6454 = vpop.f32.mrf.mxu0
      %6455 = vdwg.mxu0
      %v6456 = vmax.f32 %v6448, 0.0
      %v6457 = vmax.f32 %v6453, 0.0
      %6458 = vmatprep.subr.mxu0 0.0
      %6459 = vmatpush1.msra.mxu0 0.0
      %6460 = vmatprep.subr.mxu0 0.0
      %6461 = vmatpush1.msra.mxu0 0.0
      %6462 = vmatprep.subr.mxu0 0.0
      %6463 = vmatpush1.msra.mxu0 0.0
      %6464 = vmatprep.subr.mxu0 0.0
      %6465 = vmatpush1.msra.mxu0 0.0
      %6466 = vmatprep.subr.mxu0 0.0
      %6467 = vmatpush1.msra.mxu0 0.0
      %6468 = vmatprep.subr.mxu0 0.0
      %6469 = vmatpush1.msra.mxu0 0.0
      %6470 = vmatprep.subr.mxu0 0.0
      %6471 = vmatpush1.msra.mxu0 0.0
      %6472 = vmatprep.subr.mxu0 0.0
      %6473 = vmatpush1.msra.mxu0 0.0
      %6474 = vmatprep.subr.mxu0 0.0
      %6475 = vmatpush1.msra.mxu0 0.0
      %6476 = vmatprep.subr.mxu0 0.0
      %6477 = vmatpush1.msra.mxu0 0.0
      %6478 = vmatprep.subr.mxu0 0.0
      %6479 = vmatpush1.msra.mxu0 0.0
      %6480 = vmatprep.subr.mxu0 0.0
      %6481 = vmatpush1.msra.mxu0 0.0
      %6482 = vmatprep.subr.mxu0 0.0
      %6483 = vmatpush1.msra.mxu0 0.0
      %6484 = vmatprep.subr.mxu0 0.0
      %6485 = vmatpush1.msra.mxu0 0.0
      %6486 = vmatprep.subr.mxu0 0.0
      %6487 = vmatpush1.msra.mxu0 %v6457
      %6488 = vmatprep.subr.mxu0 0.0
      %6489 = vmatpush1.msra.mxu0 %v6456
      %6490 = vmatprep.subr.mxu0 0.0
      %6491 = vmatpush2.msra.mxu0 0.0
      %6492 = vmatprep.subr.mxu0 0.0
      %6493 = vmatpush2.msra.mxu0 0.0
      %6494 = vmatprep.subr.mxu0 0.0
      %6495 = vmatpush2.msra.mxu0 0.0
      %6496 = vmatprep.subr.mxu0 0.0
      %6497 = vmatpush2.msra.mxu0 0.0
      %6498 = vmatprep.subr.mxu0 0.0
      %6499 = vmatpush2.msra.mxu0 0.0
      %6500 = vmatprep.subr.mxu0 0.0
      %6501 = vmatpush2.msra.mxu0 0.0
      %6502 = vmatprep.subr.mxu0 0.0
      %6503 = vmatpush2.msra.mxu0 0.0
      %6504 = vmatprep.subr.mxu0 0.0
      %6505 = vmatpush2.msra.mxu0 0.0
      %6506 = vmatprep.subr.mxu0 0.0
      %6507 = vmatpush2.msra.mxu0 0.0
      %6508 = vmatprep.subr.mxu0 0.0
      %6509 = vmatpush2.msra.mxu0 0.0
      %6510 = vmatprep.subr.mxu0 0.0
      %6511 = vmatpush2.msra.mxu0 0.0
      %6512 = vmatprep.subr.mxu0 0.0
      %6513 = vmatpush2.msra.mxu0 0.0
      %6514 = vmatprep.subr.mxu0 0.0
      %6515 = vmatpush2.msra.mxu0 0.0
      %6516 = vmatprep.subr.mxu0 0.0
      %6517 = vmatpush2.msra.mxu0 0.0
      %6518 = vmatprep.subr.mxu0 0.0
      %6519 = vmatpush2.msra.mxu0 0.0
      %6520 = vmatprep.subr.mxu0 0.0
      %6521 = vmatpush2.msra.mxu0 0.0
      %6522 = vmatprep.mubr.f32.mxu0 0.0
      %6523 = vmatmul.mubr.f32.gmra.mxu0 %v521
      %v6524 = vpop.f32.mrf.mxu0
      %v6525 = vadd.f32 0.0, %v6524
      %v6526 = vpop.f32.mrf.mxu0
      %6527 = vmatprep.mubr.f32.mxu0 0.0
      %6528 = vmatmul.mubr.f32.gmra.mxu0 %v524
      %v6529 = vpop.f32.mrf.mxu0
      %v6530 = vadd.f32 0.0, %v6529
      %v6531 = vpop.f32.mrf.mxu0
      %6532 = vdwg.mxu0
      %v6533 = vld [vmem:[%s13] sm:$0xff]
      %v6534 = vld [vmem:[%s13 + $0x8] sm:$0xff]
      %v6535 = vld [vmem:[%s13 + $0x10] sm:$0xff]
      %v6536 = vld [vmem:[%s13 + $0x18] sm:$0xff]
      %v6537 = vld [vmem:[%s13 + $0x20] sm:$0xff]
      %v6538 = vld [vmem:[%s13 + $0x28] sm:$0xff]
      %v6539 = vld [vmem:[%s13 + $0x30] sm:$0x3]
      %v6540 = vld [vmem:[%s14] sm:$0x1]
      %v6542 = vlaneseq
      %v6543 = vshrl.u32 %v6542, 7
      %v6544 = vsub.s32 0, %v6543
      %v6545 = vrot.slane %v6540, %v6544
      %vm6547 = vcmask 408576
      %v6549 = vsel %vm6547, %v6525, 0
      %v6552 = vsel %vm6547, %v6530, 0
      %v6555 = vsel %vm815, %v6539, 0
      %6557 = vmatprep.subr.mxu0 0.0
      %6558 = vmatpush1.msra.mxu0 0.0
      %6559 = vmatprep.subr.mxu0 0.0
      %6560 = vmatpush1.msra.mxu0 0.0
      %6561 = vmatprep.subr.mxu0 0.0
      %6562 = vmatpush1.msra.mxu0 0.0
      %6563 = vmatprep.subr.mxu0 0.0
      %6564 = vmatpush1.msra.mxu0 0.0
      %6565 = vmatprep.subr.mxu0 0.0
      %6566 = vmatpush1.msra.mxu0 0.0
      %6567 = vmatprep.subr.mxu0 0.0
      %6568 = vmatpush1.msra.mxu0 0.0
      %6569 = vmatprep.subr.mxu0 0.0
      %6570 = vmatpush1.msra.mxu0 0.0
      %6571 = vmatprep.subr.mxu0 0.0
      %6572 = vmatpush1.msra.mxu0 0.0
      %6573 = vmatprep.subr.mxu0 0.0
      %6574 = vmatpush1.msra.mxu0 0.0
      %6575 = vmatprep.subr.mxu0 0.0
      %6576 = vmatpush1.msra.mxu0 %v6555
      %6577 = vmatprep.subr.mxu0 0.0
      %6578 = vmatpush1.msra.mxu0 %v6538
      %6579 = vmatprep.subr.mxu0 0.0
      %6580 = vmatpush1.msra.mxu0 %v6537
      %6581 = vmatprep.subr.mxu0 0.0
      %6582 = vmatpush1.msra.mxu0 %v6536
      %6583 = vmatprep.subr.mxu0 0.0
      %6584 = vmatpush1.msra.mxu0 %v6535
      %6585 = vmatprep.subr.mxu0 0.0
      %6586 = vmatpush1.msra.mxu0 %v6534
      %6587 = vmatprep.subr.mxu0 0.0
      %6588 = vmatpush1.msra.mxu0 %v6533
      %6589 = vmatprep.subr.mxu0 0.0
      %6590 = vmatpush2.msra.mxu0 0.0
      %6591 = vmatprep.subr.mxu0 0.0
      %6592 = vmatpush2.msra.mxu0 0.0
      %6593 = vmatprep.subr.mxu0 0.0
      %6594 = vmatpush2.msra.mxu0 0.0
      %6595 = vmatprep.subr.mxu0 0.0
      %6596 = vmatpush2.msra.mxu0 0.0
      %6597 = vmatprep.subr.mxu0 0.0
      %6598 = vmatpush2.msra.mxu0 0.0
      %6599 = vmatprep.subr.mxu0 0.0
      %6600 = vmatpush2.msra.mxu0 0.0
      %6601 = vmatprep.subr.mxu0 0.0
      %6602 = vmatpush2.msra.mxu0 0.0
      %6603 = vmatprep.subr.mxu0 0.0
      %6604 = vmatpush2.msra.mxu0 0.0
      %6605 = vmatprep.subr.mxu0 0.0
      %6606 = vmatpush2.msra.mxu0 0.0
      %6607 = vmatprep.subr.mxu0 0.0
      %6608 = vmatpush2.msra.mxu0 0.0
      %6609 = vmatprep.subr.mxu0 0.0
      %6610 = vmatpush2.msra.mxu0 0.0
      %6611 = vmatprep.subr.mxu0 0.0
      %6612 = vmatpush2.msra.mxu0 0.0
      %6613 = vmatprep.subr.mxu0 0.0
      %6614 = vmatpush2.msra.mxu0 0.0
      %6615 = vmatprep.subr.mxu0 0.0
      %6616 = vmatpush2.msra.mxu0 0.0
      %6617 = vmatprep.subr.mxu0 0.0
      %6618 = vmatpush2.msra.mxu0 0.0
      %6619 = vmatprep.subr.mxu0 0.0
      %6620 = vmatpush2.msra.mxu0 0.0
      %6621 = vmatprep.mubr.f32.mxu0 0.0
      %6622 = vmatmul.mubr.f32.gmra.mxu0 %v6549
      %v6623 = vpop.f32.mrf.mxu0
      %v6624 = vadd.f32 %v6545, %v6623
      %v6625 = vpop.f32.mrf.mxu0
      %6626 = vmatprep.mubr.f32.mxu0 0.0
      %6627 = vmatmul.mubr.f32.gmra.mxu0 %v6552
      %v6628 = vpop.f32.mrf.mxu0
      %v6629 = vadd.f32 %v6545, %v6628
      %v6630 = vpop.f32.mrf.mxu0
      %6631 = vdwg.mxu0
      %v6632 = vxor.u32 %v6624, 2147483648
      %v6633 = vxor.u32 %v6629, 2147483648
      %v6634 = vmul.f32 %v6632, 1.442695
      %v6635 = vpow.pop %v6634
      %v6636 = vmul.f32 %v6633, 1.442695
      %v6637 = vpow.pop %v6636
      %v6638 = vadd.f32 %v6635, 1.0
      %v6639 = vadd.f32 %v6637, 1.0
      %v6640 = vrcp.pop %v6638
      %v6641 = vmul.f32 1.0, %v6640
      %v6642 = vrcp.pop %v6639
      %v6643 = vmul.f32 1.0, %v6642
      %vm6644 = vcmask 15360
      %6645 = vst.msk [vmem:[%s514] sm:$0xff] %vm6644, %v6641
      %6646 = vst.msk [vmem:[%s514 + $0x8] sm:$0xff] %vm6644, %v6643
      %p6647 = scmp.lt.s32.totalorder %s26, 1
      %s6648 = scalar_select %p6647, %s26, 1
      %s6649 = smul.addr %s6648, 2
      %s6650 = smul.addr %s6649, 8
      %s6651 = scalar_lea.vmem %s15, %s6650
      // Predicated region
      $region81: #{tpu_custom_call.1} parent=79 // pred_check
        %p6652 = pneg %p369
      $region82: #{tpu_custom_call.1} parent=79 // pred_check_branch
        %6654 = sbr.rel (%p6652) target = $region84
      $region83: #{tpu_custom_call.1} parent=79 // pred_region
        _
      $region84: #{tpu_custom_call.1} parent=79 // pred_fallthru
        _
    $region80: #{tpu_custom_call.1} parent=5 // pred_fallthru
      _
    %p6655 = scmp.le.s32.totalorder 2, %s21
    // Predicated region
    $region85: #{tpu_custom_call.1} parent=5 // pred_check
      %p6656 = pneg %p6655
    $region86: #{tpu_custom_call.1} parent=5 // pred_check_branch
      %6658 = sbr.rel (%p6656) target = $region88
    $region87: #{tpu_custom_call.1} parent=5 // pred_region
      %s6659 = ssub.s32 %s21, 2
      // Predicated region
      $region89: #{tpu_custom_call.1} parent=87 // pred_check
        %p6660 = pneg %p375
      $region90: #{tpu_custom_call.1} parent=87 // pred_check_branch
        %6662 = sbr.rel (%p6660) target = $region92
      $region91: #{tpu_custom_call.1} parent=87 // pred_region
        %p6663 = scmp.lt.s32.totalorder %s27, 1
        %s6664 = scalar_select %p6663, %s27, 1
        %s6665 = smul.addr %s6664, 2
        %s6666 = smul.addr %s6665, 8
        %s6667 = scalar_lea.vmem %s15, %s6666
      $region92: #{tpu_custom_call.1} parent=87 // pred_fallthru
        _
    $region88: #{tpu_custom_call.1} parent=5 // pred_fallthru
      _
  $region6: #{tpu_custom_call.1} parent=0 // loop_footer
    %s25 = sadd.s32 1, %s21
  $region7: #{tpu_custom_call.1} parent=0 // loop_footer_branch
    %20 = sbr.rel target = $region3
  $region8: #{tpu_custom_call.1} parent=0 // loop_exit
    _

</llo_original>
